<compile_context>
chip_gen: v7x
topology: tpu7x:2x2x1
jax: 0.10.0
libtpu: 0.0.40
codegen_flags: <defaults>
</compile_context>

<pallas_src>
import functools

import jax
import jax.numpy as jnp
from jax.experimental import pallas as pl
from jax.experimental.pallas import tpu as pltpu


HID1, HID2, HID3 = 500, 500, 2000  # fixed by the module definition


def _round_up(x, m):
    return (x + m - 1) // m * m


def _pad2d(a, rows, cols):
    return jnp.pad(a, ((0, rows - a.shape[0]), (0, cols - a.shape[1])))


def _mlp_kernel(x_ref,
                w1_ref, b1_ref,
                w2_ref, b2_ref,
                w3_ref, b3_ref,
                w4_ref, b4_ref,
                o_ref):
    """Fused 4-layer MLP: (Linear -> ReLU) x3 -> Linear.

    x arrives f32 and is cast to bf16 in-VMEM (no HBM pre-pass).  Every matmul
    runs bf16 x bf16 on the MXU with f32 accumulation.  Layer 1-3 epilogues
    (bias + ReLU) are done in bf16 since the next matmul consumes bf16 anyway;
    the final layer keeps an f32 epilogue and writes f32.
    """
    wdt = w1_ref.dtype  # bf16

    h = jnp.dot(x_ref[...].astype(wdt), w1_ref[...],
                preferred_element_type=jnp.float32)
    h = jnp.maximum(h.astype(wdt) + b1_ref[...], 0)

    h = jnp.dot(h, w2_ref[...], preferred_element_type=jnp.float32)
    h = jnp.maximum(h.astype(wdt) + b2_ref[...], 0)

    h = jnp.dot(h, w3_ref[...], preferred_element_type=jnp.float32)
    h = jnp.maximum(h.astype(wdt) + b3_ref[...], 0)

    h = jnp.dot(h, w4_ref[...], preferred_element_type=jnp.float32)
    o_ref[...] = (h + b4_ref[...]).astype(o_ref.dtype)


def prepare_encoder_params(params, compute_dtype=jnp.bfloat16):
    """One-time pad (output features -> multiples of 128) + bf16 cast.

    Layer-1 weights keep their natural K (= input_dim) so x needs NO feature
    padding or dtype pre-pass at call time; only the batch may be padded.
    Biases of layers 1-3 are bf16 (bf16 epilogue); the layer-4 bias stays f32.
    Returns (padded_param_dict, feature_dim).
    """
    padded = {}
    for idx, name in enumerate(("l1", "l2", "l3", "l4"), start=1):
        w, b = params[name]
        ip = w.shape[0] if idx == 1 else _round_up(w.shape[0], 128)
        op = _round_up(w.shape[1], 128)
        b_dt = compute_dtype if idx < 4 else jnp.float32
        padded[name] = (
            _pad2d(w, ip, op).astype(compute_dtype),        # MXU operand
            _pad2d(b[None, :], 1, op).astype(b_dt),          # bias row
        )
    return padded, int(params["l4"][1].shape[0])


@functools.partial(
    jax.jit, static_argnames=("out_dim", "tm_max", "single_buffer_weights"))
def encoder_forward(x, padded_params, out_dim, tm_max=512,
                    single_buffer_weights=True):
    """x: (B, input_dim) float32. padded_params: from prepare_encoder_params."""
    w1, b1 = padded_params["l1"]
    w2, b2 = padded_params["l2"]
    w3, b3 = padded_params["l3"]
    w4, b4 = padded_params["l4"]

    B, d_in = x.shape
    d_out_p = w4.shape[1]
    assert d_in == w1.shape[0], "input feature dim mismatch with prepared weights"

    # Batch tile: as tall as possible (up to 512).  Fewer grid steps
    # (~0.35us each), bigger x/out DMAs, longer uninterrupted MXU streaming.
    # No forced >=2-step split: v5e/v6e have one TensorCore, and on v7x any
    # batch large enough to matter already yields >=4 steps at tm=512.
    bp8 = _round_up(max(B, 8), 8)
    tm = min(tm_max, bp8)
    bp = _round_up(bp8, tm)
    grid = (bp // tm,)

    # Per call: batch-pad only (zeros), and only when needed.  No feature pad,
    # no dtype cast -> no extra HBM pass over x.
    xp = x if bp == B else jnp.pad(x, ((0, bp - B), (0, 0)))

    buffered_cls = getattr(pl, "Buffered", None)

    def const_spec(shape):
        # Constant block index => loaded into VMEM once, resident across all
        # batch tiles.  Single-buffer it (2nd pipeline buffer is never used),
        # freeing ~3.2 MiB of VMEM.
        if single_buffer_weights and buffered_cls is not None:
            return pl.BlockSpec(shape, lambda i: (0, 0),
                                pipeline_mode=pl.Buffered(1))
        return pl.BlockSpec(shape, lambda i: (0, 0))

    flops = 2 * bp * (d_in * w1.shape[1]
                      + w2.shape[0] * w2.shape[1]
                      + w3.shape[0] * w3.shape[1]
                      + w4.shape[0] * d_out_p)
    weight_bytes = sum(int(a.size) * a.dtype.itemsize
                       for a in (w1, b1, w2, b2, w3, b3, w4, b4))
    bytes_accessed = bp * d_in * 4 + bp * d_out_p * 4 + weight_bytes

    out_p = pl.pallas_call(
        _mlp_kernel,
        out_shape=jax.ShapeDtypeStruct((bp, d_out_p), jnp.float32),
        grid_spec=pltpu.PrefetchScalarGridSpec(
            num_scalar_prefetch=0,
            grid=grid,
            in_specs=[
                pl.BlockSpec((tm, d_in), lambda i: (i, 0)),   # x tile (f32)
                const_spec(w1.shape), const_spec(b1.shape),   # layer 1
                const_spec(w2.shape), const_spec(b2.shape),   # layer 2
                const_spec(w3.shape), const_spec(b3.shape),   # layer 3
                const_spec(w4.shape), const_spec(b4.shape),   # layer 4
            ],
            out_specs=pl.BlockSpec((tm, d_out_p), lambda i: (i, 0)),
        ),
        compiler_params=pltpu.CompilerParams(
            dimension_semantics=("parallel",),
            # ~3.2 MiB resident bf16 weights + tm<=512 activation tiles fit
            # comfortably; 32 MiB also respects v7x's 64 MiB-per-TC VMEM.
            vmem_limit_bytes=32 << 20,
        ),
        cost_estimate=pl.CostEstimate(
            flops=flops, transcendentals=0, bytes_accessed=bytes_accessed),
    )(xp, w1, b1, w2, b2, w3, b3, w4, b4)

    return out_p[:B, :out_dim]


def init_encoder_params(key, input_dim, feature_dim):
    """Deterministic synthetic init (PyTorch-Linear-like uniform fan-in scaling).
    Weights stored as (in_features, out_features) so y = x @ W + b."""
    dims = [(input_dim, HID1), (HID1, HID2), (HID2, HID3), (HID3, feature_dim)]
    params = {}
    for idx, (fan_in, fan_out) in enumerate(dims, start=1):
        key, kw, kb = jax.random.split(key, 3)
        bound = 1.0 / jnp.sqrt(fan_in)
        w = jax.random.uniform(kw, (fan_in, fan_out), jnp.float32, -bound, bound)
        b = jax.random.uniform(kb, (fan_out,), jnp.float32, -bound, bound)
        params[f"l{idx}"] = (w, b)
    return params


def encoder_reference(x, params):
    """Pure f32 JAX reference matching the PyTorch module."""
    h = x
    for name in ("l1", "l2", "l3"):
        w, b = params[name]
        h = jnp.maximum(h @ w + b, 0.0)
    w, b = params["l4"]
    return h @ w + b


if __name__ == "__main__":
    key = jax.random.PRNGKey(0)
    k_x, k_p = jax.random.split(key)

    batch, input_dim, feature_dim = 8, 32, 16
    x = jax.random.normal(k_x, (batch, input_dim), dtype=jnp.float32)
    params = init_encoder_params(k_p, input_dim, feature_dim)

    # One-time weight prep (pad + bf16 cast), hoisted out of the forward path.
    padded_params, out_dim = prepare_encoder_params(params)

    try:
        out = jax.block_until_ready(encoder_forward(x, padded_params, out_dim))
    except Exception:
        # Fallback: default (double-)buffered weight blocks in case this jax
        # build rejects pl.Buffered(1) on constant-index BlockSpecs.
        out = jax.block_until_ready(
            encoder_forward(x, padded_params, out_dim,
                            single_buffer_weights=False))

    ref = encoder_reference(x, params)
    assert out.shape == (batch, feature_dim)
    # bf16 weights/activations on the MXU (f32 accumulation) vs. f32 reference:
    # ~1e-3 absolute error at these magnitudes; 2e-2 gives safe margin.
    assert jnp.allclose(out, ref, atol=2e-2, rtol=2e-2), "mismatch vs. reference"

    print("KERNEL_OK")
</pallas_src>

<mosaic_0001>
module attributes {stable_mosaic.version = 11 : i64} {
  func.func @_mlp_kernel(%arg0: i32, %arg1: memref<8x32xf32, #tpu.memory_space<vmem>>, %arg2: memref<32x512xbf16, #tpu.memory_space<vmem>>, %arg3: memref<1x512xbf16, #tpu.memory_space<vmem>>, %arg4: memref<512x512xbf16, #tpu.memory_space<vmem>>, %arg5: memref<1x512xbf16, #tpu.memory_space<vmem>>, %arg6: memref<512x2048xbf16, #tpu.memory_space<vmem>>, %arg7: memref<1x2048xbf16, #tpu.memory_space<vmem>>, %arg8: memref<2048x128xbf16, #tpu.memory_space<vmem>>, %arg9: memref<1x128xf32, #tpu.memory_space<vmem>>, %arg10: memref<8x128xf32, #tpu.memory_space<vmem>>) attributes {dimension_semantics = [#tpu.dimension_semantics<parallel>], iteration_bounds = array<i64: 1>, scalar_prefetch = 0 : i64, scratch_operands = 0 : i64, tpu.core_type = #tpu.core_type<tc>, window_params = [{transform_indices = @transform_0, window_bounds = array<i64: 8, 32>}, {pipeline_mode = #tpu.pipeline_mode<synchronous>, transform_indices = @transform_1, window_bounds = array<i64: 32, 512>}, {pipeline_mode = #tpu.pipeline_mode<synchronous>, transform_indices = @transform_2, window_bounds = array<i64: 1, 512>}, {pipeline_mode = #tpu.pipeline_mode<synchronous>, transform_indices = @transform_3, window_bounds = array<i64: 512, 512>}, {pipeline_mode = #tpu.pipeline_mode<synchronous>, transform_indices = @transform_4, window_bounds = array<i64: 1, 512>}, {pipeline_mode = #tpu.pipeline_mode<synchronous>, transform_indices = @transform_5, window_bounds = array<i64: 512, 2048>}, {pipeline_mode = #tpu.pipeline_mode<synchronous>, transform_indices = @transform_6, window_bounds = array<i64: 1, 2048>}, {pipeline_mode = #tpu.pipeline_mode<synchronous>, transform_indices = @transform_7, window_bounds = array<i64: 2048, 128>}, {pipeline_mode = #tpu.pipeline_mode<synchronous>, transform_indices = @transform_8, window_bounds = array<i64: 1, 128>}, {transform_indices = @transform_9, window_bounds = array<i64: 8, 128>}]} {
    %c0 = arith.constant 0 : index
    %c0_0 = arith.constant 0 : index
    %0 = vector.load %arg1[%c0, %c0_0] : memref<8x32xf32, #tpu.memory_space<vmem>>, vector<8x32xf32>
    %1 = arith.truncf %0 : vector<8x32xf32> to vector<8x32xbf16>
    %c0_1 = arith.constant 0 : index
    %c0_2 = arith.constant 0 : index
    %2 = vector.load %arg2[%c0_1, %c0_2] : memref<32x512xbf16, #tpu.memory_space<vmem>>, vector<32x512xbf16>
    %cst = arith.constant dense<0.000000e+00> : vector<8x512xf32>
    %3 = tpu.matmul %1, %2, %cst {dimension_numbers = #tpu.dot_dimension_numbers<[1], [0], [0], [1], [0, 0, 1, 1], [], []>} : vector<8x32xbf16>, vector<32x512xbf16>, vector<8x512xf32> -> vector<8x512xf32>
    %4 = arith.truncf %3 : vector<8x512xf32> to vector<8x512xbf16>
    %c0_3 = arith.constant 0 : index
    %c0_4 = arith.constant 0 : index
    %5 = vector.load %arg3[%c0_3, %c0_4] : memref<1x512xbf16, #tpu.memory_space<vmem>>, vector<1x512xbf16>
    %6 = vector.broadcast %5 : vector<1x512xbf16> to vector<8x512xbf16>
    %7 = arith.addf %4, %6 : vector<8x512xbf16>
    %cst_5 = arith.constant 0.000000e+00 : bf16
    %8 = vector.broadcast %cst_5 : bf16 to vector<8x512xbf16>
    %9 = arith.maximumf %7, %8 : vector<8x512xbf16>
    %c0_6 = arith.constant 0 : index
    %c0_7 = arith.constant 0 : index
    %10 = vector.load %arg4[%c0_6, %c0_7] : memref<512x512xbf16, #tpu.memory_space<vmem>>, vector<512x512xbf16>
    %cst_8 = arith.constant dense<0.000000e+00> : vector<8x512xf32>
    %11 = tpu.matmul %9, %10, %cst_8 {dimension_numbers = #tpu.dot_dimension_numbers<[1], [0], [0], [1], [0, 0, 1, 1], [], []>} : vector<8x512xbf16>, vector<512x512xbf16>, vector<8x512xf32> -> vector<8x512xf32>
    %12 = arith.truncf %11 : vector<8x512xf32> to vector<8x512xbf16>
    %c0_9 = arith.constant 0 : index
    %c0_10 = arith.constant 0 : index
    %13 = vector.load %arg5[%c0_9, %c0_10] : memref<1x512xbf16, #tpu.memory_space<vmem>>, vector<1x512xbf16>
    %14 = vector.broadcast %13 : vector<1x512xbf16> to vector<8x512xbf16>
    %15 = arith.addf %12, %14 : vector<8x512xbf16>
    %cst_11 = arith.constant 0.000000e+00 : bf16
    %16 = vector.broadcast %cst_11 : bf16 to vector<8x512xbf16>
    %17 = arith.maximumf %15, %16 : vector<8x512xbf16>
    %c0_12 = arith.constant 0 : index
    %c0_13 = arith.constant 0 : index
    %18 = vector.load %arg6[%c0_12, %c0_13] : memref<512x2048xbf16, #tpu.memory_space<vmem>>, vector<512x2048xbf16>
    %cst_14 = arith.constant dense<0.000000e+00> : vector<8x2048xf32>
    %19 = tpu.matmul %17, %18, %cst_14 {dimension_numbers = #tpu.dot_dimension_numbers<[1], [0], [0], [1], [0, 0, 1, 1], [], []>} : vector<8x512xbf16>, vector<512x2048xbf16>, vector<8x2048xf32> -> vector<8x2048xf32>
    %20 = arith.truncf %19 : vector<8x2048xf32> to vector<8x2048xbf16>
    %c0_15 = arith.constant 0 : index
    %c0_16 = arith.constant 0 : index
    %21 = vector.load %arg7[%c0_15, %c0_16] : memref<1x2048xbf16, #tpu.memory_space<vmem>>, vector<1x2048xbf16>
    %22 = vector.broadcast %21 : vector<1x2048xbf16> to vector<8x2048xbf16>
    %23 = arith.addf %20, %22 : vector<8x2048xbf16>
    %cst_17 = arith.constant 0.000000e+00 : bf16
    %24 = vector.broadcast %cst_17 : bf16 to vector<8x2048xbf16>
    %25 = arith.maximumf %23, %24 : vector<8x2048xbf16>
    %c0_18 = arith.constant 0 : index
    %c0_19 = arith.constant 0 : index
    %26 = vector.load %arg8[%c0_18, %c0_19] : memref<2048x128xbf16, #tpu.memory_space<vmem>>, vector<2048x128xbf16>
    %cst_20 = arith.constant dense<0.000000e+00> : vector<8x128xf32>
    %27 = tpu.matmul %25, %26, %cst_20 {dimension_numbers = #tpu.dot_dimension_numbers<[1], [0], [0], [1], [0, 0, 1, 1], [], []>} : vector<8x2048xbf16>, vector<2048x128xbf16>, vector<8x128xf32> -> vector<8x128xf32>
    %c0_21 = arith.constant 0 : index
    %c0_22 = arith.constant 0 : index
    %28 = vector.load %arg9[%c0_21, %c0_22] : memref<1x128xf32, #tpu.memory_space<vmem>>, vector<1x128xf32>
    %29 = vector.broadcast %28 : vector<1x128xf32> to vector<8x128xf32>
    %30 = arith.addf %27, %29 : vector<8x128xf32>
    %c0_23 = arith.constant 0 : index
    %c0_24 = arith.constant 0 : index
    %31 = vector.load %arg10[%c0_23, %c0_24] : memref<8x128xf32, #tpu.memory_space<vmem>>, vector<8x128xf32>
    tpu.vector_store %arg10[%c0_23, %c0_24], %30 {strides = array<i32>} : memref<8x128xf32, #tpu.memory_space<vmem>>, vector<8x128xf32>,
    return
  }
  func.func @transform_0(%arg0: i32) -> (i32, i32) {
    %c0_i32 = arith.constant 0 : i32
    %c0_i32_0 = arith.constant 0 : i32
    return %arg0, %c0_i32 : i32, i32
  }
  func.func @transform_1(%arg0: i32) -> (i32, i32) {
    %c0_i32 = arith.constant 0 : i32
    %c0_i32_0 = arith.constant 0 : i32
    %c0_i32_1 = arith.constant 0 : i32
    return %c0_i32, %c0_i32_0 : i32, i32
  }
  func.func @transform_2(%arg0: i32) -> (i32, i32) {
    %c0_i32 = arith.constant 0 : i32
    %c0_i32_0 = arith.constant 0 : i32
    %c0_i32_1 = arith.constant 0 : i32
    return %c0_i32, %c0_i32_0 : i32, i32
  }
  func.func @transform_3(%arg0: i32) -> (i32, i32) {
    %c0_i32 = arith.constant 0 : i32
    %c0_i32_0 = arith.constant 0 : i32
    %c0_i32_1 = arith.constant 0 : i32
    return %c0_i32, %c0_i32_0 : i32, i32
  }
  func.func @transform_4(%arg0: i32) -> (i32, i32) {
    %c0_i32 = arith.constant 0 : i32
    %c0_i32_0 = arith.constant 0 : i32
    %c0_i32_1 = arith.constant 0 : i32
    return %c0_i32, %c0_i32_0 : i32, i32
  }
  func.func @transform_5(%arg0: i32) -> (i32, i32) {
    %c0_i32 = arith.constant 0 : i32
    %c0_i32_0 = arith.constant 0 : i32
    %c0_i32_1 = arith.constant 0 : i32
    return %c0_i32, %c0_i32_0 : i32, i32
  }
  func.func @transform_6(%arg0: i32) -> (i32, i32) {
    %c0_i32 = arith.constant 0 : i32
    %c0_i32_0 = arith.constant 0 : i32
    %c0_i32_1 = arith.constant 0 : i32
    return %c0_i32, %c0_i32_0 : i32, i32
  }
  func.func @transform_7(%arg0: i32) -> (i32, i32) {
    %c0_i32 = arith.constant 0 : i32
    %c0_i32_0 = arith.constant 0 : i32
    %c0_i32_1 = arith.constant 0 : i32
    return %c0_i32, %c0_i32_0 : i32, i32
  }
  func.func @transform_8(%arg0: i32) -> (i32, i32) {
    %c0_i32 = arith.constant 0 : i32
    %c0_i32_0 = arith.constant 0 : i32
    %c0_i32_1 = arith.constant 0 : i32
    return %c0_i32, %c0_i32_0 : i32, i32
  }
  func.func @transform_9(%arg0: i32) -> (i32, i32) {
    %c0_i32 = arith.constant 0 : i32
    %c0_i32_0 = arith.constant 0 : i32
    return %arg0, %c0_i32 : i32, i32
  }
}

module attributes {stable_mosaic.version = 11 : i64} {
  func.func @_mlp_kernel(%arg0: i32, %arg1: memref<8x32xf32, #tpu.memory_space<vmem>>, %arg2: memref<32x512xbf16, #tpu.memory_space<vmem>>, %arg3: memref<1x512xbf16, #tpu.memory_space<vmem>>, %arg4: memref<512x512xbf16, #tpu.memory_space<vmem>>, %arg5: memref<1x512xbf16, #tpu.memory_space<vmem>>, %arg6: memref<512x2048xbf16, #tpu.memory_space<vmem>>, %arg7: memref<1x2048xbf16, #tpu.memory_space<vmem>>, %arg8: memref<2048x128xbf16, #tpu.memory_space<vmem>>, %arg9: memref<1x128xf32, #tpu.memory_space<vmem>>, %arg10: memref<8x128xf32, #tpu.memory_space<vmem>>) attributes {dimension_semantics = [#tpu.dimension_semantics<parallel>], iteration_bounds = array<i64: 1>, scalar_prefetch = 0 : i64, scratch_operands = 0 : i64, tpu.core_type = #tpu.core_type<tc>, window_params = [{transform_indices = @transform_0, window_bounds = array<i64: 8, 32>}, {pipeline_mode = #tpu.pipeline_mode<synchronous>, transform_indices = @transform_1, window_bounds = array<i64: 32, 512>}, {pipeline_mode = #tpu.pipeline_mode<synchronous>, transform_indices = @transform_2, window_bounds = array<i64: 1, 512>}, {pipeline_mode = #tpu.pipeline_mode<synchronous>, transform_indices = @transform_3, window_bounds = array<i64: 512, 512>}, {pipeline_mode = #tpu.pipeline_mode<synchronous>, transform_indices = @transform_4, window_bounds = array<i64: 1, 512>}, {pipeline_mode = #tpu.pipeline_mode<synchronous>, transform_indices = @transform_5, window_bounds = array<i64: 512, 2048>}, {pipeline_mode = #tpu.pipeline_mode<synchronous>, transform_indices = @transform_6, window_bounds = array<i64: 1, 2048>}, {pipeline_mode = #tpu.pipeline_mode<synchronous>, transform_indices = @transform_7, window_bounds = array<i64: 2048, 128>}, {pipeline_mode = #tpu.pipeline_mode<synchronous>, transform_indices = @transform_8, window_bounds = array<i64: 1, 128>}, {transform_indices = @transform_9, window_bounds = array<i64: 8, 128>}]} {
    %c0 = arith.constant 0 : index
    %c0_0 = arith.constant 0 : index
    %0 = vector.load %arg1[%c0, %c0_0] : memref<8x32xf32, #tpu.memory_space<vmem>>, vector<8x32xf32>
    %1 = arith.truncf %0 : vector<8x32xf32> to vector<8x32xbf16>
    %c0_1 = arith.constant 0 : index
    %c0_2 = arith.constant 0 : index
    %2 = vector.load %arg2[%c0_1, %c0_2] : memref<32x512xbf16, #tpu.memory_space<vmem>>, vector<32x512xbf16>
    %cst = arith.constant dense<0.000000e+00> : vector<8x512xf32>
    %3 = tpu.matmul %1, %2, %cst {dimension_numbers = #tpu.dot_dimension_numbers<[1], [0], [0], [1], [0, 0, 1, 1], [], []>} : vector<8x32xbf16>, vector<32x512xbf16>, vector<8x512xf32> -> vector<8x512xf32>
    %4 = arith.truncf %3 : vector<8x512xf32> to vector<8x512xbf16>
    %c0_3 = arith.constant 0 : index
    %c0_4 = arith.constant 0 : index
    %5 = vector.load %arg3[%c0_3, %c0_4] : memref<1x512xbf16, #tpu.memory_space<vmem>>, vector<1x512xbf16>
    %6 = vector.broadcast %5 : vector<1x512xbf16> to vector<8x512xbf16>
    %7 = arith.addf %4, %6 : vector<8x512xbf16>
    %cst_5 = arith.constant 0.000000e+00 : bf16
    %8 = vector.broadcast %cst_5 : bf16 to vector<8x512xbf16>
    %9 = arith.maximumf %7, %8 : vector<8x512xbf16>
    %c0_6 = arith.constant 0 : index
    %c0_7 = arith.constant 0 : index
    %10 = vector.load %arg4[%c0_6, %c0_7] : memref<512x512xbf16, #tpu.memory_space<vmem>>, vector<512x512xbf16>
    %cst_8 = arith.constant dense<0.000000e+00> : vector<8x512xf32>
    %11 = tpu.matmul %9, %10, %cst_8 {dimension_numbers = #tpu.dot_dimension_numbers<[1], [0], [0], [1], [0, 0, 1, 1], [], []>} : vector<8x512xbf16>, vector<512x512xbf16>, vector<8x512xf32> -> vector<8x512xf32>
    %12 = arith.truncf %11 : vector<8x512xf32> to vector<8x512xbf16>
    %c0_9 = arith.constant 0 : index
    %c0_10 = arith.constant 0 : index
    %13 = vector.load %arg5[%c0_9, %c0_10] : memref<1x512xbf16, #tpu.memory_space<vmem>>, vector<1x512xbf16>
    %14 = vector.broadcast %13 : vector<1x512xbf16> to vector<8x512xbf16>
    %15 = arith.addf %12, %14 : vector<8x512xbf16>
    %cst_11 = arith.constant 0.000000e+00 : bf16
    %16 = vector.broadcast %cst_11 : bf16 to vector<8x512xbf16>
    %17 = arith.maximumf %15, %16 : vector<8x512xbf16>
    %c0_12 = arith.constant 0 : index
    %c0_13 = arith.constant 0 : index
    %18 = vector.load %arg6[%c0_12, %c0_13] : memref<512x2048xbf16, #tpu.memory_space<vmem>>, vector<512x2048xbf16>
    %cst_14 = arith.constant dense<0.000000e+00> : vector<8x2048xf32>
    %19 = tpu.matmul %17, %18, %cst_14 {dimension_numbers = #tpu.dot_dimension_numbers<[1], [0], [0], [1], [0, 0, 1, 1], [], []>} : vector<8x512xbf16>, vector<512x2048xbf16>, vector<8x2048xf32> -> vector<8x2048xf32>
    %20 = arith.truncf %19 : vector<8x2048xf32> to vector<8x2048xbf16>
    %c0_15 = arith.constant 0 : index
    %c0_16 = arith.constant 0 : index
    %21 = vector.load %arg7[%c0_15, %c0_16] : memref<1x2048xbf16, #tpu.memory_space<vmem>>, vector<1x2048xbf16>
    %22 = vector.broadcast %21 : vector<1x2048xbf16> to vector<8x2048xbf16>
    %23 = arith.addf %20, %22 : vector<8x2048xbf16>
    %cst_17 = arith.constant 0.000000e+00 : bf16
    %24 = vector.broadcast %cst_17 : bf16 to vector<8x2048xbf16>
    %25 = arith.maximumf %23, %24 : vector<8x2048xbf16>
    %c0_18 = arith.constant 0 : index
    %c0_19 = arith.constant 0 : index
    %26 = vector.load %arg8[%c0_18, %c0_19] : memref<2048x128xbf16, #tpu.memory_space<vmem>>, vector<2048x128xbf16>
    %cst_20 = arith.constant dense<0.000000e+00> : vector<8x128xf32>
    %27 = tpu.matmul %25, %26, %cst_20 {dimension_numbers = #tpu.dot_dimension_numbers<[1], [0], [0], [1], [0, 0, 1, 1], [], []>} : vector<8x2048xbf16>, vector<2048x128xbf16>, vector<8x128xf32> -> vector<8x128xf32>
    %c0_21 = arith.constant 0 : index
    %c0_22 = arith.constant 0 : index
    %28 = vector.load %arg9[%c0_21, %c0_22] : memref<1x128xf32, #tpu.memory_space<vmem>>, vector<1x128xf32>
    %29 = vector.broadcast %28 : vector<1x128xf32> to vector<8x128xf32>
    %30 = arith.addf %27, %29 : vector<8x128xf32>
    %c0_23 = arith.constant 0 : index
    %c0_24 = arith.constant 0 : index
    %31 = vector.load %arg10[%c0_23, %c0_24] : memref<8x128xf32, #tpu.memory_space<vmem>>, vector<8x128xf32>
    tpu.vector_store %arg10[%c0_23, %c0_24], %30 {strides = array<i32>} : memref<8x128xf32, #tpu.memory_space<vmem>>, vector<8x128xf32>,
    return
  }
  func.func @transform_0(%arg0: i32) -> (i32, i32) {
    %c0_i32 = arith.constant 0 : i32
    %c0_i32_0 = arith.constant 0 : i32
    return %arg0, %c0_i32 : i32, i32
  }
  func.func @transform_1(%arg0: i32) -> (i32, i32) {
    %c0_i32 = arith.constant 0 : i32
    %c0_i32_0 = arith.constant 0 : i32
    %c0_i32_1 = arith.constant 0 : i32
    return %c0_i32, %c0_i32_0 : i32, i32
  }
  func.func @transform_2(%arg0: i32) -> (i32, i32) {
    %c0_i32 = arith.constant 0 : i32
    %c0_i32_0 = arith.constant 0 : i32
    %c0_i32_1 = arith.constant 0 : i32
    return %c0_i32, %c0_i32_0 : i32, i32
  }
  func.func @transform_3(%arg0: i32) -> (i32, i32) {
    %c0_i32 = arith.constant 0 : i32
    %c0_i32_0 = arith.constant 0 : i32
    %c0_i32_1 = arith.constant 0 : i32
    return %c0_i32, %c0_i32_0 : i32, i32
  }
  func.func @transform_4(%arg0: i32) -> (i32, i32) {
    %c0_i32 = arith.constant 0 : i32
    %c0_i32_0 = arith.constant 0 : i32
    %c0_i32_1 = arith.constant 0 : i32
    return %c0_i32, %c0_i32_0 : i32, i32
  }
  func.func @transform_5(%arg0: i32) -> (i32, i32) {
    %c0_i32 = arith.constant 0 : i32
    %c0_i32_0 = arith.constant 0 : i32
    %c0_i32_1 = arith.constant 0 : i32
    return %c0_i32, %c0_i32_0 : i32, i32
  }
  func.func @transform_6(%arg0: i32) -> (i32, i32) {
    %c0_i32 = arith.constant 0 : i32
    %c0_i32_0 = arith.constant 0 : i32
    %c0_i32_1 = arith.constant 0 : i32
    return %c0_i32, %c0_i32_0 : i32, i32
  }
  func.func @transform_7(%arg0: i32) -> (i32, i32) {
    %c0_i32 = arith.constant 0 : i32
    %c0_i32_0 = arith.constant 0 : i32
    %c0_i32_1 = arith.constant 0 : i32
    return %c0_i32, %c0_i32_0 : i32, i32
  }
  func.func @transform_8(%arg0: i32) -> (i32, i32) {
    %c0_i32 = arith.constant 0 : i32
    %c0_i32_0 = arith.constant 0 : i32
    %c0_i32_1 = arith.constant 0 : i32
    return %c0_i32, %c0_i32_0 : i32, i32
  }
  func.func @transform_9(%arg0: i32) -> (i32, i32) {
    %c0_i32 = arith.constant 0 : i32
    %c0_i32_0 = arith.constant 0 : i32
    return %arg0, %c0_i32 : i32, i32
  }
}

</mosaic_0001>

<llo_original>
// kernel: encoder_forward.1
$region0: #{encoder_forward.1}
  #allocation0 [shape = 'u32[]', space=smem, size = 0x4, offset = 0x4, fixed_abs, tag = 'smem constant byte address 0x4 - core index']
  #allocation1 [shape = 'u32[144,128]{1,0:T(1,128)}', space=vmem, size = 0x12000, scoped, tag = 'internal scratch']
  %s0 = inlined_call_operand.hbm [shape: f32[8,32], index: 0, kind: input, shape index: {}]
  %s1 = inlined_call_operand.hbm [shape: bf16[32,512], index: 1, kind: input, shape index: {}]
  %s2 = inlined_call_operand.hbm [shape: bf16[1,512], index: 2, kind: input, shape index: {}]
  %s3 = inlined_call_operand.hbm [shape: bf16[512,512], index: 3, kind: input, shape index: {}]
  %s4 = inlined_call_operand.hbm [shape: bf16[1,512], index: 4, kind: input, shape index: {}]
  %s5 = inlined_call_operand.hbm [shape: bf16[512,2048], index: 5, kind: input, shape index: {}]
  %s6 = inlined_call_operand.hbm [shape: bf16[1,2048], index: 6, kind: input, shape index: {}]
  %s7 = inlined_call_operand.hbm [shape: bf16[2048,128], index: 7, kind: input, shape index: {}]
  %s8 = inlined_call_operand.hbm [shape: f32[1,128], index: 8, kind: input, shape index: {}]
  %s9 = inlined_call_operand.hbm [shape: f32[8,128], index: 9, kind: output, shape index: {}]
  %s10 = sld [smem:[#allocation0]]
  $region82: #{encoder_forward.1} parent=0
    _
  %s12 = ssub.s32 1, %s10
  %s13 = scalar_select 0, %s12, %s10
  $region1: #{encoder_forward.1} parent=0
    #allocation2 [shape = 'u8[4096]{0}', space=vmem, size = 0x1000, scoped, tag = 'input window, operand 0, single buffered']
    #allocation3 [shape = 's32[1]{0}', space=sflag, size = 0x4, scoped, tag = 'scoped memory for encoder_forward.1']
    #allocation4 [shape = 's32[1]{0}', space=sflag, size = 0x4, scoped, tag = 'scoped memory for encoder_forward.1']
    #allocation5 [shape = 'u8[32768]{0}', space=vmem, size = 0x8000, scoped, tag = 'input window, operand 1, single buffered']
    #allocation6 [shape = 's32[1]{0}', space=sflag, size = 0x4, scoped, tag = 'scoped memory for encoder_forward.1']
    #allocation7 [shape = 'u8[2048]{0}', space=vmem, size = 0x800, scoped, tag = 'input window, operand 2, single buffered']
    #allocation8 [shape = 'u8[524288]{0}', space=vmem, size = 0x80000, scoped, tag = 'input window, operand 3, single buffered']
    #allocation9 [shape = 's32[1]{0}', space=sflag, size = 0x4, scoped, tag = 'scoped memory for encoder_forward.1']
    #allocation10 [shape = 'u8[2048]{0}', space=vmem, size = 0x800, scoped, tag = 'input window, operand 4, single buffered']
    #allocation11 [shape = 'u8[2097152]{0}', space=vmem, size = 0x200000, scoped, tag = 'input window, operand 5, single buffered']
    #allocation12 [shape = 's32[1]{0}', space=sflag, size = 0x4, scoped, tag = 'scoped memory for encoder_forward.1']
    #allocation13 [shape = 'u8[8192]{0}', space=vmem, size = 0x2000, scoped, tag = 'input window, operand 6, single buffered']
    #allocation14 [shape = 'u8[524288]{0}', space=vmem, size = 0x80000, scoped, tag = 'input window, operand 7, single buffered']
    #allocation15 [shape = 's32[1]{0}', space=sflag, size = 0x4, scoped, tag = 'scoped memory for encoder_forward.1']
    #allocation16 [shape = 'u8[512]{0}', space=vmem, size = 0x400, scoped, tag = 'input window, operand 8, single buffered']
    #allocation17 [shape = 'u8[4096]{0}', space=vmem, size = 0x1000, scoped, tag = 'output window, operand 0, single buffered']
    %14 = vsyncpa [#allocation3], 0
    %15 = vsyncpa [#allocation6], 0
    %16 = vsyncpa [#allocation9], 0
    %17 = vsyncpa [#allocation12], 0
    %18 = vsyncpa [#allocation15], 0
    %19 = vsyncpa [#allocation4], 0
    // Predicated region
    $region2: #{encoder_forward.1} parent=1 // pred_check
      _
    $region3: #{encoder_forward.1} parent=1 // pred_check_branch
      %21 = sbr.rel (0) target = $region5
    $region4: #{encoder_forward.1} parent=1 // pred_region
      %s23 = ssub.s32 128, 128
      %24 = vsyncadd [#allocation3], %s23
      %s26 = sshll.u32 [#allocation2], 4
      %s27 = int_to_ptr.vmem [resolvable:$true] %s26
      %29 = dma.hbm_to_vmem [thread:$0]  %s0, 128, %s27, [#allocation3]
    $region5: #{encoder_forward.1} parent=1 // pred_fallthru
      _
    // Predicated region
    $region6: #{encoder_forward.1} parent=1 // pred_check
      _
    $region7: #{encoder_forward.1} parent=1 // pred_check_branch
      %31 = sbr.rel (0) target = $region9
    $region8: #{encoder_forward.1} parent=1 // pred_region
      %s33 = ssub.s32 1024, 1024
      %34 = vsyncadd [#allocation6], %s33
      %s35 = sshll.u32 [#allocation5], 4
      %s36 = int_to_ptr.vmem [resolvable:$true] %s35
      %41 = dma.hbm_to_vmem [thread:$0]  %s1, 1024, %s36, [#allocation6], 256, 256, 16
    $region9: #{encoder_forward.1} parent=1 // pred_fallthru
      _
    // Predicated region
    $region10: #{encoder_forward.1} parent=1 // pred_check
      _
    $region11: #{encoder_forward.1} parent=1 // pred_check_branch
      %43 = sbr.rel (0) target = $region13
    $region12: #{encoder_forward.1} parent=1 // pred_region
      %s45 = ssub.s32 64, 64
      %46 = vsyncadd [#allocation6], %s45
      %s48 = sshll.u32 [#allocation7], 4
      %s49 = int_to_ptr.vmem [resolvable:$true] %s48
      %51 = dma.hbm_to_vmem [thread:$0]  %s2, 64, %s49, [#allocation6]
    $region13: #{encoder_forward.1} parent=1 // pred_fallthru
      _
    // Predicated region
    $region14: #{encoder_forward.1} parent=1 // pred_check
      _
    $region15: #{encoder_forward.1} parent=1 // pred_check_branch
      %53 = sbr.rel (0) target = $region17
    $region16: #{encoder_forward.1} parent=1 // pred_region
      %s55 = ssub.s32 16384, 16384
      %56 = vsyncadd [#allocation9], %s55
      %s57 = sshll.u32 [#allocation8], 4
      %s58 = int_to_ptr.vmem [resolvable:$true] %s57
      %63 = dma.hbm_to_vmem [thread:$0]  %s3, 16384, %s58, [#allocation9], 256, 256, 16
    $region17: #{encoder_forward.1} parent=1 // pred_fallthru
      _
    // Predicated region
    $region18: #{encoder_forward.1} parent=1 // pred_check
      _
    $region19: #{encoder_forward.1} parent=1 // pred_check_branch
      %65 = sbr.rel (0) target = $region21
    $region20: #{encoder_forward.1} parent=1 // pred_region
      %s67 = ssub.s32 64, 64
      %68 = vsyncadd [#allocation9], %s67
      %s70 = sshll.u32 [#allocation10], 4
      %s71 = int_to_ptr.vmem [resolvable:$true] %s70
      %73 = dma.hbm_to_vmem [thread:$0]  %s4, 64, %s71, [#allocation9]
    $region21: #{encoder_forward.1} parent=1 // pred_fallthru
      _
    // Predicated region
    $region22: #{encoder_forward.1} parent=1 // pred_check
      _
    $region23: #{encoder_forward.1} parent=1 // pred_check_branch
      %75 = sbr.rel (0) target = $region25
    $region24: #{encoder_forward.1} parent=1 // pred_region
      %s77 = ssub.s32 65536, 65536
      %78 = vsyncadd [#allocation12], %s77
      %s79 = sshll.u32 [#allocation11], 4
      %s80 = int_to_ptr.vmem [resolvable:$true] %s79
      %85 = dma.hbm_to_vmem [thread:$0]  %s5, 65536, %s80, [#allocation12], 1024, 1024, 64
    $region25: #{encoder_forward.1} parent=1 // pred_fallthru
      _
    // Predicated region
    $region26: #{encoder_forward.1} parent=1 // pred_check
      _
    $region27: #{encoder_forward.1} parent=1 // pred_check_branch
      %87 = sbr.rel (0) target = $region29
    $region28: #{encoder_forward.1} parent=1 // pred_region
      %s89 = ssub.s32 256, 256
      %90 = vsyncadd [#allocation12], %s89
      %s92 = sshll.u32 [#allocation13], 4
      %s93 = int_to_ptr.vmem [resolvable:$true] %s92
      %95 = dma.hbm_to_vmem [thread:$0]  %s6, 256, %s93, [#allocation12]
    $region29: #{encoder_forward.1} parent=1 // pred_fallthru
      _
    // Predicated region
    $region30: #{encoder_forward.1} parent=1 // pred_check
      _
    $region31: #{encoder_forward.1} parent=1 // pred_check_branch
      %97 = sbr.rel (0) target = $region33
    $region32: #{encoder_forward.1} parent=1 // pred_region
      %s99 = ssub.s32 16384, 16384
      %100 = vsyncadd [#allocation15], %s99
      %s101 = sshll.u32 [#allocation14], 4
      %s102 = int_to_ptr.vmem [resolvable:$true] %s101
      %107 = dma.hbm_to_vmem [thread:$0]  %s7, 16384, %s102, [#allocation15], 64, 64, 4
    $region33: #{encoder_forward.1} parent=1 // pred_fallthru
      _
    // Predicated region
    $region34: #{encoder_forward.1} parent=1 // pred_check
      _
    $region35: #{encoder_forward.1} parent=1 // pred_check_branch
      %109 = sbr.rel (0) target = $region37
    $region36: #{encoder_forward.1} parent=1 // pred_region
      %s111 = ssub.s32 16, 16
      %112 = vsyncadd [#allocation15], %s111
      %s114 = sshll.u32 [#allocation16], 4
      %s115 = int_to_ptr.vmem [resolvable:$true] %s114
      %117 = dma.hbm_to_vmem [thread:$0]  %s8, 16, %s115, [#allocation15]
    $region37: #{encoder_forward.1} parent=1 // pred_fallthru
      _
    // Predicated region
    $region38: #{encoder_forward.1} parent=1 // pred_check
      _
    $region39: #{encoder_forward.1} parent=1 // pred_check_branch
      %119 = sbr.rel (0) target = $region41
    $region40: #{encoder_forward.1} parent=1 // pred_region
      %120 = dma.done [#allocation3], 128
    $region41: #{encoder_forward.1} parent=1 // pred_fallthru
      _
    // Predicated region
    $region42: #{encoder_forward.1} parent=1 // pred_check
      _
    $region43: #{encoder_forward.1} parent=1 // pred_check_branch
      %122 = sbr.rel (0) target = $region45
    $region44: #{encoder_forward.1} parent=1 // pred_region
      %123 = dma.done [#allocation6], 1024
    $region45: #{encoder_forward.1} parent=1 // pred_fallthru
      _
    // Predicated region
    $region46: #{encoder_forward.1} parent=1 // pred_check
      _
    $region47: #{encoder_forward.1} parent=1 // pred_check_branch
      %125 = sbr.rel (0) target = $region49
    $region48: #{encoder_forward.1} parent=1 // pred_region
      %126 = dma.done [#allocation6], 64
    $region49: #{encoder_forward.1} parent=1 // pred_fallthru
      _
    // Predicated region
    $region50: #{encoder_forward.1} parent=1 // pred_check
      _
    $region51: #{encoder_forward.1} parent=1 // pred_check_branch
      %128 = sbr.rel (0) target = $region53
    $region52: #{encoder_forward.1} parent=1 // pred_region
      %129 = dma.done [#allocation9], 16384
    $region53: #{encoder_forward.1} parent=1 // pred_fallthru
      _
    // Predicated region
    $region54: #{encoder_forward.1} parent=1 // pred_check
      _
    $region55: #{encoder_forward.1} parent=1 // pred_check_branch
      %131 = sbr.rel (0) target = $region57
    $region56: #{encoder_forward.1} parent=1 // pred_region
      %132 = dma.done [#allocation9], 64
    $region57: #{encoder_forward.1} parent=1 // pred_fallthru
      _
    // Predicated region
    $region58: #{encoder_forward.1} parent=1 // pred_check
      _
    $region59: #{encoder_forward.1} parent=1 // pred_check_branch
      %134 = sbr.rel (0) target = $region61
    $region60: #{encoder_forward.1} parent=1 // pred_region
      %135 = dma.done [#allocation12], 65536
    $region61: #{encoder_forward.1} parent=1 // pred_fallthru
      _
    // Predicated region
    $region62: #{encoder_forward.1} parent=1 // pred_check
      _
    $region63: #{encoder_forward.1} parent=1 // pred_check_branch
      %137 = sbr.rel (0) target = $region65
    $region64: #{encoder_forward.1} parent=1 // pred_region
      %138 = dma.done [#allocation12], 256
    $region65: #{encoder_forward.1} parent=1 // pred_fallthru
      _
    // Predicated region
    $region66: #{encoder_forward.1} parent=1 // pred_check
      _
    $region67: #{encoder_forward.1} parent=1 // pred_check_branch
      %140 = sbr.rel (0) target = $region69
    $region68: #{encoder_forward.1} parent=1 // pred_region
      %141 = dma.done [#allocation15], 16384
    $region69: #{encoder_forward.1} parent=1 // pred_fallthru
      _
    // Predicated region
    $region70: #{encoder_forward.1} parent=1 // pred_check
      _
    $region71: #{encoder_forward.1} parent=1 // pred_check_branch
      %143 = sbr.rel (0) target = $region73
    $region72: #{encoder_forward.1} parent=1 // pred_region
      %144 = dma.done [#allocation15], 16
    $region73: #{encoder_forward.1} parent=1 // pred_fallthru
      _
    %v146 = vld [vmem:[#allocation2] sm:$0xff]
    %v147 = vpack.c.bf16 %v146, %v146
    %v148 = vld [vmem:[#allocation5] sm:$0xff]
    %v149 = vld [vmem:[#allocation5 + $0x8] sm:$0xff]
    %v150 = vld [vmem:[#allocation5 + $0x10] sm:$0xff]
    %v151 = vld [vmem:[#allocation5 + $0x18] sm:$0xff]
    %v152 = vld [vmem:[#allocation5 + $0x20] sm:$0xff]
    %v153 = vld [vmem:[#allocation5 + $0x28] sm:$0xff]
    %v154 = vld [vmem:[#allocation5 + $0x30] sm:$0xff]
    %v155 = vld [vmem:[#allocation5 + $0x38] sm:$0xff]
    %v164 = vunpack.c.l.b16 %v148
    %v165 = vunpack.c.h.b16 %v148
    %v166 = vunpack.c.l.b16 %v149
    %v167 = vunpack.c.h.b16 %v149
    %v168 = vunpack.c.l.b16 %v150
    %v169 = vunpack.c.h.b16 %v150
    %v170 = vunpack.c.l.b16 %v151
    %v171 = vunpack.c.h.b16 %v151
    %v172 = vunpack.c.l.b16 %v152
    %v173 = vunpack.c.h.b16 %v152
    %v174 = vunpack.c.l.b16 %v153
    %v175 = vunpack.c.h.b16 %v153
    %v176 = vunpack.c.l.b16 %v154
    %v177 = vunpack.c.h.b16 %v154
    %v178 = vunpack.c.l.b16 %v155
    %v179 = vunpack.c.h.b16 %v155
    %v180 = vpack.c.b16 %v168, %v164
    %v181 = vpack.c.b16 %v169, %v165
    %v182 = vpack.c.b16 %v170, %v166
    %v183 = vpack.c.b16 %v171, %v167
    %v184 = vpack.c.b16 %v176, %v172
    %v185 = vpack.c.b16 %v177, %v173
    %v186 = vpack.c.b16 %v178, %v174
    %v187 = vpack.c.b16 %v179, %v175
    %vm196 = vcmask 261120
    %v198 = vsel %vm196, %v147, 0
    %200 = vmatprep.subr.bf16.mxu0 %v181
    %201 = vmatpush1.bf16.msra.mxu0 %v180
    %202 = vmatprep.subr.bf16.mxu0 %v185
    %203 = vmatpush1.bf16.msra.mxu0 %v184
    %204 = vmatprep.subr.bf16.mxu0 0
    %205 = vmatpush1.bf16.msra.mxu0 0
    %206 = vmatprep.subr.bf16.mxu0 0
    %207 = vmatpush1.bf16.msra.mxu0 0
    %208 = vmatprep.subr.bf16.mxu0 0
    %209 = vmatpush1.bf16.msra.mxu0 0
    %210 = vmatprep.subr.bf16.mxu0 0
    %211 = vmatpush1.bf16.msra.mxu0 0
    %212 = vmatprep.subr.bf16.mxu0 0
    %213 = vmatpush1.bf16.msra.mxu0 0
    %214 = vmatprep.subr.bf16.mxu0 0
    %215 = vmatpush1.bf16.msra.mxu0 0
    %216 = vmatprep.subr.bf16.mxu0 0
    %217 = vmatpush1.bf16.msra.mxu0 0
    %218 = vmatprep.subr.bf16.mxu0 0
    %219 = vmatpush1.bf16.msra.mxu0 0
    %220 = vmatprep.subr.bf16.mxu0 0
    %221 = vmatpush1.bf16.msra.mxu0 0
    %222 = vmatprep.subr.bf16.mxu0 0
    %223 = vmatpush1.bf16.msra.mxu0 0
    %224 = vmatprep.subr.bf16.mxu0 0
    %225 = vmatpush1.bf16.msra.mxu0 0
    %226 = vmatprep.subr.bf16.mxu0 0
    %227 = vmatpush1.bf16.msra.mxu0 0
    %228 = vmatprep.subr.bf16.mxu0 0
    %229 = vmatpush1.bf16.msra.mxu0 0
    %230 = vmatprep.subr.bf16.mxu0 0
    %231 = vmatpush1.bf16.msra.mxu0 0
    %232 = vmatprep.mubr.bf16.mxu0 0
    %233 = vmatmul.mubr.bf16.gmra.mrb[0].mxu0 %v198
    %v234 = vpop.f32.mrb[0].mxu0
    %v235 = vadd.f32 0.0, %v234
    %v236 = vpop.f32.mrb[0].mxu0
    %v237 = vadd.f32 0.0, %v236
    %v238 = vpop.f32.mrb[0].mxu0
    %v239 = vpop.f32.mrb[0].mxu0
    %240 = vdwg.mxu0
    %241 = vmatprep.subr.bf16.mxu0 %v183
    %242 = vmatpush1.bf16.msra.mxu0 %v182
    %243 = vmatprep.subr.bf16.mxu0 %v187
    %244 = vmatpush1.bf16.msra.mxu0 %v186
    %245 = vmatprep.subr.bf16.mxu0 0
    %246 = vmatpush1.bf16.msra.mxu0 0
    %247 = vmatprep.subr.bf16.mxu0 0
    %248 = vmatpush1.bf16.msra.mxu0 0
    %249 = vmatprep.subr.bf16.mxu0 0
    %250 = vmatpush1.bf16.msra.mxu0 0
    %251 = vmatprep.subr.bf16.mxu0 0
    %252 = vmatpush1.bf16.msra.mxu0 0
    %253 = vmatprep.subr.bf16.mxu0 0
    %254 = vmatpush1.bf16.msra.mxu0 0
    %255 = vmatprep.subr.bf16.mxu0 0
    %256 = vmatpush1.bf16.msra.mxu0 0
    %257 = vmatprep.subr.bf16.mxu0 0
    %258 = vmatpush1.bf16.msra.mxu0 0
    %259 = vmatprep.subr.bf16.mxu0 0
    %260 = vmatpush1.bf16.msra.mxu0 0
    %261 = vmatprep.subr.bf16.mxu0 0
    %262 = vmatpush1.bf16.msra.mxu0 0
    %263 = vmatprep.subr.bf16.mxu0 0
    %264 = vmatpush1.bf16.msra.mxu0 0
    %265 = vmatprep.subr.bf16.mxu0 0
    %266 = vmatpush1.bf16.msra.mxu0 0
    %267 = vmatprep.subr.bf16.mxu0 0
    %268 = vmatpush1.bf16.msra.mxu0 0
    %269 = vmatprep.subr.bf16.mxu0 0
    %270 = vmatpush1.bf16.msra.mxu0 0
    %271 = vmatprep.subr.bf16.mxu0 0
    %272 = vmatpush1.bf16.msra.mxu0 0
    %273 = vmatprep.mubr.bf16.mxu0 0
    %274 = vmatmul.mubr.bf16.gmra.mrb[0].mxu0 %v198
    %v275 = vpop.f32.mrb[0].mxu0
    %v276 = vadd.f32 0.0, %v275
    %v277 = vpop.f32.mrb[0].mxu0
    %v278 = vadd.f32 0.0, %v277
    %v279 = vpop.f32.mrb[0].mxu0
    %v280 = vpop.f32.mrb[0].mxu0
    %281 = vdwg.mxu0
    %v282 = vpack.c.bf16 %v235, %v235
    %v283 = vpack.c.bf16 %v237, %v237
    %v284 = vpack.c.bf16 %v276, %v276
    %v285 = vpack.c.bf16 %v278, %v278
    %v286 = vld [vmem:[#allocation7] sm:$0xf]
    %v289 = vunpack.c.l.s4 1966171168
    %v290 = vunpack.c.0.s8 %v289
    %v291 = vlaneseq
    %v292 = vshrl.u32 %v291, 7
    %v293 = vsub.s32 %v290, %v292
    %v294 = vrot.slane %v286, %v293
    %v295 = vcombine.high %v294, %v294
    %v297 = vunpack.c.l.s4 1966171168
    %v298 = vunpack.c.0.s8 %v297
    %v299 = vlaneseq
    %v300 = vshrl.u32 %v299, 7
    %v301 = vsub.s32 %v298, %v300
    %v302 = vrot.slane %v294, %v301
    %v304 = vunpack.c.l.s4 1966171168
    %v305 = vunpack.c.0.s8 %v304
    %v306 = vlaneseq
    %v307 = vshrl.u32 %v306, 7
    %v308 = vsub.s32 %v305, %v307
    %v309 = vrot.slane %v295, %v308
    %v310 = vcombine.high %v302, %v302
    %v311 = vcombine.high %v309, %v309
    %v313 = vpack.i.b16 %v302, %v302
    %v315 = vlaneseq
    %v316 = vshrl.u32 %v315, 7
    %v317 = vsub.s32 0, %v316
    %v318 = vrot.slane %v313, %v317
    %v320 = vpack.i.b16 %v309, %v309
    %v322 = vlaneseq
    %v323 = vshrl.u32 %v322, 7
    %v324 = vsub.s32 0, %v323
    %v325 = vrot.slane %v320, %v324
    %v327 = vpack.i.b16 %v310, %v310
    %v329 = vlaneseq
    %v330 = vshrl.u32 %v329, 7
    %v331 = vsub.s32 0, %v330
    %v332 = vrot.slane %v327, %v331
    %v334 = vpack.i.b16 %v311, %v311
    %v336 = vlaneseq
    %v337 = vshrl.u32 %v336, 7
    %v338 = vsub.s32 0, %v337
    %v339 = vrot.slane %v334, %v338
    %v340 = vadd.bf16 %v282, %v318
    %v341 = vadd.bf16 %v283, %v325
    %v342 = vadd.bf16 %v284, %v332
    %v343 = vadd.bf16 %v285, %v339
    %v344 = vmax.bf16 %v340, 0
    %v345 = vmax.bf16 %v341, 0
    %v346 = vmax.bf16 %v342, 0
    %v347 = vmax.bf16 %v343, 0
    %v348 = vld [vmem:[#allocation8] sm:$0xff]
    %v349 = vld [vmem:[#allocation8 + $0x8] sm:$0xff]
    %v350 = vld [vmem:[#allocation8 + $0x10] sm:$0xff]
    %v351 = vld [vmem:[#allocation8 + $0x18] sm:$0xff]
    %v352 = vld [vmem:[#allocation8 + $0x20] sm:$0xff]
    %v353 = vld [vmem:[#allocation8 + $0x28] sm:$0xff]
    %v354 = vld [vmem:[#allocation8 + $0x30] sm:$0xff]
    %v355 = vld [vmem:[#allocation8 + $0x38] sm:$0xff]
    %v356 = vld [vmem:[#allocation8 + $0x40] sm:$0xff]
    %v357 = vld [vmem:[#allocation8 + $0x48] sm:$0xff]
    %v358 = vld [vmem:[#allocation8 + $0x50] sm:$0xff]
    %v359 = vld [vmem:[#allocation8 + $0x58] sm:$0xff]
    %v360 = vld [vmem:[#allocation8 + $0x60] sm:$0xff]
    %v361 = vld [vmem:[#allocation8 + $0x68] sm:$0xff]
    %v362 = vld [vmem:[#allocation8 + $0x70] sm:$0xff]
    %v363 = vld [vmem:[#allocation8 + $0x78] sm:$0xff]
    %v364 = vld [vmem:[#allocation8 + $0x80] sm:$0xff]
    %v365 = vld [vmem:[#allocation8 + $0x88] sm:$0xff]
    %v366 = vld [vmem:[#allocation8 + $0x90] sm:$0xff]
    %v367 = vld [vmem:[#allocation8 + $0x98] sm:$0xff]
    %v368 = vld [vmem:[#allocation8 + $0xa0] sm:$0xff]
    %v369 = vld [vmem:[#allocation8 + $0xa8] sm:$0xff]
    %v370 = vld [vmem:[#allocation8 + $0xb0] sm:$0xff]
    %v371 = vld [vmem:[#allocation8 + $0xb8] sm:$0xff]
    %v372 = vld [vmem:[#allocation8 + $0xc0] sm:$0xff]
    %v373 = vld [vmem:[#allocation8 + $0xc8] sm:$0xff]
    %v374 = vld [vmem:[#allocation8 + $0xd0] sm:$0xff]
    %v375 = vld [vmem:[#allocation8 + $0xd8] sm:$0xff]
    %v376 = vld [vmem:[#allocation8 + $0xe0] sm:$0xff]
    %v377 = vld [vmem:[#allocation8 + $0xe8] sm:$0xff]
    %v378 = vld [vmem:[#allocation8 + $0xf0] sm:$0xff]
    %v379 = vld [vmem:[#allocation8 + $0xf8] sm:$0xff]
    %v380 = vld [vmem:[#allocation8 + $0x100] sm:$0xff]
    %v381 = vld [vmem:[#allocation8 + $0x108] sm:$0xff]
    %v382 = vld [vmem:[#allocation8 + $0x110] sm:$0xff]
    %v383 = vld [vmem:[#allocation8 + $0x118] sm:$0xff]
    %v384 = vld [vmem:[#allocation8 + $0x120] sm:$0xff]
    %v385 = vld [vmem:[#allocation8 + $0x128] sm:$0xff]
    %v386 = vld [vmem:[#allocation8 + $0x130] sm:$0xff]
    %v387 = vld [vmem:[#allocation8 + $0x138] sm:$0xff]
    %v388 = vld [vmem:[#allocation8 + $0x140] sm:$0xff]
    %v389 = vld [vmem:[#allocation8 + $0x148] sm:$0xff]
    %v390 = vld [vmem:[#allocation8 + $0x150] sm:$0xff]
    %v391 = vld [vmem:[#allocation8 + $0x158] sm:$0xff]
    %v392 = vld [vmem:[#allocation8 + $0x160] sm:$0xff]
    %v393 = vld [vmem:[#allocation8 + $0x168] sm:$0xff]
    %v394 = vld [vmem:[#allocation8 + $0x170] sm:$0xff]
    %v395 = vld [vmem:[#allocation8 + $0x178] sm:$0xff]
    %v396 = vld [vmem:[#allocation8 + $0x180] sm:$0xff]
    %v397 = vld [vmem:[#allocation8 + $0x188] sm:$0xff]
    %v398 = vld [vmem:[#allocation8 + $0x190] sm:$0xff]
    %v399 = vld [vmem:[#allocation8 + $0x198] sm:$0xff]
    %v400 = vld [vmem:[#allocation8 + $0x1a0] sm:$0xff]
    %v401 = vld [vmem:[#allocation8 + $0x1a8] sm:$0xff]
    %v402 = vld [vmem:[#allocation8 + $0x1b0] sm:$0xff]
    %v403 = vld [vmem:[#allocation8 + $0x1b8] sm:$0xff]
    %v404 = vld [vmem:[#allocation8 + $0x1c0] sm:$0xff]
    %v405 = vld [vmem:[#allocation8 + $0x1c8] sm:$0xff]
    %v406 = vld [vmem:[#allocation8 + $0x1d0] sm:$0xff]
    %v407 = vld [vmem:[#allocation8 + $0x1d8] sm:$0xff]
    %v408 = vld [vmem:[#allocation8 + $0x1e0] sm:$0xff]
    %v409 = vld [vmem:[#allocation8 + $0x1e8] sm:$0xff]
    %v410 = vld [vmem:[#allocation8 + $0x1f0] sm:$0xff]
    %v411 = vld [vmem:[#allocation8 + $0x1f8] sm:$0xff]
    %v412 = vld [vmem:[#allocation8 + $0x200] sm:$0xff]
    %v413 = vld [vmem:[#allocation8 + $0x208] sm:$0xff]
    %v414 = vld [vmem:[#allocation8 + $0x210] sm:$0xff]
    %v415 = vld [vmem:[#allocation8 + $0x218] sm:$0xff]
    %v416 = vld [vmem:[#allocation8 + $0x220] sm:$0xff]
    %v417 = vld [vmem:[#allocation8 + $0x228] sm:$0xff]
    %v418 = vld [vmem:[#allocation8 + $0x230] sm:$0xff]
    %v419 = vld [vmem:[#allocation8 + $0x238] sm:$0xff]
    %v420 = vld [vmem:[#allocation8 + $0x240] sm:$0xff]
    %v421 = vld [vmem:[#allocation8 + $0x248] sm:$0xff]
    %v422 = vld [vmem:[#allocation8 + $0x250] sm:$0xff]
    %v423 = vld [vmem:[#allocation8 + $0x258] sm:$0xff]
    %v424 = vld [vmem:[#allocation8 + $0x260] sm:$0xff]
    %v425 = vld [vmem:[#allocation8 + $0x268] sm:$0xff]
    %v426 = vld [vmem:[#allocation8 + $0x270] sm:$0xff]
    %v427 = vld [vmem:[#allocation8 + $0x278] sm:$0xff]
    %v428 = vld [vmem:[#allocation8 + $0x280] sm:$0xff]
    %v429 = vld [vmem:[#allocation8 + $0x288] sm:$0xff]
    %v430 = vld [vmem:[#allocation8 + $0x290] sm:$0xff]
    %v431 = vld [vmem:[#allocation8 + $0x298] sm:$0xff]
    %v432 = vld [vmem:[#allocation8 + $0x2a0] sm:$0xff]
    %v433 = vld [vmem:[#allocation8 + $0x2a8] sm:$0xff]
    %v434 = vld [vmem:[#allocation8 + $0x2b0] sm:$0xff]
    %v435 = vld [vmem:[#allocation8 + $0x2b8] sm:$0xff]
    %v436 = vld [vmem:[#allocation8 + $0x2c0] sm:$0xff]
    %v437 = vld [vmem:[#allocation8 + $0x2c8] sm:$0xff]
    %v438 = vld [vmem:[#allocation8 + $0x2d0] sm:$0xff]
    %v439 = vld [vmem:[#allocation8 + $0x2d8] sm:$0xff]
    %v440 = vld [vmem:[#allocation8 + $0x2e0] sm:$0xff]
    %v441 = vld [vmem:[#allocation8 + $0x2e8] sm:$0xff]
    %v442 = vld [vmem:[#allocation8 + $0x2f0] sm:$0xff]
    %v443 = vld [vmem:[#allocation8 + $0x2f8] sm:$0xff]
    %v444 = vld [vmem:[#allocation8 + $0x300] sm:$0xff]
    %v445 = vld [vmem:[#allocation8 + $0x308] sm:$0xff]
    %v446 = vld [vmem:[#allocation8 + $0x310] sm:$0xff]
    %v447 = vld [vmem:[#allocation8 + $0x318] sm:$0xff]
    %v448 = vld [vmem:[#allocation8 + $0x320] sm:$0xff]
    %v449 = vld [vmem:[#allocation8 + $0x328] sm:$0xff]
    %v450 = vld [vmem:[#allocation8 + $0x330] sm:$0xff]
    %v451 = vld [vmem:[#allocation8 + $0x338] sm:$0xff]
    %v452 = vld [vmem:[#allocation8 + $0x340] sm:$0xff]
    %v453 = vld [vmem:[#allocation8 + $0x348] sm:$0xff]
    %v454 = vld [vmem:[#allocation8 + $0x350] sm:$0xff]
    %v455 = vld [vmem:[#allocation8 + $0x358] sm:$0xff]
    %v456 = vld [vmem:[#allocation8 + $0x360] sm:$0xff]
    %v457 = vld [vmem:[#allocation8 + $0x368] sm:$0xff]
    %v458 = vld [vmem:[#allocation8 + $0x370] sm:$0xff]
    %v459 = vld [vmem:[#allocation8 + $0x378] sm:$0xff]
    %v460 = vld [vmem:[#allocation8 + $0x380] sm:$0xff]
    %v461 = vld [vmem:[#allocation8 + $0x388] sm:$0xff]
    %v462 = vld [vmem:[#allocation8 + $0x390] sm:$0xff]
    %v463 = vld [vmem:[#allocation8 + $0x398] sm:$0xff]
    %v464 = vld [vmem:[#allocation8 + $0x3a0] sm:$0xff]
    %v465 = vld [vmem:[#allocation8 + $0x3a8] sm:$0xff]
    %v466 = vld [vmem:[#allocation8 + $0x3b0] sm:$0xff]
    %v467 = vld [vmem:[#allocation8 + $0x3b8] sm:$0xff]
    %v468 = vld [vmem:[#allocation8 + $0x3c0] sm:$0xff]
    %v469 = vld [vmem:[#allocation8 + $0x3c8] sm:$0xff]
    %v470 = vld [vmem:[#allocation8 + $0x3d0] sm:$0xff]
    %v471 = vld [vmem:[#allocation8 + $0x3d8] sm:$0xff]
    %v472 = vld [vmem:[#allocation8 + $0x3e0] sm:$0xff]
    %v473 = vld [vmem:[#allocation8 + $0x3e8] sm:$0xff]
    %v474 = vld [vmem:[#allocation8 + $0x3f0] sm:$0xff]
    %v475 = vld [vmem:[#allocation8 + $0x3f8] sm:$0xff]
    %v604 = vunpack.c.l.b16 %v348
    %v605 = vunpack.c.h.b16 %v348
    %v606 = vunpack.c.l.b16 %v349
    %v607 = vunpack.c.h.b16 %v349
    %v608 = vunpack.c.l.b16 %v350
    %v609 = vunpack.c.h.b16 %v350
    %v610 = vunpack.c.l.b16 %v351
    %v611 = vunpack.c.h.b16 %v351
    %v612 = vunpack.c.l.b16 %v352
    %v613 = vunpack.c.h.b16 %v352
    %v614 = vunpack.c.l.b16 %v353
    %v615 = vunpack.c.h.b16 %v353
    %v616 = vunpack.c.l.b16 %v354
    %v617 = vunpack.c.h.b16 %v354
    %v618 = vunpack.c.l.b16 %v355
    %v619 = vunpack.c.h.b16 %v355
    %v620 = vunpack.c.l.b16 %v356
    %v621 = vunpack.c.h.b16 %v356
    %v622 = vunpack.c.l.b16 %v357
    %v623 = vunpack.c.h.b16 %v357
    %v624 = vunpack.c.l.b16 %v358
    %v625 = vunpack.c.h.b16 %v358
    %v626 = vunpack.c.l.b16 %v359
    %v627 = vunpack.c.h.b16 %v359
    %v628 = vunpack.c.l.b16 %v360
    %v629 = vunpack.c.h.b16 %v360
    %v630 = vunpack.c.l.b16 %v361
    %v631 = vunpack.c.h.b16 %v361
    %v632 = vunpack.c.l.b16 %v362
    %v633 = vunpack.c.h.b16 %v362
    %v634 = vunpack.c.l.b16 %v363
    %v635 = vunpack.c.h.b16 %v363
    %v636 = vunpack.c.l.b16 %v364
    %v637 = vunpack.c.h.b16 %v364
    %v638 = vunpack.c.l.b16 %v365
    %v639 = vunpack.c.h.b16 %v365
    %v640 = vunpack.c.l.b16 %v366
    %v641 = vunpack.c.h.b16 %v366
    %v642 = vunpack.c.l.b16 %v367
    %v643 = vunpack.c.h.b16 %v367
    %v644 = vunpack.c.l.b16 %v368
    %v645 = vunpack.c.h.b16 %v368
    %v646 = vunpack.c.l.b16 %v369
    %v647 = vunpack.c.h.b16 %v369
    %v648 = vunpack.c.l.b16 %v370
    %v649 = vunpack.c.h.b16 %v370
    %v650 = vunpack.c.l.b16 %v371
    %v651 = vunpack.c.h.b16 %v371
    %v652 = vunpack.c.l.b16 %v372
    %v653 = vunpack.c.h.b16 %v372
    %v654 = vunpack.c.l.b16 %v373
    %v655 = vunpack.c.h.b16 %v373
    %v656 = vunpack.c.l.b16 %v374
    %v657 = vunpack.c.h.b16 %v374
    %v658 = vunpack.c.l.b16 %v375
    %v659 = vunpack.c.h.b16 %v375
    %v660 = vunpack.c.l.b16 %v376
    %v661 = vunpack.c.h.b16 %v376
    %v662 = vunpack.c.l.b16 %v377
    %v663 = vunpack.c.h.b16 %v377
    %v664 = vunpack.c.l.b16 %v378
    %v665 = vunpack.c.h.b16 %v378
    %v666 = vunpack.c.l.b16 %v379
    %v667 = vunpack.c.h.b16 %v379
    %v668 = vunpack.c.l.b16 %v380
    %v669 = vunpack.c.h.b16 %v380
    %v670 = vunpack.c.l.b16 %v381
    %v671 = vunpack.c.h.b16 %v381
    %v672 = vunpack.c.l.b16 %v382
    %v673 = vunpack.c.h.b16 %v382
    %v674 = vunpack.c.l.b16 %v383
    %v675 = vunpack.c.h.b16 %v383
    %v676 = vunpack.c.l.b16 %v384
    %v677 = vunpack.c.h.b16 %v384
    %v678 = vunpack.c.l.b16 %v385
    %v679 = vunpack.c.h.b16 %v385
    %v680 = vunpack.c.l.b16 %v386
    %v681 = vunpack.c.h.b16 %v386
    %v682 = vunpack.c.l.b16 %v387
    %v683 = vunpack.c.h.b16 %v387
    %v684 = vunpack.c.l.b16 %v388
    %v685 = vunpack.c.h.b16 %v388
    %v686 = vunpack.c.l.b16 %v389
    %v687 = vunpack.c.h.b16 %v389
    %v688 = vunpack.c.l.b16 %v390
    %v689 = vunpack.c.h.b16 %v390
    %v690 = vunpack.c.l.b16 %v391
    %v691 = vunpack.c.h.b16 %v391
    %v692 = vunpack.c.l.b16 %v392
    %v693 = vunpack.c.h.b16 %v392
    %v694 = vunpack.c.l.b16 %v393
    %v695 = vunpack.c.h.b16 %v393
    %v696 = vunpack.c.l.b16 %v394
    %v697 = vunpack.c.h.b16 %v394
    %v698 = vunpack.c.l.b16 %v395
    %v699 = vunpack.c.h.b16 %v395
    %v700 = vunpack.c.l.b16 %v396
    %v701 = vunpack.c.h.b16 %v396
    %v702 = vunpack.c.l.b16 %v397
    %v703 = vunpack.c.h.b16 %v397
    %v704 = vunpack.c.l.b16 %v398
    %v705 = vunpack.c.h.b16 %v398
    %v706 = vunpack.c.l.b16 %v399
    %v707 = vunpack.c.h.b16 %v399
    %v708 = vunpack.c.l.b16 %v400
    %v709 = vunpack.c.h.b16 %v400
    %v710 = vunpack.c.l.b16 %v401
    %v711 = vunpack.c.h.b16 %v401
    %v712 = vunpack.c.l.b16 %v402
    %v713 = vunpack.c.h.b16 %v402
    %v714 = vunpack.c.l.b16 %v403
    %v715 = vunpack.c.h.b16 %v403
    %v716 = vunpack.c.l.b16 %v404
    %v717 = vunpack.c.h.b16 %v404
    %v718 = vunpack.c.l.b16 %v405
    %v719 = vunpack.c.h.b16 %v405
    %v720 = vunpack.c.l.b16 %v406
    %v721 = vunpack.c.h.b16 %v406
    %v722 = vunpack.c.l.b16 %v407
    %v723 = vunpack.c.h.b16 %v407
    %v724 = vunpack.c.l.b16 %v408
    %v725 = vunpack.c.h.b16 %v408
    %v726 = vunpack.c.l.b16 %v409
    %v727 = vunpack.c.h.b16 %v409
    %v728 = vunpack.c.l.b16 %v410
    %v729 = vunpack.c.h.b16 %v410
    %v730 = vunpack.c.l.b16 %v411
    %v731 = vunpack.c.h.b16 %v411
    %v732 = vunpack.c.l.b16 %v412
    %v733 = vunpack.c.h.b16 %v412
    %v734 = vunpack.c.l.b16 %v413
    %v735 = vunpack.c.h.b16 %v413
    %v736 = vunpack.c.l.b16 %v414
    %v737 = vunpack.c.h.b16 %v414
    %v738 = vunpack.c.l.b16 %v415
    %v739 = vunpack.c.h.b16 %v415
    %v740 = vunpack.c.l.b16 %v416
    %v741 = vunpack.c.h.b16 %v416
    %v742 = vunpack.c.l.b16 %v417
    %v743 = vunpack.c.h.b16 %v417
    %v744 = vunpack.c.l.b16 %v418
    %v745 = vunpack.c.h.b16 %v418
    %v746 = vunpack.c.l.b16 %v419
    %v747 = vunpack.c.h.b16 %v419
    %v748 = vunpack.c.l.b16 %v420
    %v749 = vunpack.c.h.b16 %v420
    %v750 = vunpack.c.l.b16 %v421
    %v751 = vunpack.c.h.b16 %v421
    %v752 = vunpack.c.l.b16 %v422
    %v753 = vunpack.c.h.b16 %v422
    %v754 = vunpack.c.l.b16 %v423
    %v755 = vunpack.c.h.b16 %v423
    %v756 = vunpack.c.l.b16 %v424
    %v757 = vunpack.c.h.b16 %v424
    %v758 = vunpack.c.l.b16 %v425
    %v759 = vunpack.c.h.b16 %v425
    %v760 = vunpack.c.l.b16 %v426
    %v761 = vunpack.c.h.b16 %v426
    %v762 = vunpack.c.l.b16 %v427
    %v763 = vunpack.c.h.b16 %v427
    %v764 = vunpack.c.l.b16 %v428
    %v765 = vunpack.c.h.b16 %v428
    %v766 = vunpack.c.l.b16 %v429
    %v767 = vunpack.c.h.b16 %v429
    %v768 = vunpack.c.l.b16 %v430
    %v769 = vunpack.c.h.b16 %v430
    %v770 = vunpack.c.l.b16 %v431
    %v771 = vunpack.c.h.b16 %v431
    %v772 = vunpack.c.l.b16 %v432
    %v773 = vunpack.c.h.b16 %v432
    %v774 = vunpack.c.l.b16 %v433
    %v775 = vunpack.c.h.b16 %v433
    %v776 = vunpack.c.l.b16 %v434
    %v777 = vunpack.c.h.b16 %v434
    %v778 = vunpack.c.l.b16 %v435
    %v779 = vunpack.c.h.b16 %v435
    %v780 = vunpack.c.l.b16 %v436
    %v781 = vunpack.c.h.b16 %v436
    %v782 = vunpack.c.l.b16 %v437
    %v783 = vunpack.c.h.b16 %v437
    %v784 = vunpack.c.l.b16 %v438
    %v785 = vunpack.c.h.b16 %v438
    %v786 = vunpack.c.l.b16 %v439
    %v787 = vunpack.c.h.b16 %v439
    %v788 = vunpack.c.l.b16 %v440
    %v789 = vunpack.c.h.b16 %v440
    %v790 = vunpack.c.l.b16 %v441
    %v791 = vunpack.c.h.b16 %v441
    %v792 = vunpack.c.l.b16 %v442
    %v793 = vunpack.c.h.b16 %v442
    %v794 = vunpack.c.l.b16 %v443
    %v795 = vunpack.c.h.b16 %v443
    %v796 = vunpack.c.l.b16 %v444
    %v797 = vunpack.c.h.b16 %v444
    %v798 = vunpack.c.l.b16 %v445
    %v799 = vunpack.c.h.b16 %v445
    %v800 = vunpack.c.l.b16 %v446
    %v801 = vunpack.c.h.b16 %v446
    %v802 = vunpack.c.l.b16 %v447
    %v803 = vunpack.c.h.b16 %v447
    %v804 = vunpack.c.l.b16 %v448
    %v805 = vunpack.c.h.b16 %v448
    %v806 = vunpack.c.l.b16 %v449
    %v807 = vunpack.c.h.b16 %v449
    %v808 = vunpack.c.l.b16 %v450
    %v809 = vunpack.c.h.b16 %v450
    %v810 = vunpack.c.l.b16 %v451
    %v811 = vunpack.c.h.b16 %v451
    %v812 = vunpack.c.l.b16 %v452
    %v813 = vunpack.c.h.b16 %v452
    %v814 = vunpack.c.l.b16 %v453
    %v815 = vunpack.c.h.b16 %v453
    %v816 = vunpack.c.l.b16 %v454
    %v817 = vunpack.c.h.b16 %v454
    %v818 = vunpack.c.l.b16 %v455
    %v819 = vunpack.c.h.b16 %v455
    %v820 = vunpack.c.l.b16 %v456
    %v821 = vunpack.c.h.b16 %v456
    %v822 = vunpack.c.l.b16 %v457
    %v823 = vunpack.c.h.b16 %v457
    %v824 = vunpack.c.l.b16 %v458
    %v825 = vunpack.c.h.b16 %v458
    %v826 = vunpack.c.l.b16 %v459
    %v827 = vunpack.c.h.b16 %v459
    %v828 = vunpack.c.l.b16 %v460
    %v829 = vunpack.c.h.b16 %v460
    %v830 = vunpack.c.l.b16 %v461
    %v831 = vunpack.c.h.b16 %v461
    %v832 = vunpack.c.l.b16 %v462
    %v833 = vunpack.c.h.b16 %v462
    %v834 = vunpack.c.l.b16 %v463
    %v835 = vunpack.c.h.b16 %v463
    %v836 = vunpack.c.l.b16 %v464
    %v837 = vunpack.c.h.b16 %v464
    %v838 = vunpack.c.l.b16 %v465
    %v839 = vunpack.c.h.b16 %v465
    %v840 = vunpack.c.l.b16 %v466
    %v841 = vunpack.c.h.b16 %v466
    %v842 = vunpack.c.l.b16 %v467
    %v843 = vunpack.c.h.b16 %v467
    %v844 = vunpack.c.l.b16 %v468
    %v845 = vunpack.c.h.b16 %v468
    %v846 = vunpack.c.l.b16 %v469
    %v847 = vunpack.c.h.b16 %v469
    %v848 = vunpack.c.l.b16 %v470
    %v849 = vunpack.c.h.b16 %v470
    %v850 = vunpack.c.l.b16 %v471
    %v851 = vunpack.c.h.b16 %v471
    %v852 = vunpack.c.l.b16 %v472
    %v853 = vunpack.c.h.b16 %v472
    %v854 = vunpack.c.l.b16 %v473
    %v855 = vunpack.c.h.b16 %v473
    %v856 = vunpack.c.l.b16 %v474
    %v857 = vunpack.c.h.b16 %v474
    %v858 = vunpack.c.l.b16 %v475
    %v859 = vunpack.c.h.b16 %v475
    %v860 = vpack.c.b16 %v608, %v604
    %v861 = vpack.c.b16 %v609, %v605
    %v862 = vpack.c.b16 %v610, %v606
    %v863 = vpack.c.b16 %v611, %v607
    %v864 = vpack.c.b16 %v616, %v612
    %v865 = vpack.c.b16 %v617, %v613
    %v866 = vpack.c.b16 %v618, %v614
    %v867 = vpack.c.b16 %v619, %v615
    %v868 = vpack.c.b16 %v624, %v620
    %v869 = vpack.c.b16 %v625, %v621
    %v870 = vpack.c.b16 %v626, %v622
    %v871 = vpack.c.b16 %v627, %v623
    %v872 = vpack.c.b16 %v632, %v628
    %v873 = vpack.c.b16 %v633, %v629
    %v874 = vpack.c.b16 %v634, %v630
    %v875 = vpack.c.b16 %v635, %v631
    %v876 = vpack.c.b16 %v640, %v636
    %v877 = vpack.c.b16 %v641, %v637
    %v878 = vpack.c.b16 %v642, %v638
    %v879 = vpack.c.b16 %v643, %v639
    %v880 = vpack.c.b16 %v648, %v644
    %v881 = vpack.c.b16 %v649, %v645
    %v882 = vpack.c.b16 %v650, %v646
    %v883 = vpack.c.b16 %v651, %v647
    %v884 = vpack.c.b16 %v656, %v652
    %v885 = vpack.c.b16 %v657, %v653
    %v886 = vpack.c.b16 %v658, %v654
    %v887 = vpack.c.b16 %v659, %v655
    %v888 = vpack.c.b16 %v664, %v660
    %v889 = vpack.c.b16 %v665, %v661
    %v890 = vpack.c.b16 %v666, %v662
    %v891 = vpack.c.b16 %v667, %v663
    %v892 = vpack.c.b16 %v672, %v668
    %v893 = vpack.c.b16 %v673, %v669
    %v894 = vpack.c.b16 %v674, %v670
    %v895 = vpack.c.b16 %v675, %v671
    %v896 = vpack.c.b16 %v680, %v676
    %v897 = vpack.c.b16 %v681, %v677
    %v898 = vpack.c.b16 %v682, %v678
    %v899 = vpack.c.b16 %v683, %v679
    %v900 = vpack.c.b16 %v688, %v684
    %v901 = vpack.c.b16 %v689, %v685
    %v902 = vpack.c.b16 %v690, %v686
    %v903 = vpack.c.b16 %v691, %v687
    %v904 = vpack.c.b16 %v696, %v692
    %v905 = vpack.c.b16 %v697, %v693
    %v906 = vpack.c.b16 %v698, %v694
    %v907 = vpack.c.b16 %v699, %v695
    %v908 = vpack.c.b16 %v704, %v700
    %v909 = vpack.c.b16 %v705, %v701
    %v910 = vpack.c.b16 %v706, %v702
    %v911 = vpack.c.b16 %v707, %v703
    %v912 = vpack.c.b16 %v712, %v708
    %v913 = vpack.c.b16 %v713, %v709
    %v914 = vpack.c.b16 %v714, %v710
    %v915 = vpack.c.b16 %v715, %v711
    %v916 = vpack.c.b16 %v720, %v716
    %v917 = vpack.c.b16 %v721, %v717
    %v918 = vpack.c.b16 %v722, %v718
    %v919 = vpack.c.b16 %v723, %v719
    %v920 = vpack.c.b16 %v728, %v724
    %v921 = vpack.c.b16 %v729, %v725
    %v922 = vpack.c.b16 %v730, %v726
    %v923 = vpack.c.b16 %v731, %v727
    %v924 = vpack.c.b16 %v736, %v732
    %v925 = vpack.c.b16 %v737, %v733
    %v926 = vpack.c.b16 %v738, %v734
    %v927 = vpack.c.b16 %v739, %v735
    %v928 = vpack.c.b16 %v744, %v740
    %v929 = vpack.c.b16 %v745, %v741
    %v930 = vpack.c.b16 %v746, %v742
    %v931 = vpack.c.b16 %v747, %v743
    %v932 = vpack.c.b16 %v752, %v748
    %v933 = vpack.c.b16 %v753, %v749
    %v934 = vpack.c.b16 %v754, %v750
    %v935 = vpack.c.b16 %v755, %v751
    %v936 = vpack.c.b16 %v760, %v756
    %v937 = vpack.c.b16 %v761, %v757
    %v938 = vpack.c.b16 %v762, %v758
    %v939 = vpack.c.b16 %v763, %v759
    %v940 = vpack.c.b16 %v768, %v764
    %v941 = vpack.c.b16 %v769, %v765
    %v942 = vpack.c.b16 %v770, %v766
    %v943 = vpack.c.b16 %v771, %v767
    %v944 = vpack.c.b16 %v776, %v772
    %v945 = vpack.c.b16 %v777, %v773
    %v946 = vpack.c.b16 %v778, %v774
    %v947 = vpack.c.b16 %v779, %v775
    %v948 = vpack.c.b16 %v784, %v780
    %v949 = vpack.c.b16 %v785, %v781
    %v950 = vpack.c.b16 %v786, %v782
    %v951 = vpack.c.b16 %v787, %v783
    %v952 = vpack.c.b16 %v792, %v788
    %v953 = vpack.c.b16 %v793, %v789
    %v954 = vpack.c.b16 %v794, %v790
    %v955 = vpack.c.b16 %v795, %v791
    %v956 = vpack.c.b16 %v800, %v796
    %v957 = vpack.c.b16 %v801, %v797
    %v958 = vpack.c.b16 %v802, %v798
    %v959 = vpack.c.b16 %v803, %v799
    %v960 = vpack.c.b16 %v808, %v804
    %v961 = vpack.c.b16 %v809, %v805
    %v962 = vpack.c.b16 %v810, %v806
    %v963 = vpack.c.b16 %v811, %v807
    %v964 = vpack.c.b16 %v816, %v812
    %v965 = vpack.c.b16 %v817, %v813
    %v966 = vpack.c.b16 %v818, %v814
    %v967 = vpack.c.b16 %v819, %v815
    %v968 = vpack.c.b16 %v824, %v820
    %v969 = vpack.c.b16 %v825, %v821
    %v970 = vpack.c.b16 %v826, %v822
    %v971 = vpack.c.b16 %v827, %v823
    %v972 = vpack.c.b16 %v832, %v828
    %v973 = vpack.c.b16 %v833, %v829
    %v974 = vpack.c.b16 %v834, %v830
    %v975 = vpack.c.b16 %v835, %v831
    %v976 = vpack.c.b16 %v840, %v836
    %v977 = vpack.c.b16 %v841, %v837
    %v978 = vpack.c.b16 %v842, %v838
    %v979 = vpack.c.b16 %v843, %v839
    %v980 = vpack.c.b16 %v848, %v844
    %v981 = vpack.c.b16 %v849, %v845
    %v982 = vpack.c.b16 %v850, %v846
    %v983 = vpack.c.b16 %v851, %v847
    %v984 = vpack.c.b16 %v856, %v852
    %v985 = vpack.c.b16 %v857, %v853
    %v986 = vpack.c.b16 %v858, %v854
    %v987 = vpack.c.b16 %v859, %v855
    %1116 = vmatprep.subr.bf16.mxu0 %v861
    %1117 = vmatpush1.bf16.msra.mxu0 %v860
    %1118 = vmatprep.subr.bf16.mxu0 %v865
    %1119 = vmatpush1.bf16.msra.mxu0 %v864
    %1120 = vmatprep.subr.bf16.mxu0 %v869
    %1121 = vmatpush1.bf16.msra.mxu0 %v868
    %1122 = vmatprep.subr.bf16.mxu0 %v873
    %1123 = vmatpush1.bf16.msra.mxu0 %v872
    %1124 = vmatprep.subr.bf16.mxu0 %v877
    %1125 = vmatpush1.bf16.msra.mxu0 %v876
    %1126 = vmatprep.subr.bf16.mxu0 %v881
    %1127 = vmatpush1.bf16.msra.mxu0 %v880
    %1128 = vmatprep.subr.bf16.mxu0 %v885
    %1129 = vmatpush1.bf16.msra.mxu0 %v884
    %1130 = vmatprep.subr.bf16.mxu0 %v889
    %1131 = vmatpush1.bf16.msra.mxu0 %v888
    %1132 = vmatprep.subr.bf16.mxu0 %v893
    %1133 = vmatpush1.bf16.msra.mxu0 %v892
    %1134 = vmatprep.subr.bf16.mxu0 %v897
    %1135 = vmatpush1.bf16.msra.mxu0 %v896
    %1136 = vmatprep.subr.bf16.mxu0 %v901
    %1137 = vmatpush1.bf16.msra.mxu0 %v900
    %1138 = vmatprep.subr.bf16.mxu0 %v905
    %1139 = vmatpush1.bf16.msra.mxu0 %v904
    %1140 = vmatprep.subr.bf16.mxu0 %v909
    %1141 = vmatpush1.bf16.msra.mxu0 %v908
    %1142 = vmatprep.subr.bf16.mxu0 %v913
    %1143 = vmatpush1.bf16.msra.mxu0 %v912
    %1144 = vmatprep.subr.bf16.mxu0 %v917
    %1145 = vmatpush1.bf16.msra.mxu0 %v916
    %1146 = vmatprep.subr.bf16.mxu0 %v921
    %1147 = vmatpush1.bf16.msra.mxu0 %v920
    %1148 = vmatprep.mubr.bf16.mxu0 %v345
    %1149 = vmatmul.mubr.bf16.gmra.mrb[0].mxu0 %v344
    %v1150 = vpop.f32.mrb[0].mxu0
    %v1151 = vadd.f32 0.0, %v1150
    %v1152 = vpop.f32.mrb[0].mxu0
    %v1153 = vadd.f32 0.0, %v1152
    %v1154 = vpop.f32.mrb[0].mxu0
    %v1155 = vpop.f32.mrb[0].mxu0
    %1156 = vdwg.mxu0
    %1157 = vmatprep.subr.bf16.mxu0 %v925
    %1158 = vmatpush1.bf16.msra.mxu0 %v924
    %1159 = vmatprep.subr.bf16.mxu0 %v929
    %1160 = vmatpush1.bf16.msra.mxu0 %v928
    %1161 = vmatprep.subr.bf16.mxu0 %v933
    %1162 = vmatpush1.bf16.msra.mxu0 %v932
    %1163 = vmatprep.subr.bf16.mxu0 %v937
    %1164 = vmatpush1.bf16.msra.mxu0 %v936
    %1165 = vmatprep.subr.bf16.mxu0 %v941
    %1166 = vmatpush1.bf16.msra.mxu0 %v940
    %1167 = vmatprep.subr.bf16.mxu0 %v945
    %1168 = vmatpush1.bf16.msra.mxu0 %v944
    %1169 = vmatprep.subr.bf16.mxu0 %v949
    %1170 = vmatpush1.bf16.msra.mxu0 %v948
    %1171 = vmatprep.subr.bf16.mxu0 %v953
    %1172 = vmatpush1.bf16.msra.mxu0 %v952
    %1173 = vmatprep.subr.bf16.mxu0 %v957
    %1174 = vmatpush1.bf16.msra.mxu0 %v956
    %1175 = vmatprep.subr.bf16.mxu0 %v961
    %1176 = vmatpush1.bf16.msra.mxu0 %v960
    %1177 = vmatprep.subr.bf16.mxu0 %v965
    %1178 = vmatpush1.bf16.msra.mxu0 %v964
    %1179 = vmatprep.subr.bf16.mxu0 %v969
    %1180 = vmatpush1.bf16.msra.mxu0 %v968
    %1181 = vmatprep.subr.bf16.mxu0 %v973
    %1182 = vmatpush1.bf16.msra.mxu0 %v972
    %1183 = vmatprep.subr.bf16.mxu0 %v977
    %1184 = vmatpush1.bf16.msra.mxu0 %v976
    %1185 = vmatprep.subr.bf16.mxu0 %v981
    %1186 = vmatpush1.bf16.msra.mxu0 %v980
    %1187 = vmatprep.subr.bf16.mxu0 %v985
    %1188 = vmatpush1.bf16.msra.mxu0 %v984
    %1189 = vmatprep.mubr.bf16.mxu0 %v347
    %1190 = vmatmul.mubr.bf16.gmra.mrb[0].mxu0 %v346
    %v1191 = vpop.f32.mrb[0].mxu0
    %v1192 = vadd.f32 %v1151, %v1191
    %v1193 = vpop.f32.mrb[0].mxu0
    %v1194 = vadd.f32 %v1153, %v1193
    %v1195 = vpop.f32.mrb[0].mxu0
    %v1196 = vpop.f32.mrb[0].mxu0
    %1197 = vdwg.mxu0
    %1198 = vmatprep.subr.bf16.mxu0 %v863
    %1199 = vmatpush1.bf16.msra.mxu0 %v862
    %1200 = vmatprep.subr.bf16.mxu0 %v867
    %1201 = vmatpush1.bf16.msra.mxu0 %v866
    %1202 = vmatprep.subr.bf16.mxu0 %v871
    %1203 = vmatpush1.bf16.msra.mxu0 %v870
    %1204 = vmatprep.subr.bf16.mxu0 %v875
    %1205 = vmatpush1.bf16.msra.mxu0 %v874
    %1206 = vmatprep.subr.bf16.mxu0 %v879
    %1207 = vmatpush1.bf16.msra.mxu0 %v878
    %1208 = vmatprep.subr.bf16.mxu0 %v883
    %1209 = vmatpush1.bf16.msra.mxu0 %v882
    %1210 = vmatprep.subr.bf16.mxu0 %v887
    %1211 = vmatpush1.bf16.msra.mxu0 %v886
    %1212 = vmatprep.subr.bf16.mxu0 %v891
    %1213 = vmatpush1.bf16.msra.mxu0 %v890
    %1214 = vmatprep.subr.bf16.mxu0 %v895
    %1215 = vmatpush1.bf16.msra.mxu0 %v894
    %1216 = vmatprep.subr.bf16.mxu0 %v899
    %1217 = vmatpush1.bf16.msra.mxu0 %v898
    %1218 = vmatprep.subr.bf16.mxu0 %v903
    %1219 = vmatpush1.bf16.msra.mxu0 %v902
    %1220 = vmatprep.subr.bf16.mxu0 %v907
    %1221 = vmatpush1.bf16.msra.mxu0 %v906
    %1222 = vmatprep.subr.bf16.mxu0 %v911
    %1223 = vmatpush1.bf16.msra.mxu0 %v910
    %1224 = vmatprep.subr.bf16.mxu0 %v915
    %1225 = vmatpush1.bf16.msra.mxu0 %v914
    %1226 = vmatprep.subr.bf16.mxu0 %v919
    %1227 = vmatpush1.bf16.msra.mxu0 %v918
    %1228 = vmatprep.subr.bf16.mxu0 %v923
    %1229 = vmatpush1.bf16.msra.mxu0 %v922
    %1230 = vmatprep.mubr.bf16.mxu0 %v345
    %1231 = vmatmul.mubr.bf16.gmra.mrb[0].mxu0 %v344
    %v1232 = vpop.f32.mrb[0].mxu0
    %v1233 = vadd.f32 0.0, %v1232
    %v1234 = vpop.f32.mrb[0].mxu0
    %v1235 = vadd.f32 0.0, %v1234
    %v1236 = vpop.f32.mrb[0].mxu0
    %v1237 = vpop.f32.mrb[0].mxu0
    %1238 = vdwg.mxu0
    %1239 = vmatprep.subr.bf16.mxu0 %v927
    %1240 = vmatpush1.bf16.msra.mxu0 %v926
    %1241 = vmatprep.subr.bf16.mxu0 %v931
    %1242 = vmatpush1.bf16.msra.mxu0 %v930
    %1243 = vmatprep.subr.bf16.mxu0 %v935
    %1244 = vmatpush1.bf16.msra.mxu0 %v934
    %1245 = vmatprep.subr.bf16.mxu0 %v939
    %1246 = vmatpush1.bf16.msra.mxu0 %v938
    %1247 = vmatprep.subr.bf16.mxu0 %v943
    %1248 = vmatpush1.bf16.msra.mxu0 %v942
    %1249 = vmatprep.subr.bf16.mxu0 %v947
    %1250 = vmatpush1.bf16.msra.mxu0 %v946
    %1251 = vmatprep.subr.bf16.mxu0 %v951
    %1252 = vmatpush1.bf16.msra.mxu0 %v950
    %1253 = vmatprep.subr.bf16.mxu0 %v955
    %1254 = vmatpush1.bf16.msra.mxu0 %v954
    %1255 = vmatprep.subr.bf16.mxu0 %v959
    %1256 = vmatpush1.bf16.msra.mxu0 %v958
    %1257 = vmatprep.subr.bf16.mxu0 %v963
    %1258 = vmatpush1.bf16.msra.mxu0 %v962
    %1259 = vmatprep.subr.bf16.mxu0 %v967
    %1260 = vmatpush1.bf16.msra.mxu0 %v966
    %1261 = vmatprep.subr.bf16.mxu0 %v971
    %1262 = vmatpush1.bf16.msra.mxu0 %v970
    %1263 = vmatprep.subr.bf16.mxu0 %v975
    %1264 = vmatpush1.bf16.msra.mxu0 %v974
    %1265 = vmatprep.subr.bf16.mxu0 %v979
    %1266 = vmatpush1.bf16.msra.mxu0 %v978
    %1267 = vmatprep.subr.bf16.mxu0 %v983
    %1268 = vmatpush1.bf16.msra.mxu0 %v982
    %1269 = vmatprep.subr.bf16.mxu0 %v987
    %1270 = vmatpush1.bf16.msra.mxu0 %v986
    %1271 = vmatprep.mubr.bf16.mxu0 %v347
    %1272 = vmatmul.mubr.bf16.gmra.mrb[0].mxu0 %v346
    %v1273 = vpop.f32.mrb[0].mxu0
    %v1274 = vadd.f32 %v1233, %v1273
    %v1275 = vpop.f32.mrb[0].mxu0
    %v1276 = vadd.f32 %v1235, %v1275
    %v1277 = vpop.f32.mrb[0].mxu0
    %v1278 = vpop.f32.mrb[0].mxu0
    %1279 = vdwg.mxu0
    %v1280 = vpack.c.bf16 %v1192, %v1192
    %v1281 = vpack.c.bf16 %v1194, %v1194
    %v1282 = vpack.c.bf16 %v1274, %v1274
    %v1283 = vpack.c.bf16 %v1276, %v1276
    %v1284 = vld [vmem:[#allocation10] sm:$0xf]
    %v1287 = vunpack.c.l.s4 1966171168
    %v1288 = vunpack.c.0.s8 %v1287
    %v1289 = vlaneseq
    %v1290 = vshrl.u32 %v1289, 7
    %v1291 = vsub.s32 %v1288, %v1290
    %v1292 = vrot.slane %v1284, %v1291
    %v1293 = vcombine.high %v1292, %v1292
    %v1295 = vunpack.c.l.s4 1966171168
    %v1296 = vunpack.c.0.s8 %v1295
    %v1297 = vlaneseq
    %v1298 = vshrl.u32 %v1297, 7
    %v1299 = vsub.s32 %v1296, %v1298
    %v1300 = vrot.slane %v1292, %v1299
    %v1302 = vunpack.c.l.s4 1966171168
    %v1303 = vunpack.c.0.s8 %v1302
    %v1304 = vlaneseq
    %v1305 = vshrl.u32 %v1304, 7
    %v1306 = vsub.s32 %v1303, %v1305
    %v1307 = vrot.slane %v1293, %v1306
    %v1308 = vcombine.high %v1300, %v1300
    %v1309 = vcombine.high %v1307, %v1307
    %v1311 = vpack.i.b16 %v1300, %v1300
    %v1313 = vlaneseq
    %v1314 = vshrl.u32 %v1313, 7
    %v1315 = vsub.s32 0, %v1314
    %v1316 = vrot.slane %v1311, %v1315
    %v1318 = vpack.i.b16 %v1307, %v1307
    %v1320 = vlaneseq
    %v1321 = vshrl.u32 %v1320, 7
    %v1322 = vsub.s32 0, %v1321
    %v1323 = vrot.slane %v1318, %v1322
    %v1325 = vpack.i.b16 %v1308, %v1308
    %v1327 = vlaneseq
    %v1328 = vshrl.u32 %v1327, 7
    %v1329 = vsub.s32 0, %v1328
    %v1330 = vrot.slane %v1325, %v1329
    %v1332 = vpack.i.b16 %v1309, %v1309
    %v1334 = vlaneseq
    %v1335 = vshrl.u32 %v1334, 7
    %v1336 = vsub.s32 0, %v1335
    %v1337 = vrot.slane %v1332, %v1336
    %v1338 = vadd.bf16 %v1280, %v1316
    %v1339 = vadd.bf16 %v1281, %v1323
    %v1340 = vadd.bf16 %v1282, %v1330
    %v1341 = vadd.bf16 %v1283, %v1337
    %v1342 = vmax.bf16 %v1338, 0
    %v1343 = vmax.bf16 %v1339, 0
    %v1344 = vmax.bf16 %v1340, 0
    %v1345 = vmax.bf16 %v1341, 0
    %v1346 = vld [vmem:[#allocation11] sm:$0xff]
    %v1347 = vld [vmem:[#allocation11 + $0x8] sm:$0xff]
    %v1348 = vld [vmem:[#allocation11 + $0x10] sm:$0xff]
    %v1349 = vld [vmem:[#allocation11 + $0x18] sm:$0xff]
    %v1350 = vld [vmem:[#allocation11 + $0x20] sm:$0xff]
    %v1351 = vld [vmem:[#allocation11 + $0x28] sm:$0xff]
    %v1352 = vld [vmem:[#allocation11 + $0x30] sm:$0xff]
    %v1353 = vld [vmem:[#allocation11 + $0x38] sm:$0xff]
    %v1354 = vld [vmem:[#allocation11 + $0x40] sm:$0xff]
    %v1355 = vld [vmem:[#allocation11 + $0x48] sm:$0xff]
    %v1356 = vld [vmem:[#allocation11 + $0x50] sm:$0xff]
    %v1357 = vld [vmem:[#allocation11 + $0x58] sm:$0xff]
    %v1358 = vld [vmem:[#allocation11 + $0x60] sm:$0xff]
    %v1359 = vld [vmem:[#allocation11 + $0x68] sm:$0xff]
    %v1360 = vld [vmem:[#allocation11 + $0x70] sm:$0xff]
    %v1361 = vld [vmem:[#allocation11 + $0x78] sm:$0xff]
    %v1362 = vld [vmem:[#allocation11 + $0x80] sm:$0xff]
    %v1363 = vld [vmem:[#allocation11 + $0x88] sm:$0xff]
    %v1364 = vld [vmem:[#allocation11 + $0x90] sm:$0xff]
    %v1365 = vld [vmem:[#allocation11 + $0x98] sm:$0xff]
    %v1366 = vld [vmem:[#allocation11 + $0xa0] sm:$0xff]
    %v1367 = vld [vmem:[#allocation11 + $0xa8] sm:$0xff]
    %v1368 = vld [vmem:[#allocation11 + $0xb0] sm:$0xff]
    %v1369 = vld [vmem:[#allocation11 + $0xb8] sm:$0xff]
    %v1370 = vld [vmem:[#allocation11 + $0xc0] sm:$0xff]
    %v1371 = vld [vmem:[#allocation11 + $0xc8] sm:$0xff]
    %v1372 = vld [vmem:[#allocation11 + $0xd0] sm:$0xff]
    %v1373 = vld [vmem:[#allocation11 + $0xd8] sm:$0xff]
    %v1374 = vld [vmem:[#allocation11 + $0xe0] sm:$0xff]
    %v1375 = vld [vmem:[#allocation11 + $0xe8] sm:$0xff]
    %v1376 = vld [vmem:[#allocation11 + $0xf0] sm:$0xff]
    %v1377 = vld [vmem:[#allocation11 + $0xf8] sm:$0xff]
    %v1378 = vld [vmem:[#allocation11 + $0x100] sm:$0xff]
    %v1379 = vld [vmem:[#allocation11 + $0x108] sm:$0xff]
    %v1380 = vld [vmem:[#allocation11 + $0x110] sm:$0xff]
    %v1381 = vld [vmem:[#allocation11 + $0x118] sm:$0xff]
    %v1382 = vld [vmem:[#allocation11 + $0x120] sm:$0xff]
    %v1383 = vld [vmem:[#allocation11 + $0x128] sm:$0xff]
    %v1384 = vld [vmem:[#allocation11 + $0x130] sm:$0xff]
    %v1385 = vld [vmem:[#allocation11 + $0x138] sm:$0xff]
    %v1386 = vld [vmem:[#allocation11 + $0x140] sm:$0xff]
    %v1387 = vld [vmem:[#allocation11 + $0x148] sm:$0xff]
    %v1388 = vld [vmem:[#allocation11 + $0x150] sm:$0xff]
    %v1389 = vld [vmem:[#allocation11 + $0x158] sm:$0xff]
    %v1390 = vld [vmem:[#allocation11 + $0x160] sm:$0xff]
    %v1391 = vld [vmem:[#allocation11 + $0x168] sm:$0xff]
    %v1392 = vld [vmem:[#allocation11 + $0x170] sm:$0xff]
    %v1393 = vld [vmem:[#allocation11 + $0x178] sm:$0xff]
    %v1394 = vld [vmem:[#allocation11 + $0x180] sm:$0xff]
    %v1395 = vld [vmem:[#allocation11 + $0x188] sm:$0xff]
    %v1396 = vld [vmem:[#allocation11 + $0x190] sm:$0xff]
    %v1397 = vld [vmem:[#allocation11 + $0x198] sm:$0xff]
    %v1398 = vld [vmem:[#allocation11 + $0x1a0] sm:$0xff]
    %v1399 = vld [vmem:[#allocation11 + $0x1a8] sm:$0xff]
    %v1400 = vld [vmem:[#allocation11 + $0x1b0] sm:$0xff]
    %v1401 = vld [vmem:[#allocation11 + $0x1b8] sm:$0xff]
    %v1402 = vld [vmem:[#allocation11 + $0x1c0] sm:$0xff]
    %v1403 = vld [vmem:[#allocation11 + $0x1c8] sm:$0xff]
    %v1404 = vld [vmem:[#allocation11 + $0x1d0] sm:$0xff]
    %v1405 = vld [vmem:[#allocation11 + $0x1d8] sm:$0xff]
    %v1406 = vld [vmem:[#allocation11 + $0x1e0] sm:$0xff]
    %v1407 = vld [vmem:[#allocation11 + $0x1e8] sm:$0xff]
    %v1408 = vld [vmem:[#allocation11 + $0x1f0] sm:$0xff]
    %v1409 = vld [vmem:[#allocation11 + $0x1f8] sm:$0xff]
    %v1410 = vld [vmem:[#allocation11 + $0x200] sm:$0xff]
    %v1411 = vld [vmem:[#allocation11 + $0x208] sm:$0xff]
    %v1412 = vld [vmem:[#allocation11 + $0x210] sm:$0xff]
    %v1413 = vld [vmem:[#allocation11 + $0x218] sm:$0xff]
    %v1414 = vld [vmem:[#allocation11 + $0x220] sm:$0xff]
    %v1415 = vld [vmem:[#allocation11 + $0x228] sm:$0xff]
    %v1416 = vld [vmem:[#allocation11 + $0x230] sm:$0xff]
    %v1417 = vld [vmem:[#allocation11 + $0x238] sm:$0xff]
    %v1418 = vld [vmem:[#allocation11 + $0x240] sm:$0xff]
    %v1419 = vld [vmem:[#allocation11 + $0x248] sm:$0xff]
    %v1420 = vld [vmem:[#allocation11 + $0x250] sm:$0xff]
    %v1421 = vld [vmem:[#allocation11 + $0x258] sm:$0xff]
    %v1422 = vld [vmem:[#allocation11 + $0x260] sm:$0xff]
    %v1423 = vld [vmem:[#allocation11 + $0x268] sm:$0xff]
    %v1424 = vld [vmem:[#allocation11 + $0x270] sm:$0xff]
    %v1425 = vld [vmem:[#allocation11 + $0x278] sm:$0xff]
    %v1426 = vld [vmem:[#allocation11 + $0x280] sm:$0xff]
    %v1427 = vld [vmem:[#allocation11 + $0x288] sm:$0xff]
    %v1428 = vld [vmem:[#allocation11 + $0x290] sm:$0xff]
    %v1429 = vld [vmem:[#allocation11 + $0x298] sm:$0xff]
    %v1430 = vld [vmem:[#allocation11 + $0x2a0] sm:$0xff]
    %v1431 = vld [vmem:[#allocation11 + $0x2a8] sm:$0xff]
    %v1432 = vld [vmem:[#allocation11 + $0x2b0] sm:$0xff]
    %v1433 = vld [vmem:[#allocation11 + $0x2b8] sm:$0xff]
    %v1434 = vld [vmem:[#allocation11 + $0x2c0] sm:$0xff]
    %v1435 = vld [vmem:[#allocation11 + $0x2c8] sm:$0xff]
    %v1436 = vld [vmem:[#allocation11 + $0x2d0] sm:$0xff]
    %v1437 = vld [vmem:[#allocation11 + $0x2d8] sm:$0xff]
    %v1438 = vld [vmem:[#allocation11 + $0x2e0] sm:$0xff]
    %v1439 = vld [vmem:[#allocation11 + $0x2e8] sm:$0xff]
    %v1440 = vld [vmem:[#allocation11 + $0x2f0] sm:$0xff]
    %v1441 = vld [vmem:[#allocation11 + $0x2f8] sm:$0xff]
    %v1442 = vld [vmem:[#allocation11 + $0x300] sm:$0xff]
    %v1443 = vld [vmem:[#allocation11 + $0x308] sm:$0xff]
    %v1444 = vld [vmem:[#allocation11 + $0x310] sm:$0xff]
    %v1445 = vld [vmem:[#allocation11 + $0x318] sm:$0xff]
    %v1446 = vld [vmem:[#allocation11 + $0x320] sm:$0xff]
    %v1447 = vld [vmem:[#allocation11 + $0x328] sm:$0xff]
    %v1448 = vld [vmem:[#allocation11 + $0x330] sm:$0xff]
    %v1449 = vld [vmem:[#allocation11 + $0x338] sm:$0xff]
    %v1450 = vld [vmem:[#allocation11 + $0x340] sm:$0xff]
    %v1451 = vld [vmem:[#allocation11 + $0x348] sm:$0xff]
    %v1452 = vld [vmem:[#allocation11 + $0x350] sm:$0xff]
    %v1453 = vld [vmem:[#allocation11 + $0x358] sm:$0xff]
    %v1454 = vld [vmem:[#allocation11 + $0x360] sm:$0xff]
    %v1455 = vld [vmem:[#allocation11 + $0x368] sm:$0xff]
    %v1456 = vld [vmem:[#allocation11 + $0x370] sm:$0xff]
    %v1457 = vld [vmem:[#allocation11 + $0x378] sm:$0xff]
    %v1458 = vld [vmem:[#allocation11 + $0x380] sm:$0xff]
    %v1459 = vld [vmem:[#allocation11 + $0x388] sm:$0xff]
    %v1460 = vld [vmem:[#allocation11 + $0x390] sm:$0xff]
    %v1461 = vld [vmem:[#allocation11 + $0x398] sm:$0xff]
    %v1462 = vld [vmem:[#allocation11 + $0x3a0] sm:$0xff]
    %v1463 = vld [vmem:[#allocation11 + $0x3a8] sm:$0xff]
    %v1464 = vld [vmem:[#allocation11 + $0x3b0] sm:$0xff]
    %v1465 = vld [vmem:[#allocation11 + $0x3b8] sm:$0xff]
    %v1466 = vld [vmem:[#allocation11 + $0x3c0] sm:$0xff]
    %v1467 = vld [vmem:[#allocation11 + $0x3c8] sm:$0xff]
    %v1468 = vld [vmem:[#allocation11 + $0x3d0] sm:$0xff]
    %v1469 = vld [vmem:[#allocation11 + $0x3d8] sm:$0xff]
    %v1470 = vld [vmem:[#allocation11 + $0x3e0] sm:$0xff]
    %v1471 = vld [vmem:[#allocation11 + $0x3e8] sm:$0xff]
    %v1472 = vld [vmem:[#allocation11 + $0x3f0] sm:$0xff]
    %v1473 = vld [vmem:[#allocation11 + $0x3f8] sm:$0xff]
    %v1474 = vld [vmem:[#allocation11 + $0x400] sm:$0xff]
    %v1475 = vld [vmem:[#allocation11 + $0x408] sm:$0xff]
    %v1476 = vld [vmem:[#allocation11 + $0x410] sm:$0xff]
    %v1477 = vld [vmem:[#allocation11 + $0x418] sm:$0xff]
    %v1478 = vld [vmem:[#allocation11 + $0x420] sm:$0xff]
    %v1479 = vld [vmem:[#allocation11 + $0x428] sm:$0xff]
    %v1480 = vld [vmem:[#allocation11 + $0x430] sm:$0xff]
    %v1481 = vld [vmem:[#allocation11 + $0x438] sm:$0xff]
    %v1482 = vld [vmem:[#allocation11 + $0x440] sm:$0xff]
    %v1483 = vld [vmem:[#allocation11 + $0x448] sm:$0xff]
    %v1484 = vld [vmem:[#allocation11 + $0x450] sm:$0xff]
    %v1485 = vld [vmem:[#allocation11 + $0x458] sm:$0xff]
    %v1486 = vld [vmem:[#allocation11 + $0x460] sm:$0xff]
    %v1487 = vld [vmem:[#allocation11 + $0x468] sm:$0xff]
    %v1488 = vld [vmem:[#allocation11 + $0x470] sm:$0xff]
    %v1489 = vld [vmem:[#allocation11 + $0x478] sm:$0xff]
    %v1490 = vld [vmem:[#allocation11 + $0x480] sm:$0xff]
    %v1491 = vld [vmem:[#allocation11 + $0x488] sm:$0xff]
    %v1492 = vld [vmem:[#allocation11 + $0x490] sm:$0xff]
    %v1493 = vld [vmem:[#allocation11 + $0x498] sm:$0xff]
    %v1494 = vld [vmem:[#allocation11 + $0x4a0] sm:$0xff]
    %v1495 = vld [vmem:[#allocation11 + $0x4a8] sm:$0xff]
    %v1496 = vld [vmem:[#allocation11 + $0x4b0] sm:$0xff]
    %v1497 = vld [vmem:[#allocation11 + $0x4b8] sm:$0xff]
    %v1498 = vld [vmem:[#allocation11 + $0x4c0] sm:$0xff]
    %v1499 = vld [vmem:[#allocation11 + $0x4c8] sm:$0xff]
    %v1500 = vld [vmem:[#allocation11 + $0x4d0] sm:$0xff]
    %v1501 = vld [vmem:[#allocation11 + $0x4d8] sm:$0xff]
    %v1502 = vld [vmem:[#allocation11 + $0x4e0] sm:$0xff]
    %v1503 = vld [vmem:[#allocation11 + $0x4e8] sm:$0xff]
    %v1504 = vld [vmem:[#allocation11 + $0x4f0] sm:$0xff]
    %v1505 = vld [vmem:[#allocation11 + $0x4f8] sm:$0xff]
    %v1506 = vld [vmem:[#allocation11 + $0x500] sm:$0xff]
    %v1507 = vld [vmem:[#allocation11 + $0x508] sm:$0xff]
    %v1508 = vld [vmem:[#allocation11 + $0x510] sm:$0xff]
    %v1509 = vld [vmem:[#allocation11 + $0x518] sm:$0xff]
    %v1510 = vld [vmem:[#allocation11 + $0x520] sm:$0xff]
    %v1511 = vld [vmem:[#allocation11 + $0x528] sm:$0xff]
    %v1512 = vld [vmem:[#allocation11 + $0x530] sm:$0xff]
    %v1513 = vld [vmem:[#allocation11 + $0x538] sm:$0xff]
    %v1514 = vld [vmem:[#allocation11 + $0x540] sm:$0xff]
    %v1515 = vld [vmem:[#allocation11 + $0x548] sm:$0xff]
    %v1516 = vld [vmem:[#allocation11 + $0x550] sm:$0xff]
    %v1517 = vld [vmem:[#allocation11 + $0x558] sm:$0xff]
    %v1518 = vld [vmem:[#allocation11 + $0x560] sm:$0xff]
    %v1519 = vld [vmem:[#allocation11 + $0x568] sm:$0xff]
    %v1520 = vld [vmem:[#allocation11 + $0x570] sm:$0xff]
    %v1521 = vld [vmem:[#allocation11 + $0x578] sm:$0xff]
    %v1522 = vld [vmem:[#allocation11 + $0x580] sm:$0xff]
    %v1523 = vld [vmem:[#allocation11 + $0x588] sm:$0xff]
    %v1524 = vld [vmem:[#allocation11 + $0x590] sm:$0xff]
    %v1525 = vld [vmem:[#allocation11 + $0x598] sm:$0xff]
    %v1526 = vld [vmem:[#allocation11 + $0x5a0] sm:$0xff]
    %v1527 = vld [vmem:[#allocation11 + $0x5a8] sm:$0xff]
    %v1528 = vld [vmem:[#allocation11 + $0x5b0] sm:$0xff]
    %v1529 = vld [vmem:[#allocation11 + $0x5b8] sm:$0xff]
    %v1530 = vld [vmem:[#allocation11 + $0x5c0] sm:$0xff]
    %v1531 = vld [vmem:[#allocation11 + $0x5c8] sm:$0xff]
    %v1532 = vld [vmem:[#allocation11 + $0x5d0] sm:$0xff]
    %v1533 = vld [vmem:[#allocation11 + $0x5d8] sm:$0xff]
    %v1534 = vld [vmem:[#allocation11 + $0x5e0] sm:$0xff]
    %v1535 = vld [vmem:[#allocation11 + $0x5e8] sm:$0xff]
    %v1536 = vld [vmem:[#allocation11 + $0x5f0] sm:$0xff]
    %v1537 = vld [vmem:[#allocation11 + $0x5f8] sm:$0xff]
    %v1538 = vld [vmem:[#allocation11 + $0x600] sm:$0xff]
    %v1539 = vld [vmem:[#allocation11 + $0x608] sm:$0xff]
    %v1540 = vld [vmem:[#allocation11 + $0x610] sm:$0xff]
    %v1541 = vld [vmem:[#allocation11 + $0x618] sm:$0xff]
    %v1542 = vld [vmem:[#allocation11 + $0x620] sm:$0xff]
    %v1543 = vld [vmem:[#allocation11 + $0x628] sm:$0xff]
    %v1544 = vld [vmem:[#allocation11 + $0x630] sm:$0xff]
    %v1545 = vld [vmem:[#allocation11 + $0x638] sm:$0xff]
    %v1546 = vld [vmem:[#allocation11 + $0x640] sm:$0xff]
    %v1547 = vld [vmem:[#allocation11 + $0x648] sm:$0xff]
    %v1548 = vld [vmem:[#allocation11 + $0x650] sm:$0xff]
    %v1549 = vld [vmem:[#allocation11 + $0x658] sm:$0xff]
    %v1550 = vld [vmem:[#allocation11 + $0x660] sm:$0xff]
    %v1551 = vld [vmem:[#allocation11 + $0x668] sm:$0xff]
    %v1552 = vld [vmem:[#allocation11 + $0x670] sm:$0xff]
    %v1553 = vld [vmem:[#allocation11 + $0x678] sm:$0xff]
    %v1554 = vld [vmem:[#allocation11 + $0x680] sm:$0xff]
    %v1555 = vld [vmem:[#allocation11 + $0x688] sm:$0xff]
    %v1556 = vld [vmem:[#allocation11 + $0x690] sm:$0xff]
    %v1557 = vld [vmem:[#allocation11 + $0x698] sm:$0xff]
    %v1558 = vld [vmem:[#allocation11 + $0x6a0] sm:$0xff]
    %v1559 = vld [vmem:[#allocation11 + $0x6a8] sm:$0xff]
    %v1560 = vld [vmem:[#allocation11 + $0x6b0] sm:$0xff]
    %v1561 = vld [vmem:[#allocation11 + $0x6b8] sm:$0xff]
    %v1562 = vld [vmem:[#allocation11 + $0x6c0] sm:$0xff]
    %v1563 = vld [vmem:[#allocation11 + $0x6c8] sm:$0xff]
    %v1564 = vld [vmem:[#allocation11 + $0x6d0] sm:$0xff]
    %v1565 = vld [vmem:[#allocation11 + $0x6d8] sm:$0xff]
    %v1566 = vld [vmem:[#allocation11 + $0x6e0] sm:$0xff]
    %v1567 = vld [vmem:[#allocation11 + $0x6e8] sm:$0xff]
    %v1568 = vld [vmem:[#allocation11 + $0x6f0] sm:$0xff]
    %v1569 = vld [vmem:[#allocation11 + $0x6f8] sm:$0xff]
    %v1570 = vld [vmem:[#allocation11 + $0x700] sm:$0xff]
    %v1571 = vld [vmem:[#allocation11 + $0x708] sm:$0xff]
    %v1572 = vld [vmem:[#allocation11 + $0x710] sm:$0xff]
    %v1573 = vld [vmem:[#allocation11 + $0x718] sm:$0xff]
    %v1574 = vld [vmem:[#allocation11 + $0x720] sm:$0xff]
    %v1575 = vld [vmem:[#allocation11 + $0x728] sm:$0xff]
    %v1576 = vld [vmem:[#allocation11 + $0x730] sm:$0xff]
    %v1577 = vld [vmem:[#allocation11 + $0x738] sm:$0xff]
    %v1578 = vld [vmem:[#allocation11 + $0x740] sm:$0xff]
    %v1579 = vld [vmem:[#allocation11 + $0x748] sm:$0xff]
    %v1580 = vld [vmem:[#allocation11 + $0x750] sm:$0xff]
    %v1581 = vld [vmem:[#allocation11 + $0x758] sm:$0xff]
    %v1582 = vld [vmem:[#allocation11 + $0x760] sm:$0xff]
    %v1583 = vld [vmem:[#allocation11 + $0x768] sm:$0xff]
    %v1584 = vld [vmem:[#allocation11 + $0x770] sm:$0xff]
    %v1585 = vld [vmem:[#allocation11 + $0x778] sm:$0xff]
    %v1586 = vld [vmem:[#allocation11 + $0x780] sm:$0xff]
    %v1587 = vld [vmem:[#allocation11 + $0x788] sm:$0xff]
    %v1588 = vld [vmem:[#allocation11 + $0x790] sm:$0xff]
    %v1589 = vld [vmem:[#allocation11 + $0x798] sm:$0xff]
    %v1590 = vld [vmem:[#allocation11 + $0x7a0] sm:$0xff]
    %v1591 = vld [vmem:[#allocation11 + $0x7a8] sm:$0xff]
    %v1592 = vld [vmem:[#allocation11 + $0x7b0] sm:$0xff]
    %v1593 = vld [vmem:[#allocation11 + $0x7b8] sm:$0xff]
    %v1594 = vld [vmem:[#allocation11 + $0x7c0] sm:$0xff]
    %v1595 = vld [vmem:[#allocation11 + $0x7c8] sm:$0xff]
    %v1596 = vld [vmem:[#allocation11 + $0x7d0] sm:$0xff]
    %v1597 = vld [vmem:[#allocation11 + $0x7d8] sm:$0xff]
    %v1598 = vld [vmem:[#allocation11 + $0x7e0] sm:$0xff]
    %v1599 = vld [vmem:[#allocation11 + $0x7e8] sm:$0xff]
    %v1600 = vld [vmem:[#allocation11 + $0x7f0] sm:$0xff]
    %v1601 = vld [vmem:[#allocation11 + $0x7f8] sm:$0xff]
    %v1602 = vld [vmem:[#allocation11 + $0x800] sm:$0xff]
    %v1603 = vld [vmem:[#allocation11 + $0x808] sm:$0xff]
    %v1604 = vld [vmem:[#allocation11 + $0x810] sm:$0xff]
    %v1605 = vld [vmem:[#allocation11 + $0x818] sm:$0xff]
    %v1606 = vld [vmem:[#allocation11 + $0x820] sm:$0xff]
    %v1607 = vld [vmem:[#allocation11 + $0x828] sm:$0xff]
    %v1608 = vld [vmem:[#allocation11 + $0x830] sm:$0xff]
    %v1609 = vld [vmem:[#allocation11 + $0x838] sm:$0xff]
    %v1610 = vld [vmem:[#allocation11 + $0x840] sm:$0xff]
    %v1611 = vld [vmem:[#allocation11 + $0x848] sm:$0xff]
    %v1612 = vld [vmem:[#allocation11 + $0x850] sm:$0xff]
    %v1613 = vld [vmem:[#allocation11 + $0x858] sm:$0xff]
    %v1614 = vld [vmem:[#allocation11 + $0x860] sm:$0xff]
    %v1615 = vld [vmem:[#allocation11 + $0x868] sm:$0xff]
    %v1616 = vld [vmem:[#allocation11 + $0x870] sm:$0xff]
    %v1617 = vld [vmem:[#allocation11 + $0x878] sm:$0xff]
    %v1618 = vld [vmem:[#allocation11 + $0x880] sm:$0xff]
    %v1619 = vld [vmem:[#allocation11 + $0x888] sm:$0xff]
    %v1620 = vld [vmem:[#allocation11 + $0x890] sm:$0xff]
    %v1621 = vld [vmem:[#allocation11 + $0x898] sm:$0xff]
    %v1622 = vld [vmem:[#allocation11 + $0x8a0] sm:$0xff]
    %v1623 = vld [vmem:[#allocation11 + $0x8a8] sm:$0xff]
    %v1624 = vld [vmem:[#allocation11 + $0x8b0] sm:$0xff]
    %v1625 = vld [vmem:[#allocation11 + $0x8b8] sm:$0xff]
    %v1626 = vld [vmem:[#allocation11 + $0x8c0] sm:$0xff]
    %v1627 = vld [vmem:[#allocation11 + $0x8c8] sm:$0xff]
    %v1628 = vld [vmem:[#allocation11 + $0x8d0] sm:$0xff]
    %v1629 = vld [vmem:[#allocation11 + $0x8d8] sm:$0xff]
    %v1630 = vld [vmem:[#allocation11 + $0x8e0] sm:$0xff]
    %v1631 = vld [vmem:[#allocation11 + $0x8e8] sm:$0xff]
    %v1632 = vld [vmem:[#allocation11 + $0x8f0] sm:$0xff]
    %v1633 = vld [vmem:[#allocation11 + $0x8f8] sm:$0xff]
    %v1634 = vld [vmem:[#allocation11 + $0x900] sm:$0xff]
    %v1635 = vld [vmem:[#allocation11 + $0x908] sm:$0xff]
    %v1636 = vld [vmem:[#allocation11 + $0x910] sm:$0xff]
    %v1637 = vld [vmem:[#allocation11 + $0x918] sm:$0xff]
    %v1638 = vld [vmem:[#allocation11 + $0x920] sm:$0xff]
    %v1639 = vld [vmem:[#allocation11 + $0x928] sm:$0xff]
    %v1640 = vld [vmem:[#allocation11 + $0x930] sm:$0xff]
    %v1641 = vld [vmem:[#allocation11 + $0x938] sm:$0xff]
    %v1642 = vld [vmem:[#allocation11 + $0x940] sm:$0xff]
    %v1643 = vld [vmem:[#allocation11 + $0x948] sm:$0xff]
    %v1644 = vld [vmem:[#allocation11 + $0x950] sm:$0xff]
    %v1645 = vld [vmem:[#allocation11 + $0x958] sm:$0xff]
    %v1646 = vld [vmem:[#allocation11 + $0x960] sm:$0xff]
    %v1647 = vld [vmem:[#allocation11 + $0x968] sm:$0xff]
    %v1648 = vld [vmem:[#allocation11 + $0x970] sm:$0xff]
    %v1649 = vld [vmem:[#allocation11 + $0x978] sm:$0xff]
    %v1650 = vld [vmem:[#allocation11 + $0x980] sm:$0xff]
    %v1651 = vld [vmem:[#allocation11 + $0x988] sm:$0xff]
    %v1652 = vld [vmem:[#allocation11 + $0x990] sm:$0xff]
    %v1653 = vld [vmem:[#allocation11 + $0x998] sm:$0xff]
    %v1654 = vld [vmem:[#allocation11 + $0x9a0] sm:$0xff]
    %v1655 = vld [vmem:[#allocation11 + $0x9a8] sm:$0xff]
    %v1656 = vld [vmem:[#allocation11 + $0x9b0] sm:$0xff]
    %v1657 = vld [vmem:[#allocation11 + $0x9b8] sm:$0xff]
    %v1658 = vld [vmem:[#allocation11 + $0x9c0] sm:$0xff]
    %v1659 = vld [vmem:[#allocation11 + $0x9c8] sm:$0xff]
    %v1660 = vld [vmem:[#allocation11 + $0x9d0] sm:$0xff]
    %v1661 = vld [vmem:[#allocation11 + $0x9d8] sm:$0xff]
    %v1662 = vld [vmem:[#allocation11 + $0x9e0] sm:$0xff]
    %v1663 = vld [vmem:[#allocation11 + $0x9e8] sm:$0xff]
    %v1664 = vld [vmem:[#allocation11 + $0x9f0] sm:$0xff]
    %v1665 = vld [vmem:[#allocation11 + $0x9f8] sm:$0xff]
    %v1666 = vld [vmem:[#allocation11 + $0xa00] sm:$0xff]
    %v1667 = vld [vmem:[#allocation11 + $0xa08] sm:$0xff]
    %v1668 = vld [vmem:[#allocation11 + $0xa10] sm:$0xff]
    %v1669 = vld [vmem:[#allocation11 + $0xa18] sm:$0xff]
    %v1670 = vld [vmem:[#allocation11 + $0xa20] sm:$0xff]
    %v1671 = vld [vmem:[#allocation11 + $0xa28] sm:$0xff]
    %v1672 = vld [vmem:[#allocation11 + $0xa30] sm:$0xff]
    %v1673 = vld [vmem:[#allocation11 + $0xa38] sm:$0xff]
    %v1674 = vld [vmem:[#allocation11 + $0xa40] sm:$0xff]
    %v1675 = vld [vmem:[#allocation11 + $0xa48] sm:$0xff]
    %v1676 = vld [vmem:[#allocation11 + $0xa50] sm:$0xff]
    %v1677 = vld [vmem:[#allocation11 + $0xa58] sm:$0xff]
    %v1678 = vld [vmem:[#allocation11 + $0xa60] sm:$0xff]
    %v1679 = vld [vmem:[#allocation11 + $0xa68] sm:$0xff]
    %v1680 = vld [vmem:[#allocation11 + $0xa70] sm:$0xff]
    %v1681 = vld [vmem:[#allocation11 + $0xa78] sm:$0xff]
    %v1682 = vld [vmem:[#allocation11 + $0xa80] sm:$0xff]
    %v1683 = vld [vmem:[#allocation11 + $0xa88] sm:$0xff]
    %v1684 = vld [vmem:[#allocation11 + $0xa90] sm:$0xff]
    %v1685 = vld [vmem:[#allocation11 + $0xa98] sm:$0xff]
    %v1686 = vld [vmem:[#allocation11 + $0xaa0] sm:$0xff]
    %v1687 = vld [vmem:[#allocation11 + $0xaa8] sm:$0xff]
    %v1688 = vld [vmem:[#allocation11 + $0xab0] sm:$0xff]
    %v1689 = vld [vmem:[#allocation11 + $0xab8] sm:$0xff]
    %v1690 = vld [vmem:[#allocation11 + $0xac0] sm:$0xff]
    %v1691 = vld [vmem:[#allocation11 + $0xac8] sm:$0xff]
    %v1692 = vld [vmem:[#allocation11 + $0xad0] sm:$0xff]
    %v1693 = vld [vmem:[#allocation11 + $0xad8] sm:$0xff]
    %v1694 = vld [vmem:[#allocation11 + $0xae0] sm:$0xff]
    %v1695 = vld [vmem:[#allocation11 + $0xae8] sm:$0xff]
    %v1696 = vld [vmem:[#allocation11 + $0xaf0] sm:$0xff]
    %v1697 = vld [vmem:[#allocation11 + $0xaf8] sm:$0xff]
    %v1698 = vld [vmem:[#allocation11 + $0xb00] sm:$0xff]
    %v1699 = vld [vmem:[#allocation11 + $0xb08] sm:$0xff]
    %v1700 = vld [vmem:[#allocation11 + $0xb10] sm:$0xff]
    %v1701 = vld [vmem:[#allocation11 + $0xb18] sm:$0xff]
    %v1702 = vld [vmem:[#allocation11 + $0xb20] sm:$0xff]
    %v1703 = vld [vmem:[#allocation11 + $0xb28] sm:$0xff]
    %v1704 = vld [vmem:[#allocation11 + $0xb30] sm:$0xff]
    %v1705 = vld [vmem:[#allocation11 + $0xb38] sm:$0xff]
    %v1706 = vld [vmem:[#allocation11 + $0xb40] sm:$0xff]
    %v1707 = vld [vmem:[#allocation11 + $0xb48] sm:$0xff]
    %v1708 = vld [vmem:[#allocation11 + $0xb50] sm:$0xff]
    %v1709 = vld [vmem:[#allocation11 + $0xb58] sm:$0xff]
    %v1710 = vld [vmem:[#allocation11 + $0xb60] sm:$0xff]
    %v1711 = vld [vmem:[#allocation11 + $0xb68] sm:$0xff]
    %v1712 = vld [vmem:[#allocation11 + $0xb70] sm:$0xff]
    %v1713 = vld [vmem:[#allocation11 + $0xb78] sm:$0xff]
    %v1714 = vld [vmem:[#allocation11 + $0xb80] sm:$0xff]
    %v1715 = vld [vmem:[#allocation11 + $0xb88] sm:$0xff]
    %v1716 = vld [vmem:[#allocation11 + $0xb90] sm:$0xff]
    %v1717 = vld [vmem:[#allocation11 + $0xb98] sm:$0xff]
    %v1718 = vld [vmem:[#allocation11 + $0xba0] sm:$0xff]
    %v1719 = vld [vmem:[#allocation11 + $0xba8] sm:$0xff]
    %v1720 = vld [vmem:[#allocation11 + $0xbb0] sm:$0xff]
    %v1721 = vld [vmem:[#allocation11 + $0xbb8] sm:$0xff]
    %v1722 = vld [vmem:[#allocation11 + $0xbc0] sm:$0xff]
    %v1723 = vld [vmem:[#allocation11 + $0xbc8] sm:$0xff]
    %v1724 = vld [vmem:[#allocation11 + $0xbd0] sm:$0xff]
    %v1725 = vld [vmem:[#allocation11 + $0xbd8] sm:$0xff]
    %v1726 = vld [vmem:[#allocation11 + $0xbe0] sm:$0xff]
    %v1727 = vld [vmem:[#allocation11 + $0xbe8] sm:$0xff]
    %v1728 = vld [vmem:[#allocation11 + $0xbf0] sm:$0xff]
    %v1729 = vld [vmem:[#allocation11 + $0xbf8] sm:$0xff]
    %v1730 = vld [vmem:[#allocation11 + $0xc00] sm:$0xff]
    %v1731 = vld [vmem:[#allocation11 + $0xc08] sm:$0xff]
    %v1732 = vld [vmem:[#allocation11 + $0xc10] sm:$0xff]
    %v1733 = vld [vmem:[#allocation11 + $0xc18] sm:$0xff]
    %v1734 = vld [vmem:[#allocation11 + $0xc20] sm:$0xff]
    %v1735 = vld [vmem:[#allocation11 + $0xc28] sm:$0xff]
    %v1736 = vld [vmem:[#allocation11 + $0xc30] sm:$0xff]
    %v1737 = vld [vmem:[#allocation11 + $0xc38] sm:$0xff]
    %v1738 = vld [vmem:[#allocation11 + $0xc40] sm:$0xff]
    %v1739 = vld [vmem:[#allocation11 + $0xc48] sm:$0xff]
    %v1740 = vld [vmem:[#allocation11 + $0xc50] sm:$0xff]
    %v1741 = vld [vmem:[#allocation11 + $0xc58] sm:$0xff]
    %v1742 = vld [vmem:[#allocation11 + $0xc60] sm:$0xff]
    %v1743 = vld [vmem:[#allocation11 + $0xc68] sm:$0xff]
    %v1744 = vld [vmem:[#allocation11 + $0xc70] sm:$0xff]
    %v1745 = vld [vmem:[#allocation11 + $0xc78] sm:$0xff]
    %v1746 = vld [vmem:[#allocation11 + $0xc80] sm:$0xff]
    %v1747 = vld [vmem:[#allocation11 + $0xc88] sm:$0xff]
    %v1748 = vld [vmem:[#allocation11 + $0xc90] sm:$0xff]
    %v1749 = vld [vmem:[#allocation11 + $0xc98] sm:$0xff]
    %v1750 = vld [vmem:[#allocation11 + $0xca0] sm:$0xff]
    %v1751 = vld [vmem:[#allocation11 + $0xca8] sm:$0xff]
    %v1752 = vld [vmem:[#allocation11 + $0xcb0] sm:$0xff]
    %v1753 = vld [vmem:[#allocation11 + $0xcb8] sm:$0xff]
    %v1754 = vld [vmem:[#allocation11 + $0xcc0] sm:$0xff]
    %v1755 = vld [vmem:[#allocation11 + $0xcc8] sm:$0xff]
    %v1756 = vld [vmem:[#allocation11 + $0xcd0] sm:$0xff]
    %v1757 = vld [vmem:[#allocation11 + $0xcd8] sm:$0xff]
    %v1758 = vld [vmem:[#allocation11 + $0xce0] sm:$0xff]
    %v1759 = vld [vmem:[#allocation11 + $0xce8] sm:$0xff]
    %v1760 = vld [vmem:[#allocation11 + $0xcf0] sm:$0xff]
    %v1761 = vld [vmem:[#allocation11 + $0xcf8] sm:$0xff]
    %v1762 = vld [vmem:[#allocation11 + $0xd00] sm:$0xff]
    %v1763 = vld [vmem:[#allocation11 + $0xd08] sm:$0xff]
    %v1764 = vld [vmem:[#allocation11 + $0xd10] sm:$0xff]
    %v1765 = vld [vmem:[#allocation11 + $0xd18] sm:$0xff]
    %v1766 = vld [vmem:[#allocation11 + $0xd20] sm:$0xff]
    %v1767 = vld [vmem:[#allocation11 + $0xd28] sm:$0xff]
    %v1768 = vld [vmem:[#allocation11 + $0xd30] sm:$0xff]
    %v1769 = vld [vmem:[#allocation11 + $0xd38] sm:$0xff]
    %v1770 = vld [vmem:[#allocation11 + $0xd40] sm:$0xff]
    %v1771 = vld [vmem:[#allocation11 + $0xd48] sm:$0xff]
    %v1772 = vld [vmem:[#allocation11 + $0xd50] sm:$0xff]
    %v1773 = vld [vmem:[#allocation11 + $0xd58] sm:$0xff]
    %v1774 = vld [vmem:[#allocation11 + $0xd60] sm:$0xff]
    %v1775 = vld [vmem:[#allocation11 + $0xd68] sm:$0xff]
    %v1776 = vld [vmem:[#allocation11 + $0xd70] sm:$0xff]
    %v1777 = vld [vmem:[#allocation11 + $0xd78] sm:$0xff]
    %v1778 = vld [vmem:[#allocation11 + $0xd80] sm:$0xff]
    %v1779 = vld [vmem:[#allocation11 + $0xd88] sm:$0xff]
    %v1780 = vld [vmem:[#allocation11 + $0xd90] sm:$0xff]
    %v1781 = vld [vmem:[#allocation11 + $0xd98] sm:$0xff]
    %v1782 = vld [vmem:[#allocation11 + $0xda0] sm:$0xff]
    %v1783 = vld [vmem:[#allocation11 + $0xda8] sm:$0xff]
    %v1784 = vld [vmem:[#allocation11 + $0xdb0] sm:$0xff]
    %v1785 = vld [vmem:[#allocation11 + $0xdb8] sm:$0xff]
    %v1786 = vld [vmem:[#allocation11 + $0xdc0] sm:$0xff]
    %v1787 = vld [vmem:[#allocation11 + $0xdc8] sm:$0xff]
    %v1788 = vld [vmem:[#allocation11 + $0xdd0] sm:$0xff]
    %v1789 = vld [vmem:[#allocation11 + $0xdd8] sm:$0xff]
    %v1790 = vld [vmem:[#allocation11 + $0xde0] sm:$0xff]
    %v1791 = vld [vmem:[#allocation11 + $0xde8] sm:$0xff]
    %v1792 = vld [vmem:[#allocation11 + $0xdf0] sm:$0xff]
    %v1793 = vld [vmem:[#allocation11 + $0xdf8] sm:$0xff]
    %v1794 = vld [vmem:[#allocation11 + $0xe00] sm:$0xff]
    %v1795 = vld [vmem:[#allocation11 + $0xe08] sm:$0xff]
    %v1796 = vld [vmem:[#allocation11 + $0xe10] sm:$0xff]
    %v1797 = vld [vmem:[#allocation11 + $0xe18] sm:$0xff]
    %v1798 = vld [vmem:[#allocation11 + $0xe20] sm:$0xff]
    %v1799 = vld [vmem:[#allocation11 + $0xe28] sm:$0xff]
    %v1800 = vld [vmem:[#allocation11 + $0xe30] sm:$0xff]
    %v1801 = vld [vmem:[#allocation11 + $0xe38] sm:$0xff]
    %v1802 = vld [vmem:[#allocation11 + $0xe40] sm:$0xff]
    %v1803 = vld [vmem:[#allocation11 + $0xe48] sm:$0xff]
    %v1804 = vld [vmem:[#allocation11 + $0xe50] sm:$0xff]
    %v1805 = vld [vmem:[#allocation11 + $0xe58] sm:$0xff]
    %v1806 = vld [vmem:[#allocation11 + $0xe60] sm:$0xff]
    %v1807 = vld [vmem:[#allocation11 + $0xe68] sm:$0xff]
    %v1808 = vld [vmem:[#allocation11 + $0xe70] sm:$0xff]
    %v1809 = vld [vmem:[#allocation11 + $0xe78] sm:$0xff]
    %v1810 = vld [vmem:[#allocation11 + $0xe80] sm:$0xff]
    %v1811 = vld [vmem:[#allocation11 + $0xe88] sm:$0xff]
    %v1812 = vld [vmem:[#allocation11 + $0xe90] sm:$0xff]
    %v1813 = vld [vmem:[#allocation11 + $0xe98] sm:$0xff]
    %v1814 = vld [vmem:[#allocation11 + $0xea0] sm:$0xff]
    %v1815 = vld [vmem:[#allocation11 + $0xea8] sm:$0xff]
    %v1816 = vld [vmem:[#allocation11 + $0xeb0] sm:$0xff]
    %v1817 = vld [vmem:[#allocation11 + $0xeb8] sm:$0xff]
    %v1818 = vld [vmem:[#allocation11 + $0xec0] sm:$0xff]
    %v1819 = vld [vmem:[#allocation11 + $0xec8] sm:$0xff]
    %v1820 = vld [vmem:[#allocation11 + $0xed0] sm:$0xff]
    %v1821 = vld [vmem:[#allocation11 + $0xed8] sm:$0xff]
    %v1822 = vld [vmem:[#allocation11 + $0xee0] sm:$0xff]
    %v1823 = vld [vmem:[#allocation11 + $0xee8] sm:$0xff]
    %v1824 = vld [vmem:[#allocation11 + $0xef0] sm:$0xff]
    %v1825 = vld [vmem:[#allocation11 + $0xef8] sm:$0xff]
    %v1826 = vld [vmem:[#allocation11 + $0xf00] sm:$0xff]
    %v1827 = vld [vmem:[#allocation11 + $0xf08] sm:$0xff]
    %v1828 = vld [vmem:[#allocation11 + $0xf10] sm:$0xff]
    %v1829 = vld [vmem:[#allocation11 + $0xf18] sm:$0xff]
    %v1830 = vld [vmem:[#allocation11 + $0xf20] sm:$0xff]
    %v1831 = vld [vmem:[#allocation11 + $0xf28] sm:$0xff]
    %v1832 = vld [vmem:[#allocation11 + $0xf30] sm:$0xff]
    %v1833 = vld [vmem:[#allocation11 + $0xf38] sm:$0xff]
    %v1834 = vld [vmem:[#allocation11 + $0xf40] sm:$0xff]
    %v1835 = vld [vmem:[#allocation11 + $0xf48] sm:$0xff]
    %v1836 = vld [vmem:[#allocation11 + $0xf50] sm:$0xff]
    %v1837 = vld [vmem:[#allocation11 + $0xf58] sm:$0xff]
    %v1838 = vld [vmem:[#allocation11 + $0xf60] sm:$0xff]
    %v1839 = vld [vmem:[#allocation11 + $0xf68] sm:$0xff]
    %v1840 = vld [vmem:[#allocation11 + $0xf70] sm:$0xff]
    %v1841 = vld [vmem:[#allocation11 + $0xf78] sm:$0xff]
    %v1842 = vld [vmem:[#allocation11 + $0xf80] sm:$0xff]
    %v1843 = vld [vmem:[#allocation11 + $0xf88] sm:$0xff]
    %v1844 = vld [vmem:[#allocation11 + $0xf90] sm:$0xff]
    %v1845 = vld [vmem:[#allocation11 + $0xf98] sm:$0xff]
    %v1846 = vld [vmem:[#allocation11 + $0xfa0] sm:$0xff]
    %v1847 = vld [vmem:[#allocation11 + $0xfa8] sm:$0xff]
    %v1848 = vld [vmem:[#allocation11 + $0xfb0] sm:$0xff]
    %v1849 = vld [vmem:[#allocation11 + $0xfb8] sm:$0xff]
    %v1850 = vld [vmem:[#allocation11 + $0xfc0] sm:$0xff]
    %v1851 = vld [vmem:[#allocation11 + $0xfc8] sm:$0xff]
    %v1852 = vld [vmem:[#allocation11 + $0xfd0] sm:$0xff]
    %v1853 = vld [vmem:[#allocation11 + $0xfd8] sm:$0xff]
    %v1854 = vld [vmem:[#allocation11 + $0xfe0] sm:$0xff]
    %v1855 = vld [vmem:[#allocation11 + $0xfe8] sm:$0xff]
    %v1856 = vld [vmem:[#allocation11 + $0xff0] sm:$0xff]
    %v1857 = vld [vmem:[#allocation11 + $0xff8] sm:$0xff]
    %v2370 = vunpack.c.l.b16 %v1346
    %v2371 = vunpack.c.h.b16 %v1346
    %v2372 = vunpack.c.l.b16 %v1347
    %v2373 = vunpack.c.h.b16 %v1347
    %v2374 = vunpack.c.l.b16 %v1348
    %v2375 = vunpack.c.h.b16 %v1348
    %v2376 = vunpack.c.l.b16 %v1349
    %v2377 = vunpack.c.h.b16 %v1349
    %v2378 = vunpack.c.l.b16 %v1350
    %v2379 = vunpack.c.h.b16 %v1350
    %v2380 = vunpack.c.l.b16 %v1351
    %v2381 = vunpack.c.h.b16 %v1351
    %v2382 = vunpack.c.l.b16 %v1352
    %v2383 = vunpack.c.h.b16 %v1352
    %v2384 = vunpack.c.l.b16 %v1353
    %v2385 = vunpack.c.h.b16 %v1353
    %v2386 = vunpack.c.l.b16 %v1354
    %v2387 = vunpack.c.h.b16 %v1354
    %v2388 = vunpack.c.l.b16 %v1355
    %v2389 = vunpack.c.h.b16 %v1355
    %v2390 = vunpack.c.l.b16 %v1356
    %v2391 = vunpack.c.h.b16 %v1356
    %v2392 = vunpack.c.l.b16 %v1357
    %v2393 = vunpack.c.h.b16 %v1357
    %v2394 = vunpack.c.l.b16 %v1358
    %v2395 = vunpack.c.h.b16 %v1358
    %v2396 = vunpack.c.l.b16 %v1359
    %v2397 = vunpack.c.h.b16 %v1359
    %v2398 = vunpack.c.l.b16 %v1360
    %v2399 = vunpack.c.h.b16 %v1360
    %v2400 = vunpack.c.l.b16 %v1361
    %v2401 = vunpack.c.h.b16 %v1361
    %v2402 = vunpack.c.l.b16 %v1362
    %v2403 = vunpack.c.h.b16 %v1362
    %v2404 = vunpack.c.l.b16 %v1363
    %v2405 = vunpack.c.h.b16 %v1363
    %v2406 = vunpack.c.l.b16 %v1364
    %v2407 = vunpack.c.h.b16 %v1364
    %v2408 = vunpack.c.l.b16 %v1365
    %v2409 = vunpack.c.h.b16 %v1365
    %v2410 = vunpack.c.l.b16 %v1366
    %v2411 = vunpack.c.h.b16 %v1366
    %v2412 = vunpack.c.l.b16 %v1367
    %v2413 = vunpack.c.h.b16 %v1367
    %v2414 = vunpack.c.l.b16 %v1368
    %v2415 = vunpack.c.h.b16 %v1368
    %v2416 = vunpack.c.l.b16 %v1369
    %v2417 = vunpack.c.h.b16 %v1369
    %v2418 = vunpack.c.l.b16 %v1370
    %v2419 = vunpack.c.h.b16 %v1370
    %v2420 = vunpack.c.l.b16 %v1371
    %v2421 = vunpack.c.h.b16 %v1371
    %v2422 = vunpack.c.l.b16 %v1372
    %v2423 = vunpack.c.h.b16 %v1372
    %v2424 = vunpack.c.l.b16 %v1373
    %v2425 = vunpack.c.h.b16 %v1373
    %v2426 = vunpack.c.l.b16 %v1374
    %v2427 = vunpack.c.h.b16 %v1374
    %v2428 = vunpack.c.l.b16 %v1375
    %v2429 = vunpack.c.h.b16 %v1375
    %v2430 = vunpack.c.l.b16 %v1376
    %v2431 = vunpack.c.h.b16 %v1376
    %v2432 = vunpack.c.l.b16 %v1377
    %v2433 = vunpack.c.h.b16 %v1377
    %v2434 = vunpack.c.l.b16 %v1378
    %v2435 = vunpack.c.h.b16 %v1378
    %v2436 = vunpack.c.l.b16 %v1379
    %v2437 = vunpack.c.h.b16 %v1379
    %v2438 = vunpack.c.l.b16 %v1380
    %v2439 = vunpack.c.h.b16 %v1380
    %v2440 = vunpack.c.l.b16 %v1381
    %v2441 = vunpack.c.h.b16 %v1381
    %v2442 = vunpack.c.l.b16 %v1382
    %v2443 = vunpack.c.h.b16 %v1382
    %v2444 = vunpack.c.l.b16 %v1383
    %v2445 = vunpack.c.h.b16 %v1383
    %v2446 = vunpack.c.l.b16 %v1384
    %v2447 = vunpack.c.h.b16 %v1384
    %v2448 = vunpack.c.l.b16 %v1385
    %v2449 = vunpack.c.h.b16 %v1385
    %v2450 = vunpack.c.l.b16 %v1386
    %v2451 = vunpack.c.h.b16 %v1386
    %v2452 = vunpack.c.l.b16 %v1387
    %v2453 = vunpack.c.h.b16 %v1387
    %v2454 = vunpack.c.l.b16 %v1388
    %v2455 = vunpack.c.h.b16 %v1388
    %v2456 = vunpack.c.l.b16 %v1389
    %v2457 = vunpack.c.h.b16 %v1389
    %v2458 = vunpack.c.l.b16 %v1390
    %v2459 = vunpack.c.h.b16 %v1390
    %v2460 = vunpack.c.l.b16 %v1391
    %v2461 = vunpack.c.h.b16 %v1391
    %v2462 = vunpack.c.l.b16 %v1392
    %v2463 = vunpack.c.h.b16 %v1392
    %v2464 = vunpack.c.l.b16 %v1393
    %v2465 = vunpack.c.h.b16 %v1393
    %v2466 = vunpack.c.l.b16 %v1394
    %v2467 = vunpack.c.h.b16 %v1394
    %v2468 = vunpack.c.l.b16 %v1395
    %v2469 = vunpack.c.h.b16 %v1395
    %v2470 = vunpack.c.l.b16 %v1396
    %v2471 = vunpack.c.h.b16 %v1396
    %v2472 = vunpack.c.l.b16 %v1397
    %v2473 = vunpack.c.h.b16 %v1397
    %v2474 = vunpack.c.l.b16 %v1398
    %v2475 = vunpack.c.h.b16 %v1398
    %v2476 = vunpack.c.l.b16 %v1399
    %v2477 = vunpack.c.h.b16 %v1399
    %v2478 = vunpack.c.l.b16 %v1400
    %v2479 = vunpack.c.h.b16 %v1400
    %v2480 = vunpack.c.l.b16 %v1401
    %v2481 = vunpack.c.h.b16 %v1401
    %v2482 = vunpack.c.l.b16 %v1402
    %v2483 = vunpack.c.h.b16 %v1402
    %v2484 = vunpack.c.l.b16 %v1403
    %v2485 = vunpack.c.h.b16 %v1403
    %v2486 = vunpack.c.l.b16 %v1404
    %v2487 = vunpack.c.h.b16 %v1404
    %v2488 = vunpack.c.l.b16 %v1405
    %v2489 = vunpack.c.h.b16 %v1405
    %v2490 = vunpack.c.l.b16 %v1406
    %v2491 = vunpack.c.h.b16 %v1406
    %v2492 = vunpack.c.l.b16 %v1407
    %v2493 = vunpack.c.h.b16 %v1407
    %v2494 = vunpack.c.l.b16 %v1408
    %v2495 = vunpack.c.h.b16 %v1408
    %v2496 = vunpack.c.l.b16 %v1409
    %v2497 = vunpack.c.h.b16 %v1409
    %v2498 = vunpack.c.l.b16 %v1410
    %v2499 = vunpack.c.h.b16 %v1410
    %v2500 = vunpack.c.l.b16 %v1411
    %v2501 = vunpack.c.h.b16 %v1411
    %v2502 = vunpack.c.l.b16 %v1412
    %v2503 = vunpack.c.h.b16 %v1412
    %v2504 = vunpack.c.l.b16 %v1413
    %v2505 = vunpack.c.h.b16 %v1413
    %v2506 = vunpack.c.l.b16 %v1414
    %v2507 = vunpack.c.h.b16 %v1414
    %v2508 = vunpack.c.l.b16 %v1415
    %v2509 = vunpack.c.h.b16 %v1415
    %v2510 = vunpack.c.l.b16 %v1416
    %v2511 = vunpack.c.h.b16 %v1416
    %v2512 = vunpack.c.l.b16 %v1417
    %v2513 = vunpack.c.h.b16 %v1417
    %v2514 = vunpack.c.l.b16 %v1418
    %v2515 = vunpack.c.h.b16 %v1418
    %v2516 = vunpack.c.l.b16 %v1419
    %v2517 = vunpack.c.h.b16 %v1419
    %v2518 = vunpack.c.l.b16 %v1420
    %v2519 = vunpack.c.h.b16 %v1420
    %v2520 = vunpack.c.l.b16 %v1421
    %v2521 = vunpack.c.h.b16 %v1421
    %v2522 = vunpack.c.l.b16 %v1422
    %v2523 = vunpack.c.h.b16 %v1422
    %v2524 = vunpack.c.l.b16 %v1423
    %v2525 = vunpack.c.h.b16 %v1423
    %v2526 = vunpack.c.l.b16 %v1424
    %v2527 = vunpack.c.h.b16 %v1424
    %v2528 = vunpack.c.l.b16 %v1425
    %v2529 = vunpack.c.h.b16 %v1425
    %v2530 = vunpack.c.l.b16 %v1426
    %v2531 = vunpack.c.h.b16 %v1426
    %v2532 = vunpack.c.l.b16 %v1427
    %v2533 = vunpack.c.h.b16 %v1427
    %v2534 = vunpack.c.l.b16 %v1428
    %v2535 = vunpack.c.h.b16 %v1428
    %v2536 = vunpack.c.l.b16 %v1429
    %v2537 = vunpack.c.h.b16 %v1429
    %v2538 = vunpack.c.l.b16 %v1430
    %v2539 = vunpack.c.h.b16 %v1430
    %v2540 = vunpack.c.l.b16 %v1431
    %v2541 = vunpack.c.h.b16 %v1431
    %v2542 = vunpack.c.l.b16 %v1432
    %v2543 = vunpack.c.h.b16 %v1432
    %v2544 = vunpack.c.l.b16 %v1433
    %v2545 = vunpack.c.h.b16 %v1433
    %v2546 = vunpack.c.l.b16 %v1434
    %v2547 = vunpack.c.h.b16 %v1434
    %v2548 = vunpack.c.l.b16 %v1435
    %v2549 = vunpack.c.h.b16 %v1435
    %v2550 = vunpack.c.l.b16 %v1436
    %v2551 = vunpack.c.h.b16 %v1436
    %v2552 = vunpack.c.l.b16 %v1437
    %v2553 = vunpack.c.h.b16 %v1437
    %v2554 = vunpack.c.l.b16 %v1438
    %v2555 = vunpack.c.h.b16 %v1438
    %v2556 = vunpack.c.l.b16 %v1439
    %v2557 = vunpack.c.h.b16 %v1439
    %v2558 = vunpack.c.l.b16 %v1440
    %v2559 = vunpack.c.h.b16 %v1440
    %v2560 = vunpack.c.l.b16 %v1441
    %v2561 = vunpack.c.h.b16 %v1441
    %v2562 = vunpack.c.l.b16 %v1442
    %v2563 = vunpack.c.h.b16 %v1442
    %v2564 = vunpack.c.l.b16 %v1443
    %v2565 = vunpack.c.h.b16 %v1443
    %v2566 = vunpack.c.l.b16 %v1444
    %v2567 = vunpack.c.h.b16 %v1444
    %v2568 = vunpack.c.l.b16 %v1445
    %v2569 = vunpack.c.h.b16 %v1445
    %v2570 = vunpack.c.l.b16 %v1446
    %v2571 = vunpack.c.h.b16 %v1446
    %v2572 = vunpack.c.l.b16 %v1447
    %v2573 = vunpack.c.h.b16 %v1447
    %v2574 = vunpack.c.l.b16 %v1448
    %v2575 = vunpack.c.h.b16 %v1448
    %v2576 = vunpack.c.l.b16 %v1449
    %v2577 = vunpack.c.h.b16 %v1449
    %v2578 = vunpack.c.l.b16 %v1450
    %v2579 = vunpack.c.h.b16 %v1450
    %v2580 = vunpack.c.l.b16 %v1451
    %v2581 = vunpack.c.h.b16 %v1451
    %v2582 = vunpack.c.l.b16 %v1452
    %v2583 = vunpack.c.h.b16 %v1452
    %v2584 = vunpack.c.l.b16 %v1453
    %v2585 = vunpack.c.h.b16 %v1453
    %v2586 = vunpack.c.l.b16 %v1454
    %v2587 = vunpack.c.h.b16 %v1454
    %v2588 = vunpack.c.l.b16 %v1455
    %v2589 = vunpack.c.h.b16 %v1455
    %v2590 = vunpack.c.l.b16 %v1456
    %v2591 = vunpack.c.h.b16 %v1456
    %v2592 = vunpack.c.l.b16 %v1457
    %v2593 = vunpack.c.h.b16 %v1457
    %v2594 = vunpack.c.l.b16 %v1458
    %v2595 = vunpack.c.h.b16 %v1458
    %v2596 = vunpack.c.l.b16 %v1459
    %v2597 = vunpack.c.h.b16 %v1459
    %v2598 = vunpack.c.l.b16 %v1460
    %v2599 = vunpack.c.h.b16 %v1460
    %v2600 = vunpack.c.l.b16 %v1461
    %v2601 = vunpack.c.h.b16 %v1461
    %v2602 = vunpack.c.l.b16 %v1462
    %v2603 = vunpack.c.h.b16 %v1462
    %v2604 = vunpack.c.l.b16 %v1463
    %v2605 = vunpack.c.h.b16 %v1463
    %v2606 = vunpack.c.l.b16 %v1464
    %v2607 = vunpack.c.h.b16 %v1464
    %v2608 = vunpack.c.l.b16 %v1465
    %v2609 = vunpack.c.h.b16 %v1465
    %v2610 = vunpack.c.l.b16 %v1466
    %v2611 = vunpack.c.h.b16 %v1466
    %v2612 = vunpack.c.l.b16 %v1467
    %v2613 = vunpack.c.h.b16 %v1467
    %v2614 = vunpack.c.l.b16 %v1468
    %v2615 = vunpack.c.h.b16 %v1468
    %v2616 = vunpack.c.l.b16 %v1469
    %v2617 = vunpack.c.h.b16 %v1469
    %v2618 = vunpack.c.l.b16 %v1470
    %v2619 = vunpack.c.h.b16 %v1470
    %v2620 = vunpack.c.l.b16 %v1471
    %v2621 = vunpack.c.h.b16 %v1471
    %v2622 = vunpack.c.l.b16 %v1472
    %v2623 = vunpack.c.h.b16 %v1472
    %v2624 = vunpack.c.l.b16 %v1473
    %v2625 = vunpack.c.h.b16 %v1473
    %v2626 = vunpack.c.l.b16 %v1474
    %v2627 = vunpack.c.h.b16 %v1474
    %v2628 = vunpack.c.l.b16 %v1475
    %v2629 = vunpack.c.h.b16 %v1475
    %v2630 = vunpack.c.l.b16 %v1476
    %v2631 = vunpack.c.h.b16 %v1476
    %v2632 = vunpack.c.l.b16 %v1477
    %v2633 = vunpack.c.h.b16 %v1477
    %v2634 = vunpack.c.l.b16 %v1478
    %v2635 = vunpack.c.h.b16 %v1478
    %v2636 = vunpack.c.l.b16 %v1479
    %v2637 = vunpack.c.h.b16 %v1479
    %v2638 = vunpack.c.l.b16 %v1480
    %v2639 = vunpack.c.h.b16 %v1480
    %v2640 = vunpack.c.l.b16 %v1481
    %v2641 = vunpack.c.h.b16 %v1481
    %v2642 = vunpack.c.l.b16 %v1482
    %v2643 = vunpack.c.h.b16 %v1482
    %v2644 = vunpack.c.l.b16 %v1483
    %v2645 = vunpack.c.h.b16 %v1483
    %v2646 = vunpack.c.l.b16 %v1484
    %v2647 = vunpack.c.h.b16 %v1484
    %v2648 = vunpack.c.l.b16 %v1485
    %v2649 = vunpack.c.h.b16 %v1485
    %v2650 = vunpack.c.l.b16 %v1486
    %v2651 = vunpack.c.h.b16 %v1486
    %v2652 = vunpack.c.l.b16 %v1487
    %v2653 = vunpack.c.h.b16 %v1487
    %v2654 = vunpack.c.l.b16 %v1488
    %v2655 = vunpack.c.h.b16 %v1488
    %v2656 = vunpack.c.l.b16 %v1489
    %v2657 = vunpack.c.h.b16 %v1489
    %v2658 = vunpack.c.l.b16 %v1490
    %v2659 = vunpack.c.h.b16 %v1490
    %v2660 = vunpack.c.l.b16 %v1491
    %v2661 = vunpack.c.h.b16 %v1491
    %v2662 = vunpack.c.l.b16 %v1492
    %v2663 = vunpack.c.h.b16 %v1492
    %v2664 = vunpack.c.l.b16 %v1493
    %v2665 = vunpack.c.h.b16 %v1493
    %v2666 = vunpack.c.l.b16 %v1494
    %v2667 = vunpack.c.h.b16 %v1494
    %v2668 = vunpack.c.l.b16 %v1495
    %v2669 = vunpack.c.h.b16 %v1495
    %v2670 = vunpack.c.l.b16 %v1496
    %v2671 = vunpack.c.h.b16 %v1496
    %v2672 = vunpack.c.l.b16 %v1497
    %v2673 = vunpack.c.h.b16 %v1497
    %v2674 = vunpack.c.l.b16 %v1498
    %v2675 = vunpack.c.h.b16 %v1498
    %v2676 = vunpack.c.l.b16 %v1499
    %v2677 = vunpack.c.h.b16 %v1499
    %v2678 = vunpack.c.l.b16 %v1500
    %v2679 = vunpack.c.h.b16 %v1500
    %v2680 = vunpack.c.l.b16 %v1501
    %v2681 = vunpack.c.h.b16 %v1501
    %v2682 = vunpack.c.l.b16 %v1502
    %v2683 = vunpack.c.h.b16 %v1502
    %v2684 = vunpack.c.l.b16 %v1503
    %v2685 = vunpack.c.h.b16 %v1503
    %v2686 = vunpack.c.l.b16 %v1504
    %v2687 = vunpack.c.h.b16 %v1504
    %v2688 = vunpack.c.l.b16 %v1505
    %v2689 = vunpack.c.h.b16 %v1505
    %v2690 = vunpack.c.l.b16 %v1506
    %v2691 = vunpack.c.h.b16 %v1506
    %v2692 = vunpack.c.l.b16 %v1507
    %v2693 = vunpack.c.h.b16 %v1507
    %v2694 = vunpack.c.l.b16 %v1508
    %v2695 = vunpack.c.h.b16 %v1508
    %v2696 = vunpack.c.l.b16 %v1509
    %v2697 = vunpack.c.h.b16 %v1509
    %v2698 = vunpack.c.l.b16 %v1510
    %v2699 = vunpack.c.h.b16 %v1510
    %v2700 = vunpack.c.l.b16 %v1511
    %v2701 = vunpack.c.h.b16 %v1511
    %v2702 = vunpack.c.l.b16 %v1512
    %v2703 = vunpack.c.h.b16 %v1512
    %v2704 = vunpack.c.l.b16 %v1513
    %v2705 = vunpack.c.h.b16 %v1513
    %v2706 = vunpack.c.l.b16 %v1514
    %v2707 = vunpack.c.h.b16 %v1514
    %v2708 = vunpack.c.l.b16 %v1515
    %v2709 = vunpack.c.h.b16 %v1515
    %v2710 = vunpack.c.l.b16 %v1516
    %v2711 = vunpack.c.h.b16 %v1516
    %v2712 = vunpack.c.l.b16 %v1517
    %v2713 = vunpack.c.h.b16 %v1517
    %v2714 = vunpack.c.l.b16 %v1518
    %v2715 = vunpack.c.h.b16 %v1518
    %v2716 = vunpack.c.l.b16 %v1519
    %v2717 = vunpack.c.h.b16 %v1519
    %v2718 = vunpack.c.l.b16 %v1520
    %v2719 = vunpack.c.h.b16 %v1520
    %v2720 = vunpack.c.l.b16 %v1521
    %v2721 = vunpack.c.h.b16 %v1521
    %v2722 = vunpack.c.l.b16 %v1522
    %v2723 = vunpack.c.h.b16 %v1522
    %v2724 = vunpack.c.l.b16 %v1523
    %v2725 = vunpack.c.h.b16 %v1523
    %v2726 = vunpack.c.l.b16 %v1524
    %v2727 = vunpack.c.h.b16 %v1524
    %v2728 = vunpack.c.l.b16 %v1525
    %v2729 = vunpack.c.h.b16 %v1525
    %v2730 = vunpack.c.l.b16 %v1526
    %v2731 = vunpack.c.h.b16 %v1526
    %v2732 = vunpack.c.l.b16 %v1527
    %v2733 = vunpack.c.h.b16 %v1527
    %v2734 = vunpack.c.l.b16 %v1528
    %v2735 = vunpack.c.h.b16 %v1528
    %v2736 = vunpack.c.l.b16 %v1529
    %v2737 = vunpack.c.h.b16 %v1529
    %v2738 = vunpack.c.l.b16 %v1530
    %v2739 = vunpack.c.h.b16 %v1530
    %v2740 = vunpack.c.l.b16 %v1531
    %v2741 = vunpack.c.h.b16 %v1531
    %v2742 = vunpack.c.l.b16 %v1532
    %v2743 = vunpack.c.h.b16 %v1532
    %v2744 = vunpack.c.l.b16 %v1533
    %v2745 = vunpack.c.h.b16 %v1533
    %v2746 = vunpack.c.l.b16 %v1534
    %v2747 = vunpack.c.h.b16 %v1534
    %v2748 = vunpack.c.l.b16 %v1535
    %v2749 = vunpack.c.h.b16 %v1535
    %v2750 = vunpack.c.l.b16 %v1536
    %v2751 = vunpack.c.h.b16 %v1536
    %v2752 = vunpack.c.l.b16 %v1537
    %v2753 = vunpack.c.h.b16 %v1537
    %v2754 = vunpack.c.l.b16 %v1538
    %v2755 = vunpack.c.h.b16 %v1538
    %v2756 = vunpack.c.l.b16 %v1539
    %v2757 = vunpack.c.h.b16 %v1539
    %v2758 = vunpack.c.l.b16 %v1540
    %v2759 = vunpack.c.h.b16 %v1540
    %v2760 = vunpack.c.l.b16 %v1541
    %v2761 = vunpack.c.h.b16 %v1541
    %v2762 = vunpack.c.l.b16 %v1542
    %v2763 = vunpack.c.h.b16 %v1542
    %v2764 = vunpack.c.l.b16 %v1543
    %v2765 = vunpack.c.h.b16 %v1543
    %v2766 = vunpack.c.l.b16 %v1544
    %v2767 = vunpack.c.h.b16 %v1544
    %v2768 = vunpack.c.l.b16 %v1545
    %v2769 = vunpack.c.h.b16 %v1545
    %v2770 = vunpack.c.l.b16 %v1546
    %v2771 = vunpack.c.h.b16 %v1546
    %v2772 = vunpack.c.l.b16 %v1547
    %v2773 = vunpack.c.h.b16 %v1547
    %v2774 = vunpack.c.l.b16 %v1548
    %v2775 = vunpack.c.h.b16 %v1548
    %v2776 = vunpack.c.l.b16 %v1549
    %v2777 = vunpack.c.h.b16 %v1549
    %v2778 = vunpack.c.l.b16 %v1550
    %v2779 = vunpack.c.h.b16 %v1550
    %v2780 = vunpack.c.l.b16 %v1551
    %v2781 = vunpack.c.h.b16 %v1551
    %v2782 = vunpack.c.l.b16 %v1552
    %v2783 = vunpack.c.h.b16 %v1552
    %v2784 = vunpack.c.l.b16 %v1553
    %v2785 = vunpack.c.h.b16 %v1553
    %v2786 = vunpack.c.l.b16 %v1554
    %v2787 = vunpack.c.h.b16 %v1554
    %v2788 = vunpack.c.l.b16 %v1555
    %v2789 = vunpack.c.h.b16 %v1555
    %v2790 = vunpack.c.l.b16 %v1556
    %v2791 = vunpack.c.h.b16 %v1556
    %v2792 = vunpack.c.l.b16 %v1557
    %v2793 = vunpack.c.h.b16 %v1557
    %v2794 = vunpack.c.l.b16 %v1558
    %v2795 = vunpack.c.h.b16 %v1558
    %v2796 = vunpack.c.l.b16 %v1559
    %v2797 = vunpack.c.h.b16 %v1559
    %v2798 = vunpack.c.l.b16 %v1560
    %v2799 = vunpack.c.h.b16 %v1560
    %v2800 = vunpack.c.l.b16 %v1561
    %v2801 = vunpack.c.h.b16 %v1561
    %v2802 = vunpack.c.l.b16 %v1562
    %v2803 = vunpack.c.h.b16 %v1562
    %v2804 = vunpack.c.l.b16 %v1563
    %v2805 = vunpack.c.h.b16 %v1563
    %v2806 = vunpack.c.l.b16 %v1564
    %v2807 = vunpack.c.h.b16 %v1564
    %v2808 = vunpack.c.l.b16 %v1565
    %v2809 = vunpack.c.h.b16 %v1565
    %v2810 = vunpack.c.l.b16 %v1566
    %v2811 = vunpack.c.h.b16 %v1566
    %v2812 = vunpack.c.l.b16 %v1567
    %v2813 = vunpack.c.h.b16 %v1567
    %v2814 = vunpack.c.l.b16 %v1568
    %v2815 = vunpack.c.h.b16 %v1568
    %v2816 = vunpack.c.l.b16 %v1569
    %v2817 = vunpack.c.h.b16 %v1569
    %v2818 = vunpack.c.l.b16 %v1570
    %v2819 = vunpack.c.h.b16 %v1570
    %v2820 = vunpack.c.l.b16 %v1571
    %v2821 = vunpack.c.h.b16 %v1571
    %v2822 = vunpack.c.l.b16 %v1572
    %v2823 = vunpack.c.h.b16 %v1572
    %v2824 = vunpack.c.l.b16 %v1573
    %v2825 = vunpack.c.h.b16 %v1573
    %v2826 = vunpack.c.l.b16 %v1574
    %v2827 = vunpack.c.h.b16 %v1574
    %v2828 = vunpack.c.l.b16 %v1575
    %v2829 = vunpack.c.h.b16 %v1575
    %v2830 = vunpack.c.l.b16 %v1576
    %v2831 = vunpack.c.h.b16 %v1576
    %v2832 = vunpack.c.l.b16 %v1577
    %v2833 = vunpack.c.h.b16 %v1577
    %v2834 = vunpack.c.l.b16 %v1578
    %v2835 = vunpack.c.h.b16 %v1578
    %v2836 = vunpack.c.l.b16 %v1579
    %v2837 = vunpack.c.h.b16 %v1579
    %v2838 = vunpack.c.l.b16 %v1580
    %v2839 = vunpack.c.h.b16 %v1580
    %v2840 = vunpack.c.l.b16 %v1581
    %v2841 = vunpack.c.h.b16 %v1581
    %v2842 = vunpack.c.l.b16 %v1582
    %v2843 = vunpack.c.h.b16 %v1582
    %v2844 = vunpack.c.l.b16 %v1583
    %v2845 = vunpack.c.h.b16 %v1583
    %v2846 = vunpack.c.l.b16 %v1584
    %v2847 = vunpack.c.h.b16 %v1584
    %v2848 = vunpack.c.l.b16 %v1585
    %v2849 = vunpack.c.h.b16 %v1585
    %v2850 = vunpack.c.l.b16 %v1586
    %v2851 = vunpack.c.h.b16 %v1586
    %v2852 = vunpack.c.l.b16 %v1587
    %v2853 = vunpack.c.h.b16 %v1587
    %v2854 = vunpack.c.l.b16 %v1588
    %v2855 = vunpack.c.h.b16 %v1588
    %v2856 = vunpack.c.l.b16 %v1589
    %v2857 = vunpack.c.h.b16 %v1589
    %v2858 = vunpack.c.l.b16 %v1590
    %v2859 = vunpack.c.h.b16 %v1590
    %v2860 = vunpack.c.l.b16 %v1591
    %v2861 = vunpack.c.h.b16 %v1591
    %v2862 = vunpack.c.l.b16 %v1592
    %v2863 = vunpack.c.h.b16 %v1592
    %v2864 = vunpack.c.l.b16 %v1593
    %v2865 = vunpack.c.h.b16 %v1593
    %v2866 = vunpack.c.l.b16 %v1594
    %v2867 = vunpack.c.h.b16 %v1594
    %v2868 = vunpack.c.l.b16 %v1595
    %v2869 = vunpack.c.h.b16 %v1595
    %v2870 = vunpack.c.l.b16 %v1596
    %v2871 = vunpack.c.h.b16 %v1596
    %v2872 = vunpack.c.l.b16 %v1597
    %v2873 = vunpack.c.h.b16 %v1597
    %v2874 = vunpack.c.l.b16 %v1598
    %v2875 = vunpack.c.h.b16 %v1598
    %v2876 = vunpack.c.l.b16 %v1599
    %v2877 = vunpack.c.h.b16 %v1599
    %v2878 = vunpack.c.l.b16 %v1600
    %v2879 = vunpack.c.h.b16 %v1600
    %v2880 = vunpack.c.l.b16 %v1601
    %v2881 = vunpack.c.h.b16 %v1601
    %v2882 = vunpack.c.l.b16 %v1602
    %v2883 = vunpack.c.h.b16 %v1602
    %v2884 = vunpack.c.l.b16 %v1603
    %v2885 = vunpack.c.h.b16 %v1603
    %v2886 = vunpack.c.l.b16 %v1604
    %v2887 = vunpack.c.h.b16 %v1604
    %v2888 = vunpack.c.l.b16 %v1605
    %v2889 = vunpack.c.h.b16 %v1605
    %v2890 = vunpack.c.l.b16 %v1606
    %v2891 = vunpack.c.h.b16 %v1606
    %v2892 = vunpack.c.l.b16 %v1607
    %v2893 = vunpack.c.h.b16 %v1607
    %v2894 = vunpack.c.l.b16 %v1608
    %v2895 = vunpack.c.h.b16 %v1608
    %v2896 = vunpack.c.l.b16 %v1609
    %v2897 = vunpack.c.h.b16 %v1609
    %v2898 = vunpack.c.l.b16 %v1610
    %v2899 = vunpack.c.h.b16 %v1610
    %v2900 = vunpack.c.l.b16 %v1611
    %v2901 = vunpack.c.h.b16 %v1611
    %v2902 = vunpack.c.l.b16 %v1612
    %v2903 = vunpack.c.h.b16 %v1612
    %v2904 = vunpack.c.l.b16 %v1613
    %v2905 = vunpack.c.h.b16 %v1613
    %v2906 = vunpack.c.l.b16 %v1614
    %v2907 = vunpack.c.h.b16 %v1614
    %v2908 = vunpack.c.l.b16 %v1615
    %v2909 = vunpack.c.h.b16 %v1615
    %v2910 = vunpack.c.l.b16 %v1616
    %v2911 = vunpack.c.h.b16 %v1616
    %v2912 = vunpack.c.l.b16 %v1617
    %v2913 = vunpack.c.h.b16 %v1617
    %v2914 = vunpack.c.l.b16 %v1618
    %v2915 = vunpack.c.h.b16 %v1618
    %v2916 = vunpack.c.l.b16 %v1619
    %v2917 = vunpack.c.h.b16 %v1619
    %v2918 = vunpack.c.l.b16 %v1620
    %v2919 = vunpack.c.h.b16 %v1620
    %v2920 = vunpack.c.l.b16 %v1621
    %v2921 = vunpack.c.h.b16 %v1621
    %v2922 = vunpack.c.l.b16 %v1622
    %v2923 = vunpack.c.h.b16 %v1622
    %v2924 = vunpack.c.l.b16 %v1623
    %v2925 = vunpack.c.h.b16 %v1623
    %v2926 = vunpack.c.l.b16 %v1624
    %v2927 = vunpack.c.h.b16 %v1624
    %v2928 = vunpack.c.l.b16 %v1625
    %v2929 = vunpack.c.h.b16 %v1625
    %v2930 = vunpack.c.l.b16 %v1626
    %v2931 = vunpack.c.h.b16 %v1626
    %v2932 = vunpack.c.l.b16 %v1627
    %v2933 = vunpack.c.h.b16 %v1627
    %v2934 = vunpack.c.l.b16 %v1628
    %v2935 = vunpack.c.h.b16 %v1628
    %v2936 = vunpack.c.l.b16 %v1629
    %v2937 = vunpack.c.h.b16 %v1629
    %v2938 = vunpack.c.l.b16 %v1630
    %v2939 = vunpack.c.h.b16 %v1630
    %v2940 = vunpack.c.l.b16 %v1631
    %v2941 = vunpack.c.h.b16 %v1631
    %v2942 = vunpack.c.l.b16 %v1632
    %v2943 = vunpack.c.h.b16 %v1632
    %v2944 = vunpack.c.l.b16 %v1633
    %v2945 = vunpack.c.h.b16 %v1633
    %v2946 = vunpack.c.l.b16 %v1634
    %v2947 = vunpack.c.h.b16 %v1634
    %v2948 = vunpack.c.l.b16 %v1635
    %v2949 = vunpack.c.h.b16 %v1635
    %v2950 = vunpack.c.l.b16 %v1636
    %v2951 = vunpack.c.h.b16 %v1636
    %v2952 = vunpack.c.l.b16 %v1637
    %v2953 = vunpack.c.h.b16 %v1637
    %v2954 = vunpack.c.l.b16 %v1638
    %v2955 = vunpack.c.h.b16 %v1638
    %v2956 = vunpack.c.l.b16 %v1639
    %v2957 = vunpack.c.h.b16 %v1639
    %v2958 = vunpack.c.l.b16 %v1640
    %v2959 = vunpack.c.h.b16 %v1640
    %v2960 = vunpack.c.l.b16 %v1641
    %v2961 = vunpack.c.h.b16 %v1641
    %v2962 = vunpack.c.l.b16 %v1642
    %v2963 = vunpack.c.h.b16 %v1642
    %v2964 = vunpack.c.l.b16 %v1643
    %v2965 = vunpack.c.h.b16 %v1643
    %v2966 = vunpack.c.l.b16 %v1644
    %v2967 = vunpack.c.h.b16 %v1644
    %v2968 = vunpack.c.l.b16 %v1645
    %v2969 = vunpack.c.h.b16 %v1645
    %v2970 = vunpack.c.l.b16 %v1646
    %v2971 = vunpack.c.h.b16 %v1646
    %v2972 = vunpack.c.l.b16 %v1647
    %v2973 = vunpack.c.h.b16 %v1647
    %v2974 = vunpack.c.l.b16 %v1648
    %v2975 = vunpack.c.h.b16 %v1648
    %v2976 = vunpack.c.l.b16 %v1649
    %v2977 = vunpack.c.h.b16 %v1649
    %v2978 = vunpack.c.l.b16 %v1650
    %v2979 = vunpack.c.h.b16 %v1650
    %v2980 = vunpack.c.l.b16 %v1651
    %v2981 = vunpack.c.h.b16 %v1651
    %v2982 = vunpack.c.l.b16 %v1652
    %v2983 = vunpack.c.h.b16 %v1652
    %v2984 = vunpack.c.l.b16 %v1653
    %v2985 = vunpack.c.h.b16 %v1653
    %v2986 = vunpack.c.l.b16 %v1654
    %v2987 = vunpack.c.h.b16 %v1654
    %v2988 = vunpack.c.l.b16 %v1655
    %v2989 = vunpack.c.h.b16 %v1655
    %v2990 = vunpack.c.l.b16 %v1656
    %v2991 = vunpack.c.h.b16 %v1656
    %v2992 = vunpack.c.l.b16 %v1657
    %v2993 = vunpack.c.h.b16 %v1657
    %v2994 = vunpack.c.l.b16 %v1658
    %v2995 = vunpack.c.h.b16 %v1658
    %v2996 = vunpack.c.l.b16 %v1659
    %v2997 = vunpack.c.h.b16 %v1659
    %v2998 = vunpack.c.l.b16 %v1660
    %v2999 = vunpack.c.h.b16 %v1660
    %v3000 = vunpack.c.l.b16 %v1661
    %v3001 = vunpack.c.h.b16 %v1661
    %v3002 = vunpack.c.l.b16 %v1662
    %v3003 = vunpack.c.h.b16 %v1662
    %v3004 = vunpack.c.l.b16 %v1663
    %v3005 = vunpack.c.h.b16 %v1663
    %v3006 = vunpack.c.l.b16 %v1664
    %v3007 = vunpack.c.h.b16 %v1664
    %v3008 = vunpack.c.l.b16 %v1665
    %v3009 = vunpack.c.h.b16 %v1665
    %v3010 = vunpack.c.l.b16 %v1666
    %v3011 = vunpack.c.h.b16 %v1666
    %v3012 = vunpack.c.l.b16 %v1667
    %v3013 = vunpack.c.h.b16 %v1667
    %v3014 = vunpack.c.l.b16 %v1668
    %v3015 = vunpack.c.h.b16 %v1668
    %v3016 = vunpack.c.l.b16 %v1669
    %v3017 = vunpack.c.h.b16 %v1669
    %v3018 = vunpack.c.l.b16 %v1670
    %v3019 = vunpack.c.h.b16 %v1670
    %v3020 = vunpack.c.l.b16 %v1671
    %v3021 = vunpack.c.h.b16 %v1671
    %v3022 = vunpack.c.l.b16 %v1672
    %v3023 = vunpack.c.h.b16 %v1672
    %v3024 = vunpack.c.l.b16 %v1673
    %v3025 = vunpack.c.h.b16 %v1673
    %v3026 = vunpack.c.l.b16 %v1674
    %v3027 = vunpack.c.h.b16 %v1674
    %v3028 = vunpack.c.l.b16 %v1675
    %v3029 = vunpack.c.h.b16 %v1675
    %v3030 = vunpack.c.l.b16 %v1676
    %v3031 = vunpack.c.h.b16 %v1676
    %v3032 = vunpack.c.l.b16 %v1677
    %v3033 = vunpack.c.h.b16 %v1677
    %v3034 = vunpack.c.l.b16 %v1678
    %v3035 = vunpack.c.h.b16 %v1678
    %v3036 = vunpack.c.l.b16 %v1679
    %v3037 = vunpack.c.h.b16 %v1679
    %v3038 = vunpack.c.l.b16 %v1680
    %v3039 = vunpack.c.h.b16 %v1680
    %v3040 = vunpack.c.l.b16 %v1681
    %v3041 = vunpack.c.h.b16 %v1681
    %v3042 = vunpack.c.l.b16 %v1682
    %v3043 = vunpack.c.h.b16 %v1682
    %v3044 = vunpack.c.l.b16 %v1683
    %v3045 = vunpack.c.h.b16 %v1683
    %v3046 = vunpack.c.l.b16 %v1684
    %v3047 = vunpack.c.h.b16 %v1684
    %v3048 = vunpack.c.l.b16 %v1685
    %v3049 = vunpack.c.h.b16 %v1685
    %v3050 = vunpack.c.l.b16 %v1686
    %v3051 = vunpack.c.h.b16 %v1686
    %v3052 = vunpack.c.l.b16 %v1687
    %v3053 = vunpack.c.h.b16 %v1687
    %v3054 = vunpack.c.l.b16 %v1688
    %v3055 = vunpack.c.h.b16 %v1688
    %v3056 = vunpack.c.l.b16 %v1689
    %v3057 = vunpack.c.h.b16 %v1689
    %v3058 = vunpack.c.l.b16 %v1690
    %v3059 = vunpack.c.h.b16 %v1690
    %v3060 = vunpack.c.l.b16 %v1691
    %v3061 = vunpack.c.h.b16 %v1691
    %v3062 = vunpack.c.l.b16 %v1692
    %v3063 = vunpack.c.h.b16 %v1692
    %v3064 = vunpack.c.l.b16 %v1693
    %v3065 = vunpack.c.h.b16 %v1693
    %v3066 = vunpack.c.l.b16 %v1694
    %v3067 = vunpack.c.h.b16 %v1694
    %v3068 = vunpack.c.l.b16 %v1695
    %v3069 = vunpack.c.h.b16 %v1695
    %v3070 = vunpack.c.l.b16 %v1696
    %v3071 = vunpack.c.h.b16 %v1696
    %v3072 = vunpack.c.l.b16 %v1697
    %v3073 = vunpack.c.h.b16 %v1697
    %v3074 = vunpack.c.l.b16 %v1698
    %v3075 = vunpack.c.h.b16 %v1698
    %v3076 = vunpack.c.l.b16 %v1699
    %v3077 = vunpack.c.h.b16 %v1699
    %v3078 = vunpack.c.l.b16 %v1700
    %v3079 = vunpack.c.h.b16 %v1700
    %v3080 = vunpack.c.l.b16 %v1701
    %v3081 = vunpack.c.h.b16 %v1701
    %v3082 = vunpack.c.l.b16 %v1702
    %v3083 = vunpack.c.h.b16 %v1702
    %v3084 = vunpack.c.l.b16 %v1703
    %v3085 = vunpack.c.h.b16 %v1703
    %v3086 = vunpack.c.l.b16 %v1704
    %v3087 = vunpack.c.h.b16 %v1704
    %v3088 = vunpack.c.l.b16 %v1705
    %v3089 = vunpack.c.h.b16 %v1705
    %v3090 = vunpack.c.l.b16 %v1706
    %v3091 = vunpack.c.h.b16 %v1706
    %v3092 = vunpack.c.l.b16 %v1707
    %v3093 = vunpack.c.h.b16 %v1707
    %v3094 = vunpack.c.l.b16 %v1708
    %v3095 = vunpack.c.h.b16 %v1708
    %v3096 = vunpack.c.l.b16 %v1709
    %v3097 = vunpack.c.h.b16 %v1709
    %v3098 = vunpack.c.l.b16 %v1710
    %v3099 = vunpack.c.h.b16 %v1710
    %v3100 = vunpack.c.l.b16 %v1711
    %v3101 = vunpack.c.h.b16 %v1711
    %v3102 = vunpack.c.l.b16 %v1712
    %v3103 = vunpack.c.h.b16 %v1712
    %v3104 = vunpack.c.l.b16 %v1713
    %v3105 = vunpack.c.h.b16 %v1713
    %v3106 = vunpack.c.l.b16 %v1714
    %v3107 = vunpack.c.h.b16 %v1714
    %v3108 = vunpack.c.l.b16 %v1715
    %v3109 = vunpack.c.h.b16 %v1715
    %v3110 = vunpack.c.l.b16 %v1716
    %v3111 = vunpack.c.h.b16 %v1716
    %v3112 = vunpack.c.l.b16 %v1717
    %v3113 = vunpack.c.h.b16 %v1717
    %v3114 = vunpack.c.l.b16 %v1718
    %v3115 = vunpack.c.h.b16 %v1718
    %v3116 = vunpack.c.l.b16 %v1719
    %v3117 = vunpack.c.h.b16 %v1719
    %v3118 = vunpack.c.l.b16 %v1720
    %v3119 = vunpack.c.h.b16 %v1720
    %v3120 = vunpack.c.l.b16 %v1721
    %v3121 = vunpack.c.h.b16 %v1721
    %v3122 = vunpack.c.l.b16 %v1722
    %v3123 = vunpack.c.h.b16 %v1722
    %v3124 = vunpack.c.l.b16 %v1723
    %v3125 = vunpack.c.h.b16 %v1723
    %v3126 = vunpack.c.l.b16 %v1724
    %v3127 = vunpack.c.h.b16 %v1724
    %v3128 = vunpack.c.l.b16 %v1725
    %v3129 = vunpack.c.h.b16 %v1725
    %v3130 = vunpack.c.l.b16 %v1726
    %v3131 = vunpack.c.h.b16 %v1726
    %v3132 = vunpack.c.l.b16 %v1727
    %v3133 = vunpack.c.h.b16 %v1727
    %v3134 = vunpack.c.l.b16 %v1728
    %v3135 = vunpack.c.h.b16 %v1728
    %v3136 = vunpack.c.l.b16 %v1729
    %v3137 = vunpack.c.h.b16 %v1729
    %v3138 = vunpack.c.l.b16 %v1730
    %v3139 = vunpack.c.h.b16 %v1730
    %v3140 = vunpack.c.l.b16 %v1731
    %v3141 = vunpack.c.h.b16 %v1731
    %v3142 = vunpack.c.l.b16 %v1732
    %v3143 = vunpack.c.h.b16 %v1732
    %v3144 = vunpack.c.l.b16 %v1733
    %v3145 = vunpack.c.h.b16 %v1733
    %v3146 = vunpack.c.l.b16 %v1734
    %v3147 = vunpack.c.h.b16 %v1734
    %v3148 = vunpack.c.l.b16 %v1735
    %v3149 = vunpack.c.h.b16 %v1735
    %v3150 = vunpack.c.l.b16 %v1736
    %v3151 = vunpack.c.h.b16 %v1736
    %v3152 = vunpack.c.l.b16 %v1737
    %v3153 = vunpack.c.h.b16 %v1737
    %v3154 = vunpack.c.l.b16 %v1738
    %v3155 = vunpack.c.h.b16 %v1738
    %v3156 = vunpack.c.l.b16 %v1739
    %v3157 = vunpack.c.h.b16 %v1739
    %v3158 = vunpack.c.l.b16 %v1740
    %v3159 = vunpack.c.h.b16 %v1740
    %v3160 = vunpack.c.l.b16 %v1741
    %v3161 = vunpack.c.h.b16 %v1741
    %v3162 = vunpack.c.l.b16 %v1742
    %v3163 = vunpack.c.h.b16 %v1742
    %v3164 = vunpack.c.l.b16 %v1743
    %v3165 = vunpack.c.h.b16 %v1743
    %v3166 = vunpack.c.l.b16 %v1744
    %v3167 = vunpack.c.h.b16 %v1744
    %v3168 = vunpack.c.l.b16 %v1745
    %v3169 = vunpack.c.h.b16 %v1745
    %v3170 = vunpack.c.l.b16 %v1746
    %v3171 = vunpack.c.h.b16 %v1746
    %v3172 = vunpack.c.l.b16 %v1747
    %v3173 = vunpack.c.h.b16 %v1747
    %v3174 = vunpack.c.l.b16 %v1748
    %v3175 = vunpack.c.h.b16 %v1748
    %v3176 = vunpack.c.l.b16 %v1749
    %v3177 = vunpack.c.h.b16 %v1749
    %v3178 = vunpack.c.l.b16 %v1750
    %v3179 = vunpack.c.h.b16 %v1750
    %v3180 = vunpack.c.l.b16 %v1751
    %v3181 = vunpack.c.h.b16 %v1751
    %v3182 = vunpack.c.l.b16 %v1752
    %v3183 = vunpack.c.h.b16 %v1752
    %v3184 = vunpack.c.l.b16 %v1753
    %v3185 = vunpack.c.h.b16 %v1753
    %v3186 = vunpack.c.l.b16 %v1754
    %v3187 = vunpack.c.h.b16 %v1754
    %v3188 = vunpack.c.l.b16 %v1755
    %v3189 = vunpack.c.h.b16 %v1755
    %v3190 = vunpack.c.l.b16 %v1756
    %v3191 = vunpack.c.h.b16 %v1756
    %v3192 = vunpack.c.l.b16 %v1757
    %v3193 = vunpack.c.h.b16 %v1757
    %v3194 = vunpack.c.l.b16 %v1758
    %v3195 = vunpack.c.h.b16 %v1758
    %v3196 = vunpack.c.l.b16 %v1759
    %v3197 = vunpack.c.h.b16 %v1759
    %v3198 = vunpack.c.l.b16 %v1760
    %v3199 = vunpack.c.h.b16 %v1760
    %v3200 = vunpack.c.l.b16 %v1761
    %v3201 = vunpack.c.h.b16 %v1761
    %v3202 = vunpack.c.l.b16 %v1762
    %v3203 = vunpack.c.h.b16 %v1762
    %v3204 = vunpack.c.l.b16 %v1763
    %v3205 = vunpack.c.h.b16 %v1763
    %v3206 = vunpack.c.l.b16 %v1764
    %v3207 = vunpack.c.h.b16 %v1764
    %v3208 = vunpack.c.l.b16 %v1765
    %v3209 = vunpack.c.h.b16 %v1765
    %v3210 = vunpack.c.l.b16 %v1766
    %v3211 = vunpack.c.h.b16 %v1766
    %v3212 = vunpack.c.l.b16 %v1767
    %v3213 = vunpack.c.h.b16 %v1767
    %v3214 = vunpack.c.l.b16 %v1768
    %v3215 = vunpack.c.h.b16 %v1768
    %v3216 = vunpack.c.l.b16 %v1769
    %v3217 = vunpack.c.h.b16 %v1769
    %v3218 = vunpack.c.l.b16 %v1770
    %v3219 = vunpack.c.h.b16 %v1770
    %v3220 = vunpack.c.l.b16 %v1771
    %v3221 = vunpack.c.h.b16 %v1771
    %v3222 = vunpack.c.l.b16 %v1772
    %v3223 = vunpack.c.h.b16 %v1772
    %v3224 = vunpack.c.l.b16 %v1773
    %v3225 = vunpack.c.h.b16 %v1773
    %v3226 = vunpack.c.l.b16 %v1774
    %v3227 = vunpack.c.h.b16 %v1774
    %v3228 = vunpack.c.l.b16 %v1775
    %v3229 = vunpack.c.h.b16 %v1775
    %v3230 = vunpack.c.l.b16 %v1776
    %v3231 = vunpack.c.h.b16 %v1776
    %v3232 = vunpack.c.l.b16 %v1777
    %v3233 = vunpack.c.h.b16 %v1777
    %v3234 = vunpack.c.l.b16 %v1778
    %v3235 = vunpack.c.h.b16 %v1778
    %v3236 = vunpack.c.l.b16 %v1779
    %v3237 = vunpack.c.h.b16 %v1779
    %v3238 = vunpack.c.l.b16 %v1780
    %v3239 = vunpack.c.h.b16 %v1780
    %v3240 = vunpack.c.l.b16 %v1781
    %v3241 = vunpack.c.h.b16 %v1781
    %v3242 = vunpack.c.l.b16 %v1782
    %v3243 = vunpack.c.h.b16 %v1782
    %v3244 = vunpack.c.l.b16 %v1783
    %v3245 = vunpack.c.h.b16 %v1783
    %v3246 = vunpack.c.l.b16 %v1784
    %v3247 = vunpack.c.h.b16 %v1784
    %v3248 = vunpack.c.l.b16 %v1785
    %v3249 = vunpack.c.h.b16 %v1785
    %v3250 = vunpack.c.l.b16 %v1786
    %v3251 = vunpack.c.h.b16 %v1786
    %v3252 = vunpack.c.l.b16 %v1787
    %v3253 = vunpack.c.h.b16 %v1787
    %v3254 = vunpack.c.l.b16 %v1788
    %v3255 = vunpack.c.h.b16 %v1788
    %v3256 = vunpack.c.l.b16 %v1789
    %v3257 = vunpack.c.h.b16 %v1789
    %v3258 = vunpack.c.l.b16 %v1790
    %v3259 = vunpack.c.h.b16 %v1790
    %v3260 = vunpack.c.l.b16 %v1791
    %v3261 = vunpack.c.h.b16 %v1791
    %v3262 = vunpack.c.l.b16 %v1792
    %v3263 = vunpack.c.h.b16 %v1792
    %v3264 = vunpack.c.l.b16 %v1793
    %v3265 = vunpack.c.h.b16 %v1793
    %v3266 = vunpack.c.l.b16 %v1794
    %v3267 = vunpack.c.h.b16 %v1794
    %v3268 = vunpack.c.l.b16 %v1795
    %v3269 = vunpack.c.h.b16 %v1795
    %v3270 = vunpack.c.l.b16 %v1796
    %v3271 = vunpack.c.h.b16 %v1796
    %v3272 = vunpack.c.l.b16 %v1797
    %v3273 = vunpack.c.h.b16 %v1797
    %v3274 = vunpack.c.l.b16 %v1798
    %v3275 = vunpack.c.h.b16 %v1798
    %v3276 = vunpack.c.l.b16 %v1799
    %v3277 = vunpack.c.h.b16 %v1799
    %v3278 = vunpack.c.l.b16 %v1800
    %v3279 = vunpack.c.h.b16 %v1800
    %v3280 = vunpack.c.l.b16 %v1801
    %v3281 = vunpack.c.h.b16 %v1801
    %v3282 = vunpack.c.l.b16 %v1802
    %v3283 = vunpack.c.h.b16 %v1802
    %v3284 = vunpack.c.l.b16 %v1803
    %v3285 = vunpack.c.h.b16 %v1803
    %v3286 = vunpack.c.l.b16 %v1804
    %v3287 = vunpack.c.h.b16 %v1804
    %v3288 = vunpack.c.l.b16 %v1805
    %v3289 = vunpack.c.h.b16 %v1805
    %v3290 = vunpack.c.l.b16 %v1806
    %v3291 = vunpack.c.h.b16 %v1806
    %v3292 = vunpack.c.l.b16 %v1807
    %v3293 = vunpack.c.h.b16 %v1807
    %v3294 = vunpack.c.l.b16 %v1808
    %v3295 = vunpack.c.h.b16 %v1808
    %v3296 = vunpack.c.l.b16 %v1809
    %v3297 = vunpack.c.h.b16 %v1809
    %v3298 = vunpack.c.l.b16 %v1810
    %v3299 = vunpack.c.h.b16 %v1810
    %v3300 = vunpack.c.l.b16 %v1811
    %v3301 = vunpack.c.h.b16 %v1811
    %v3302 = vunpack.c.l.b16 %v1812
    %v3303 = vunpack.c.h.b16 %v1812
    %v3304 = vunpack.c.l.b16 %v1813
    %v3305 = vunpack.c.h.b16 %v1813
    %v3306 = vunpack.c.l.b16 %v1814
    %v3307 = vunpack.c.h.b16 %v1814
    %v3308 = vunpack.c.l.b16 %v1815
    %v3309 = vunpack.c.h.b16 %v1815
    %v3310 = vunpack.c.l.b16 %v1816
    %v3311 = vunpack.c.h.b16 %v1816
    %v3312 = vunpack.c.l.b16 %v1817
    %v3313 = vunpack.c.h.b16 %v1817
    %v3314 = vunpack.c.l.b16 %v1818
    %v3315 = vunpack.c.h.b16 %v1818
    %v3316 = vunpack.c.l.b16 %v1819
    %v3317 = vunpack.c.h.b16 %v1819
    %v3318 = vunpack.c.l.b16 %v1820
    %v3319 = vunpack.c.h.b16 %v1820
    %v3320 = vunpack.c.l.b16 %v1821
    %v3321 = vunpack.c.h.b16 %v1821
    %v3322 = vunpack.c.l.b16 %v1822
    %v3323 = vunpack.c.h.b16 %v1822
    %v3324 = vunpack.c.l.b16 %v1823
    %v3325 = vunpack.c.h.b16 %v1823
    %v3326 = vunpack.c.l.b16 %v1824
    %v3327 = vunpack.c.h.b16 %v1824
    %v3328 = vunpack.c.l.b16 %v1825
    %v3329 = vunpack.c.h.b16 %v1825
    %v3330 = vunpack.c.l.b16 %v1826
    %v3331 = vunpack.c.h.b16 %v1826
    %v3332 = vunpack.c.l.b16 %v1827
    %v3333 = vunpack.c.h.b16 %v1827
    %v3334 = vunpack.c.l.b16 %v1828
    %v3335 = vunpack.c.h.b16 %v1828
    %v3336 = vunpack.c.l.b16 %v1829
    %v3337 = vunpack.c.h.b16 %v1829
    %v3338 = vunpack.c.l.b16 %v1830
    %v3339 = vunpack.c.h.b16 %v1830
    %v3340 = vunpack.c.l.b16 %v1831
    %v3341 = vunpack.c.h.b16 %v1831
    %v3342 = vunpack.c.l.b16 %v1832
    %v3343 = vunpack.c.h.b16 %v1832
    %v3344 = vunpack.c.l.b16 %v1833
    %v3345 = vunpack.c.h.b16 %v1833
    %v3346 = vunpack.c.l.b16 %v1834
    %v3347 = vunpack.c.h.b16 %v1834
    %v3348 = vunpack.c.l.b16 %v1835
    %v3349 = vunpack.c.h.b16 %v1835
    %v3350 = vunpack.c.l.b16 %v1836
    %v3351 = vunpack.c.h.b16 %v1836
    %v3352 = vunpack.c.l.b16 %v1837
    %v3353 = vunpack.c.h.b16 %v1837
    %v3354 = vunpack.c.l.b16 %v1838
    %v3355 = vunpack.c.h.b16 %v1838
    %v3356 = vunpack.c.l.b16 %v1839
    %v3357 = vunpack.c.h.b16 %v1839
    %v3358 = vunpack.c.l.b16 %v1840
    %v3359 = vunpack.c.h.b16 %v1840
    %v3360 = vunpack.c.l.b16 %v1841
    %v3361 = vunpack.c.h.b16 %v1841
    %v3362 = vunpack.c.l.b16 %v1842
    %v3363 = vunpack.c.h.b16 %v1842
    %v3364 = vunpack.c.l.b16 %v1843
    %v3365 = vunpack.c.h.b16 %v1843
    %v3366 = vunpack.c.l.b16 %v1844
    %v3367 = vunpack.c.h.b16 %v1844
    %v3368 = vunpack.c.l.b16 %v1845
    %v3369 = vunpack.c.h.b16 %v1845
    %v3370 = vunpack.c.l.b16 %v1846
    %v3371 = vunpack.c.h.b16 %v1846
    %v3372 = vunpack.c.l.b16 %v1847
    %v3373 = vunpack.c.h.b16 %v1847
    %v3374 = vunpack.c.l.b16 %v1848
    %v3375 = vunpack.c.h.b16 %v1848
    %v3376 = vunpack.c.l.b16 %v1849
    %v3377 = vunpack.c.h.b16 %v1849
    %v3378 = vunpack.c.l.b16 %v1850
    %v3379 = vunpack.c.h.b16 %v1850
    %v3380 = vunpack.c.l.b16 %v1851
    %v3381 = vunpack.c.h.b16 %v1851
    %v3382 = vunpack.c.l.b16 %v1852
    %v3383 = vunpack.c.h.b16 %v1852
    %v3384 = vunpack.c.l.b16 %v1853
    %v3385 = vunpack.c.h.b16 %v1853
    %v3386 = vunpack.c.l.b16 %v1854
    %v3387 = vunpack.c.h.b16 %v1854
    %v3388 = vunpack.c.l.b16 %v1855
    %v3389 = vunpack.c.h.b16 %v1855
    %v3390 = vunpack.c.l.b16 %v1856
    %v3391 = vunpack.c.h.b16 %v1856
    %v3392 = vunpack.c.l.b16 %v1857
    %v3393 = vunpack.c.h.b16 %v1857
    %v3394 = vpack.c.b16 %v2386, %v2370
    %v3395 = vpack.c.b16 %v2387, %v2371
    %v3396 = vpack.c.b16 %v2388, %v2372
    %v3397 = vpack.c.b16 %v2389, %v2373
    %v3398 = vpack.c.b16 %v2390, %v2374
    %v3399 = vpack.c.b16 %v2391, %v2375
    %v3400 = vpack.c.b16 %v2392, %v2376
    %v3401 = vpack.c.b16 %v2393, %v2377
    %v3402 = vpack.c.b16 %v2394, %v2378
    %v3403 = vpack.c.b16 %v2395, %v2379
    %v3404 = vpack.c.b16 %v2396, %v2380
    %v3405 = vpack.c.b16 %v2397, %v2381
    %v3406 = vpack.c.b16 %v2398, %v2382
    %v3407 = vpack.c.b16 %v2399, %v2383
    %v3408 = vpack.c.b16 %v2400, %v2384
    %v3409 = vpack.c.b16 %v2401, %v2385
    %v3410 = vpack.c.b16 %v2418, %v2402
    %v3411 = vpack.c.b16 %v2419, %v2403
    %v3412 = vpack.c.b16 %v2420, %v2404
    %v3413 = vpack.c.b16 %v2421, %v2405
    %v3414 = vpack.c.b16 %v2422, %v2406
    %v3415 = vpack.c.b16 %v2423, %v2407
    %v3416 = vpack.c.b16 %v2424, %v2408
    %v3417 = vpack.c.b16 %v2425, %v2409
    %v3418 = vpack.c.b16 %v2426, %v2410
    %v3419 = vpack.c.b16 %v2427, %v2411
    %v3420 = vpack.c.b16 %v2428, %v2412
    %v3421 = vpack.c.b16 %v2429, %v2413
    %v3422 = vpack.c.b16 %v2430, %v2414
    %v3423 = vpack.c.b16 %v2431, %v2415
    %v3424 = vpack.c.b16 %v2432, %v2416
    %v3425 = vpack.c.b16 %v2433, %v2417
    %v3426 = vpack.c.b16 %v2450, %v2434
    %v3427 = vpack.c.b16 %v2451, %v2435
    %v3428 = vpack.c.b16 %v2452, %v2436
    %v3429 = vpack.c.b16 %v2453, %v2437
    %v3430 = vpack.c.b16 %v2454, %v2438
    %v3431 = vpack.c.b16 %v2455, %v2439
    %v3432 = vpack.c.b16 %v2456, %v2440
    %v3433 = vpack.c.b16 %v2457, %v2441
    %v3434 = vpack.c.b16 %v2458, %v2442
    %v3435 = vpack.c.b16 %v2459, %v2443
    %v3436 = vpack.c.b16 %v2460, %v2444
    %v3437 = vpack.c.b16 %v2461, %v2445
    %v3438 = vpack.c.b16 %v2462, %v2446
    %v3439 = vpack.c.b16 %v2463, %v2447
    %v3440 = vpack.c.b16 %v2464, %v2448
    %v3441 = vpack.c.b16 %v2465, %v2449
    %v3442 = vpack.c.b16 %v2482, %v2466
    %v3443 = vpack.c.b16 %v2483, %v2467
    %v3444 = vpack.c.b16 %v2484, %v2468
    %v3445 = vpack.c.b16 %v2485, %v2469
    %v3446 = vpack.c.b16 %v2486, %v2470
    %v3447 = vpack.c.b16 %v2487, %v2471
    %v3448 = vpack.c.b16 %v2488, %v2472
    %v3449 = vpack.c.b16 %v2489, %v2473
    %v3450 = vpack.c.b16 %v2490, %v2474
    %v3451 = vpack.c.b16 %v2491, %v2475
    %v3452 = vpack.c.b16 %v2492, %v2476
    %v3453 = vpack.c.b16 %v2493, %v2477
    %v3454 = vpack.c.b16 %v2494, %v2478
    %v3455 = vpack.c.b16 %v2495, %v2479
    %v3456 = vpack.c.b16 %v2496, %v2480
    %v3457 = vpack.c.b16 %v2497, %v2481
    %v3458 = vpack.c.b16 %v2514, %v2498
    %v3459 = vpack.c.b16 %v2515, %v2499
    %v3460 = vpack.c.b16 %v2516, %v2500
    %v3461 = vpack.c.b16 %v2517, %v2501
    %v3462 = vpack.c.b16 %v2518, %v2502
    %v3463 = vpack.c.b16 %v2519, %v2503
    %v3464 = vpack.c.b16 %v2520, %v2504
    %v3465 = vpack.c.b16 %v2521, %v2505
    %v3466 = vpack.c.b16 %v2522, %v2506
    %v3467 = vpack.c.b16 %v2523, %v2507
    %v3468 = vpack.c.b16 %v2524, %v2508
    %v3469 = vpack.c.b16 %v2525, %v2509
    %v3470 = vpack.c.b16 %v2526, %v2510
    %v3471 = vpack.c.b16 %v2527, %v2511
    %v3472 = vpack.c.b16 %v2528, %v2512
    %v3473 = vpack.c.b16 %v2529, %v2513
    %v3474 = vpack.c.b16 %v2546, %v2530
    %v3475 = vpack.c.b16 %v2547, %v2531
    %v3476 = vpack.c.b16 %v2548, %v2532
    %v3477 = vpack.c.b16 %v2549, %v2533
    %v3478 = vpack.c.b16 %v2550, %v2534
    %v3479 = vpack.c.b16 %v2551, %v2535
    %v3480 = vpack.c.b16 %v2552, %v2536
    %v3481 = vpack.c.b16 %v2553, %v2537
    %v3482 = vpack.c.b16 %v2554, %v2538
    %v3483 = vpack.c.b16 %v2555, %v2539
    %v3484 = vpack.c.b16 %v2556, %v2540
    %v3485 = vpack.c.b16 %v2557, %v2541
    %v3486 = vpack.c.b16 %v2558, %v2542
    %v3487 = vpack.c.b16 %v2559, %v2543
    %v3488 = vpack.c.b16 %v2560, %v2544
    %v3489 = vpack.c.b16 %v2561, %v2545
    %v3490 = vpack.c.b16 %v2578, %v2562
    %v3491 = vpack.c.b16 %v2579, %v2563
    %v3492 = vpack.c.b16 %v2580, %v2564
    %v3493 = vpack.c.b16 %v2581, %v2565
    %v3494 = vpack.c.b16 %v2582, %v2566
    %v3495 = vpack.c.b16 %v2583, %v2567
    %v3496 = vpack.c.b16 %v2584, %v2568
    %v3497 = vpack.c.b16 %v2585, %v2569
    %v3498 = vpack.c.b16 %v2586, %v2570
    %v3499 = vpack.c.b16 %v2587, %v2571
    %v3500 = vpack.c.b16 %v2588, %v2572
    %v3501 = vpack.c.b16 %v2589, %v2573
    %v3502 = vpack.c.b16 %v2590, %v2574
    %v3503 = vpack.c.b16 %v2591, %v2575
    %v3504 = vpack.c.b16 %v2592, %v2576
    %v3505 = vpack.c.b16 %v2593, %v2577
    %v3506 = vpack.c.b16 %v2610, %v2594
    %v3507 = vpack.c.b16 %v2611, %v2595
    %v3508 = vpack.c.b16 %v2612, %v2596
    %v3509 = vpack.c.b16 %v2613, %v2597
    %v3510 = vpack.c.b16 %v2614, %v2598
    %v3511 = vpack.c.b16 %v2615, %v2599
    %v3512 = vpack.c.b16 %v2616, %v2600
    %v3513 = vpack.c.b16 %v2617, %v2601
    %v3514 = vpack.c.b16 %v2618, %v2602
    %v3515 = vpack.c.b16 %v2619, %v2603
    %v3516 = vpack.c.b16 %v2620, %v2604
    %v3517 = vpack.c.b16 %v2621, %v2605
    %v3518 = vpack.c.b16 %v2622, %v2606
    %v3519 = vpack.c.b16 %v2623, %v2607
    %v3520 = vpack.c.b16 %v2624, %v2608
    %v3521 = vpack.c.b16 %v2625, %v2609
    %v3522 = vpack.c.b16 %v2642, %v2626
    %v3523 = vpack.c.b16 %v2643, %v2627
    %v3524 = vpack.c.b16 %v2644, %v2628
    %v3525 = vpack.c.b16 %v2645, %v2629
    %v3526 = vpack.c.b16 %v2646, %v2630
    %v3527 = vpack.c.b16 %v2647, %v2631
    %v3528 = vpack.c.b16 %v2648, %v2632
    %v3529 = vpack.c.b16 %v2649, %v2633
    %v3530 = vpack.c.b16 %v2650, %v2634
    %v3531 = vpack.c.b16 %v2651, %v2635
    %v3532 = vpack.c.b16 %v2652, %v2636
    %v3533 = vpack.c.b16 %v2653, %v2637
    %v3534 = vpack.c.b16 %v2654, %v2638
    %v3535 = vpack.c.b16 %v2655, %v2639
    %v3536 = vpack.c.b16 %v2656, %v2640
    %v3537 = vpack.c.b16 %v2657, %v2641
    %v3538 = vpack.c.b16 %v2674, %v2658
    %v3539 = vpack.c.b16 %v2675, %v2659
    %v3540 = vpack.c.b16 %v2676, %v2660
    %v3541 = vpack.c.b16 %v2677, %v2661
    %v3542 = vpack.c.b16 %v2678, %v2662
    %v3543 = vpack.c.b16 %v2679, %v2663
    %v3544 = vpack.c.b16 %v2680, %v2664
    %v3545 = vpack.c.b16 %v2681, %v2665
    %v3546 = vpack.c.b16 %v2682, %v2666
    %v3547 = vpack.c.b16 %v2683, %v2667
    %v3548 = vpack.c.b16 %v2684, %v2668
    %v3549 = vpack.c.b16 %v2685, %v2669
    %v3550 = vpack.c.b16 %v2686, %v2670
    %v3551 = vpack.c.b16 %v2687, %v2671
    %v3552 = vpack.c.b16 %v2688, %v2672
    %v3553 = vpack.c.b16 %v2689, %v2673
    %v3554 = vpack.c.b16 %v2706, %v2690
    %v3555 = vpack.c.b16 %v2707, %v2691
    %v3556 = vpack.c.b16 %v2708, %v2692
    %v3557 = vpack.c.b16 %v2709, %v2693
    %v3558 = vpack.c.b16 %v2710, %v2694
    %v3559 = vpack.c.b16 %v2711, %v2695
    %v3560 = vpack.c.b16 %v2712, %v2696
    %v3561 = vpack.c.b16 %v2713, %v2697
    %v3562 = vpack.c.b16 %v2714, %v2698
    %v3563 = vpack.c.b16 %v2715, %v2699
    %v3564 = vpack.c.b16 %v2716, %v2700
    %v3565 = vpack.c.b16 %v2717, %v2701
    %v3566 = vpack.c.b16 %v2718, %v2702
    %v3567 = vpack.c.b16 %v2719, %v2703
    %v3568 = vpack.c.b16 %v2720, %v2704
    %v3569 = vpack.c.b16 %v2721, %v2705
    %v3570 = vpack.c.b16 %v2738, %v2722
    %v3571 = vpack.c.b16 %v2739, %v2723
    %v3572 = vpack.c.b16 %v2740, %v2724
    %v3573 = vpack.c.b16 %v2741, %v2725
    %v3574 = vpack.c.b16 %v2742, %v2726
    %v3575 = vpack.c.b16 %v2743, %v2727
    %v3576 = vpack.c.b16 %v2744, %v2728
    %v3577 = vpack.c.b16 %v2745, %v2729
    %v3578 = vpack.c.b16 %v2746, %v2730
    %v3579 = vpack.c.b16 %v2747, %v2731
    %v3580 = vpack.c.b16 %v2748, %v2732
    %v3581 = vpack.c.b16 %v2749, %v2733
    %v3582 = vpack.c.b16 %v2750, %v2734
    %v3583 = vpack.c.b16 %v2751, %v2735
    %v3584 = vpack.c.b16 %v2752, %v2736
    %v3585 = vpack.c.b16 %v2753, %v2737
    %v3586 = vpack.c.b16 %v2770, %v2754
    %v3587 = vpack.c.b16 %v2771, %v2755
    %v3588 = vpack.c.b16 %v2772, %v2756
    %v3589 = vpack.c.b16 %v2773, %v2757
    %v3590 = vpack.c.b16 %v2774, %v2758
    %v3591 = vpack.c.b16 %v2775, %v2759
    %v3592 = vpack.c.b16 %v2776, %v2760
    %v3593 = vpack.c.b16 %v2777, %v2761
    %v3594 = vpack.c.b16 %v2778, %v2762
    %v3595 = vpack.c.b16 %v2779, %v2763
    %v3596 = vpack.c.b16 %v2780, %v2764
    %v3597 = vpack.c.b16 %v2781, %v2765
    %v3598 = vpack.c.b16 %v2782, %v2766
    %v3599 = vpack.c.b16 %v2783, %v2767
    %v3600 = vpack.c.b16 %v2784, %v2768
    %v3601 = vpack.c.b16 %v2785, %v2769
    %v3602 = vpack.c.b16 %v2802, %v2786
    %v3603 = vpack.c.b16 %v2803, %v2787
    %v3604 = vpack.c.b16 %v2804, %v2788
    %v3605 = vpack.c.b16 %v2805, %v2789
    %v3606 = vpack.c.b16 %v2806, %v2790
    %v3607 = vpack.c.b16 %v2807, %v2791
    %v3608 = vpack.c.b16 %v2808, %v2792
    %v3609 = vpack.c.b16 %v2809, %v2793
    %v3610 = vpack.c.b16 %v2810, %v2794
    %v3611 = vpack.c.b16 %v2811, %v2795
    %v3612 = vpack.c.b16 %v2812, %v2796
    %v3613 = vpack.c.b16 %v2813, %v2797
    %v3614 = vpack.c.b16 %v2814, %v2798
    %v3615 = vpack.c.b16 %v2815, %v2799
    %v3616 = vpack.c.b16 %v2816, %v2800
    %v3617 = vpack.c.b16 %v2817, %v2801
    %v3618 = vpack.c.b16 %v2834, %v2818
    %v3619 = vpack.c.b16 %v2835, %v2819
    %v3620 = vpack.c.b16 %v2836, %v2820
    %v3621 = vpack.c.b16 %v2837, %v2821
    %v3622 = vpack.c.b16 %v2838, %v2822
    %v3623 = vpack.c.b16 %v2839, %v2823
    %v3624 = vpack.c.b16 %v2840, %v2824
    %v3625 = vpack.c.b16 %v2841, %v2825
    %v3626 = vpack.c.b16 %v2842, %v2826
    %v3627 = vpack.c.b16 %v2843, %v2827
    %v3628 = vpack.c.b16 %v2844, %v2828
    %v3629 = vpack.c.b16 %v2845, %v2829
    %v3630 = vpack.c.b16 %v2846, %v2830
    %v3631 = vpack.c.b16 %v2847, %v2831
    %v3632 = vpack.c.b16 %v2848, %v2832
    %v3633 = vpack.c.b16 %v2849, %v2833
    %v3634 = vpack.c.b16 %v2866, %v2850
    %v3635 = vpack.c.b16 %v2867, %v2851
    %v3636 = vpack.c.b16 %v2868, %v2852
    %v3637 = vpack.c.b16 %v2869, %v2853
    %v3638 = vpack.c.b16 %v2870, %v2854
    %v3639 = vpack.c.b16 %v2871, %v2855
    %v3640 = vpack.c.b16 %v2872, %v2856
    %v3641 = vpack.c.b16 %v2873, %v2857
    %v3642 = vpack.c.b16 %v2874, %v2858
    %v3643 = vpack.c.b16 %v2875, %v2859
    %v3644 = vpack.c.b16 %v2876, %v2860
    %v3645 = vpack.c.b16 %v2877, %v2861
    %v3646 = vpack.c.b16 %v2878, %v2862
    %v3647 = vpack.c.b16 %v2879, %v2863
    %v3648 = vpack.c.b16 %v2880, %v2864
    %v3649 = vpack.c.b16 %v2881, %v2865
    %v3650 = vpack.c.b16 %v2898, %v2882
    %v3651 = vpack.c.b16 %v2899, %v2883
    %v3652 = vpack.c.b16 %v2900, %v2884
    %v3653 = vpack.c.b16 %v2901, %v2885
    %v3654 = vpack.c.b16 %v2902, %v2886
    %v3655 = vpack.c.b16 %v2903, %v2887
    %v3656 = vpack.c.b16 %v2904, %v2888
    %v3657 = vpack.c.b16 %v2905, %v2889
    %v3658 = vpack.c.b16 %v2906, %v2890
    %v3659 = vpack.c.b16 %v2907, %v2891
    %v3660 = vpack.c.b16 %v2908, %v2892
    %v3661 = vpack.c.b16 %v2909, %v2893
    %v3662 = vpack.c.b16 %v2910, %v2894
    %v3663 = vpack.c.b16 %v2911, %v2895
    %v3664 = vpack.c.b16 %v2912, %v2896
    %v3665 = vpack.c.b16 %v2913, %v2897
    %v3666 = vpack.c.b16 %v2930, %v2914
    %v3667 = vpack.c.b16 %v2931, %v2915
    %v3668 = vpack.c.b16 %v2932, %v2916
    %v3669 = vpack.c.b16 %v2933, %v2917
    %v3670 = vpack.c.b16 %v2934, %v2918
    %v3671 = vpack.c.b16 %v2935, %v2919
    %v3672 = vpack.c.b16 %v2936, %v2920
    %v3673 = vpack.c.b16 %v2937, %v2921
    %v3674 = vpack.c.b16 %v2938, %v2922
    %v3675 = vpack.c.b16 %v2939, %v2923
    %v3676 = vpack.c.b16 %v2940, %v2924
    %v3677 = vpack.c.b16 %v2941, %v2925
    %v3678 = vpack.c.b16 %v2942, %v2926
    %v3679 = vpack.c.b16 %v2943, %v2927
    %v3680 = vpack.c.b16 %v2944, %v2928
    %v3681 = vpack.c.b16 %v2945, %v2929
    %v3682 = vpack.c.b16 %v2962, %v2946
    %v3683 = vpack.c.b16 %v2963, %v2947
    %v3684 = vpack.c.b16 %v2964, %v2948
    %v3685 = vpack.c.b16 %v2965, %v2949
    %v3686 = vpack.c.b16 %v2966, %v2950
    %v3687 = vpack.c.b16 %v2967, %v2951
    %v3688 = vpack.c.b16 %v2968, %v2952
    %v3689 = vpack.c.b16 %v2969, %v2953
    %v3690 = vpack.c.b16 %v2970, %v2954
    %v3691 = vpack.c.b16 %v2971, %v2955
    %v3692 = vpack.c.b16 %v2972, %v2956
    %v3693 = vpack.c.b16 %v2973, %v2957
    %v3694 = vpack.c.b16 %v2974, %v2958
    %v3695 = vpack.c.b16 %v2975, %v2959
    %v3696 = vpack.c.b16 %v2976, %v2960
    %v3697 = vpack.c.b16 %v2977, %v2961
    %v3698 = vpack.c.b16 %v2994, %v2978
    %v3699 = vpack.c.b16 %v2995, %v2979
    %v3700 = vpack.c.b16 %v2996, %v2980
    %v3701 = vpack.c.b16 %v2997, %v2981
    %v3702 = vpack.c.b16 %v2998, %v2982
    %v3703 = vpack.c.b16 %v2999, %v2983
    %v3704 = vpack.c.b16 %v3000, %v2984
    %v3705 = vpack.c.b16 %v3001, %v2985
    %v3706 = vpack.c.b16 %v3002, %v2986
    %v3707 = vpack.c.b16 %v3003, %v2987
    %v3708 = vpack.c.b16 %v3004, %v2988
    %v3709 = vpack.c.b16 %v3005, %v2989
    %v3710 = vpack.c.b16 %v3006, %v2990
    %v3711 = vpack.c.b16 %v3007, %v2991
    %v3712 = vpack.c.b16 %v3008, %v2992
    %v3713 = vpack.c.b16 %v3009, %v2993
    %v3714 = vpack.c.b16 %v3026, %v3010
    %v3715 = vpack.c.b16 %v3027, %v3011
    %v3716 = vpack.c.b16 %v3028, %v3012
    %v3717 = vpack.c.b16 %v3029, %v3013
    %v3718 = vpack.c.b16 %v3030, %v3014
    %v3719 = vpack.c.b16 %v3031, %v3015
    %v3720 = vpack.c.b16 %v3032, %v3016
    %v3721 = vpack.c.b16 %v3033, %v3017
    %v3722 = vpack.c.b16 %v3034, %v3018
    %v3723 = vpack.c.b16 %v3035, %v3019
    %v3724 = vpack.c.b16 %v3036, %v3020
    %v3725 = vpack.c.b16 %v3037, %v3021
    %v3726 = vpack.c.b16 %v3038, %v3022
    %v3727 = vpack.c.b16 %v3039, %v3023
    %v3728 = vpack.c.b16 %v3040, %v3024
    %v3729 = vpack.c.b16 %v3041, %v3025
    %v3730 = vpack.c.b16 %v3058, %v3042
    %v3731 = vpack.c.b16 %v3059, %v3043
    %v3732 = vpack.c.b16 %v3060, %v3044
    %v3733 = vpack.c.b16 %v3061, %v3045
    %v3734 = vpack.c.b16 %v3062, %v3046
    %v3735 = vpack.c.b16 %v3063, %v3047
    %v3736 = vpack.c.b16 %v3064, %v3048
    %v3737 = vpack.c.b16 %v3065, %v3049
    %v3738 = vpack.c.b16 %v3066, %v3050
    %v3739 = vpack.c.b16 %v3067, %v3051
    %v3740 = vpack.c.b16 %v3068, %v3052
    %v3741 = vpack.c.b16 %v3069, %v3053
    %v3742 = vpack.c.b16 %v3070, %v3054
    %v3743 = vpack.c.b16 %v3071, %v3055
    %v3744 = vpack.c.b16 %v3072, %v3056
    %v3745 = vpack.c.b16 %v3073, %v3057
    %v3746 = vpack.c.b16 %v3090, %v3074
    %v3747 = vpack.c.b16 %v3091, %v3075
    %v3748 = vpack.c.b16 %v3092, %v3076
    %v3749 = vpack.c.b16 %v3093, %v3077
    %v3750 = vpack.c.b16 %v3094, %v3078
    %v3751 = vpack.c.b16 %v3095, %v3079
    %v3752 = vpack.c.b16 %v3096, %v3080
    %v3753 = vpack.c.b16 %v3097, %v3081
    %v3754 = vpack.c.b16 %v3098, %v3082
    %v3755 = vpack.c.b16 %v3099, %v3083
    %v3756 = vpack.c.b16 %v3100, %v3084
    %v3757 = vpack.c.b16 %v3101, %v3085
    %v3758 = vpack.c.b16 %v3102, %v3086
    %v3759 = vpack.c.b16 %v3103, %v3087
    %v3760 = vpack.c.b16 %v3104, %v3088
    %v3761 = vpack.c.b16 %v3105, %v3089
    %v3762 = vpack.c.b16 %v3122, %v3106
    %v3763 = vpack.c.b16 %v3123, %v3107
    %v3764 = vpack.c.b16 %v3124, %v3108
    %v3765 = vpack.c.b16 %v3125, %v3109
    %v3766 = vpack.c.b16 %v3126, %v3110
    %v3767 = vpack.c.b16 %v3127, %v3111
    %v3768 = vpack.c.b16 %v3128, %v3112
    %v3769 = vpack.c.b16 %v3129, %v3113
    %v3770 = vpack.c.b16 %v3130, %v3114
    %v3771 = vpack.c.b16 %v3131, %v3115
    %v3772 = vpack.c.b16 %v3132, %v3116
    %v3773 = vpack.c.b16 %v3133, %v3117
    %v3774 = vpack.c.b16 %v3134, %v3118
    %v3775 = vpack.c.b16 %v3135, %v3119
    %v3776 = vpack.c.b16 %v3136, %v3120
    %v3777 = vpack.c.b16 %v3137, %v3121
    %v3778 = vpack.c.b16 %v3154, %v3138
    %v3779 = vpack.c.b16 %v3155, %v3139
    %v3780 = vpack.c.b16 %v3156, %v3140
    %v3781 = vpack.c.b16 %v3157, %v3141
    %v3782 = vpack.c.b16 %v3158, %v3142
    %v3783 = vpack.c.b16 %v3159, %v3143
    %v3784 = vpack.c.b16 %v3160, %v3144
    %v3785 = vpack.c.b16 %v3161, %v3145
    %v3786 = vpack.c.b16 %v3162, %v3146
    %v3787 = vpack.c.b16 %v3163, %v3147
    %v3788 = vpack.c.b16 %v3164, %v3148
    %v3789 = vpack.c.b16 %v3165, %v3149
    %v3790 = vpack.c.b16 %v3166, %v3150
    %v3791 = vpack.c.b16 %v3167, %v3151
    %v3792 = vpack.c.b16 %v3168, %v3152
    %v3793 = vpack.c.b16 %v3169, %v3153
    %v3794 = vpack.c.b16 %v3186, %v3170
    %v3795 = vpack.c.b16 %v3187, %v3171
    %v3796 = vpack.c.b16 %v3188, %v3172
    %v3797 = vpack.c.b16 %v3189, %v3173
    %v3798 = vpack.c.b16 %v3190, %v3174
    %v3799 = vpack.c.b16 %v3191, %v3175
    %v3800 = vpack.c.b16 %v3192, %v3176
    %v3801 = vpack.c.b16 %v3193, %v3177
    %v3802 = vpack.c.b16 %v3194, %v3178
    %v3803 = vpack.c.b16 %v3195, %v3179
    %v3804 = vpack.c.b16 %v3196, %v3180
    %v3805 = vpack.c.b16 %v3197, %v3181
    %v3806 = vpack.c.b16 %v3198, %v3182
    %v3807 = vpack.c.b16 %v3199, %v3183
    %v3808 = vpack.c.b16 %v3200, %v3184
    %v3809 = vpack.c.b16 %v3201, %v3185
    %v3810 = vpack.c.b16 %v3218, %v3202
    %v3811 = vpack.c.b16 %v3219, %v3203
    %v3812 = vpack.c.b16 %v3220, %v3204
    %v3813 = vpack.c.b16 %v3221, %v3205
    %v3814 = vpack.c.b16 %v3222, %v3206
    %v3815 = vpack.c.b16 %v3223, %v3207
    %v3816 = vpack.c.b16 %v3224, %v3208
    %v3817 = vpack.c.b16 %v3225, %v3209
    %v3818 = vpack.c.b16 %v3226, %v3210
    %v3819 = vpack.c.b16 %v3227, %v3211
    %v3820 = vpack.c.b16 %v3228, %v3212
    %v3821 = vpack.c.b16 %v3229, %v3213
    %v3822 = vpack.c.b16 %v3230, %v3214
    %v3823 = vpack.c.b16 %v3231, %v3215
    %v3824 = vpack.c.b16 %v3232, %v3216
    %v3825 = vpack.c.b16 %v3233, %v3217
    %v3826 = vpack.c.b16 %v3250, %v3234
    %v3827 = vpack.c.b16 %v3251, %v3235
    %v3828 = vpack.c.b16 %v3252, %v3236
    %v3829 = vpack.c.b16 %v3253, %v3237
    %v3830 = vpack.c.b16 %v3254, %v3238
    %v3831 = vpack.c.b16 %v3255, %v3239
    %v3832 = vpack.c.b16 %v3256, %v3240
    %v3833 = vpack.c.b16 %v3257, %v3241
    %v3834 = vpack.c.b16 %v3258, %v3242
    %v3835 = vpack.c.b16 %v3259, %v3243
    %v3836 = vpack.c.b16 %v3260, %v3244
    %v3837 = vpack.c.b16 %v3261, %v3245
    %v3838 = vpack.c.b16 %v3262, %v3246
    %v3839 = vpack.c.b16 %v3263, %v3247
    %v3840 = vpack.c.b16 %v3264, %v3248
    %v3841 = vpack.c.b16 %v3265, %v3249
    %v3842 = vpack.c.b16 %v3282, %v3266
    %v3843 = vpack.c.b16 %v3283, %v3267
    %v3844 = vpack.c.b16 %v3284, %v3268
    %v3845 = vpack.c.b16 %v3285, %v3269
    %v3846 = vpack.c.b16 %v3286, %v3270
    %v3847 = vpack.c.b16 %v3287, %v3271
    %v3848 = vpack.c.b16 %v3288, %v3272
    %v3849 = vpack.c.b16 %v3289, %v3273
    %v3850 = vpack.c.b16 %v3290, %v3274
    %v3851 = vpack.c.b16 %v3291, %v3275
    %v3852 = vpack.c.b16 %v3292, %v3276
    %v3853 = vpack.c.b16 %v3293, %v3277
    %v3854 = vpack.c.b16 %v3294, %v3278
    %v3855 = vpack.c.b16 %v3295, %v3279
    %v3856 = vpack.c.b16 %v3296, %v3280
    %v3857 = vpack.c.b16 %v3297, %v3281
    %v3858 = vpack.c.b16 %v3314, %v3298
    %v3859 = vpack.c.b16 %v3315, %v3299
    %v3860 = vpack.c.b16 %v3316, %v3300
    %v3861 = vpack.c.b16 %v3317, %v3301
    %v3862 = vpack.c.b16 %v3318, %v3302
    %v3863 = vpack.c.b16 %v3319, %v3303
    %v3864 = vpack.c.b16 %v3320, %v3304
    %v3865 = vpack.c.b16 %v3321, %v3305
    %v3866 = vpack.c.b16 %v3322, %v3306
    %v3867 = vpack.c.b16 %v3323, %v3307
    %v3868 = vpack.c.b16 %v3324, %v3308
    %v3869 = vpack.c.b16 %v3325, %v3309
    %v3870 = vpack.c.b16 %v3326, %v3310
    %v3871 = vpack.c.b16 %v3327, %v3311
    %v3872 = vpack.c.b16 %v3328, %v3312
    %v3873 = vpack.c.b16 %v3329, %v3313
    %v3874 = vpack.c.b16 %v3346, %v3330
    %v3875 = vpack.c.b16 %v3347, %v3331
    %v3876 = vpack.c.b16 %v3348, %v3332
    %v3877 = vpack.c.b16 %v3349, %v3333
    %v3878 = vpack.c.b16 %v3350, %v3334
    %v3879 = vpack.c.b16 %v3351, %v3335
    %v3880 = vpack.c.b16 %v3352, %v3336
    %v3881 = vpack.c.b16 %v3353, %v3337
    %v3882 = vpack.c.b16 %v3354, %v3338
    %v3883 = vpack.c.b16 %v3355, %v3339
    %v3884 = vpack.c.b16 %v3356, %v3340
    %v3885 = vpack.c.b16 %v3357, %v3341
    %v3886 = vpack.c.b16 %v3358, %v3342
    %v3887 = vpack.c.b16 %v3359, %v3343
    %v3888 = vpack.c.b16 %v3360, %v3344
    %v3889 = vpack.c.b16 %v3361, %v3345
    %v3890 = vpack.c.b16 %v3378, %v3362
    %v3891 = vpack.c.b16 %v3379, %v3363
    %v3892 = vpack.c.b16 %v3380, %v3364
    %v3893 = vpack.c.b16 %v3381, %v3365
    %v3894 = vpack.c.b16 %v3382, %v3366
    %v3895 = vpack.c.b16 %v3383, %v3367
    %v3896 = vpack.c.b16 %v3384, %v3368
    %v3897 = vpack.c.b16 %v3385, %v3369
    %v3898 = vpack.c.b16 %v3386, %v3370
    %v3899 = vpack.c.b16 %v3387, %v3371
    %v3900 = vpack.c.b16 %v3388, %v3372
    %v3901 = vpack.c.b16 %v3389, %v3373
    %v3902 = vpack.c.b16 %v3390, %v3374
    %v3903 = vpack.c.b16 %v3391, %v3375
    %v3904 = vpack.c.b16 %v3392, %v3376
    %v3905 = vpack.c.b16 %v3393, %v3377
    %4418 = vmatprep.subr.bf16.mxu0 %v3395
    %4419 = vmatpush1.bf16.msra.mxu0 %v3394
    %4420 = vmatprep.subr.bf16.mxu0 %v3411
    %4421 = vmatpush1.bf16.msra.mxu0 %v3410
    %4422 = vmatprep.subr.bf16.mxu0 %v3427
    %4423 = vmatpush1.bf16.msra.mxu0 %v3426
    %4424 = vmatprep.subr.bf16.mxu0 %v3443
    %4425 = vmatpush1.bf16.msra.mxu0 %v3442
    %4426 = vmatprep.subr.bf16.mxu0 %v3459
    %4427 = vmatpush1.bf16.msra.mxu0 %v3458
    %4428 = vmatprep.subr.bf16.mxu0 %v3475
    %4429 = vmatpush1.bf16.msra.mxu0 %v3474
    %4430 = vmatprep.subr.bf16.mxu0 %v3491
    %4431 = vmatpush1.bf16.msra.mxu0 %v3490
    %4432 = vmatprep.subr.bf16.mxu0 %v3507
    %4433 = vmatpush1.bf16.msra.mxu0 %v3506
    %4434 = vmatprep.subr.bf16.mxu0 %v3523
    %4435 = vmatpush1.bf16.msra.mxu0 %v3522
    %4436 = vmatprep.subr.bf16.mxu0 %v3539
    %4437 = vmatpush1.bf16.msra.mxu0 %v3538
    %4438 = vmatprep.subr.bf16.mxu0 %v3555
    %4439 = vmatpush1.bf16.msra.mxu0 %v3554
    %4440 = vmatprep.subr.bf16.mxu0 %v3571
    %4441 = vmatpush1.bf16.msra.mxu0 %v3570
    %4442 = vmatprep.subr.bf16.mxu0 %v3587
    %4443 = vmatpush1.bf16.msra.mxu0 %v3586
    %4444 = vmatprep.subr.bf16.mxu0 %v3603
    %4445 = vmatpush1.bf16.msra.mxu0 %v3602
    %4446 = vmatprep.subr.bf16.mxu0 %v3619
    %4447 = vmatpush1.bf16.msra.mxu0 %v3618
    %4448 = vmatprep.subr.bf16.mxu0 %v3635
    %4449 = vmatpush1.bf16.msra.mxu0 %v3634
    %4450 = vmatprep.mubr.bf16.mxu0 %v1343
    %4451 = vmatmul.mubr.bf16.gmra.mrb[0].mxu0 %v1342
    %v4452 = vpop.f32.mrb[0].mxu0
    %v4453 = vadd.f32 0.0, %v4452
    %v4454 = vpop.f32.mrb[0].mxu0
    %v4455 = vadd.f32 0.0, %v4454
    %v4456 = vpop.f32.mrb[0].mxu0
    %v4457 = vpop.f32.mrb[0].mxu0
    %4458 = vdwg.mxu0
    %4459 = vmatprep.subr.bf16.mxu0 %v3651
    %4460 = vmatpush1.bf16.msra.mxu0 %v3650
    %4461 = vmatprep.subr.bf16.mxu0 %v3667
    %4462 = vmatpush1.bf16.msra.mxu0 %v3666
    %4463 = vmatprep.subr.bf16.mxu0 %v3683
    %4464 = vmatpush1.bf16.msra.mxu0 %v3682
    %4465 = vmatprep.subr.bf16.mxu0 %v3699
    %4466 = vmatpush1.bf16.msra.mxu0 %v3698
    %4467 = vmatprep.subr.bf16.mxu0 %v3715
    %4468 = vmatpush1.bf16.msra.mxu0 %v3714
    %4469 = vmatprep.subr.bf16.mxu0 %v3731
    %4470 = vmatpush1.bf16.msra.mxu0 %v3730
    %4471 = vmatprep.subr.bf16.mxu0 %v3747
    %4472 = vmatpush1.bf16.msra.mxu0 %v3746
    %4473 = vmatprep.subr.bf16.mxu0 %v3763
    %4474 = vmatpush1.bf16.msra.mxu0 %v3762
    %4475 = vmatprep.subr.bf16.mxu0 %v3779
    %4476 = vmatpush1.bf16.msra.mxu0 %v3778
    %4477 = vmatprep.subr.bf16.mxu0 %v3795
    %4478 = vmatpush1.bf16.msra.mxu0 %v3794
    %4479 = vmatprep.subr.bf16.mxu0 %v3811
    %4480 = vmatpush1.bf16.msra.mxu0 %v3810
    %4481 = vmatprep.subr.bf16.mxu0 %v3827
    %4482 = vmatpush1.bf16.msra.mxu0 %v3826
    %4483 = vmatprep.subr.bf16.mxu0 %v3843
    %4484 = vmatpush1.bf16.msra.mxu0 %v3842
    %4485 = vmatprep.subr.bf16.mxu0 %v3859
    %4486 = vmatpush1.bf16.msra.mxu0 %v3858
    %4487 = vmatprep.subr.bf16.mxu0 %v3875
    %4488 = vmatpush1.bf16.msra.mxu0 %v3874
    %4489 = vmatprep.subr.bf16.mxu0 %v3891
    %4490 = vmatpush1.bf16.msra.mxu0 %v3890
    %4491 = vmatprep.mubr.bf16.mxu0 %v1345
    %4492 = vmatmul.mubr.bf16.gmra.mrb[0].mxu0 %v1344
    %v4493 = vpop.f32.mrb[0].mxu0
    %v4494 = vadd.f32 %v4453, %v4493
    %v4495 = vpop.f32.mrb[0].mxu0
    %v4496 = vadd.f32 %v4455, %v4495
    %v4497 = vpop.f32.mrb[0].mxu0
    %v4498 = vpop.f32.mrb[0].mxu0
    %4499 = vdwg.mxu0
    %4500 = vmatprep.subr.bf16.mxu0 %v3397
    %4501 = vmatpush1.bf16.msra.mxu0 %v3396
    %4502 = vmatprep.subr.bf16.mxu0 %v3413
    %4503 = vmatpush1.bf16.msra.mxu0 %v3412
    %4504 = vmatprep.subr.bf16.mxu0 %v3429
    %4505 = vmatpush1.bf16.msra.mxu0 %v3428
    %4506 = vmatprep.subr.bf16.mxu0 %v3445
    %4507 = vmatpush1.bf16.msra.mxu0 %v3444
    %4508 = vmatprep.subr.bf16.mxu0 %v3461
    %4509 = vmatpush1.bf16.msra.mxu0 %v3460
    %4510 = vmatprep.subr.bf16.mxu0 %v3477
    %4511 = vmatpush1.bf16.msra.mxu0 %v3476
    %4512 = vmatprep.subr.bf16.mxu0 %v3493
    %4513 = vmatpush1.bf16.msra.mxu0 %v3492
    %4514 = vmatprep.subr.bf16.mxu0 %v3509
    %4515 = vmatpush1.bf16.msra.mxu0 %v3508
    %4516 = vmatprep.subr.bf16.mxu0 %v3525
    %4517 = vmatpush1.bf16.msra.mxu0 %v3524
    %4518 = vmatprep.subr.bf16.mxu0 %v3541
    %4519 = vmatpush1.bf16.msra.mxu0 %v3540
    %4520 = vmatprep.subr.bf16.mxu0 %v3557
    %4521 = vmatpush1.bf16.msra.mxu0 %v3556
    %4522 = vmatprep.subr.bf16.mxu0 %v3573
    %4523 = vmatpush1.bf16.msra.mxu0 %v3572
    %4524 = vmatprep.subr.bf16.mxu0 %v3589
    %4525 = vmatpush1.bf16.msra.mxu0 %v3588
    %4526 = vmatprep.subr.bf16.mxu0 %v3605
    %4527 = vmatpush1.bf16.msra.mxu0 %v3604
    %4528 = vmatprep.subr.bf16.mxu0 %v3621
    %4529 = vmatpush1.bf16.msra.mxu0 %v3620
    %4530 = vmatprep.subr.bf16.mxu0 %v3637
    %4531 = vmatpush1.bf16.msra.mxu0 %v3636
    %4532 = vmatprep.mubr.bf16.mxu0 %v1343
    %4533 = vmatmul.mubr.bf16.gmra.mrb[0].mxu0 %v1342
    %v4534 = vpop.f32.mrb[0].mxu0
    %v4535 = vadd.f32 0.0, %v4534
    %v4536 = vpop.f32.mrb[0].mxu0
    %v4537 = vadd.f32 0.0, %v4536
    %v4538 = vpop.f32.mrb[0].mxu0
    %v4539 = vpop.f32.mrb[0].mxu0
    %4540 = vdwg.mxu0
    %4541 = vmatprep.subr.bf16.mxu0 %v3653
    %4542 = vmatpush1.bf16.msra.mxu0 %v3652
    %4543 = vmatprep.subr.bf16.mxu0 %v3669
    %4544 = vmatpush1.bf16.msra.mxu0 %v3668
    %4545 = vmatprep.subr.bf16.mxu0 %v3685
    %4546 = vmatpush1.bf16.msra.mxu0 %v3684
    %4547 = vmatprep.subr.bf16.mxu0 %v3701
    %4548 = vmatpush1.bf16.msra.mxu0 %v3700
    %4549 = vmatprep.subr.bf16.mxu0 %v3717
    %4550 = vmatpush1.bf16.msra.mxu0 %v3716
    %4551 = vmatprep.subr.bf16.mxu0 %v3733
    %4552 = vmatpush1.bf16.msra.mxu0 %v3732
    %4553 = vmatprep.subr.bf16.mxu0 %v3749
    %4554 = vmatpush1.bf16.msra.mxu0 %v3748
    %4555 = vmatprep.subr.bf16.mxu0 %v3765
    %4556 = vmatpush1.bf16.msra.mxu0 %v3764
    %4557 = vmatprep.subr.bf16.mxu0 %v3781
    %4558 = vmatpush1.bf16.msra.mxu0 %v3780
    %4559 = vmatprep.subr.bf16.mxu0 %v3797
    %4560 = vmatpush1.bf16.msra.mxu0 %v3796
    %4561 = vmatprep.subr.bf16.mxu0 %v3813
    %4562 = vmatpush1.bf16.msra.mxu0 %v3812
    %4563 = vmatprep.subr.bf16.mxu0 %v3829
    %4564 = vmatpush1.bf16.msra.mxu0 %v3828
    %4565 = vmatprep.subr.bf16.mxu0 %v3845
    %4566 = vmatpush1.bf16.msra.mxu0 %v3844
    %4567 = vmatprep.subr.bf16.mxu0 %v3861
    %4568 = vmatpush1.bf16.msra.mxu0 %v3860
    %4569 = vmatprep.subr.bf16.mxu0 %v3877
    %4570 = vmatpush1.bf16.msra.mxu0 %v3876
    %4571 = vmatprep.subr.bf16.mxu0 %v3893
    %4572 = vmatpush1.bf16.msra.mxu0 %v3892
    %4573 = vmatprep.mubr.bf16.mxu0 %v1345
    %4574 = vmatmul.mubr.bf16.gmra.mrb[0].mxu0 %v1344
    %v4575 = vpop.f32.mrb[0].mxu0
    %v4576 = vadd.f32 %v4535, %v4575
    %v4577 = vpop.f32.mrb[0].mxu0
    %v4578 = vadd.f32 %v4537, %v4577
    %v4579 = vpop.f32.mrb[0].mxu0
    %v4580 = vpop.f32.mrb[0].mxu0
    %4581 = vdwg.mxu0
    %4582 = vmatprep.subr.bf16.mxu0 %v3399
    %4583 = vmatpush1.bf16.msra.mxu0 %v3398
    %4584 = vmatprep.subr.bf16.mxu0 %v3415
    %4585 = vmatpush1.bf16.msra.mxu0 %v3414
    %4586 = vmatprep.subr.bf16.mxu0 %v3431
    %4587 = vmatpush1.bf16.msra.mxu0 %v3430
    %4588 = vmatprep.subr.bf16.mxu0 %v3447
    %4589 = vmatpush1.bf16.msra.mxu0 %v3446
    %4590 = vmatprep.subr.bf16.mxu0 %v3463
    %4591 = vmatpush1.bf16.msra.mxu0 %v3462
    %4592 = vmatprep.subr.bf16.mxu0 %v3479
    %4593 = vmatpush1.bf16.msra.mxu0 %v3478
    %4594 = vmatprep.subr.bf16.mxu0 %v3495
    %4595 = vmatpush1.bf16.msra.mxu0 %v3494
    %4596 = vmatprep.subr.bf16.mxu0 %v3511
    %4597 = vmatpush1.bf16.msra.mxu0 %v3510
    %4598 = vmatprep.subr.bf16.mxu0 %v3527
    %4599 = vmatpush1.bf16.msra.mxu0 %v3526
    %4600 = vmatprep.subr.bf16.mxu0 %v3543
    %4601 = vmatpush1.bf16.msra.mxu0 %v3542
    %4602 = vmatprep.subr.bf16.mxu0 %v3559
    %4603 = vmatpush1.bf16.msra.mxu0 %v3558
    %4604 = vmatprep.subr.bf16.mxu0 %v3575
    %4605 = vmatpush1.bf16.msra.mxu0 %v3574
    %4606 = vmatprep.subr.bf16.mxu0 %v3591
    %4607 = vmatpush1.bf16.msra.mxu0 %v3590
    %4608 = vmatprep.subr.bf16.mxu0 %v3607
    %4609 = vmatpush1.bf16.msra.mxu0 %v3606
    %4610 = vmatprep.subr.bf16.mxu0 %v3623
    %4611 = vmatpush1.bf16.msra.mxu0 %v3622
    %4612 = vmatprep.subr.bf16.mxu0 %v3639
    %4613 = vmatpush1.bf16.msra.mxu0 %v3638
    %4614 = vmatprep.mubr.bf16.mxu0 %v1343
    %4615 = vmatmul.mubr.bf16.gmra.mrb[0].mxu0 %v1342
    %v4616 = vpop.f32.mrb[0].mxu0
    %v4617 = vadd.f32 0.0, %v4616
    %v4618 = vpop.f32.mrb[0].mxu0
    %v4619 = vadd.f32 0.0, %v4618
    %v4620 = vpop.f32.mrb[0].mxu0
    %v4621 = vpop.f32.mrb[0].mxu0
    %4622 = vdwg.mxu0
    %4623 = vmatprep.subr.bf16.mxu0 %v3655
    %4624 = vmatpush1.bf16.msra.mxu0 %v3654
    %4625 = vmatprep.subr.bf16.mxu0 %v3671
    %4626 = vmatpush1.bf16.msra.mxu0 %v3670
    %4627 = vmatprep.subr.bf16.mxu0 %v3687
    %4628 = vmatpush1.bf16.msra.mxu0 %v3686
    %4629 = vmatprep.subr.bf16.mxu0 %v3703
    %4630 = vmatpush1.bf16.msra.mxu0 %v3702
    %4631 = vmatprep.subr.bf16.mxu0 %v3719
    %4632 = vmatpush1.bf16.msra.mxu0 %v3718
    %4633 = vmatprep.subr.bf16.mxu0 %v3735
    %4634 = vmatpush1.bf16.msra.mxu0 %v3734
    %4635 = vmatprep.subr.bf16.mxu0 %v3751
    %4636 = vmatpush1.bf16.msra.mxu0 %v3750
    %4637 = vmatprep.subr.bf16.mxu0 %v3767
    %4638 = vmatpush1.bf16.msra.mxu0 %v3766
    %4639 = vmatprep.subr.bf16.mxu0 %v3783
    %4640 = vmatpush1.bf16.msra.mxu0 %v3782
    %4641 = vmatprep.subr.bf16.mxu0 %v3799
    %4642 = vmatpush1.bf16.msra.mxu0 %v3798
    %4643 = vmatprep.subr.bf16.mxu0 %v3815
    %4644 = vmatpush1.bf16.msra.mxu0 %v3814
    %4645 = vmatprep.subr.bf16.mxu0 %v3831
    %4646 = vmatpush1.bf16.msra.mxu0 %v3830
    %4647 = vmatprep.subr.bf16.mxu0 %v3847
    %4648 = vmatpush1.bf16.msra.mxu0 %v3846
    %4649 = vmatprep.subr.bf16.mxu0 %v3863
    %4650 = vmatpush1.bf16.msra.mxu0 %v3862
    %4651 = vmatprep.subr.bf16.mxu0 %v3879
    %4652 = vmatpush1.bf16.msra.mxu0 %v3878
    %4653 = vmatprep.subr.bf16.mxu0 %v3895
    %4654 = vmatpush1.bf16.msra.mxu0 %v3894
    %4655 = vmatprep.mubr.bf16.mxu0 %v1345
    %4656 = vmatmul.mubr.bf16.gmra.mrb[0].mxu0 %v1344
    %v4657 = vpop.f32.mrb[0].mxu0
    %v4658 = vadd.f32 %v4617, %v4657
    %v4659 = vpop.f32.mrb[0].mxu0
    %v4660 = vadd.f32 %v4619, %v4659
    %v4661 = vpop.f32.mrb[0].mxu0
    %v4662 = vpop.f32.mrb[0].mxu0
    %4663 = vdwg.mxu0
    %4664 = vmatprep.subr.bf16.mxu0 %v3401
    %4665 = vmatpush1.bf16.msra.mxu0 %v3400
    %4666 = vmatprep.subr.bf16.mxu0 %v3417
    %4667 = vmatpush1.bf16.msra.mxu0 %v3416
    %4668 = vmatprep.subr.bf16.mxu0 %v3433
    %4669 = vmatpush1.bf16.msra.mxu0 %v3432
    %4670 = vmatprep.subr.bf16.mxu0 %v3449
    %4671 = vmatpush1.bf16.msra.mxu0 %v3448
    %4672 = vmatprep.subr.bf16.mxu0 %v3465
    %4673 = vmatpush1.bf16.msra.mxu0 %v3464
    %4674 = vmatprep.subr.bf16.mxu0 %v3481
    %4675 = vmatpush1.bf16.msra.mxu0 %v3480
    %4676 = vmatprep.subr.bf16.mxu0 %v3497
    %4677 = vmatpush1.bf16.msra.mxu0 %v3496
    %4678 = vmatprep.subr.bf16.mxu0 %v3513
    %4679 = vmatpush1.bf16.msra.mxu0 %v3512
    %4680 = vmatprep.subr.bf16.mxu0 %v3529
    %4681 = vmatpush1.bf16.msra.mxu0 %v3528
    %4682 = vmatprep.subr.bf16.mxu0 %v3545
    %4683 = vmatpush1.bf16.msra.mxu0 %v3544
    %4684 = vmatprep.subr.bf16.mxu0 %v3561
    %4685 = vmatpush1.bf16.msra.mxu0 %v3560
    %4686 = vmatprep.subr.bf16.mxu0 %v3577
    %4687 = vmatpush1.bf16.msra.mxu0 %v3576
    %4688 = vmatprep.subr.bf16.mxu0 %v3593
    %4689 = vmatpush1.bf16.msra.mxu0 %v3592
    %4690 = vmatprep.subr.bf16.mxu0 %v3609
    %4691 = vmatpush1.bf16.msra.mxu0 %v3608
    %4692 = vmatprep.subr.bf16.mxu0 %v3625
    %4693 = vmatpush1.bf16.msra.mxu0 %v3624
    %4694 = vmatprep.subr.bf16.mxu0 %v3641
    %4695 = vmatpush1.bf16.msra.mxu0 %v3640
    %4696 = vmatprep.mubr.bf16.mxu0 %v1343
    %4697 = vmatmul.mubr.bf16.gmra.mrb[0].mxu0 %v1342
    %v4698 = vpop.f32.mrb[0].mxu0
    %v4699 = vadd.f32 0.0, %v4698
    %v4700 = vpop.f32.mrb[0].mxu0
    %v4701 = vadd.f32 0.0, %v4700
    %v4702 = vpop.f32.mrb[0].mxu0
    %v4703 = vpop.f32.mrb[0].mxu0
    %4704 = vdwg.mxu0
    %4705 = vmatprep.subr.bf16.mxu0 %v3657
    %4706 = vmatpush1.bf16.msra.mxu0 %v3656
    %4707 = vmatprep.subr.bf16.mxu0 %v3673
    %4708 = vmatpush1.bf16.msra.mxu0 %v3672
    %4709 = vmatprep.subr.bf16.mxu0 %v3689
    %4710 = vmatpush1.bf16.msra.mxu0 %v3688
    %4711 = vmatprep.subr.bf16.mxu0 %v3705
    %4712 = vmatpush1.bf16.msra.mxu0 %v3704
    %4713 = vmatprep.subr.bf16.mxu0 %v3721
    %4714 = vmatpush1.bf16.msra.mxu0 %v3720
    %4715 = vmatprep.subr.bf16.mxu0 %v3737
    %4716 = vmatpush1.bf16.msra.mxu0 %v3736
    %4717 = vmatprep.subr.bf16.mxu0 %v3753
    %4718 = vmatpush1.bf16.msra.mxu0 %v3752
    %4719 = vmatprep.subr.bf16.mxu0 %v3769
    %4720 = vmatpush1.bf16.msra.mxu0 %v3768
    %4721 = vmatprep.subr.bf16.mxu0 %v3785
    %4722 = vmatpush1.bf16.msra.mxu0 %v3784
    %4723 = vmatprep.subr.bf16.mxu0 %v3801
    %4724 = vmatpush1.bf16.msra.mxu0 %v3800
    %4725 = vmatprep.subr.bf16.mxu0 %v3817
    %4726 = vmatpush1.bf16.msra.mxu0 %v3816
    %4727 = vmatprep.subr.bf16.mxu0 %v3833
    %4728 = vmatpush1.bf16.msra.mxu0 %v3832
    %4729 = vmatprep.subr.bf16.mxu0 %v3849
    %4730 = vmatpush1.bf16.msra.mxu0 %v3848
    %4731 = vmatprep.subr.bf16.mxu0 %v3865
    %4732 = vmatpush1.bf16.msra.mxu0 %v3864
    %4733 = vmatprep.subr.bf16.mxu0 %v3881
    %4734 = vmatpush1.bf16.msra.mxu0 %v3880
    %4735 = vmatprep.subr.bf16.mxu0 %v3897
    %4736 = vmatpush1.bf16.msra.mxu0 %v3896
    %4737 = vmatprep.mubr.bf16.mxu0 %v1345
    %4738 = vmatmul.mubr.bf16.gmra.mrb[0].mxu0 %v1344
    %v4739 = vpop.f32.mrb[0].mxu0
    %v4740 = vadd.f32 %v4699, %v4739
    %v4741 = vpop.f32.mrb[0].mxu0
    %v4742 = vadd.f32 %v4701, %v4741
    %v4743 = vpop.f32.mrb[0].mxu0
    %v4744 = vpop.f32.mrb[0].mxu0
    %4745 = vdwg.mxu0
    %4746 = vmatprep.subr.bf16.mxu0 %v3403
    %4747 = vmatpush1.bf16.msra.mxu0 %v3402
    %4748 = vmatprep.subr.bf16.mxu0 %v3419
    %4749 = vmatpush1.bf16.msra.mxu0 %v3418
    %4750 = vmatprep.subr.bf16.mxu0 %v3435
    %4751 = vmatpush1.bf16.msra.mxu0 %v3434
    %4752 = vmatprep.subr.bf16.mxu0 %v3451
    %4753 = vmatpush1.bf16.msra.mxu0 %v3450
    %4754 = vmatprep.subr.bf16.mxu0 %v3467
    %4755 = vmatpush1.bf16.msra.mxu0 %v3466
    %4756 = vmatprep.subr.bf16.mxu0 %v3483
    %4757 = vmatpush1.bf16.msra.mxu0 %v3482
    %4758 = vmatprep.subr.bf16.mxu0 %v3499
    %4759 = vmatpush1.bf16.msra.mxu0 %v3498
    %4760 = vmatprep.subr.bf16.mxu0 %v3515
    %4761 = vmatpush1.bf16.msra.mxu0 %v3514
    %4762 = vmatprep.subr.bf16.mxu0 %v3531
    %4763 = vmatpush1.bf16.msra.mxu0 %v3530
    %4764 = vmatprep.subr.bf16.mxu0 %v3547
    %4765 = vmatpush1.bf16.msra.mxu0 %v3546
    %4766 = vmatprep.subr.bf16.mxu0 %v3563
    %4767 = vmatpush1.bf16.msra.mxu0 %v3562
    %4768 = vmatprep.subr.bf16.mxu0 %v3579
    %4769 = vmatpush1.bf16.msra.mxu0 %v3578
    %4770 = vmatprep.subr.bf16.mxu0 %v3595
    %4771 = vmatpush1.bf16.msra.mxu0 %v3594
    %4772 = vmatprep.subr.bf16.mxu0 %v3611
    %4773 = vmatpush1.bf16.msra.mxu0 %v3610
    %4774 = vmatprep.subr.bf16.mxu0 %v3627
    %4775 = vmatpush1.bf16.msra.mxu0 %v3626
    %4776 = vmatprep.subr.bf16.mxu0 %v3643
    %4777 = vmatpush1.bf16.msra.mxu0 %v3642
    %4778 = vmatprep.mubr.bf16.mxu0 %v1343
    %4779 = vmatmul.mubr.bf16.gmra.mrb[0].mxu0 %v1342
    %v4780 = vpop.f32.mrb[0].mxu0
    %v4781 = vadd.f32 0.0, %v4780
    %v4782 = vpop.f32.mrb[0].mxu0
    %v4783 = vadd.f32 0.0, %v4782
    %v4784 = vpop.f32.mrb[0].mxu0
    %v4785 = vpop.f32.mrb[0].mxu0
    %4786 = vdwg.mxu0
    %4787 = vmatprep.subr.bf16.mxu0 %v3659
    %4788 = vmatpush1.bf16.msra.mxu0 %v3658
    %4789 = vmatprep.subr.bf16.mxu0 %v3675
    %4790 = vmatpush1.bf16.msra.mxu0 %v3674
    %4791 = vmatprep.subr.bf16.mxu0 %v3691
    %4792 = vmatpush1.bf16.msra.mxu0 %v3690
    %4793 = vmatprep.subr.bf16.mxu0 %v3707
    %4794 = vmatpush1.bf16.msra.mxu0 %v3706
    %4795 = vmatprep.subr.bf16.mxu0 %v3723
    %4796 = vmatpush1.bf16.msra.mxu0 %v3722
    %4797 = vmatprep.subr.bf16.mxu0 %v3739
    %4798 = vmatpush1.bf16.msra.mxu0 %v3738
    %4799 = vmatprep.subr.bf16.mxu0 %v3755
    %4800 = vmatpush1.bf16.msra.mxu0 %v3754
    %4801 = vmatprep.subr.bf16.mxu0 %v3771
    %4802 = vmatpush1.bf16.msra.mxu0 %v3770
    %4803 = vmatprep.subr.bf16.mxu0 %v3787
    %4804 = vmatpush1.bf16.msra.mxu0 %v3786
    %4805 = vmatprep.subr.bf16.mxu0 %v3803
    %4806 = vmatpush1.bf16.msra.mxu0 %v3802
    %4807 = vmatprep.subr.bf16.mxu0 %v3819
    %4808 = vmatpush1.bf16.msra.mxu0 %v3818
    %4809 = vmatprep.subr.bf16.mxu0 %v3835
    %4810 = vmatpush1.bf16.msra.mxu0 %v3834
    %4811 = vmatprep.subr.bf16.mxu0 %v3851
    %4812 = vmatpush1.bf16.msra.mxu0 %v3850
    %4813 = vmatprep.subr.bf16.mxu0 %v3867
    %4814 = vmatpush1.bf16.msra.mxu0 %v3866
    %4815 = vmatprep.subr.bf16.mxu0 %v3883
    %4816 = vmatpush1.bf16.msra.mxu0 %v3882
    %4817 = vmatprep.subr.bf16.mxu0 %v3899
    %4818 = vmatpush1.bf16.msra.mxu0 %v3898
    %4819 = vmatprep.mubr.bf16.mxu0 %v1345
    %4820 = vmatmul.mubr.bf16.gmra.mrb[0].mxu0 %v1344
    %v4821 = vpop.f32.mrb[0].mxu0
    %v4822 = vadd.f32 %v4781, %v4821
    %v4823 = vpop.f32.mrb[0].mxu0
    %v4824 = vadd.f32 %v4783, %v4823
    %v4825 = vpop.f32.mrb[0].mxu0
    %v4826 = vpop.f32.mrb[0].mxu0
    %4827 = vdwg.mxu0
    %4828 = vmatprep.subr.bf16.mxu0 %v3405
    %4829 = vmatpush1.bf16.msra.mxu0 %v3404
    %4830 = vmatprep.subr.bf16.mxu0 %v3421
    %4831 = vmatpush1.bf16.msra.mxu0 %v3420
    %4832 = vmatprep.subr.bf16.mxu0 %v3437
    %4833 = vmatpush1.bf16.msra.mxu0 %v3436
    %4834 = vmatprep.subr.bf16.mxu0 %v3453
    %4835 = vmatpush1.bf16.msra.mxu0 %v3452
    %4836 = vmatprep.subr.bf16.mxu0 %v3469
    %4837 = vmatpush1.bf16.msra.mxu0 %v3468
    %4838 = vmatprep.subr.bf16.mxu0 %v3485
    %4839 = vmatpush1.bf16.msra.mxu0 %v3484
    %4840 = vmatprep.subr.bf16.mxu0 %v3501
    %4841 = vmatpush1.bf16.msra.mxu0 %v3500
    %4842 = vmatprep.subr.bf16.mxu0 %v3517
    %4843 = vmatpush1.bf16.msra.mxu0 %v3516
    %4844 = vmatprep.subr.bf16.mxu0 %v3533
    %4845 = vmatpush1.bf16.msra.mxu0 %v3532
    %4846 = vmatprep.subr.bf16.mxu0 %v3549
    %4847 = vmatpush1.bf16.msra.mxu0 %v3548
    %4848 = vmatprep.subr.bf16.mxu0 %v3565
    %4849 = vmatpush1.bf16.msra.mxu0 %v3564
    %4850 = vmatprep.subr.bf16.mxu0 %v3581
    %4851 = vmatpush1.bf16.msra.mxu0 %v3580
    %4852 = vmatprep.subr.bf16.mxu0 %v3597
    %4853 = vmatpush1.bf16.msra.mxu0 %v3596
    %4854 = vmatprep.subr.bf16.mxu0 %v3613
    %4855 = vmatpush1.bf16.msra.mxu0 %v3612
    %4856 = vmatprep.subr.bf16.mxu0 %v3629
    %4857 = vmatpush1.bf16.msra.mxu0 %v3628
    %4858 = vmatprep.subr.bf16.mxu0 %v3645
    %4859 = vmatpush1.bf16.msra.mxu0 %v3644
    %4860 = vmatprep.mubr.bf16.mxu0 %v1343
    %4861 = vmatmul.mubr.bf16.gmra.mrb[0].mxu0 %v1342
    %v4862 = vpop.f32.mrb[0].mxu0
    %v4863 = vadd.f32 0.0, %v4862
    %v4864 = vpop.f32.mrb[0].mxu0
    %v4865 = vadd.f32 0.0, %v4864
    %v4866 = vpop.f32.mrb[0].mxu0
    %v4867 = vpop.f32.mrb[0].mxu0
    %4868 = vdwg.mxu0
    %4869 = vmatprep.subr.bf16.mxu0 %v3661
    %4870 = vmatpush1.bf16.msra.mxu0 %v3660
    %4871 = vmatprep.subr.bf16.mxu0 %v3677
    %4872 = vmatpush1.bf16.msra.mxu0 %v3676
    %4873 = vmatprep.subr.bf16.mxu0 %v3693
    %4874 = vmatpush1.bf16.msra.mxu0 %v3692
    %4875 = vmatprep.subr.bf16.mxu0 %v3709
    %4876 = vmatpush1.bf16.msra.mxu0 %v3708
    %4877 = vmatprep.subr.bf16.mxu0 %v3725
    %4878 = vmatpush1.bf16.msra.mxu0 %v3724
    %4879 = vmatprep.subr.bf16.mxu0 %v3741
    %4880 = vmatpush1.bf16.msra.mxu0 %v3740
    %4881 = vmatprep.subr.bf16.mxu0 %v3757
    %4882 = vmatpush1.bf16.msra.mxu0 %v3756
    %4883 = vmatprep.subr.bf16.mxu0 %v3773
    %4884 = vmatpush1.bf16.msra.mxu0 %v3772
    %4885 = vmatprep.subr.bf16.mxu0 %v3789
    %4886 = vmatpush1.bf16.msra.mxu0 %v3788
    %4887 = vmatprep.subr.bf16.mxu0 %v3805
    %4888 = vmatpush1.bf16.msra.mxu0 %v3804
    %4889 = vmatprep.subr.bf16.mxu0 %v3821
    %4890 = vmatpush1.bf16.msra.mxu0 %v3820
    %4891 = vmatprep.subr.bf16.mxu0 %v3837
    %4892 = vmatpush1.bf16.msra.mxu0 %v3836
    %4893 = vmatprep.subr.bf16.mxu0 %v3853
    %4894 = vmatpush1.bf16.msra.mxu0 %v3852
    %4895 = vmatprep.subr.bf16.mxu0 %v3869
    %4896 = vmatpush1.bf16.msra.mxu0 %v3868
    %4897 = vmatprep.subr.bf16.mxu0 %v3885
    %4898 = vmatpush1.bf16.msra.mxu0 %v3884
    %4899 = vmatprep.subr.bf16.mxu0 %v3901
    %4900 = vmatpush1.bf16.msra.mxu0 %v3900
    %4901 = vmatprep.mubr.bf16.mxu0 %v1345
    %4902 = vmatmul.mubr.bf16.gmra.mrb[0].mxu0 %v1344
    %v4903 = vpop.f32.mrb[0].mxu0
    %v4904 = vadd.f32 %v4863, %v4903
    %v4905 = vpop.f32.mrb[0].mxu0
    %v4906 = vadd.f32 %v4865, %v4905
    %v4907 = vpop.f32.mrb[0].mxu0
    %v4908 = vpop.f32.mrb[0].mxu0
    %4909 = vdwg.mxu0
    %4910 = vmatprep.subr.bf16.mxu0 %v3407
    %4911 = vmatpush1.bf16.msra.mxu0 %v3406
    %4912 = vmatprep.subr.bf16.mxu0 %v3423
    %4913 = vmatpush1.bf16.msra.mxu0 %v3422
    %4914 = vmatprep.subr.bf16.mxu0 %v3439
    %4915 = vmatpush1.bf16.msra.mxu0 %v3438
    %4916 = vmatprep.subr.bf16.mxu0 %v3455
    %4917 = vmatpush1.bf16.msra.mxu0 %v3454
    %4918 = vmatprep.subr.bf16.mxu0 %v3471
    %4919 = vmatpush1.bf16.msra.mxu0 %v3470
    %4920 = vmatprep.subr.bf16.mxu0 %v3487
    %4921 = vmatpush1.bf16.msra.mxu0 %v3486
    %4922 = vmatprep.subr.bf16.mxu0 %v3503
    %4923 = vmatpush1.bf16.msra.mxu0 %v3502
    %4924 = vmatprep.subr.bf16.mxu0 %v3519
    %4925 = vmatpush1.bf16.msra.mxu0 %v3518
    %4926 = vmatprep.subr.bf16.mxu0 %v3535
    %4927 = vmatpush1.bf16.msra.mxu0 %v3534
    %4928 = vmatprep.subr.bf16.mxu0 %v3551
    %4929 = vmatpush1.bf16.msra.mxu0 %v3550
    %4930 = vmatprep.subr.bf16.mxu0 %v3567
    %4931 = vmatpush1.bf16.msra.mxu0 %v3566
    %4932 = vmatprep.subr.bf16.mxu0 %v3583
    %4933 = vmatpush1.bf16.msra.mxu0 %v3582
    %4934 = vmatprep.subr.bf16.mxu0 %v3599
    %4935 = vmatpush1.bf16.msra.mxu0 %v3598
    %4936 = vmatprep.subr.bf16.mxu0 %v3615
    %4937 = vmatpush1.bf16.msra.mxu0 %v3614
    %4938 = vmatprep.subr.bf16.mxu0 %v3631
    %4939 = vmatpush1.bf16.msra.mxu0 %v3630
    %4940 = vmatprep.subr.bf16.mxu0 %v3647
    %4941 = vmatpush1.bf16.msra.mxu0 %v3646
    %4942 = vmatprep.mubr.bf16.mxu0 %v1343
    %4943 = vmatmul.mubr.bf16.gmra.mrb[0].mxu0 %v1342
    %v4944 = vpop.f32.mrb[0].mxu0
    %v4945 = vadd.f32 0.0, %v4944
    %v4946 = vpop.f32.mrb[0].mxu0
    %v4947 = vadd.f32 0.0, %v4946
    %v4948 = vpop.f32.mrb[0].mxu0
    %v4949 = vpop.f32.mrb[0].mxu0
    %4950 = vdwg.mxu0
    %4951 = vmatprep.subr.bf16.mxu0 %v3663
    %4952 = vmatpush1.bf16.msra.mxu0 %v3662
    %4953 = vmatprep.subr.bf16.mxu0 %v3679
    %4954 = vmatpush1.bf16.msra.mxu0 %v3678
    %4955 = vmatprep.subr.bf16.mxu0 %v3695
    %4956 = vmatpush1.bf16.msra.mxu0 %v3694
    %4957 = vmatprep.subr.bf16.mxu0 %v3711
    %4958 = vmatpush1.bf16.msra.mxu0 %v3710
    %4959 = vmatprep.subr.bf16.mxu0 %v3727
    %4960 = vmatpush1.bf16.msra.mxu0 %v3726
    %4961 = vmatprep.subr.bf16.mxu0 %v3743
    %4962 = vmatpush1.bf16.msra.mxu0 %v3742
    %4963 = vmatprep.subr.bf16.mxu0 %v3759
    %4964 = vmatpush1.bf16.msra.mxu0 %v3758
    %4965 = vmatprep.subr.bf16.mxu0 %v3775
    %4966 = vmatpush1.bf16.msra.mxu0 %v3774
    %4967 = vmatprep.subr.bf16.mxu0 %v3791
    %4968 = vmatpush1.bf16.msra.mxu0 %v3790
    %4969 = vmatprep.subr.bf16.mxu0 %v3807
    %4970 = vmatpush1.bf16.msra.mxu0 %v3806
    %4971 = vmatprep.subr.bf16.mxu0 %v3823
    %4972 = vmatpush1.bf16.msra.mxu0 %v3822
    %4973 = vmatprep.subr.bf16.mxu0 %v3839
    %4974 = vmatpush1.bf16.msra.mxu0 %v3838
    %4975 = vmatprep.subr.bf16.mxu0 %v3855
    %4976 = vmatpush1.bf16.msra.mxu0 %v3854
    %4977 = vmatprep.subr.bf16.mxu0 %v3871
    %4978 = vmatpush1.bf16.msra.mxu0 %v3870
    %4979 = vmatprep.subr.bf16.mxu0 %v3887
    %4980 = vmatpush1.bf16.msra.mxu0 %v3886
    %4981 = vmatprep.subr.bf16.mxu0 %v3903
    %4982 = vmatpush1.bf16.msra.mxu0 %v3902
    %4983 = vmatprep.mubr.bf16.mxu0 %v1345
    %4984 = vmatmul.mubr.bf16.gmra.mrb[0].mxu0 %v1344
    %v4985 = vpop.f32.mrb[0].mxu0
    %v4986 = vadd.f32 %v4945, %v4985
    %v4987 = vpop.f32.mrb[0].mxu0
    %v4988 = vadd.f32 %v4947, %v4987
    %v4989 = vpop.f32.mrb[0].mxu0
    %v4990 = vpop.f32.mrb[0].mxu0
    %4991 = vdwg.mxu0
    %4992 = vmatprep.subr.bf16.mxu0 %v3409
    %4993 = vmatpush1.bf16.msra.mxu0 %v3408
    %4994 = vmatprep.subr.bf16.mxu0 %v3425
    %4995 = vmatpush1.bf16.msra.mxu0 %v3424
    %4996 = vmatprep.subr.bf16.mxu0 %v3441
    %4997 = vmatpush1.bf16.msra.mxu0 %v3440
    %4998 = vmatprep.subr.bf16.mxu0 %v3457
    %4999 = vmatpush1.bf16.msra.mxu0 %v3456
    %5000 = vmatprep.subr.bf16.mxu0 %v3473
    %5001 = vmatpush1.bf16.msra.mxu0 %v3472
    %5002 = vmatprep.subr.bf16.mxu0 %v3489
    %5003 = vmatpush1.bf16.msra.mxu0 %v3488
    %5004 = vmatprep.subr.bf16.mxu0 %v3505
    %5005 = vmatpush1.bf16.msra.mxu0 %v3504
    %5006 = vmatprep.subr.bf16.mxu0 %v3521
    %5007 = vmatpush1.bf16.msra.mxu0 %v3520
    %5008 = vmatprep.subr.bf16.mxu0 %v3537
    %5009 = vmatpush1.bf16.msra.mxu0 %v3536
    %5010 = vmatprep.subr.bf16.mxu0 %v3553
    %5011 = vmatpush1.bf16.msra.mxu0 %v3552
    %5012 = vmatprep.subr.bf16.mxu0 %v3569
    %5013 = vmatpush1.bf16.msra.mxu0 %v3568
    %5014 = vmatprep.subr.bf16.mxu0 %v3585
    %5015 = vmatpush1.bf16.msra.mxu0 %v3584
    %5016 = vmatprep.subr.bf16.mxu0 %v3601
    %5017 = vmatpush1.bf16.msra.mxu0 %v3600
    %5018 = vmatprep.subr.bf16.mxu0 %v3617
    %5019 = vmatpush1.bf16.msra.mxu0 %v3616
    %5020 = vmatprep.subr.bf16.mxu0 %v3633
    %5021 = vmatpush1.bf16.msra.mxu0 %v3632
    %5022 = vmatprep.subr.bf16.mxu0 %v3649
    %5023 = vmatpush1.bf16.msra.mxu0 %v3648
    %5024 = vmatprep.mubr.bf16.mxu0 %v1343
    %5025 = vmatmul.mubr.bf16.gmra.mrb[0].mxu0 %v1342
    %v5026 = vpop.f32.mrb[0].mxu0
    %v5027 = vadd.f32 0.0, %v5026
    %v5028 = vpop.f32.mrb[0].mxu0
    %v5029 = vadd.f32 0.0, %v5028
    %v5030 = vpop.f32.mrb[0].mxu0
    %v5031 = vpop.f32.mrb[0].mxu0
    %5032 = vdwg.mxu0
    %5033 = vmatprep.subr.bf16.mxu0 %v3665
    %5034 = vmatpush1.bf16.msra.mxu0 %v3664
    %5035 = vmatprep.subr.bf16.mxu0 %v3681
    %5036 = vmatpush1.bf16.msra.mxu0 %v3680
    %5037 = vmatprep.subr.bf16.mxu0 %v3697
    %5038 = vmatpush1.bf16.msra.mxu0 %v3696
    %5039 = vmatprep.subr.bf16.mxu0 %v3713
    %5040 = vmatpush1.bf16.msra.mxu0 %v3712
    %5041 = vmatprep.subr.bf16.mxu0 %v3729
    %5042 = vmatpush1.bf16.msra.mxu0 %v3728
    %5043 = vmatprep.subr.bf16.mxu0 %v3745
    %5044 = vmatpush1.bf16.msra.mxu0 %v3744
    %5045 = vmatprep.subr.bf16.mxu0 %v3761
    %5046 = vmatpush1.bf16.msra.mxu0 %v3760
    %5047 = vmatprep.subr.bf16.mxu0 %v3777
    %5048 = vmatpush1.bf16.msra.mxu0 %v3776
    %5049 = vmatprep.subr.bf16.mxu0 %v3793
    %5050 = vmatpush1.bf16.msra.mxu0 %v3792
    %5051 = vmatprep.subr.bf16.mxu0 %v3809
    %5052 = vmatpush1.bf16.msra.mxu0 %v3808
    %5053 = vmatprep.subr.bf16.mxu0 %v3825
    %5054 = vmatpush1.bf16.msra.mxu0 %v3824
    %5055 = vmatprep.subr.bf16.mxu0 %v3841
    %5056 = vmatpush1.bf16.msra.mxu0 %v3840
    %5057 = vmatprep.subr.bf16.mxu0 %v3857
    %5058 = vmatpush1.bf16.msra.mxu0 %v3856
    %5059 = vmatprep.subr.bf16.mxu0 %v3873
    %5060 = vmatpush1.bf16.msra.mxu0 %v3872
    %5061 = vmatprep.subr.bf16.mxu0 %v3889
    %5062 = vmatpush1.bf16.msra.mxu0 %v3888
    %5063 = vmatprep.subr.bf16.mxu0 %v3905
    %5064 = vmatpush1.bf16.msra.mxu0 %v3904
    %5065 = vmatprep.mubr.bf16.mxu0 %v1345
    %5066 = vmatmul.mubr.bf16.gmra.mrb[0].mxu0 %v1344
    %v5067 = vpop.f32.mrb[0].mxu0
    %v5068 = vadd.f32 %v5027, %v5067
    %v5069 = vpop.f32.mrb[0].mxu0
    %v5070 = vadd.f32 %v5029, %v5069
    %v5071 = vpop.f32.mrb[0].mxu0
    %v5072 = vpop.f32.mrb[0].mxu0
    %5073 = vdwg.mxu0
    %v5074 = vpack.c.bf16 %v4494, %v4494
    %v5075 = vpack.c.bf16 %v4496, %v4496
    %v5076 = vpack.c.bf16 %v4576, %v4576
    %v5077 = vpack.c.bf16 %v4578, %v4578
    %v5078 = vpack.c.bf16 %v4658, %v4658
    %v5079 = vpack.c.bf16 %v4660, %v4660
    %v5080 = vpack.c.bf16 %v4740, %v4740
    %v5081 = vpack.c.bf16 %v4742, %v4742
    %v5082 = vpack.c.bf16 %v4822, %v4822
    %v5083 = vpack.c.bf16 %v4824, %v4824
    %v5084 = vpack.c.bf16 %v4904, %v4904
    %v5085 = vpack.c.bf16 %v4906, %v4906
    %v5086 = vpack.c.bf16 %v4986, %v4986
    %v5087 = vpack.c.bf16 %v4988, %v4988
    %v5088 = vpack.c.bf16 %v5068, %v5068
    %v5089 = vpack.c.bf16 %v5070, %v5070
    %v5090 = vld [vmem:[#allocation13] sm:$0xff]
    %v5091 = vld [vmem:[#allocation13 + $0x8] sm:$0xff]
    %v5094 = vcombine.high %v5090, %v5090
    %v5096 = vunpack.c.l.s4 1966171168
    %v5097 = vunpack.c.0.s8 %v5096
    %v5098 = vlaneseq
    %v5099 = vshrl.u32 %v5098, 7
    %v5100 = vsub.s32 %v5097, %v5099
    %v5101 = vrot.slane %v5090, %v5100
    %v5103 = vunpack.c.l.s4 1966171168
    %v5104 = vunpack.c.0.s8 %v5103
    %v5105 = vlaneseq
    %v5106 = vshrl.u32 %v5105, 7
    %v5107 = vsub.s32 %v5104, %v5106
    %v5108 = vrot.slane %v5094, %v5107
    %v5109 = vcombine.high %v5101, %v5101
    %v5110 = vcombine.high %v5108, %v5108
    %v5112 = vunpack.c.l.s4 1966171168
    %v5113 = vunpack.c.0.s8 %v5112
    %v5114 = vlaneseq
    %v5115 = vshrl.u32 %v5114, 7
    %v5116 = vsub.s32 %v5113, %v5115
    %v5117 = vrot.slane %v5101, %v5116
    %v5119 = vunpack.c.l.s4 1966171168
    %v5120 = vunpack.c.0.s8 %v5119
    %v5121 = vlaneseq
    %v5122 = vshrl.u32 %v5121, 7
    %v5123 = vsub.s32 %v5120, %v5122
    %v5124 = vrot.slane %v5108, %v5123
    %v5126 = vunpack.c.l.s4 1966171168
    %v5127 = vunpack.c.0.s8 %v5126
    %v5128 = vlaneseq
    %v5129 = vshrl.u32 %v5128, 7
    %v5130 = vsub.s32 %v5127, %v5129
    %v5131 = vrot.slane %v5109, %v5130
    %v5133 = vunpack.c.l.s4 1966171168
    %v5134 = vunpack.c.0.s8 %v5133
    %v5135 = vlaneseq
    %v5136 = vshrl.u32 %v5135, 7
    %v5137 = vsub.s32 %v5134, %v5136
    %v5138 = vrot.slane %v5110, %v5137
    %v5139 = vcombine.high %v5117, %v5117
    %v5140 = vcombine.high %v5124, %v5124
    %v5141 = vcombine.high %v5131, %v5131
    %v5142 = vcombine.high %v5138, %v5138
    %v5143 = vcombine.high %v5091, %v5091
    %v5145 = vunpack.c.l.s4 1966171168
    %v5146 = vunpack.c.0.s8 %v5145
    %v5147 = vlaneseq
    %v5148 = vshrl.u32 %v5147, 7
    %v5149 = vsub.s32 %v5146, %v5148
    %v5150 = vrot.slane %v5091, %v5149
    %v5152 = vunpack.c.l.s4 1966171168
    %v5153 = vunpack.c.0.s8 %v5152
    %v5154 = vlaneseq
    %v5155 = vshrl.u32 %v5154, 7
    %v5156 = vsub.s32 %v5153, %v5155
    %v5157 = vrot.slane %v5143, %v5156
    %v5158 = vcombine.high %v5150, %v5150
    %v5159 = vcombine.high %v5157, %v5157
    %v5161 = vunpack.c.l.s4 1966171168
    %v5162 = vunpack.c.0.s8 %v5161
    %v5163 = vlaneseq
    %v5164 = vshrl.u32 %v5163, 7
    %v5165 = vsub.s32 %v5162, %v5164
    %v5166 = vrot.slane %v5150, %v5165
    %v5168 = vunpack.c.l.s4 1966171168
    %v5169 = vunpack.c.0.s8 %v5168
    %v5170 = vlaneseq
    %v5171 = vshrl.u32 %v5170, 7
    %v5172 = vsub.s32 %v5169, %v5171
    %v5173 = vrot.slane %v5157, %v5172
    %v5175 = vunpack.c.l.s4 1966171168
    %v5176 = vunpack.c.0.s8 %v5175
    %v5177 = vlaneseq
    %v5178 = vshrl.u32 %v5177, 7
    %v5179 = vsub.s32 %v5176, %v5178
    %v5180 = vrot.slane %v5158, %v5179
    %v5182 = vunpack.c.l.s4 1966171168
    %v5183 = vunpack.c.0.s8 %v5182
    %v5184 = vlaneseq
    %v5185 = vshrl.u32 %v5184, 7
    %v5186 = vsub.s32 %v5183, %v5185
    %v5187 = vrot.slane %v5159, %v5186
    %v5188 = vcombine.high %v5166, %v5166
    %v5189 = vcombine.high %v5173, %v5173
    %v5190 = vcombine.high %v5180, %v5180
    %v5191 = vcombine.high %v5187, %v5187
    %v5193 = vpack.i.b16 %v5117, %v5117
    %v5195 = vlaneseq
    %v5196 = vshrl.u32 %v5195, 7
    %v5197 = vsub.s32 0, %v5196
    %v5198 = vrot.slane %v5193, %v5197
    %v5200 = vpack.i.b16 %v5131, %v5131
    %v5202 = vlaneseq
    %v5203 = vshrl.u32 %v5202, 7
    %v5204 = vsub.s32 0, %v5203
    %v5205 = vrot.slane %v5200, %v5204
    %v5207 = vpack.i.b16 %v5139, %v5139
    %v5209 = vlaneseq
    %v5210 = vshrl.u32 %v5209, 7
    %v5211 = vsub.s32 0, %v5210
    %v5212 = vrot.slane %v5207, %v5211
    %v5214 = vpack.i.b16 %v5141, %v5141
    %v5216 = vlaneseq
    %v5217 = vshrl.u32 %v5216, 7
    %v5218 = vsub.s32 0, %v5217
    %v5219 = vrot.slane %v5214, %v5218
    %v5221 = vpack.i.b16 %v5124, %v5124
    %v5223 = vlaneseq
    %v5224 = vshrl.u32 %v5223, 7
    %v5225 = vsub.s32 0, %v5224
    %v5226 = vrot.slane %v5221, %v5225
    %v5228 = vpack.i.b16 %v5138, %v5138
    %v5230 = vlaneseq
    %v5231 = vshrl.u32 %v5230, 7
    %v5232 = vsub.s32 0, %v5231
    %v5233 = vrot.slane %v5228, %v5232
    %v5235 = vpack.i.b16 %v5140, %v5140
    %v5237 = vlaneseq
    %v5238 = vshrl.u32 %v5237, 7
    %v5239 = vsub.s32 0, %v5238
    %v5240 = vrot.slane %v5235, %v5239
    %v5242 = vpack.i.b16 %v5142, %v5142
    %v5244 = vlaneseq
    %v5245 = vshrl.u32 %v5244, 7
    %v5246 = vsub.s32 0, %v5245
    %v5247 = vrot.slane %v5242, %v5246
    %v5249 = vpack.i.b16 %v5166, %v5166
    %v5251 = vlaneseq
    %v5252 = vshrl.u32 %v5251, 7
    %v5253 = vsub.s32 0, %v5252
    %v5254 = vrot.slane %v5249, %v5253
    %v5256 = vpack.i.b16 %v5180, %v5180
    %v5258 = vlaneseq
    %v5259 = vshrl.u32 %v5258, 7
    %v5260 = vsub.s32 0, %v5259
    %v5261 = vrot.slane %v5256, %v5260
    %v5263 = vpack.i.b16 %v5188, %v5188
    %v5265 = vlaneseq
    %v5266 = vshrl.u32 %v5265, 7
    %v5267 = vsub.s32 0, %v5266
    %v5268 = vrot.slane %v5263, %v5267
    %v5270 = vpack.i.b16 %v5190, %v5190
    %v5272 = vlaneseq
    %v5273 = vshrl.u32 %v5272, 7
    %v5274 = vsub.s32 0, %v5273
    %v5275 = vrot.slane %v5270, %v5274
    %v5277 = vpack.i.b16 %v5173, %v5173
    %v5279 = vlaneseq
    %v5280 = vshrl.u32 %v5279, 7
    %v5281 = vsub.s32 0, %v5280
    %v5282 = vrot.slane %v5277, %v5281
    %v5284 = vpack.i.b16 %v5187, %v5187
    %v5286 = vlaneseq
    %v5287 = vshrl.u32 %v5286, 7
    %v5288 = vsub.s32 0, %v5287
    %v5289 = vrot.slane %v5284, %v5288
    %v5291 = vpack.i.b16 %v5189, %v5189
    %v5293 = vlaneseq
    %v5294 = vshrl.u32 %v5293, 7
    %v5295 = vsub.s32 0, %v5294
    %v5296 = vrot.slane %v5291, %v5295
    %v5298 = vpack.i.b16 %v5191, %v5191
    %v5300 = vlaneseq
    %v5301 = vshrl.u32 %v5300, 7
    %v5302 = vsub.s32 0, %v5301
    %v5303 = vrot.slane %v5298, %v5302
    %v5304 = vadd.bf16 %v5074, %v5198
    %v5305 = vadd.bf16 %v5075, %v5205
    %v5306 = vadd.bf16 %v5076, %v5212
    %v5307 = vadd.bf16 %v5077, %v5219
    %v5308 = vadd.bf16 %v5078, %v5226
    %v5309 = vadd.bf16 %v5079, %v5233
    %v5310 = vadd.bf16 %v5080, %v5240
    %v5311 = vadd.bf16 %v5081, %v5247
    %v5312 = vadd.bf16 %v5082, %v5254
    %v5313 = vadd.bf16 %v5083, %v5261
    %v5314 = vadd.bf16 %v5084, %v5268
    %v5315 = vadd.bf16 %v5085, %v5275
    %v5316 = vadd.bf16 %v5086, %v5282
    %v5317 = vadd.bf16 %v5087, %v5289
    %v5318 = vadd.bf16 %v5088, %v5296
    %v5319 = vadd.bf16 %v5089, %v5303
    %v5320 = vmax.bf16 %v5304, 0
    %v5321 = vmax.bf16 %v5305, 0
    %v5322 = vmax.bf16 %v5306, 0
    %v5323 = vmax.bf16 %v5307, 0
    %v5324 = vmax.bf16 %v5308, 0
    %v5325 = vmax.bf16 %v5309, 0
    %v5326 = vmax.bf16 %v5310, 0
    %v5327 = vmax.bf16 %v5311, 0
    %v5328 = vmax.bf16 %v5312, 0
    %v5329 = vmax.bf16 %v5313, 0
    %v5330 = vmax.bf16 %v5314, 0
    %v5331 = vmax.bf16 %v5315, 0
    %v5332 = vmax.bf16 %v5316, 0
    %v5333 = vmax.bf16 %v5317, 0
    %v5334 = vmax.bf16 %v5318, 0
    %v5335 = vmax.bf16 %v5319, 0
    %v5336 = vld [vmem:[#allocation14] sm:$0xf]
    %v5337 = vld [vmem:[#allocation14 + $0x4] sm:$0xf]
    %v5338 = vld [vmem:[#allocation14 + $0x8] sm:$0xf]
    %v5339 = vld [vmem:[#allocation14 + $0xc] sm:$0xf]
    %v5340 = vld [vmem:[#allocation14 + $0x10] sm:$0xf]
    %v5341 = vld [vmem:[#allocation14 + $0x14] sm:$0xf]
    %v5342 = vld [vmem:[#allocation14 + $0x18] sm:$0xf]
    %v5343 = vld [vmem:[#allocation14 + $0x1c] sm:$0xf]
    %v5344 = vld [vmem:[#allocation14 + $0x20] sm:$0xf]
    %v5345 = vld [vmem:[#allocation14 + $0x24] sm:$0xf]
    %v5346 = vld [vmem:[#allocation14 + $0x28] sm:$0xf]
    %v5347 = vld [vmem:[#allocation14 + $0x2c] sm:$0xf]
    %v5348 = vld [vmem:[#allocation14 + $0x30] sm:$0xf]
    %v5349 = vld [vmem:[#allocation14 + $0x34] sm:$0xf]
    %v5350 = vld [vmem:[#allocation14 + $0x38] sm:$0xf]
    %v5351 = vld [vmem:[#allocation14 + $0x3c] sm:$0xf]
    %v5352 = vld [vmem:[#allocation14 + $0x40] sm:$0xf]
    %v5353 = vld [vmem:[#allocation14 + $0x44] sm:$0xf]
    %v5354 = vld [vmem:[#allocation14 + $0x48] sm:$0xf]
    %v5355 = vld [vmem:[#allocation14 + $0x4c] sm:$0xf]
    %v5356 = vld [vmem:[#allocation14 + $0x50] sm:$0xf]
    %v5357 = vld [vmem:[#allocation14 + $0x54] sm:$0xf]
    %v5358 = vld [vmem:[#allocation14 + $0x58] sm:$0xf]
    %v5359 = vld [vmem:[#allocation14 + $0x5c] sm:$0xf]
    %v5360 = vld [vmem:[#allocation14 + $0x60] sm:$0xf]
    %v5361 = vld [vmem:[#allocation14 + $0x64] sm:$0xf]
    %v5362 = vld [vmem:[#allocation14 + $0x68] sm:$0xf]
    %v5363 = vld [vmem:[#allocation14 + $0x6c] sm:$0xf]
    %v5364 = vld [vmem:[#allocation14 + $0x70] sm:$0xf]
    %v5365 = vld [vmem:[#allocation14 + $0x74] sm:$0xf]
    %v5366 = vld [vmem:[#allocation14 + $0x78] sm:$0xf]
    %v5367 = vld [vmem:[#allocation14 + $0x7c] sm:$0xf]
    %v5368 = vld [vmem:[#allocation14 + $0x80] sm:$0xf]
    %v5369 = vld [vmem:[#allocation14 + $0x84] sm:$0xf]
    %v5370 = vld [vmem:[#allocation14 + $0x88] sm:$0xf]
    %v5371 = vld [vmem:[#allocation14 + $0x8c] sm:$0xf]
    %v5372 = vld [vmem:[#allocation14 + $0x90] sm:$0xf]
    %v5373 = vld [vmem:[#allocation14 + $0x94] sm:$0xf]
    %v5374 = vld [vmem:[#allocation14 + $0x98] sm:$0xf]
    %v5375 = vld [vmem:[#allocation14 + $0x9c] sm:$0xf]
    %v5376 = vld [vmem:[#allocation14 + $0xa0] sm:$0xf]
    %v5377 = vld [vmem:[#allocation14 + $0xa4] sm:$0xf]
    %v5378 = vld [vmem:[#allocation14 + $0xa8] sm:$0xf]
    %v5379 = vld [vmem:[#allocation14 + $0xac] sm:$0xf]
    %v5380 = vld [vmem:[#allocation14 + $0xb0] sm:$0xf]
    %v5381 = vld [vmem:[#allocation14 + $0xb4] sm:$0xf]
    %v5382 = vld [vmem:[#allocation14 + $0xb8] sm:$0xf]
    %v5383 = vld [vmem:[#allocation14 + $0xbc] sm:$0xf]
    %v5384 = vld [vmem:[#allocation14 + $0xc0] sm:$0xf]
    %v5385 = vld [vmem:[#allocation14 + $0xc4] sm:$0xf]
    %v5386 = vld [vmem:[#allocation14 + $0xc8] sm:$0xf]
    %v5387 = vld [vmem:[#allocation14 + $0xcc] sm:$0xf]
    %v5388 = vld [vmem:[#allocation14 + $0xd0] sm:$0xf]
    %v5389 = vld [vmem:[#allocation14 + $0xd4] sm:$0xf]
    %v5390 = vld [vmem:[#allocation14 + $0xd8] sm:$0xf]
    %v5391 = vld [vmem:[#allocation14 + $0xdc] sm:$0xf]
    %v5392 = vld [vmem:[#allocation14 + $0xe0] sm:$0xf]
    %v5393 = vld [vmem:[#allocation14 + $0xe4] sm:$0xf]
    %v5394 = vld [vmem:[#allocation14 + $0xe8] sm:$0xf]
    %v5395 = vld [vmem:[#allocation14 + $0xec] sm:$0xf]
    %v5396 = vld [vmem:[#allocation14 + $0xf0] sm:$0xf]
    %v5397 = vld [vmem:[#allocation14 + $0xf4] sm:$0xf]
    %v5398 = vld [vmem:[#allocation14 + $0xf8] sm:$0xf]
    %v5399 = vld [vmem:[#allocation14 + $0xfc] sm:$0xf]
    %v5400 = vld [vmem:[#allocation14 + $0x100] sm:$0xf]
    %v5401 = vld [vmem:[#allocation14 + $0x104] sm:$0xf]
    %v5402 = vld [vmem:[#allocation14 + $0x108] sm:$0xf]
    %v5403 = vld [vmem:[#allocation14 + $0x10c] sm:$0xf]
    %v5404 = vld [vmem:[#allocation14 + $0x110] sm:$0xf]
    %v5405 = vld [vmem:[#allocation14 + $0x114] sm:$0xf]
    %v5406 = vld [vmem:[#allocation14 + $0x118] sm:$0xf]
    %v5407 = vld [vmem:[#allocation14 + $0x11c] sm:$0xf]
    %v5408 = vld [vmem:[#allocation14 + $0x120] sm:$0xf]
    %v5409 = vld [vmem:[#allocation14 + $0x124] sm:$0xf]
    %v5410 = vld [vmem:[#allocation14 + $0x128] sm:$0xf]
    %v5411 = vld [vmem:[#allocation14 + $0x12c] sm:$0xf]
    %v5412 = vld [vmem:[#allocation14 + $0x130] sm:$0xf]
    %v5413 = vld [vmem:[#allocation14 + $0x134] sm:$0xf]
    %v5414 = vld [vmem:[#allocation14 + $0x138] sm:$0xf]
    %v5415 = vld [vmem:[#allocation14 + $0x13c] sm:$0xf]
    %v5416 = vld [vmem:[#allocation14 + $0x140] sm:$0xf]
    %v5417 = vld [vmem:[#allocation14 + $0x144] sm:$0xf]
    %v5418 = vld [vmem:[#allocation14 + $0x148] sm:$0xf]
    %v5419 = vld [vmem:[#allocation14 + $0x14c] sm:$0xf]
    %v5420 = vld [vmem:[#allocation14 + $0x150] sm:$0xf]
    %v5421 = vld [vmem:[#allocation14 + $0x154] sm:$0xf]
    %v5422 = vld [vmem:[#allocation14 + $0x158] sm:$0xf]
    %v5423 = vld [vmem:[#allocation14 + $0x15c] sm:$0xf]
    %v5424 = vld [vmem:[#allocation14 + $0x160] sm:$0xf]
    %v5425 = vld [vmem:[#allocation14 + $0x164] sm:$0xf]
    %v5426 = vld [vmem:[#allocation14 + $0x168] sm:$0xf]
    %v5427 = vld [vmem:[#allocation14 + $0x16c] sm:$0xf]
    %v5428 = vld [vmem:[#allocation14 + $0x170] sm:$0xf]
    %v5429 = vld [vmem:[#allocation14 + $0x174] sm:$0xf]
    %v5430 = vld [vmem:[#allocation14 + $0x178] sm:$0xf]
    %v5431 = vld [vmem:[#allocation14 + $0x17c] sm:$0xf]
    %v5432 = vld [vmem:[#allocation14 + $0x180] sm:$0xf]
    %v5433 = vld [vmem:[#allocation14 + $0x184] sm:$0xf]
    %v5434 = vld [vmem:[#allocation14 + $0x188] sm:$0xf]
    %v5435 = vld [vmem:[#allocation14 + $0x18c] sm:$0xf]
    %v5436 = vld [vmem:[#allocation14 + $0x190] sm:$0xf]
    %v5437 = vld [vmem:[#allocation14 + $0x194] sm:$0xf]
    %v5438 = vld [vmem:[#allocation14 + $0x198] sm:$0xf]
    %v5439 = vld [vmem:[#allocation14 + $0x19c] sm:$0xf]
    %v5440 = vld [vmem:[#allocation14 + $0x1a0] sm:$0xf]
    %v5441 = vld [vmem:[#allocation14 + $0x1a4] sm:$0xf]
    %v5442 = vld [vmem:[#allocation14 + $0x1a8] sm:$0xf]
    %v5443 = vld [vmem:[#allocation14 + $0x1ac] sm:$0xf]
    %v5444 = vld [vmem:[#allocation14 + $0x1b0] sm:$0xf]
    %v5445 = vld [vmem:[#allocation14 + $0x1b4] sm:$0xf]
    %v5446 = vld [vmem:[#allocation14 + $0x1b8] sm:$0xf]
    %v5447 = vld [vmem:[#allocation14 + $0x1bc] sm:$0xf]
    %v5448 = vld [vmem:[#allocation14 + $0x1c0] sm:$0xf]
    %v5449 = vld [vmem:[#allocation14 + $0x1c4] sm:$0xf]
    %v5450 = vld [vmem:[#allocation14 + $0x1c8] sm:$0xf]
    %v5451 = vld [vmem:[#allocation14 + $0x1cc] sm:$0xf]
    %v5452 = vld [vmem:[#allocation14 + $0x1d0] sm:$0xf]
    %v5453 = vld [vmem:[#allocation14 + $0x1d4] sm:$0xf]
    %v5454 = vld [vmem:[#allocation14 + $0x1d8] sm:$0xf]
    %v5455 = vld [vmem:[#allocation14 + $0x1dc] sm:$0xf]
    %v5456 = vld [vmem:[#allocation14 + $0x1e0] sm:$0xf]
    %v5457 = vld [vmem:[#allocation14 + $0x1e4] sm:$0xf]
    %v5458 = vld [vmem:[#allocation14 + $0x1e8] sm:$0xf]
    %v5459 = vld [vmem:[#allocation14 + $0x1ec] sm:$0xf]
    %v5460 = vld [vmem:[#allocation14 + $0x1f0] sm:$0xf]
    %v5461 = vld [vmem:[#allocation14 + $0x1f4] sm:$0xf]
    %v5462 = vld [vmem:[#allocation14 + $0x1f8] sm:$0xf]
    %v5463 = vld [vmem:[#allocation14 + $0x1fc] sm:$0xf]
    %v5464 = vld [vmem:[#allocation14 + $0x200] sm:$0xf]
    %v5465 = vld [vmem:[#allocation14 + $0x204] sm:$0xf]
    %v5466 = vld [vmem:[#allocation14 + $0x208] sm:$0xf]
    %v5467 = vld [vmem:[#allocation14 + $0x20c] sm:$0xf]
    %v5468 = vld [vmem:[#allocation14 + $0x210] sm:$0xf]
    %v5469 = vld [vmem:[#allocation14 + $0x214] sm:$0xf]
    %v5470 = vld [vmem:[#allocation14 + $0x218] sm:$0xf]
    %v5471 = vld [vmem:[#allocation14 + $0x21c] sm:$0xf]
    %v5472 = vld [vmem:[#allocation14 + $0x220] sm:$0xf]
    %v5473 = vld [vmem:[#allocation14 + $0x224] sm:$0xf]
    %v5474 = vld [vmem:[#allocation14 + $0x228] sm:$0xf]
    %v5475 = vld [vmem:[#allocation14 + $0x22c] sm:$0xf]
    %v5476 = vld [vmem:[#allocation14 + $0x230] sm:$0xf]
    %v5477 = vld [vmem:[#allocation14 + $0x234] sm:$0xf]
    %v5478 = vld [vmem:[#allocation14 + $0x238] sm:$0xf]
    %v5479 = vld [vmem:[#allocation14 + $0x23c] sm:$0xf]
    %v5480 = vld [vmem:[#allocation14 + $0x240] sm:$0xf]
    %v5481 = vld [vmem:[#allocation14 + $0x244] sm:$0xf]
    %v5482 = vld [vmem:[#allocation14 + $0x248] sm:$0xf]
    %v5483 = vld [vmem:[#allocation14 + $0x24c] sm:$0xf]
    %v5484 = vld [vmem:[#allocation14 + $0x250] sm:$0xf]
    %v5485 = vld [vmem:[#allocation14 + $0x254] sm:$0xf]
    %v5486 = vld [vmem:[#allocation14 + $0x258] sm:$0xf]
    %v5487 = vld [vmem:[#allocation14 + $0x25c] sm:$0xf]
    %v5488 = vld [vmem:[#allocation14 + $0x260] sm:$0xf]
    %v5489 = vld [vmem:[#allocation14 + $0x264] sm:$0xf]
    %v5490 = vld [vmem:[#allocation14 + $0x268] sm:$0xf]
    %v5491 = vld [vmem:[#allocation14 + $0x26c] sm:$0xf]
    %v5492 = vld [vmem:[#allocation14 + $0x270] sm:$0xf]
    %v5493 = vld [vmem:[#allocation14 + $0x274] sm:$0xf]
    %v5494 = vld [vmem:[#allocation14 + $0x278] sm:$0xf]
    %v5495 = vld [vmem:[#allocation14 + $0x27c] sm:$0xf]
    %v5496 = vld [vmem:[#allocation14 + $0x280] sm:$0xf]
    %v5497 = vld [vmem:[#allocation14 + $0x284] sm:$0xf]
    %v5498 = vld [vmem:[#allocation14 + $0x288] sm:$0xf]
    %v5499 = vld [vmem:[#allocation14 + $0x28c] sm:$0xf]
    %v5500 = vld [vmem:[#allocation14 + $0x290] sm:$0xf]
    %v5501 = vld [vmem:[#allocation14 + $0x294] sm:$0xf]
    %v5502 = vld [vmem:[#allocation14 + $0x298] sm:$0xf]
    %v5503 = vld [vmem:[#allocation14 + $0x29c] sm:$0xf]
    %v5504 = vld [vmem:[#allocation14 + $0x2a0] sm:$0xf]
    %v5505 = vld [vmem:[#allocation14 + $0x2a4] sm:$0xf]
    %v5506 = vld [vmem:[#allocation14 + $0x2a8] sm:$0xf]
    %v5507 = vld [vmem:[#allocation14 + $0x2ac] sm:$0xf]
    %v5508 = vld [vmem:[#allocation14 + $0x2b0] sm:$0xf]
    %v5509 = vld [vmem:[#allocation14 + $0x2b4] sm:$0xf]
    %v5510 = vld [vmem:[#allocation14 + $0x2b8] sm:$0xf]
    %v5511 = vld [vmem:[#allocation14 + $0x2bc] sm:$0xf]
    %v5512 = vld [vmem:[#allocation14 + $0x2c0] sm:$0xf]
    %v5513 = vld [vmem:[#allocation14 + $0x2c4] sm:$0xf]
    %v5514 = vld [vmem:[#allocation14 + $0x2c8] sm:$0xf]
    %v5515 = vld [vmem:[#allocation14 + $0x2cc] sm:$0xf]
    %v5516 = vld [vmem:[#allocation14 + $0x2d0] sm:$0xf]
    %v5517 = vld [vmem:[#allocation14 + $0x2d4] sm:$0xf]
    %v5518 = vld [vmem:[#allocation14 + $0x2d8] sm:$0xf]
    %v5519 = vld [vmem:[#allocation14 + $0x2dc] sm:$0xf]
    %v5520 = vld [vmem:[#allocation14 + $0x2e0] sm:$0xf]
    %v5521 = vld [vmem:[#allocation14 + $0x2e4] sm:$0xf]
    %v5522 = vld [vmem:[#allocation14 + $0x2e8] sm:$0xf]
    %v5523 = vld [vmem:[#allocation14 + $0x2ec] sm:$0xf]
    %v5524 = vld [vmem:[#allocation14 + $0x2f0] sm:$0xf]
    %v5525 = vld [vmem:[#allocation14 + $0x2f4] sm:$0xf]
    %v5526 = vld [vmem:[#allocation14 + $0x2f8] sm:$0xf]
    %v5527 = vld [vmem:[#allocation14 + $0x2fc] sm:$0xf]
    %v5528 = vld [vmem:[#allocation14 + $0x300] sm:$0xf]
    %v5529 = vld [vmem:[#allocation14 + $0x304] sm:$0xf]
    %v5530 = vld [vmem:[#allocation14 + $0x308] sm:$0xf]
    %v5531 = vld [vmem:[#allocation14 + $0x30c] sm:$0xf]
    %v5532 = vld [vmem:[#allocation14 + $0x310] sm:$0xf]
    %v5533 = vld [vmem:[#allocation14 + $0x314] sm:$0xf]
    %v5534 = vld [vmem:[#allocation14 + $0x318] sm:$0xf]
    %v5535 = vld [vmem:[#allocation14 + $0x31c] sm:$0xf]
    %v5536 = vld [vmem:[#allocation14 + $0x320] sm:$0xf]
    %v5537 = vld [vmem:[#allocation14 + $0x324] sm:$0xf]
    %v5538 = vld [vmem:[#allocation14 + $0x328] sm:$0xf]
    %v5539 = vld [vmem:[#allocation14 + $0x32c] sm:$0xf]
    %v5540 = vld [vmem:[#allocation14 + $0x330] sm:$0xf]
    %v5541 = vld [vmem:[#allocation14 + $0x334] sm:$0xf]
    %v5542 = vld [vmem:[#allocation14 + $0x338] sm:$0xf]
    %v5543 = vld [vmem:[#allocation14 + $0x33c] sm:$0xf]
    %v5544 = vld [vmem:[#allocation14 + $0x340] sm:$0xf]
    %v5545 = vld [vmem:[#allocation14 + $0x344] sm:$0xf]
    %v5546 = vld [vmem:[#allocation14 + $0x348] sm:$0xf]
    %v5547 = vld [vmem:[#allocation14 + $0x34c] sm:$0xf]
    %v5548 = vld [vmem:[#allocation14 + $0x350] sm:$0xf]
    %v5549 = vld [vmem:[#allocation14 + $0x354] sm:$0xf]
    %v5550 = vld [vmem:[#allocation14 + $0x358] sm:$0xf]
    %v5551 = vld [vmem:[#allocation14 + $0x35c] sm:$0xf]
    %v5552 = vld [vmem:[#allocation14 + $0x360] sm:$0xf]
    %v5553 = vld [vmem:[#allocation14 + $0x364] sm:$0xf]
    %v5554 = vld [vmem:[#allocation14 + $0x368] sm:$0xf]
    %v5555 = vld [vmem:[#allocation14 + $0x36c] sm:$0xf]
    %v5556 = vld [vmem:[#allocation14 + $0x370] sm:$0xf]
    %v5557 = vld [vmem:[#allocation14 + $0x374] sm:$0xf]
    %v5558 = vld [vmem:[#allocation14 + $0x378] sm:$0xf]
    %v5559 = vld [vmem:[#allocation14 + $0x37c] sm:$0xf]
    %v5560 = vld [vmem:[#allocation14 + $0x380] sm:$0xf]
    %v5561 = vld [vmem:[#allocation14 + $0x384] sm:$0xf]
    %v5562 = vld [vmem:[#allocation14 + $0x388] sm:$0xf]
    %v5563 = vld [vmem:[#allocation14 + $0x38c] sm:$0xf]
    %v5564 = vld [vmem:[#allocation14 + $0x390] sm:$0xf]
    %v5565 = vld [vmem:[#allocation14 + $0x394] sm:$0xf]
    %v5566 = vld [vmem:[#allocation14 + $0x398] sm:$0xf]
    %v5567 = vld [vmem:[#allocation14 + $0x39c] sm:$0xf]
    %v5568 = vld [vmem:[#allocation14 + $0x3a0] sm:$0xf]
    %v5569 = vld [vmem:[#allocation14 + $0x3a4] sm:$0xf]
    %v5570 = vld [vmem:[#allocation14 + $0x3a8] sm:$0xf]
    %v5571 = vld [vmem:[#allocation14 + $0x3ac] sm:$0xf]
    %v5572 = vld [vmem:[#allocation14 + $0x3b0] sm:$0xf]
    %v5573 = vld [vmem:[#allocation14 + $0x3b4] sm:$0xf]
    %v5574 = vld [vmem:[#allocation14 + $0x3b8] sm:$0xf]
    %v5575 = vld [vmem:[#allocation14 + $0x3bc] sm:$0xf]
    %v5576 = vld [vmem:[#allocation14 + $0x3c0] sm:$0xf]
    %v5577 = vld [vmem:[#allocation14 + $0x3c4] sm:$0xf]
    %v5578 = vld [vmem:[#allocation14 + $0x3c8] sm:$0xf]
    %v5579 = vld [vmem:[#allocation14 + $0x3cc] sm:$0xf]
    %v5580 = vld [vmem:[#allocation14 + $0x3d0] sm:$0xf]
    %v5581 = vld [vmem:[#allocation14 + $0x3d4] sm:$0xf]
    %v5582 = vld [vmem:[#allocation14 + $0x3d8] sm:$0xf]
    %v5583 = vld [vmem:[#allocation14 + $0x3dc] sm:$0xf]
    %v5584 = vld [vmem:[#allocation14 + $0x3e0] sm:$0xf]
    %v5585 = vld [vmem:[#allocation14 + $0x3e4] sm:$0xf]
    %v5586 = vld [vmem:[#allocation14 + $0x3e8] sm:$0xf]
    %v5587 = vld [vmem:[#allocation14 + $0x3ec] sm:$0xf]
    %v5588 = vld [vmem:[#allocation14 + $0x3f0] sm:$0xf]
    %v5589 = vld [vmem:[#allocation14 + $0x3f4] sm:$0xf]
    %v5590 = vld [vmem:[#allocation14 + $0x3f8] sm:$0xf]
    %v5591 = vld [vmem:[#allocation14 + $0x3fc] sm:$0xf]
    %v5592 = vld [vmem:[#allocation16] sm:$0x1]
    %v5594 = vlaneseq
    %v5595 = vshrl.u32 %v5594, 7
    %v5596 = vsub.s32 0, %v5595
    %v5597 = vrot.slane %v5592, %v5596
    %v5855 = vunpack.c.l.b16 %v5336
    %v5856 = vunpack.c.l.b16 %v5337
    %v5857 = vunpack.c.l.b16 %v5338
    %v5858 = vunpack.c.l.b16 %v5339
    %v5859 = vunpack.c.l.b16 %v5340
    %v5860 = vunpack.c.l.b16 %v5341
    %v5861 = vunpack.c.l.b16 %v5342
    %v5862 = vunpack.c.l.b16 %v5343
    %v5863 = vunpack.c.l.b16 %v5344
    %v5864 = vunpack.c.l.b16 %v5345
    %v5865 = vunpack.c.l.b16 %v5346
    %v5866 = vunpack.c.l.b16 %v5347
    %v5867 = vunpack.c.l.b16 %v5348
    %v5868 = vunpack.c.l.b16 %v5349
    %v5869 = vunpack.c.l.b16 %v5350
    %v5870 = vunpack.c.l.b16 %v5351
    %v5871 = vunpack.c.l.b16 %v5352
    %v5872 = vunpack.c.l.b16 %v5353
    %v5873 = vunpack.c.l.b16 %v5354
    %v5874 = vunpack.c.l.b16 %v5355
    %v5875 = vunpack.c.l.b16 %v5356
    %v5876 = vunpack.c.l.b16 %v5357
    %v5877 = vunpack.c.l.b16 %v5358
    %v5878 = vunpack.c.l.b16 %v5359
    %v5879 = vunpack.c.l.b16 %v5360
    %v5880 = vunpack.c.l.b16 %v5361
    %v5881 = vunpack.c.l.b16 %v5362
    %v5882 = vunpack.c.l.b16 %v5363
    %v5883 = vunpack.c.l.b16 %v5364
    %v5884 = vunpack.c.l.b16 %v5365
    %v5885 = vunpack.c.l.b16 %v5366
    %v5886 = vunpack.c.l.b16 %v5367
    %v5887 = vunpack.c.l.b16 %v5368
    %v5888 = vunpack.c.l.b16 %v5369
    %v5889 = vunpack.c.l.b16 %v5370
    %v5890 = vunpack.c.l.b16 %v5371
    %v5891 = vunpack.c.l.b16 %v5372
    %v5892 = vunpack.c.l.b16 %v5373
    %v5893 = vunpack.c.l.b16 %v5374
    %v5894 = vunpack.c.l.b16 %v5375
    %v5895 = vunpack.c.l.b16 %v5376
    %v5896 = vunpack.c.l.b16 %v5377
    %v5897 = vunpack.c.l.b16 %v5378
    %v5898 = vunpack.c.l.b16 %v5379
    %v5899 = vunpack.c.l.b16 %v5380
    %v5900 = vunpack.c.l.b16 %v5381
    %v5901 = vunpack.c.l.b16 %v5382
    %v5902 = vunpack.c.l.b16 %v5383
    %v5903 = vunpack.c.l.b16 %v5384
    %v5904 = vunpack.c.l.b16 %v5385
    %v5905 = vunpack.c.l.b16 %v5386
    %v5906 = vunpack.c.l.b16 %v5387
    %v5907 = vunpack.c.l.b16 %v5388
    %v5908 = vunpack.c.l.b16 %v5389
    %v5909 = vunpack.c.l.b16 %v5390
    %v5910 = vunpack.c.l.b16 %v5391
    %v5911 = vunpack.c.l.b16 %v5392
    %v5912 = vunpack.c.l.b16 %v5393
    %v5913 = vunpack.c.l.b16 %v5394
    %v5914 = vunpack.c.l.b16 %v5395
    %v5915 = vunpack.c.l.b16 %v5396
    %v5916 = vunpack.c.l.b16 %v5397
    %v5917 = vunpack.c.l.b16 %v5398
    %v5918 = vunpack.c.l.b16 %v5399
    %v5919 = vunpack.c.l.b16 %v5400
    %v5920 = vunpack.c.l.b16 %v5401
    %v5921 = vunpack.c.l.b16 %v5402
    %v5922 = vunpack.c.l.b16 %v5403
    %v5923 = vunpack.c.l.b16 %v5404
    %v5924 = vunpack.c.l.b16 %v5405
    %v5925 = vunpack.c.l.b16 %v5406
    %v5926 = vunpack.c.l.b16 %v5407
    %v5927 = vunpack.c.l.b16 %v5408
    %v5928 = vunpack.c.l.b16 %v5409
    %v5929 = vunpack.c.l.b16 %v5410
    %v5930 = vunpack.c.l.b16 %v5411
    %v5931 = vunpack.c.l.b16 %v5412
    %v5932 = vunpack.c.l.b16 %v5413
    %v5933 = vunpack.c.l.b16 %v5414
    %v5934 = vunpack.c.l.b16 %v5415
    %v5935 = vunpack.c.l.b16 %v5416
    %v5936 = vunpack.c.l.b16 %v5417
    %v5937 = vunpack.c.l.b16 %v5418
    %v5938 = vunpack.c.l.b16 %v5419
    %v5939 = vunpack.c.l.b16 %v5420
    %v5940 = vunpack.c.l.b16 %v5421
    %v5941 = vunpack.c.l.b16 %v5422
    %v5942 = vunpack.c.l.b16 %v5423
    %v5943 = vunpack.c.l.b16 %v5424
    %v5944 = vunpack.c.l.b16 %v5425
    %v5945 = vunpack.c.l.b16 %v5426
    %v5946 = vunpack.c.l.b16 %v5427
    %v5947 = vunpack.c.l.b16 %v5428
    %v5948 = vunpack.c.l.b16 %v5429
    %v5949 = vunpack.c.l.b16 %v5430
    %v5950 = vunpack.c.l.b16 %v5431
    %v5951 = vunpack.c.l.b16 %v5432
    %v5952 = vunpack.c.l.b16 %v5433
    %v5953 = vunpack.c.l.b16 %v5434
    %v5954 = vunpack.c.l.b16 %v5435
    %v5955 = vunpack.c.l.b16 %v5436
    %v5956 = vunpack.c.l.b16 %v5437
    %v5957 = vunpack.c.l.b16 %v5438
    %v5958 = vunpack.c.l.b16 %v5439
    %v5959 = vunpack.c.l.b16 %v5440
    %v5960 = vunpack.c.l.b16 %v5441
    %v5961 = vunpack.c.l.b16 %v5442
    %v5962 = vunpack.c.l.b16 %v5443
    %v5963 = vunpack.c.l.b16 %v5444
    %v5964 = vunpack.c.l.b16 %v5445
    %v5965 = vunpack.c.l.b16 %v5446
    %v5966 = vunpack.c.l.b16 %v5447
    %v5967 = vunpack.c.l.b16 %v5448
    %v5968 = vunpack.c.l.b16 %v5449
    %v5969 = vunpack.c.l.b16 %v5450
    %v5970 = vunpack.c.l.b16 %v5451
    %v5971 = vunpack.c.l.b16 %v5452
    %v5972 = vunpack.c.l.b16 %v5453
    %v5973 = vunpack.c.l.b16 %v5454
    %v5974 = vunpack.c.l.b16 %v5455
    %v5975 = vunpack.c.l.b16 %v5456
    %v5976 = vunpack.c.l.b16 %v5457
    %v5977 = vunpack.c.l.b16 %v5458
    %v5978 = vunpack.c.l.b16 %v5459
    %v5979 = vunpack.c.l.b16 %v5460
    %v5980 = vunpack.c.l.b16 %v5461
    %v5981 = vunpack.c.l.b16 %v5462
    %v5982 = vunpack.c.l.b16 %v5463
    %v5983 = vunpack.c.l.b16 %v5464
    %v5984 = vunpack.c.l.b16 %v5465
    %v5985 = vunpack.c.l.b16 %v5466
    %v5986 = vunpack.c.l.b16 %v5467
    %v5987 = vunpack.c.l.b16 %v5468
    %v5988 = vunpack.c.l.b16 %v5469
    %v5989 = vunpack.c.l.b16 %v5470
    %v5990 = vunpack.c.l.b16 %v5471
    %v5991 = vunpack.c.l.b16 %v5472
    %v5992 = vunpack.c.l.b16 %v5473
    %v5993 = vunpack.c.l.b16 %v5474
    %v5994 = vunpack.c.l.b16 %v5475
    %v5995 = vunpack.c.l.b16 %v5476
    %v5996 = vunpack.c.l.b16 %v5477
    %v5997 = vunpack.c.l.b16 %v5478
    %v5998 = vunpack.c.l.b16 %v5479
    %v5999 = vunpack.c.l.b16 %v5480
    %v6000 = vunpack.c.l.b16 %v5481
    %v6001 = vunpack.c.l.b16 %v5482
    %v6002 = vunpack.c.l.b16 %v5483
    %v6003 = vunpack.c.l.b16 %v5484
    %v6004 = vunpack.c.l.b16 %v5485
    %v6005 = vunpack.c.l.b16 %v5486
    %v6006 = vunpack.c.l.b16 %v5487
    %v6007 = vunpack.c.l.b16 %v5488
    %v6008 = vunpack.c.l.b16 %v5489
    %v6009 = vunpack.c.l.b16 %v5490
    %v6010 = vunpack.c.l.b16 %v5491
    %v6011 = vunpack.c.l.b16 %v5492
    %v6012 = vunpack.c.l.b16 %v5493
    %v6013 = vunpack.c.l.b16 %v5494
    %v6014 = vunpack.c.l.b16 %v5495
    %v6015 = vunpack.c.l.b16 %v5496
    %v6016 = vunpack.c.l.b16 %v5497
    %v6017 = vunpack.c.l.b16 %v5498
    %v6018 = vunpack.c.l.b16 %v5499
    %v6019 = vunpack.c.l.b16 %v5500
    %v6020 = vunpack.c.l.b16 %v5501
    %v6021 = vunpack.c.l.b16 %v5502
    %v6022 = vunpack.c.l.b16 %v5503
    %v6023 = vunpack.c.l.b16 %v5504
    %v6024 = vunpack.c.l.b16 %v5505
    %v6025 = vunpack.c.l.b16 %v5506
    %v6026 = vunpack.c.l.b16 %v5507
    %v6027 = vunpack.c.l.b16 %v5508
    %v6028 = vunpack.c.l.b16 %v5509
    %v6029 = vunpack.c.l.b16 %v5510
    %v6030 = vunpack.c.l.b16 %v5511
    %v6031 = vunpack.c.l.b16 %v5512
    %v6032 = vunpack.c.l.b16 %v5513
    %v6033 = vunpack.c.l.b16 %v5514
    %v6034 = vunpack.c.l.b16 %v5515
    %v6035 = vunpack.c.l.b16 %v5516
    %v6036 = vunpack.c.l.b16 %v5517
    %v6037 = vunpack.c.l.b16 %v5518
    %v6038 = vunpack.c.l.b16 %v5519
    %v6039 = vunpack.c.l.b16 %v5520
    %v6040 = vunpack.c.l.b16 %v5521
    %v6041 = vunpack.c.l.b16 %v5522
    %v6042 = vunpack.c.l.b16 %v5523
    %v6043 = vunpack.c.l.b16 %v5524
    %v6044 = vunpack.c.l.b16 %v5525
    %v6045 = vunpack.c.l.b16 %v5526
    %v6046 = vunpack.c.l.b16 %v5527
    %v6047 = vunpack.c.l.b16 %v5528
    %v6048 = vunpack.c.l.b16 %v5529
    %v6049 = vunpack.c.l.b16 %v5530
    %v6050 = vunpack.c.l.b16 %v5531
    %v6051 = vunpack.c.l.b16 %v5532
    %v6052 = vunpack.c.l.b16 %v5533
    %v6053 = vunpack.c.l.b16 %v5534
    %v6054 = vunpack.c.l.b16 %v5535
    %v6055 = vunpack.c.l.b16 %v5536
    %v6056 = vunpack.c.l.b16 %v5537
    %v6057 = vunpack.c.l.b16 %v5538
    %v6058 = vunpack.c.l.b16 %v5539
    %v6059 = vunpack.c.l.b16 %v5540
    %v6060 = vunpack.c.l.b16 %v5541
    %v6061 = vunpack.c.l.b16 %v5542
    %v6062 = vunpack.c.l.b16 %v5543
    %v6063 = vunpack.c.l.b16 %v5544
    %v6064 = vunpack.c.l.b16 %v5545
    %v6065 = vunpack.c.l.b16 %v5546
    %v6066 = vunpack.c.l.b16 %v5547
    %v6067 = vunpack.c.l.b16 %v5548
    %v6068 = vunpack.c.l.b16 %v5549
    %v6069 = vunpack.c.l.b16 %v5550
    %v6070 = vunpack.c.l.b16 %v5551
    %v6071 = vunpack.c.l.b16 %v5552
    %v6072 = vunpack.c.l.b16 %v5553
    %v6073 = vunpack.c.l.b16 %v5554
    %v6074 = vunpack.c.l.b16 %v5555
    %v6075 = vunpack.c.l.b16 %v5556
    %v6076 = vunpack.c.l.b16 %v5557
    %v6077 = vunpack.c.l.b16 %v5558
    %v6078 = vunpack.c.l.b16 %v5559
    %v6079 = vunpack.c.l.b16 %v5560
    %v6080 = vunpack.c.l.b16 %v5561
    %v6081 = vunpack.c.l.b16 %v5562
    %v6082 = vunpack.c.l.b16 %v5563
    %v6083 = vunpack.c.l.b16 %v5564
    %v6084 = vunpack.c.l.b16 %v5565
    %v6085 = vunpack.c.l.b16 %v5566
    %v6086 = vunpack.c.l.b16 %v5567
    %v6087 = vunpack.c.l.b16 %v5568
    %v6088 = vunpack.c.l.b16 %v5569
    %v6089 = vunpack.c.l.b16 %v5570
    %v6090 = vunpack.c.l.b16 %v5571
    %v6091 = vunpack.c.l.b16 %v5572
    %v6092 = vunpack.c.l.b16 %v5573
    %v6093 = vunpack.c.l.b16 %v5574
    %v6094 = vunpack.c.l.b16 %v5575
    %v6095 = vunpack.c.l.b16 %v5576
    %v6096 = vunpack.c.l.b16 %v5577
    %v6097 = vunpack.c.l.b16 %v5578
    %v6098 = vunpack.c.l.b16 %v5579
    %v6099 = vunpack.c.l.b16 %v5580
    %v6100 = vunpack.c.l.b16 %v5581
    %v6101 = vunpack.c.l.b16 %v5582
    %v6102 = vunpack.c.l.b16 %v5583
    %v6103 = vunpack.c.l.b16 %v5584
    %v6104 = vunpack.c.l.b16 %v5585
    %v6105 = vunpack.c.l.b16 %v5586
    %v6106 = vunpack.c.l.b16 %v5587
    %v6107 = vunpack.c.l.b16 %v5588
    %v6108 = vunpack.c.l.b16 %v5589
    %v6109 = vunpack.c.l.b16 %v5590
    %v6110 = vunpack.c.l.b16 %v5591
    %v6111 = vpack.c.b16 %v5856, %v5855
    %v6112 = vpack.c.b16 %v5858, %v5857
    %v6113 = vpack.c.b16 %v5860, %v5859
    %v6114 = vpack.c.b16 %v5862, %v5861
    %v6115 = vpack.c.b16 %v5864, %v5863
    %v6116 = vpack.c.b16 %v5866, %v5865
    %v6117 = vpack.c.b16 %v5868, %v5867
    %v6118 = vpack.c.b16 %v5870, %v5869
    %v6119 = vpack.c.b16 %v5872, %v5871
    %v6120 = vpack.c.b16 %v5874, %v5873
    %v6121 = vpack.c.b16 %v5876, %v5875
    %v6122 = vpack.c.b16 %v5878, %v5877
    %v6123 = vpack.c.b16 %v5880, %v5879
    %v6124 = vpack.c.b16 %v5882, %v5881
    %v6125 = vpack.c.b16 %v5884, %v5883
    %v6126 = vpack.c.b16 %v5886, %v5885
    %v6127 = vpack.c.b16 %v5888, %v5887
    %v6128 = vpack.c.b16 %v5890, %v5889
    %v6129 = vpack.c.b16 %v5892, %v5891
    %v6130 = vpack.c.b16 %v5894, %v5893
    %v6131 = vpack.c.b16 %v5896, %v5895
    %v6132 = vpack.c.b16 %v5898, %v5897
    %v6133 = vpack.c.b16 %v5900, %v5899
    %v6134 = vpack.c.b16 %v5902, %v5901
    %v6135 = vpack.c.b16 %v5904, %v5903
    %v6136 = vpack.c.b16 %v5906, %v5905
    %v6137 = vpack.c.b16 %v5908, %v5907
    %v6138 = vpack.c.b16 %v5910, %v5909
    %v6139 = vpack.c.b16 %v5912, %v5911
    %v6140 = vpack.c.b16 %v5914, %v5913
    %v6141 = vpack.c.b16 %v5916, %v5915
    %v6142 = vpack.c.b16 %v5918, %v5917
    %v6143 = vpack.c.b16 %v5920, %v5919
    %v6144 = vpack.c.b16 %v5922, %v5921
    %v6145 = vpack.c.b16 %v5924, %v5923
    %v6146 = vpack.c.b16 %v5926, %v5925
    %v6147 = vpack.c.b16 %v5928, %v5927
    %v6148 = vpack.c.b16 %v5930, %v5929
    %v6149 = vpack.c.b16 %v5932, %v5931
    %v6150 = vpack.c.b16 %v5934, %v5933
    %v6151 = vpack.c.b16 %v5936, %v5935
    %v6152 = vpack.c.b16 %v5938, %v5937
    %v6153 = vpack.c.b16 %v5940, %v5939
    %v6154 = vpack.c.b16 %v5942, %v5941
    %v6155 = vpack.c.b16 %v5944, %v5943
    %v6156 = vpack.c.b16 %v5946, %v5945
    %v6157 = vpack.c.b16 %v5948, %v5947
    %v6158 = vpack.c.b16 %v5950, %v5949
    %v6159 = vpack.c.b16 %v5952, %v5951
    %v6160 = vpack.c.b16 %v5954, %v5953
    %v6161 = vpack.c.b16 %v5956, %v5955
    %v6162 = vpack.c.b16 %v5958, %v5957
    %v6163 = vpack.c.b16 %v5960, %v5959
    %v6164 = vpack.c.b16 %v5962, %v5961
    %v6165 = vpack.c.b16 %v5964, %v5963
    %v6166 = vpack.c.b16 %v5966, %v5965
    %v6167 = vpack.c.b16 %v5968, %v5967
    %v6168 = vpack.c.b16 %v5970, %v5969
    %v6169 = vpack.c.b16 %v5972, %v5971
    %v6170 = vpack.c.b16 %v5974, %v5973
    %v6171 = vpack.c.b16 %v5976, %v5975
    %v6172 = vpack.c.b16 %v5978, %v5977
    %v6173 = vpack.c.b16 %v5980, %v5979
    %v6174 = vpack.c.b16 %v5982, %v5981
    %v6175 = vpack.c.b16 %v5984, %v5983
    %v6176 = vpack.c.b16 %v5986, %v5985
    %v6177 = vpack.c.b16 %v5988, %v5987
    %v6178 = vpack.c.b16 %v5990, %v5989
    %v6179 = vpack.c.b16 %v5992, %v5991
    %v6180 = vpack.c.b16 %v5994, %v5993
    %v6181 = vpack.c.b16 %v5996, %v5995
    %v6182 = vpack.c.b16 %v5998, %v5997
    %v6183 = vpack.c.b16 %v6000, %v5999
    %v6184 = vpack.c.b16 %v6002, %v6001
    %v6185 = vpack.c.b16 %v6004, %v6003
    %v6186 = vpack.c.b16 %v6006, %v6005
    %v6187 = vpack.c.b16 %v6008, %v6007
    %v6188 = vpack.c.b16 %v6010, %v6009
    %v6189 = vpack.c.b16 %v6012, %v6011
    %v6190 = vpack.c.b16 %v6014, %v6013
    %v6191 = vpack.c.b16 %v6016, %v6015
    %v6192 = vpack.c.b16 %v6018, %v6017
    %v6193 = vpack.c.b16 %v6020, %v6019
    %v6194 = vpack.c.b16 %v6022, %v6021
    %v6195 = vpack.c.b16 %v6024, %v6023
    %v6196 = vpack.c.b16 %v6026, %v6025
    %v6197 = vpack.c.b16 %v6028, %v6027
    %v6198 = vpack.c.b16 %v6030, %v6029
    %v6199 = vpack.c.b16 %v6032, %v6031
    %v6200 = vpack.c.b16 %v6034, %v6033
    %v6201 = vpack.c.b16 %v6036, %v6035
    %v6202 = vpack.c.b16 %v6038, %v6037
    %v6203 = vpack.c.b16 %v6040, %v6039
    %v6204 = vpack.c.b16 %v6042, %v6041
    %v6205 = vpack.c.b16 %v6044, %v6043
    %v6206 = vpack.c.b16 %v6046, %v6045
    %v6207 = vpack.c.b16 %v6048, %v6047
    %v6208 = vpack.c.b16 %v6050, %v6049
    %v6209 = vpack.c.b16 %v6052, %v6051
    %v6210 = vpack.c.b16 %v6054, %v6053
    %v6211 = vpack.c.b16 %v6056, %v6055
    %v6212 = vpack.c.b16 %v6058, %v6057
    %v6213 = vpack.c.b16 %v6060, %v6059
    %v6214 = vpack.c.b16 %v6062, %v6061
    %v6215 = vpack.c.b16 %v6064, %v6063
    %v6216 = vpack.c.b16 %v6066, %v6065
    %v6217 = vpack.c.b16 %v6068, %v6067
    %v6218 = vpack.c.b16 %v6070, %v6069
    %v6219 = vpack.c.b16 %v6072, %v6071
    %v6220 = vpack.c.b16 %v6074, %v6073
    %v6221 = vpack.c.b16 %v6076, %v6075
    %v6222 = vpack.c.b16 %v6078, %v6077
    %v6223 = vpack.c.b16 %v6080, %v6079
    %v6224 = vpack.c.b16 %v6082, %v6081
    %v6225 = vpack.c.b16 %v6084, %v6083
    %v6226 = vpack.c.b16 %v6086, %v6085
    %v6227 = vpack.c.b16 %v6088, %v6087
    %v6228 = vpack.c.b16 %v6090, %v6089
    %v6229 = vpack.c.b16 %v6092, %v6091
    %v6230 = vpack.c.b16 %v6094, %v6093
    %v6231 = vpack.c.b16 %v6096, %v6095
    %v6232 = vpack.c.b16 %v6098, %v6097
    %v6233 = vpack.c.b16 %v6100, %v6099
    %v6234 = vpack.c.b16 %v6102, %v6101
    %v6235 = vpack.c.b16 %v6104, %v6103
    %v6236 = vpack.c.b16 %v6106, %v6105
    %v6237 = vpack.c.b16 %v6108, %v6107
    %v6238 = vpack.c.b16 %v6110, %v6109
    %6367 = vmatprep.subr.bf16.mxu0 0
    %6368 = vmatpush1.bf16.msra.mxu0 %v6111
    %6369 = vmatprep.subr.bf16.mxu0 0
    %6370 = vmatpush1.bf16.msra.mxu0 %v6112
    %6371 = vmatprep.subr.bf16.mxu0 0
    %6372 = vmatpush1.bf16.msra.mxu0 %v6113
    %6373 = vmatprep.subr.bf16.mxu0 0
    %6374 = vmatpush1.bf16.msra.mxu0 %v6114
    %6375 = vmatprep.subr.bf16.mxu0 0
    %6376 = vmatpush1.bf16.msra.mxu0 %v6115
    %6377 = vmatprep.subr.bf16.mxu0 0
    %6378 = vmatpush1.bf16.msra.mxu0 %v6116
    %6379 = vmatprep.subr.bf16.mxu0 0
    %6380 = vmatpush1.bf16.msra.mxu0 %v6117
    %6381 = vmatprep.subr.bf16.mxu0 0
    %6382 = vmatpush1.bf16.msra.mxu0 %v6118
    %6383 = vmatprep.subr.bf16.mxu0 0
    %6384 = vmatpush1.bf16.msra.mxu0 %v6119
    %6385 = vmatprep.subr.bf16.mxu0 0
    %6386 = vmatpush1.bf16.msra.mxu0 %v6120
    %6387 = vmatprep.subr.bf16.mxu0 0
    %6388 = vmatpush1.bf16.msra.mxu0 %v6121
    %6389 = vmatprep.subr.bf16.mxu0 0
    %6390 = vmatpush1.bf16.msra.mxu0 %v6122
    %6391 = vmatprep.subr.bf16.mxu0 0
    %6392 = vmatpush1.bf16.msra.mxu0 %v6123
    %6393 = vmatprep.subr.bf16.mxu0 0
    %6394 = vmatpush1.bf16.msra.mxu0 %v6124
    %6395 = vmatprep.subr.bf16.mxu0 0
    %6396 = vmatpush1.bf16.msra.mxu0 %v6125
    %6397 = vmatprep.subr.bf16.mxu0 0
    %6398 = vmatpush1.bf16.msra.mxu0 %v6126
    %6399 = vmatprep.mubr.bf16.mxu0 %v5321
    %6400 = vmatmul.mubr.bf16.gmra.mrb[0].mxu0 %v5320
    %v6401 = vpop.f32.mrb[0].mxu0
    %v6402 = vadd.f32 %v5597, %v6401
    %v6403 = vpop.f32.mrb[0].mxu0
    %v6404 = vpop.f32.mrb[0].mxu0
    %v6405 = vpop.f32.mrb[0].mxu0
    %6406 = vdwg.mxu0
    %6407 = vmatprep.subr.bf16.mxu0 0
    %6408 = vmatpush1.bf16.msra.mxu0 %v6127
    %6409 = vmatprep.subr.bf16.mxu0 0
    %6410 = vmatpush1.bf16.msra.mxu0 %v6128
    %6411 = vmatprep.subr.bf16.mxu0 0
    %6412 = vmatpush1.bf16.msra.mxu0 %v6129
    %6413 = vmatprep.subr.bf16.mxu0 0
    %6414 = vmatpush1.bf16.msra.mxu0 %v6130
    %6415 = vmatprep.subr.bf16.mxu0 0
    %6416 = vmatpush1.bf16.msra.mxu0 %v6131
    %6417 = vmatprep.subr.bf16.mxu0 0
    %6418 = vmatpush1.bf16.msra.mxu0 %v6132
    %6419 = vmatprep.subr.bf16.mxu0 0
    %6420 = vmatpush1.bf16.msra.mxu0 %v6133
    %6421 = vmatprep.subr.bf16.mxu0 0
    %6422 = vmatpush1.bf16.msra.mxu0 %v6134
    %6423 = vmatprep.subr.bf16.mxu0 0
    %6424 = vmatpush1.bf16.msra.mxu0 %v6135
    %6425 = vmatprep.subr.bf16.mxu0 0
    %6426 = vmatpush1.bf16.msra.mxu0 %v6136
    %6427 = vmatprep.subr.bf16.mxu0 0
    %6428 = vmatpush1.bf16.msra.mxu0 %v6137
    %6429 = vmatprep.subr.bf16.mxu0 0
    %6430 = vmatpush1.bf16.msra.mxu0 %v6138
    %6431 = vmatprep.subr.bf16.mxu0 0
    %6432 = vmatpush1.bf16.msra.mxu0 %v6139
    %6433 = vmatprep.subr.bf16.mxu0 0
    %6434 = vmatpush1.bf16.msra.mxu0 %v6140
    %6435 = vmatprep.subr.bf16.mxu0 0
    %6436 = vmatpush1.bf16.msra.mxu0 %v6141
    %6437 = vmatprep.subr.bf16.mxu0 0
    %6438 = vmatpush1.bf16.msra.mxu0 %v6142
    %6439 = vmatprep.mubr.bf16.mxu0 %v5323
    %6440 = vmatmul.mubr.bf16.gmra.mrb[0].mxu0 %v5322
    %v6441 = vpop.f32.mrb[0].mxu0
    %v6442 = vadd.f32 %v6402, %v6441
    %v6443 = vpop.f32.mrb[0].mxu0
    %v6444 = vpop.f32.mrb[0].mxu0
    %v6445 = vpop.f32.mrb[0].mxu0
    %6446 = vdwg.mxu0
    %6447 = vmatprep.subr.bf16.mxu0 0
    %6448 = vmatpush1.bf16.msra.mxu0 %v6143
    %6449 = vmatprep.subr.bf16.mxu0 0
    %6450 = vmatpush1.bf16.msra.mxu0 %v6144
    %6451 = vmatprep.subr.bf16.mxu0 0
    %6452 = vmatpush1.bf16.msra.mxu0 %v6145
    %6453 = vmatprep.subr.bf16.mxu0 0
    %6454 = vmatpush1.bf16.msra.mxu0 %v6146
    %6455 = vmatprep.subr.bf16.mxu0 0
    %6456 = vmatpush1.bf16.msra.mxu0 %v6147
    %6457 = vmatprep.subr.bf16.mxu0 0
    %6458 = vmatpush1.bf16.msra.mxu0 %v6148
    %6459 = vmatprep.subr.bf16.mxu0 0
    %6460 = vmatpush1.bf16.msra.mxu0 %v6149
    %6461 = vmatprep.subr.bf16.mxu0 0
    %6462 = vmatpush1.bf16.msra.mxu0 %v6150
    %6463 = vmatprep.subr.bf16.mxu0 0
    %6464 = vmatpush1.bf16.msra.mxu0 %v6151
    %6465 = vmatprep.subr.bf16.mxu0 0
    %6466 = vmatpush1.bf16.msra.mxu0 %v6152
    %6467 = vmatprep.subr.bf16.mxu0 0
    %6468 = vmatpush1.bf16.msra.mxu0 %v6153
    %6469 = vmatprep.subr.bf16.mxu0 0
    %6470 = vmatpush1.bf16.msra.mxu0 %v6154
    %6471 = vmatprep.subr.bf16.mxu0 0
    %6472 = vmatpush1.bf16.msra.mxu0 %v6155
    %6473 = vmatprep.subr.bf16.mxu0 0
    %6474 = vmatpush1.bf16.msra.mxu0 %v6156
    %6475 = vmatprep.subr.bf16.mxu0 0
    %6476 = vmatpush1.bf16.msra.mxu0 %v6157
    %6477 = vmatprep.subr.bf16.mxu0 0
    %6478 = vmatpush1.bf16.msra.mxu0 %v6158
    %6479 = vmatprep.mubr.bf16.mxu0 %v5325
    %6480 = vmatmul.mubr.bf16.gmra.mrb[0].mxu0 %v5324
    %v6481 = vpop.f32.mrb[0].mxu0
    %v6482 = vadd.f32 %v6442, %v6481
    %v6483 = vpop.f32.mrb[0].mxu0
    %v6484 = vpop.f32.mrb[0].mxu0
    %v6485 = vpop.f32.mrb[0].mxu0
    %6486 = vdwg.mxu0
    %6487 = vmatprep.subr.bf16.mxu0 0
    %6488 = vmatpush1.bf16.msra.mxu0 %v6159
    %6489 = vmatprep.subr.bf16.mxu0 0
    %6490 = vmatpush1.bf16.msra.mxu0 %v6160
    %6491 = vmatprep.subr.bf16.mxu0 0
    %6492 = vmatpush1.bf16.msra.mxu0 %v6161
    %6493 = vmatprep.subr.bf16.mxu0 0
    %6494 = vmatpush1.bf16.msra.mxu0 %v6162
    %6495 = vmatprep.subr.bf16.mxu0 0
    %6496 = vmatpush1.bf16.msra.mxu0 %v6163
    %6497 = vmatprep.subr.bf16.mxu0 0
    %6498 = vmatpush1.bf16.msra.mxu0 %v6164
    %6499 = vmatprep.subr.bf16.mxu0 0
    %6500 = vmatpush1.bf16.msra.mxu0 %v6165
    %6501 = vmatprep.subr.bf16.mxu0 0
    %6502 = vmatpush1.bf16.msra.mxu0 %v6166
    %6503 = vmatprep.subr.bf16.mxu0 0
    %6504 = vmatpush1.bf16.msra.mxu0 %v6167
    %6505 = vmatprep.subr.bf16.mxu0 0
    %6506 = vmatpush1.bf16.msra.mxu0 %v6168
    %6507 = vmatprep.subr.bf16.mxu0 0
    %6508 = vmatpush1.bf16.msra.mxu0 %v6169
    %6509 = vmatprep.subr.bf16.mxu0 0
    %6510 = vmatpush1.bf16.msra.mxu0 %v6170
    %6511 = vmatprep.subr.bf16.mxu0 0
    %6512 = vmatpush1.bf16.msra.mxu0 %v6171
    %6513 = vmatprep.subr.bf16.mxu0 0
    %6514 = vmatpush1.bf16.msra.mxu0 %v6172
    %6515 = vmatprep.subr.bf16.mxu0 0
    %6516 = vmatpush1.bf16.msra.mxu0 %v6173
    %6517 = vmatprep.subr.bf16.mxu0 0
    %6518 = vmatpush1.bf16.msra.mxu0 %v6174
    %6519 = vmatprep.mubr.bf16.mxu0 %v5327
    %6520 = vmatmul.mubr.bf16.gmra.mrb[0].mxu0 %v5326
    %v6521 = vpop.f32.mrb[0].mxu0
    %v6522 = vadd.f32 %v6482, %v6521
    %v6523 = vpop.f32.mrb[0].mxu0
    %v6524 = vpop.f32.mrb[0].mxu0
    %v6525 = vpop.f32.mrb[0].mxu0
    %6526 = vdwg.mxu0
    %6527 = vmatprep.subr.bf16.mxu0 0
    %6528 = vmatpush1.bf16.msra.mxu0 %v6175
    %6529 = vmatprep.subr.bf16.mxu0 0
    %6530 = vmatpush1.bf16.msra.mxu0 %v6176
    %6531 = vmatprep.subr.bf16.mxu0 0
    %6532 = vmatpush1.bf16.msra.mxu0 %v6177
    %6533 = vmatprep.subr.bf16.mxu0 0
    %6534 = vmatpush1.bf16.msra.mxu0 %v6178
    %6535 = vmatprep.subr.bf16.mxu0 0
    %6536 = vmatpush1.bf16.msra.mxu0 %v6179
    %6537 = vmatprep.subr.bf16.mxu0 0
    %6538 = vmatpush1.bf16.msra.mxu0 %v6180
    %6539 = vmatprep.subr.bf16.mxu0 0
    %6540 = vmatpush1.bf16.msra.mxu0 %v6181
    %6541 = vmatprep.subr.bf16.mxu0 0
    %6542 = vmatpush1.bf16.msra.mxu0 %v6182
    %6543 = vmatprep.subr.bf16.mxu0 0
    %6544 = vmatpush1.bf16.msra.mxu0 %v6183
    %6545 = vmatprep.subr.bf16.mxu0 0
    %6546 = vmatpush1.bf16.msra.mxu0 %v6184
    %6547 = vmatprep.subr.bf16.mxu0 0
    %6548 = vmatpush1.bf16.msra.mxu0 %v6185
    %6549 = vmatprep.subr.bf16.mxu0 0
    %6550 = vmatpush1.bf16.msra.mxu0 %v6186
    %6551 = vmatprep.subr.bf16.mxu0 0
    %6552 = vmatpush1.bf16.msra.mxu0 %v6187
    %6553 = vmatprep.subr.bf16.mxu0 0
    %6554 = vmatpush1.bf16.msra.mxu0 %v6188
    %6555 = vmatprep.subr.bf16.mxu0 0
    %6556 = vmatpush1.bf16.msra.mxu0 %v6189
    %6557 = vmatprep.subr.bf16.mxu0 0
    %6558 = vmatpush1.bf16.msra.mxu0 %v6190
    %6559 = vmatprep.mubr.bf16.mxu0 %v5329
    %6560 = vmatmul.mubr.bf16.gmra.mrb[0].mxu0 %v5328
    %v6561 = vpop.f32.mrb[0].mxu0
    %v6562 = vadd.f32 %v6522, %v6561
    %v6563 = vpop.f32.mrb[0].mxu0
    %v6564 = vpop.f32.mrb[0].mxu0
    %v6565 = vpop.f32.mrb[0].mxu0
    %6566 = vdwg.mxu0
    %6567 = vmatprep.subr.bf16.mxu0 0
    %6568 = vmatpush1.bf16.msra.mxu0 %v6191
    %6569 = vmatprep.subr.bf16.mxu0 0
    %6570 = vmatpush1.bf16.msra.mxu0 %v6192
    %6571 = vmatprep.subr.bf16.mxu0 0
    %6572 = vmatpush1.bf16.msra.mxu0 %v6193
    %6573 = vmatprep.subr.bf16.mxu0 0
    %6574 = vmatpush1.bf16.msra.mxu0 %v6194
    %6575 = vmatprep.subr.bf16.mxu0 0
    %6576 = vmatpush1.bf16.msra.mxu0 %v6195
    %6577 = vmatprep.subr.bf16.mxu0 0
    %6578 = vmatpush1.bf16.msra.mxu0 %v6196
    %6579 = vmatprep.subr.bf16.mxu0 0
    %6580 = vmatpush1.bf16.msra.mxu0 %v6197
    %6581 = vmatprep.subr.bf16.mxu0 0
    %6582 = vmatpush1.bf16.msra.mxu0 %v6198
    %6583 = vmatprep.subr.bf16.mxu0 0
    %6584 = vmatpush1.bf16.msra.mxu0 %v6199
    %6585 = vmatprep.subr.bf16.mxu0 0
    %6586 = vmatpush1.bf16.msra.mxu0 %v6200
    %6587 = vmatprep.subr.bf16.mxu0 0
    %6588 = vmatpush1.bf16.msra.mxu0 %v6201
    %6589 = vmatprep.subr.bf16.mxu0 0
    %6590 = vmatpush1.bf16.msra.mxu0 %v6202
    %6591 = vmatprep.subr.bf16.mxu0 0
    %6592 = vmatpush1.bf16.msra.mxu0 %v6203
    %6593 = vmatprep.subr.bf16.mxu0 0
    %6594 = vmatpush1.bf16.msra.mxu0 %v6204
    %6595 = vmatprep.subr.bf16.mxu0 0
    %6596 = vmatpush1.bf16.msra.mxu0 %v6205
    %6597 = vmatprep.subr.bf16.mxu0 0
    %6598 = vmatpush1.bf16.msra.mxu0 %v6206
    %6599 = vmatprep.mubr.bf16.mxu0 %v5331
    %6600 = vmatmul.mubr.bf16.gmra.mrb[0].mxu0 %v5330
    %v6601 = vpop.f32.mrb[0].mxu0
    %v6602 = vadd.f32 %v6562, %v6601
    %v6603 = vpop.f32.mrb[0].mxu0
    %v6604 = vpop.f32.mrb[0].mxu0
    %v6605 = vpop.f32.mrb[0].mxu0
    %6606 = vdwg.mxu0
    %6607 = vmatprep.subr.bf16.mxu0 0
    %6608 = vmatpush1.bf16.msra.mxu0 %v6207
    %6609 = vmatprep.subr.bf16.mxu0 0
    %6610 = vmatpush1.bf16.msra.mxu0 %v6208
    %6611 = vmatprep.subr.bf16.mxu0 0
    %6612 = vmatpush1.bf16.msra.mxu0 %v6209
    %6613 = vmatprep.subr.bf16.mxu0 0
    %6614 = vmatpush1.bf16.msra.mxu0 %v6210
    %6615 = vmatprep.subr.bf16.mxu0 0
    %6616 = vmatpush1.bf16.msra.mxu0 %v6211
    %6617 = vmatprep.subr.bf16.mxu0 0
    %6618 = vmatpush1.bf16.msra.mxu0 %v6212
    %6619 = vmatprep.subr.bf16.mxu0 0
    %6620 = vmatpush1.bf16.msra.mxu0 %v6213
    %6621 = vmatprep.subr.bf16.mxu0 0
    %6622 = vmatpush1.bf16.msra.mxu0 %v6214
    %6623 = vmatprep.subr.bf16.mxu0 0
    %6624 = vmatpush1.bf16.msra.mxu0 %v6215
    %6625 = vmatprep.subr.bf16.mxu0 0
    %6626 = vmatpush1.bf16.msra.mxu0 %v6216
    %6627 = vmatprep.subr.bf16.mxu0 0
    %6628 = vmatpush1.bf16.msra.mxu0 %v6217
    %6629 = vmatprep.subr.bf16.mxu0 0
    %6630 = vmatpush1.bf16.msra.mxu0 %v6218
    %6631 = vmatprep.subr.bf16.mxu0 0
    %6632 = vmatpush1.bf16.msra.mxu0 %v6219
    %6633 = vmatprep.subr.bf16.mxu0 0
    %6634 = vmatpush1.bf16.msra.mxu0 %v6220
    %6635 = vmatprep.subr.bf16.mxu0 0
    %6636 = vmatpush1.bf16.msra.mxu0 %v6221
    %6637 = vmatprep.subr.bf16.mxu0 0
    %6638 = vmatpush1.bf16.msra.mxu0 %v6222
    %6639 = vmatprep.mubr.bf16.mxu0 %v5333
    %6640 = vmatmul.mubr.bf16.gmra.mrb[0].mxu0 %v5332
    %v6641 = vpop.f32.mrb[0].mxu0
    %v6642 = vadd.f32 %v6602, %v6641
    %v6643 = vpop.f32.mrb[0].mxu0
    %v6644 = vpop.f32.mrb[0].mxu0
    %v6645 = vpop.f32.mrb[0].mxu0
    %6646 = vdwg.mxu0
    %6647 = vmatprep.subr.bf16.mxu0 0
    %6648 = vmatpush1.bf16.msra.mxu0 %v6223
    %6649 = vmatprep.subr.bf16.mxu0 0
    %6650 = vmatpush1.bf16.msra.mxu0 %v6224
    %6651 = vmatprep.subr.bf16.mxu0 0
    %6652 = vmatpush1.bf16.msra.mxu0 %v6225
    %6653 = vmatprep.subr.bf16.mxu0 0
    %6654 = vmatpush1.bf16.msra.mxu0 %v6226
    %6655 = vmatprep.subr.bf16.mxu0 0
    %6656 = vmatpush1.bf16.msra.mxu0 %v6227
    %6657 = vmatprep.subr.bf16.mxu0 0
    %6658 = vmatpush1.bf16.msra.mxu0 %v6228
    %6659 = vmatprep.subr.bf16.mxu0 0
    %6660 = vmatpush1.bf16.msra.mxu0 %v6229
    %6661 = vmatprep.subr.bf16.mxu0 0
    %6662 = vmatpush1.bf16.msra.mxu0 %v6230
    %6663 = vmatprep.subr.bf16.mxu0 0
    %6664 = vmatpush1.bf16.msra.mxu0 %v6231
    %6665 = vmatprep.subr.bf16.mxu0 0
    %6666 = vmatpush1.bf16.msra.mxu0 %v6232
    %6667 = vmatprep.subr.bf16.mxu0 0
    %6668 = vmatpush1.bf16.msra.mxu0 %v6233
    %6669 = vmatprep.subr.bf16.mxu0 0
    %6670 = vmatpush1.bf16.msra.mxu0 %v6234
    %6671 = vmatprep.subr.bf16.mxu0 0
    %6672 = vmatpush1.bf16.msra.mxu0 %v6235
    %6673 = vmatprep.subr.bf16.mxu0 0
    %6674 = vmatpush1.bf16.msra.mxu0 %v6236
    %6675 = vmatprep.subr.bf16.mxu0 0
    %6676 = vmatpush1.bf16.msra.mxu0 %v6237
    %6677 = vmatprep.subr.bf16.mxu0 0
    %6678 = vmatpush1.bf16.msra.mxu0 %v6238
    %6679 = vmatprep.mubr.bf16.mxu0 %v5335
    %6680 = vmatmul.mubr.bf16.gmra.mrb[0].mxu0 %v5334
    %v6681 = vpop.f32.mrb[0].mxu0
    %v6682 = vadd.f32 %v6642, %v6681
    %v6683 = vpop.f32.mrb[0].mxu0
    %v6684 = vpop.f32.mrb[0].mxu0
    %v6685 = vpop.f32.mrb[0].mxu0
    %6686 = vdwg.mxu0
    %6687 = vst [vmem:[#allocation17] sm:$0xff] %v6682
    // Predicated region
    $region74: #{encoder_forward.1} parent=1 // pred_check
      _
    $region75: #{encoder_forward.1} parent=1 // pred_check_branch
      %6689 = sbr.rel (0) target = $region77
    $region76: #{encoder_forward.1} parent=1 // pred_region
      %s6691 = ssub.s32 128, 128
      %6692 = vsyncadd [#allocation4], %s6691
      %s6694 = sshll.u32 [#allocation17], 4
      %s6695 = int_to_ptr.vmem [resolvable:$true] %s6694
      %6697 = dma.vmem_to_hbm [thread:$0]  %s6695, 128, %s9, [#allocation4]
    $region77: #{encoder_forward.1} parent=1 // pred_fallthru
      _
    // Predicated region
    $region78: #{encoder_forward.1} parent=1 // pred_check
      _
    $region79: #{encoder_forward.1} parent=1 // pred_check_branch
      %6699 = sbr.rel (0) target = $region81
    $region80: #{encoder_forward.1} parent=1 // pred_region
      %6700 = dma.done [#allocation4], 128
    $region81: #{encoder_forward.1} parent=1 // pred_fallthru
      _
    %6701 = vsyncpa [#allocation3], 1
    %6702 = vsyncpa [#allocation6], 1
    %6703 = vsyncpa [#allocation9], 1
    %6704 = vsyncpa [#allocation12], 1
    %6705 = vsyncpa [#allocation15], 1
    %6706 = vsyncpa [#allocation4], 1

// kernel: encoder_forward.1
$region0: #{encoder_forward.1}
  #allocation0 [shape = 'u32[]', space=smem, size = 0x4, offset = 0x4, fixed_abs, tag = 'smem constant byte address 0x4 - core index']
  #allocation1 [shape = 'u32[144,128]{1,0:T(1,128)}', space=vmem, size = 0x12000, scoped, tag = 'internal scratch']
  %s0 = inlined_call_operand.hbm [shape: f32[8,32], index: 0, kind: input, shape index: {}]
  %s1 = inlined_call_operand.hbm [shape: bf16[32,512], index: 1, kind: input, shape index: {}]
  %s2 = inlined_call_operand.hbm [shape: bf16[1,512], index: 2, kind: input, shape index: {}]
  %s3 = inlined_call_operand.hbm [shape: bf16[512,512], index: 3, kind: input, shape index: {}]
  %s4 = inlined_call_operand.hbm [shape: bf16[1,512], index: 4, kind: input, shape index: {}]
  %s5 = inlined_call_operand.hbm [shape: bf16[512,2048], index: 5, kind: input, shape index: {}]
  %s6 = inlined_call_operand.hbm [shape: bf16[1,2048], index: 6, kind: input, shape index: {}]
  %s7 = inlined_call_operand.hbm [shape: bf16[2048,128], index: 7, kind: input, shape index: {}]
  %s8 = inlined_call_operand.hbm [shape: f32[1,128], index: 8, kind: input, shape index: {}]
  %s9 = inlined_call_operand.hbm [shape: f32[8,128], index: 9, kind: output, shape index: {}]
  %s10 = sld [smem:[#allocation0]]
  $region82: #{encoder_forward.1} parent=0
    _
  %s12 = ssub.s32 1, %s10
  %s13 = scalar_select 0, %s12, %s10
  $region1: #{encoder_forward.1} parent=0
    #allocation2 [shape = 'u8[4096]{0}', space=vmem, size = 0x1000, scoped, tag = 'input window, operand 0, single buffered']
    #allocation3 [shape = 's32[1]{0}', space=sflag, size = 0x4, scoped, tag = 'scoped memory for encoder_forward.1']
    #allocation4 [shape = 's32[1]{0}', space=sflag, size = 0x4, scoped, tag = 'scoped memory for encoder_forward.1']
    #allocation5 [shape = 'u8[32768]{0}', space=vmem, size = 0x8000, scoped, tag = 'input window, operand 1, single buffered']
    #allocation6 [shape = 's32[1]{0}', space=sflag, size = 0x4, scoped, tag = 'scoped memory for encoder_forward.1']
    #allocation7 [shape = 'u8[2048]{0}', space=vmem, size = 0x800, scoped, tag = 'input window, operand 2, single buffered']
    #allocation8 [shape = 'u8[524288]{0}', space=vmem, size = 0x80000, scoped, tag = 'input window, operand 3, single buffered']
    #allocation9 [shape = 's32[1]{0}', space=sflag, size = 0x4, scoped, tag = 'scoped memory for encoder_forward.1']
    #allocation10 [shape = 'u8[2048]{0}', space=vmem, size = 0x800, scoped, tag = 'input window, operand 4, single buffered']
    #allocation11 [shape = 'u8[2097152]{0}', space=vmem, size = 0x200000, scoped, tag = 'input window, operand 5, single buffered']
    #allocation12 [shape = 's32[1]{0}', space=sflag, size = 0x4, scoped, tag = 'scoped memory for encoder_forward.1']
    #allocation13 [shape = 'u8[8192]{0}', space=vmem, size = 0x2000, scoped, tag = 'input window, operand 6, single buffered']
    #allocation14 [shape = 'u8[524288]{0}', space=vmem, size = 0x80000, scoped, tag = 'input window, operand 7, single buffered']
    #allocation15 [shape = 's32[1]{0}', space=sflag, size = 0x4, scoped, tag = 'scoped memory for encoder_forward.1']
    #allocation16 [shape = 'u8[512]{0}', space=vmem, size = 0x400, scoped, tag = 'input window, operand 8, single buffered']
    #allocation17 [shape = 'u8[4096]{0}', space=vmem, size = 0x1000, scoped, tag = 'output window, operand 0, single buffered']
    %14 = vsyncpa [#allocation3], 0
    %15 = vsyncpa [#allocation6], 0
    %16 = vsyncpa [#allocation9], 0
    %17 = vsyncpa [#allocation12], 0
    %18 = vsyncpa [#allocation15], 0
    %19 = vsyncpa [#allocation4], 0
    // Predicated region
    $region2: #{encoder_forward.1} parent=1 // pred_check
      _
    $region3: #{encoder_forward.1} parent=1 // pred_check_branch
      %21 = sbr.rel (0) target = $region5
    $region4: #{encoder_forward.1} parent=1 // pred_region
      %s23 = ssub.s32 128, 128
      %24 = vsyncadd [#allocation3], %s23
      %s26 = sshll.u32 [#allocation2], 4
      %s27 = int_to_ptr.vmem [resolvable:$true] %s26
      %29 = dma.hbm_to_vmem [thread:$0]  %s0, 128, %s27, [#allocation3]
    $region5: #{encoder_forward.1} parent=1 // pred_fallthru
      _
    // Predicated region
    $region6: #{encoder_forward.1} parent=1 // pred_check
      _
    $region7: #{encoder_forward.1} parent=1 // pred_check_branch
      %31 = sbr.rel (0) target = $region9
    $region8: #{encoder_forward.1} parent=1 // pred_region
      %s33 = ssub.s32 1024, 1024
      %34 = vsyncadd [#allocation6], %s33
      %s35 = sshll.u32 [#allocation5], 4
      %s36 = int_to_ptr.vmem [resolvable:$true] %s35
      %41 = dma.hbm_to_vmem [thread:$0]  %s1, 1024, %s36, [#allocation6], 256, 256, 16
    $region9: #{encoder_forward.1} parent=1 // pred_fallthru
      _
    // Predicated region
    $region10: #{encoder_forward.1} parent=1 // pred_check
      _
    $region11: #{encoder_forward.1} parent=1 // pred_check_branch
      %43 = sbr.rel (0) target = $region13
    $region12: #{encoder_forward.1} parent=1 // pred_region
      %s45 = ssub.s32 64, 64
      %46 = vsyncadd [#allocation6], %s45
      %s48 = sshll.u32 [#allocation7], 4
      %s49 = int_to_ptr.vmem [resolvable:$true] %s48
      %51 = dma.hbm_to_vmem [thread:$0]  %s2, 64, %s49, [#allocation6]
    $region13: #{encoder_forward.1} parent=1 // pred_fallthru
      _
    // Predicated region
    $region14: #{encoder_forward.1} parent=1 // pred_check
      _
    $region15: #{encoder_forward.1} parent=1 // pred_check_branch
      %53 = sbr.rel (0) target = $region17
    $region16: #{encoder_forward.1} parent=1 // pred_region
      %s55 = ssub.s32 16384, 16384
      %56 = vsyncadd [#allocation9], %s55
      %s57 = sshll.u32 [#allocation8], 4
      %s58 = int_to_ptr.vmem [resolvable:$true] %s57
      %63 = dma.hbm_to_vmem [thread:$0]  %s3, 16384, %s58, [#allocation9], 256, 256, 16
    $region17: #{encoder_forward.1} parent=1 // pred_fallthru
      _
    // Predicated region
    $region18: #{encoder_forward.1} parent=1 // pred_check
      _
    $region19: #{encoder_forward.1} parent=1 // pred_check_branch
      %65 = sbr.rel (0) target = $region21
    $region20: #{encoder_forward.1} parent=1 // pred_region
      %s67 = ssub.s32 64, 64
      %68 = vsyncadd [#allocation9], %s67
      %s70 = sshll.u32 [#allocation10], 4
      %s71 = int_to_ptr.vmem [resolvable:$true] %s70
      %73 = dma.hbm_to_vmem [thread:$0]  %s4, 64, %s71, [#allocation9]
    $region21: #{encoder_forward.1} parent=1 // pred_fallthru
      _
    // Predicated region
    $region22: #{encoder_forward.1} parent=1 // pred_check
      _
    $region23: #{encoder_forward.1} parent=1 // pred_check_branch
      %75 = sbr.rel (0) target = $region25
    $region24: #{encoder_forward.1} parent=1 // pred_region
      %s77 = ssub.s32 65536, 65536
      %78 = vsyncadd [#allocation12], %s77
      %s79 = sshll.u32 [#allocation11], 4
      %s80 = int_to_ptr.vmem [resolvable:$true] %s79
      %85 = dma.hbm_to_vmem [thread:$0]  %s5, 65536, %s80, [#allocation12], 1024, 1024, 64
    $region25: #{encoder_forward.1} parent=1 // pred_fallthru
      _
    // Predicated region
    $region26: #{encoder_forward.1} parent=1 // pred_check
      _
    $region27: #{encoder_forward.1} parent=1 // pred_check_branch
      %87 = sbr.rel (0) target = $region29
    $region28: #{encoder_forward.1} parent=1 // pred_region
      %s89 = ssub.s32 256, 256
      %90 = vsyncadd [#allocation12], %s89
      %s92 = sshll.u32 [#allocation13], 4
      %s93 = int_to_ptr.vmem [resolvable:$true] %s92
      %95 = dma.hbm_to_vmem [thread:$0]  %s6, 256, %s93, [#allocation12]
    $region29: #{encoder_forward.1} parent=1 // pred_fallthru
      _
    // Predicated region
    $region30: #{encoder_forward.1} parent=1 // pred_check
      _
    $region31: #{encoder_forward.1} parent=1 // pred_check_branch
      %97 = sbr.rel (0) target = $region33
    $region32: #{encoder_forward.1} parent=1 // pred_region
      %s99 = ssub.s32 16384, 16384
      %100 = vsyncadd [#allocation15], %s99
      %s101 = sshll.u32 [#allocation14], 4
      %s102 = int_to_ptr.vmem [resolvable:$true] %s101
      %107 = dma.hbm_to_vmem [thread:$0]  %s7, 16384, %s102, [#allocation15], 64, 64, 4
    $region33: #{encoder_forward.1} parent=1 // pred_fallthru
      _
    // Predicated region
    $region34: #{encoder_forward.1} parent=1 // pred_check
      _
    $region35: #{encoder_forward.1} parent=1 // pred_check_branch
      %109 = sbr.rel (0) target = $region37
    $region36: #{encoder_forward.1} parent=1 // pred_region
      %s111 = ssub.s32 16, 16
      %112 = vsyncadd [#allocation15], %s111
      %s114 = sshll.u32 [#allocation16], 4
      %s115 = int_to_ptr.vmem [resolvable:$true] %s114
      %117 = dma.hbm_to_vmem [thread:$0]  %s8, 16, %s115, [#allocation15]
    $region37: #{encoder_forward.1} parent=1 // pred_fallthru
      _
    // Predicated region
    $region38: #{encoder_forward.1} parent=1 // pred_check
      _
    $region39: #{encoder_forward.1} parent=1 // pred_check_branch
      %119 = sbr.rel (0) target = $region41
    $region40: #{encoder_forward.1} parent=1 // pred_region
      %120 = dma.done [#allocation3], 128
    $region41: #{encoder_forward.1} parent=1 // pred_fallthru
      _
    // Predicated region
    $region42: #{encoder_forward.1} parent=1 // pred_check
      _
    $region43: #{encoder_forward.1} parent=1 // pred_check_branch
      %122 = sbr.rel (0) target = $region45
    $region44: #{encoder_forward.1} parent=1 // pred_region
      %123 = dma.done [#allocation6], 1024
    $region45: #{encoder_forward.1} parent=1 // pred_fallthru
      _
    // Predicated region
    $region46: #{encoder_forward.1} parent=1 // pred_check
      _
    $region47: #{encoder_forward.1} parent=1 // pred_check_branch
      %125 = sbr.rel (0) target = $region49
    $region48: #{encoder_forward.1} parent=1 // pred_region
      %126 = dma.done [#allocation6], 64
    $region49: #{encoder_forward.1} parent=1 // pred_fallthru
      _
    // Predicated region
    $region50: #{encoder_forward.1} parent=1 // pred_check
      _
    $region51: #{encoder_forward.1} parent=1 // pred_check_branch
      %128 = sbr.rel (0) target = $region53
    $region52: #{encoder_forward.1} parent=1 // pred_region
      %129 = dma.done [#allocation9], 16384
    $region53: #{encoder_forward.1} parent=1 // pred_fallthru
      _
    // Predicated region
    $region54: #{encoder_forward.1} parent=1 // pred_check
      _
    $region55: #{encoder_forward.1} parent=1 // pred_check_branch
      %131 = sbr.rel (0) target = $region57
    $region56: #{encoder_forward.1} parent=1 // pred_region
      %132 = dma.done [#allocation9], 64
    $region57: #{encoder_forward.1} parent=1 // pred_fallthru
      _
    // Predicated region
    $region58: #{encoder_forward.1} parent=1 // pred_check
      _
    $region59: #{encoder_forward.1} parent=1 // pred_check_branch
      %134 = sbr.rel (0) target = $region61
    $region60: #{encoder_forward.1} parent=1 // pred_region
      %135 = dma.done [#allocation12], 65536
    $region61: #{encoder_forward.1} parent=1 // pred_fallthru
      _
    // Predicated region
    $region62: #{encoder_forward.1} parent=1 // pred_check
      _
    $region63: #{encoder_forward.1} parent=1 // pred_check_branch
      %137 = sbr.rel (0) target = $region65
    $region64: #{encoder_forward.1} parent=1 // pred_region
      %138 = dma.done [#allocation12], 256
    $region65: #{encoder_forward.1} parent=1 // pred_fallthru
      _
    // Predicated region
    $region66: #{encoder_forward.1} parent=1 // pred_check
      _
    $region67: #{encoder_forward.1} parent=1 // pred_check_branch
      %140 = sbr.rel (0) target = $region69
    $region68: #{encoder_forward.1} parent=1 // pred_region
      %141 = dma.done [#allocation15], 16384
    $region69: #{encoder_forward.1} parent=1 // pred_fallthru
      _
    // Predicated region
    $region70: #{encoder_forward.1} parent=1 // pred_check
      _
    $region71: #{encoder_forward.1} parent=1 // pred_check_branch
      %143 = sbr.rel (0) target = $region73
    $region72: #{encoder_forward.1} parent=1 // pred_region
      %144 = dma.done [#allocation15], 16
    $region73: #{encoder_forward.1} parent=1 // pred_fallthru
      _
    %v146 = vld [vmem:[#allocation2] sm:$0xff]
    %v147 = vpack.c.bf16 %v146, %v146
    %v148 = vld [vmem:[#allocation5] sm:$0xff]
    %v149 = vld [vmem:[#allocation5 + $0x8] sm:$0xff]
    %v150 = vld [vmem:[#allocation5 + $0x10] sm:$0xff]
    %v151 = vld [vmem:[#allocation5 + $0x18] sm:$0xff]
    %v152 = vld [vmem:[#allocation5 + $0x20] sm:$0xff]
    %v153 = vld [vmem:[#allocation5 + $0x28] sm:$0xff]
    %v154 = vld [vmem:[#allocation5 + $0x30] sm:$0xff]
    %v155 = vld [vmem:[#allocation5 + $0x38] sm:$0xff]
    %v164 = vunpack.c.l.b16 %v148
    %v165 = vunpack.c.h.b16 %v148
    %v166 = vunpack.c.l.b16 %v149
    %v167 = vunpack.c.h.b16 %v149
    %v168 = vunpack.c.l.b16 %v150
    %v169 = vunpack.c.h.b16 %v150
    %v170 = vunpack.c.l.b16 %v151
    %v171 = vunpack.c.h.b16 %v151
    %v172 = vunpack.c.l.b16 %v152
    %v173 = vunpack.c.h.b16 %v152
    %v174 = vunpack.c.l.b16 %v153
    %v175 = vunpack.c.h.b16 %v153
    %v176 = vunpack.c.l.b16 %v154
    %v177 = vunpack.c.h.b16 %v154
    %v178 = vunpack.c.l.b16 %v155
    %v179 = vunpack.c.h.b16 %v155
    %v180 = vpack.c.b16 %v168, %v164
    %v181 = vpack.c.b16 %v169, %v165
    %v182 = vpack.c.b16 %v170, %v166
    %v183 = vpack.c.b16 %v171, %v167
    %v184 = vpack.c.b16 %v176, %v172
    %v185 = vpack.c.b16 %v177, %v173
    %v186 = vpack.c.b16 %v178, %v174
    %v187 = vpack.c.b16 %v179, %v175
    %vm196 = vcmask 261120
    %v198 = vsel %vm196, %v147, 0
    %200 = vmatprep.subr.bf16.mxu0 %v181
    %201 = vmatpush1.bf16.msra.mxu0 %v180
    %202 = vmatprep.subr.bf16.mxu0 %v185
    %203 = vmatpush1.bf16.msra.mxu0 %v184
    %204 = vmatprep.subr.bf16.mxu0 0
    %205 = vmatpush1.bf16.msra.mxu0 0
    %206 = vmatprep.subr.bf16.mxu0 0
    %207 = vmatpush1.bf16.msra.mxu0 0
    %208 = vmatprep.subr.bf16.mxu0 0
    %209 = vmatpush1.bf16.msra.mxu0 0
    %210 = vmatprep.subr.bf16.mxu0 0
    %211 = vmatpush1.bf16.msra.mxu0 0
    %212 = vmatprep.subr.bf16.mxu0 0
    %213 = vmatpush1.bf16.msra.mxu0 0
    %214 = vmatprep.subr.bf16.mxu0 0
    %215 = vmatpush1.bf16.msra.mxu0 0
    %216 = vmatprep.subr.bf16.mxu0 0
    %217 = vmatpush1.bf16.msra.mxu0 0
    %218 = vmatprep.subr.bf16.mxu0 0
    %219 = vmatpush1.bf16.msra.mxu0 0
    %220 = vmatprep.subr.bf16.mxu0 0
    %221 = vmatpush1.bf16.msra.mxu0 0
    %222 = vmatprep.subr.bf16.mxu0 0
    %223 = vmatpush1.bf16.msra.mxu0 0
    %224 = vmatprep.subr.bf16.mxu0 0
    %225 = vmatpush1.bf16.msra.mxu0 0
    %226 = vmatprep.subr.bf16.mxu0 0
    %227 = vmatpush1.bf16.msra.mxu0 0
    %228 = vmatprep.subr.bf16.mxu0 0
    %229 = vmatpush1.bf16.msra.mxu0 0
    %230 = vmatprep.subr.bf16.mxu0 0
    %231 = vmatpush1.bf16.msra.mxu0 0
    %232 = vmatprep.mubr.bf16.mxu0 0
    %233 = vmatmul.mubr.bf16.gmra.mrb[0].mxu0 %v198
    %v234 = vpop.f32.mrb[0].mxu0
    %v235 = vadd.f32 0.0, %v234
    %v236 = vpop.f32.mrb[0].mxu0
    %v237 = vadd.f32 0.0, %v236
    %v238 = vpop.f32.mrb[0].mxu0
    %v239 = vpop.f32.mrb[0].mxu0
    %240 = vdwg.mxu0
    %241 = vmatprep.subr.bf16.mxu0 %v183
    %242 = vmatpush1.bf16.msra.mxu0 %v182
    %243 = vmatprep.subr.bf16.mxu0 %v187
    %244 = vmatpush1.bf16.msra.mxu0 %v186
    %245 = vmatprep.subr.bf16.mxu0 0
    %246 = vmatpush1.bf16.msra.mxu0 0
    %247 = vmatprep.subr.bf16.mxu0 0
    %248 = vmatpush1.bf16.msra.mxu0 0
    %249 = vmatprep.subr.bf16.mxu0 0
    %250 = vmatpush1.bf16.msra.mxu0 0
    %251 = vmatprep.subr.bf16.mxu0 0
    %252 = vmatpush1.bf16.msra.mxu0 0
    %253 = vmatprep.subr.bf16.mxu0 0
    %254 = vmatpush1.bf16.msra.mxu0 0
    %255 = vmatprep.subr.bf16.mxu0 0
    %256 = vmatpush1.bf16.msra.mxu0 0
    %257 = vmatprep.subr.bf16.mxu0 0
    %258 = vmatpush1.bf16.msra.mxu0 0
    %259 = vmatprep.subr.bf16.mxu0 0
    %260 = vmatpush1.bf16.msra.mxu0 0
    %261 = vmatprep.subr.bf16.mxu0 0
    %262 = vmatpush1.bf16.msra.mxu0 0
    %263 = vmatprep.subr.bf16.mxu0 0
    %264 = vmatpush1.bf16.msra.mxu0 0
    %265 = vmatprep.subr.bf16.mxu0 0
    %266 = vmatpush1.bf16.msra.mxu0 0
    %267 = vmatprep.subr.bf16.mxu0 0
    %268 = vmatpush1.bf16.msra.mxu0 0
    %269 = vmatprep.subr.bf16.mxu0 0
    %270 = vmatpush1.bf16.msra.mxu0 0
    %271 = vmatprep.subr.bf16.mxu0 0
    %272 = vmatpush1.bf16.msra.mxu0 0
    %273 = vmatprep.mubr.bf16.mxu0 0
    %274 = vmatmul.mubr.bf16.gmra.mrb[0].mxu0 %v198
    %v275 = vpop.f32.mrb[0].mxu0
    %v276 = vadd.f32 0.0, %v275
    %v277 = vpop.f32.mrb[0].mxu0
    %v278 = vadd.f32 0.0, %v277
    %v279 = vpop.f32.mrb[0].mxu0
    %v280 = vpop.f32.mrb[0].mxu0
    %281 = vdwg.mxu0
    %v282 = vpack.c.bf16 %v235, %v235
    %v283 = vpack.c.bf16 %v237, %v237
    %v284 = vpack.c.bf16 %v276, %v276
    %v285 = vpack.c.bf16 %v278, %v278
    %v286 = vld [vmem:[#allocation7] sm:$0xf]
    %v289 = vunpack.c.l.s4 1966171168
    %v290 = vunpack.c.0.s8 %v289
    %v291 = vlaneseq
    %v292 = vshrl.u32 %v291, 7
    %v293 = vsub.s32 %v290, %v292
    %v294 = vrot.slane %v286, %v293
    %v295 = vcombine.high %v294, %v294
    %v297 = vunpack.c.l.s4 1966171168
    %v298 = vunpack.c.0.s8 %v297
    %v299 = vlaneseq
    %v300 = vshrl.u32 %v299, 7
    %v301 = vsub.s32 %v298, %v300
    %v302 = vrot.slane %v294, %v301
    %v304 = vunpack.c.l.s4 1966171168
    %v305 = vunpack.c.0.s8 %v304
    %v306 = vlaneseq
    %v307 = vshrl.u32 %v306, 7
    %v308 = vsub.s32 %v305, %v307
    %v309 = vrot.slane %v295, %v308
    %v310 = vcombine.high %v302, %v302
    %v311 = vcombine.high %v309, %v309
    %v313 = vpack.i.b16 %v302, %v302
    %v315 = vlaneseq
    %v316 = vshrl.u32 %v315, 7
    %v317 = vsub.s32 0, %v316
    %v318 = vrot.slane %v313, %v317
    %v320 = vpack.i.b16 %v309, %v309
    %v322 = vlaneseq
    %v323 = vshrl.u32 %v322, 7
    %v324 = vsub.s32 0, %v323
    %v325 = vrot.slane %v320, %v324
    %v327 = vpack.i.b16 %v310, %v310
    %v329 = vlaneseq
    %v330 = vshrl.u32 %v329, 7
    %v331 = vsub.s32 0, %v330
    %v332 = vrot.slane %v327, %v331
    %v334 = vpack.i.b16 %v311, %v311
    %v336 = vlaneseq
    %v337 = vshrl.u32 %v336, 7
    %v338 = vsub.s32 0, %v337
    %v339 = vrot.slane %v334, %v338
    %v340 = vadd.bf16 %v282, %v318
    %v341 = vadd.bf16 %v283, %v325
    %v342 = vadd.bf16 %v284, %v332
    %v343 = vadd.bf16 %v285, %v339
    %v344 = vmax.bf16 %v340, 0
    %v345 = vmax.bf16 %v341, 0
    %v346 = vmax.bf16 %v342, 0
    %v347 = vmax.bf16 %v343, 0
    %v348 = vld [vmem:[#allocation8] sm:$0xff]
    %v349 = vld [vmem:[#allocation8 + $0x8] sm:$0xff]
    %v350 = vld [vmem:[#allocation8 + $0x10] sm:$0xff]
    %v351 = vld [vmem:[#allocation8 + $0x18] sm:$0xff]
    %v352 = vld [vmem:[#allocation8 + $0x20] sm:$0xff]
    %v353 = vld [vmem:[#allocation8 + $0x28] sm:$0xff]
    %v354 = vld [vmem:[#allocation8 + $0x30] sm:$0xff]
    %v355 = vld [vmem:[#allocation8 + $0x38] sm:$0xff]
    %v356 = vld [vmem:[#allocation8 + $0x40] sm:$0xff]
    %v357 = vld [vmem:[#allocation8 + $0x48] sm:$0xff]
    %v358 = vld [vmem:[#allocation8 + $0x50] sm:$0xff]
    %v359 = vld [vmem:[#allocation8 + $0x58] sm:$0xff]
    %v360 = vld [vmem:[#allocation8 + $0x60] sm:$0xff]
    %v361 = vld [vmem:[#allocation8 + $0x68] sm:$0xff]
    %v362 = vld [vmem:[#allocation8 + $0x70] sm:$0xff]
    %v363 = vld [vmem:[#allocation8 + $0x78] sm:$0xff]
    %v364 = vld [vmem:[#allocation8 + $0x80] sm:$0xff]
    %v365 = vld [vmem:[#allocation8 + $0x88] sm:$0xff]
    %v366 = vld [vmem:[#allocation8 + $0x90] sm:$0xff]
    %v367 = vld [vmem:[#allocation8 + $0x98] sm:$0xff]
    %v368 = vld [vmem:[#allocation8 + $0xa0] sm:$0xff]
    %v369 = vld [vmem:[#allocation8 + $0xa8] sm:$0xff]
    %v370 = vld [vmem:[#allocation8 + $0xb0] sm:$0xff]
    %v371 = vld [vmem:[#allocation8 + $0xb8] sm:$0xff]
    %v372 = vld [vmem:[#allocation8 + $0xc0] sm:$0xff]
    %v373 = vld [vmem:[#allocation8 + $0xc8] sm:$0xff]
    %v374 = vld [vmem:[#allocation8 + $0xd0] sm:$0xff]
    %v375 = vld [vmem:[#allocation8 + $0xd8] sm:$0xff]
    %v376 = vld [vmem:[#allocation8 + $0xe0] sm:$0xff]
    %v377 = vld [vmem:[#allocation8 + $0xe8] sm:$0xff]
    %v378 = vld [vmem:[#allocation8 + $0xf0] sm:$0xff]
    %v379 = vld [vmem:[#allocation8 + $0xf8] sm:$0xff]
    %v380 = vld [vmem:[#allocation8 + $0x100] sm:$0xff]
    %v381 = vld [vmem:[#allocation8 + $0x108] sm:$0xff]
    %v382 = vld [vmem:[#allocation8 + $0x110] sm:$0xff]
    %v383 = vld [vmem:[#allocation8 + $0x118] sm:$0xff]
    %v384 = vld [vmem:[#allocation8 + $0x120] sm:$0xff]
    %v385 = vld [vmem:[#allocation8 + $0x128] sm:$0xff]
    %v386 = vld [vmem:[#allocation8 + $0x130] sm:$0xff]
    %v387 = vld [vmem:[#allocation8 + $0x138] sm:$0xff]
    %v388 = vld [vmem:[#allocation8 + $0x140] sm:$0xff]
    %v389 = vld [vmem:[#allocation8 + $0x148] sm:$0xff]
    %v390 = vld [vmem:[#allocation8 + $0x150] sm:$0xff]
    %v391 = vld [vmem:[#allocation8 + $0x158] sm:$0xff]
    %v392 = vld [vmem:[#allocation8 + $0x160] sm:$0xff]
    %v393 = vld [vmem:[#allocation8 + $0x168] sm:$0xff]
    %v394 = vld [vmem:[#allocation8 + $0x170] sm:$0xff]
    %v395 = vld [vmem:[#allocation8 + $0x178] sm:$0xff]
    %v396 = vld [vmem:[#allocation8 + $0x180] sm:$0xff]
    %v397 = vld [vmem:[#allocation8 + $0x188] sm:$0xff]
    %v398 = vld [vmem:[#allocation8 + $0x190] sm:$0xff]
    %v399 = vld [vmem:[#allocation8 + $0x198] sm:$0xff]
    %v400 = vld [vmem:[#allocation8 + $0x1a0] sm:$0xff]
    %v401 = vld [vmem:[#allocation8 + $0x1a8] sm:$0xff]
    %v402 = vld [vmem:[#allocation8 + $0x1b0] sm:$0xff]
    %v403 = vld [vmem:[#allocation8 + $0x1b8] sm:$0xff]
    %v404 = vld [vmem:[#allocation8 + $0x1c0] sm:$0xff]
    %v405 = vld [vmem:[#allocation8 + $0x1c8] sm:$0xff]
    %v406 = vld [vmem:[#allocation8 + $0x1d0] sm:$0xff]
    %v407 = vld [vmem:[#allocation8 + $0x1d8] sm:$0xff]
    %v408 = vld [vmem:[#allocation8 + $0x1e0] sm:$0xff]
    %v409 = vld [vmem:[#allocation8 + $0x1e8] sm:$0xff]
    %v410 = vld [vmem:[#allocation8 + $0x1f0] sm:$0xff]
    %v411 = vld [vmem:[#allocation8 + $0x1f8] sm:$0xff]
    %v412 = vld [vmem:[#allocation8 + $0x200] sm:$0xff]
    %v413 = vld [vmem:[#allocation8 + $0x208] sm:$0xff]
    %v414 = vld [vmem:[#allocation8 + $0x210] sm:$0xff]
    %v415 = vld [vmem:[#allocation8 + $0x218] sm:$0xff]
    %v416 = vld [vmem:[#allocation8 + $0x220] sm:$0xff]
    %v417 = vld [vmem:[#allocation8 + $0x228] sm:$0xff]
    %v418 = vld [vmem:[#allocation8 + $0x230] sm:$0xff]
    %v419 = vld [vmem:[#allocation8 + $0x238] sm:$0xff]
    %v420 = vld [vmem:[#allocation8 + $0x240] sm:$0xff]
    %v421 = vld [vmem:[#allocation8 + $0x248] sm:$0xff]
    %v422 = vld [vmem:[#allocation8 + $0x250] sm:$0xff]
    %v423 = vld [vmem:[#allocation8 + $0x258] sm:$0xff]
    %v424 = vld [vmem:[#allocation8 + $0x260] sm:$0xff]
    %v425 = vld [vmem:[#allocation8 + $0x268] sm:$0xff]
    %v426 = vld [vmem:[#allocation8 + $0x270] sm:$0xff]
    %v427 = vld [vmem:[#allocation8 + $0x278] sm:$0xff]
    %v428 = vld [vmem:[#allocation8 + $0x280] sm:$0xff]
    %v429 = vld [vmem:[#allocation8 + $0x288] sm:$0xff]
    %v430 = vld [vmem:[#allocation8 + $0x290] sm:$0xff]
    %v431 = vld [vmem:[#allocation8 + $0x298] sm:$0xff]
    %v432 = vld [vmem:[#allocation8 + $0x2a0] sm:$0xff]
    %v433 = vld [vmem:[#allocation8 + $0x2a8] sm:$0xff]
    %v434 = vld [vmem:[#allocation8 + $0x2b0] sm:$0xff]
    %v435 = vld [vmem:[#allocation8 + $0x2b8] sm:$0xff]
    %v436 = vld [vmem:[#allocation8 + $0x2c0] sm:$0xff]
    %v437 = vld [vmem:[#allocation8 + $0x2c8] sm:$0xff]
    %v438 = vld [vmem:[#allocation8 + $0x2d0] sm:$0xff]
    %v439 = vld [vmem:[#allocation8 + $0x2d8] sm:$0xff]
    %v440 = vld [vmem:[#allocation8 + $0x2e0] sm:$0xff]
    %v441 = vld [vmem:[#allocation8 + $0x2e8] sm:$0xff]
    %v442 = vld [vmem:[#allocation8 + $0x2f0] sm:$0xff]
    %v443 = vld [vmem:[#allocation8 + $0x2f8] sm:$0xff]
    %v444 = vld [vmem:[#allocation8 + $0x300] sm:$0xff]
    %v445 = vld [vmem:[#allocation8 + $0x308] sm:$0xff]
    %v446 = vld [vmem:[#allocation8 + $0x310] sm:$0xff]
    %v447 = vld [vmem:[#allocation8 + $0x318] sm:$0xff]
    %v448 = vld [vmem:[#allocation8 + $0x320] sm:$0xff]
    %v449 = vld [vmem:[#allocation8 + $0x328] sm:$0xff]
    %v450 = vld [vmem:[#allocation8 + $0x330] sm:$0xff]
    %v451 = vld [vmem:[#allocation8 + $0x338] sm:$0xff]
    %v452 = vld [vmem:[#allocation8 + $0x340] sm:$0xff]
    %v453 = vld [vmem:[#allocation8 + $0x348] sm:$0xff]
    %v454 = vld [vmem:[#allocation8 + $0x350] sm:$0xff]
    %v455 = vld [vmem:[#allocation8 + $0x358] sm:$0xff]
    %v456 = vld [vmem:[#allocation8 + $0x360] sm:$0xff]
    %v457 = vld [vmem:[#allocation8 + $0x368] sm:$0xff]
    %v458 = vld [vmem:[#allocation8 + $0x370] sm:$0xff]
    %v459 = vld [vmem:[#allocation8 + $0x378] sm:$0xff]
    %v460 = vld [vmem:[#allocation8 + $0x380] sm:$0xff]
    %v461 = vld [vmem:[#allocation8 + $0x388] sm:$0xff]
    %v462 = vld [vmem:[#allocation8 + $0x390] sm:$0xff]
    %v463 = vld [vmem:[#allocation8 + $0x398] sm:$0xff]
    %v464 = vld [vmem:[#allocation8 + $0x3a0] sm:$0xff]
    %v465 = vld [vmem:[#allocation8 + $0x3a8] sm:$0xff]
    %v466 = vld [vmem:[#allocation8 + $0x3b0] sm:$0xff]
    %v467 = vld [vmem:[#allocation8 + $0x3b8] sm:$0xff]
    %v468 = vld [vmem:[#allocation8 + $0x3c0] sm:$0xff]
    %v469 = vld [vmem:[#allocation8 + $0x3c8] sm:$0xff]
    %v470 = vld [vmem:[#allocation8 + $0x3d0] sm:$0xff]
    %v471 = vld [vmem:[#allocation8 + $0x3d8] sm:$0xff]
    %v472 = vld [vmem:[#allocation8 + $0x3e0] sm:$0xff]
    %v473 = vld [vmem:[#allocation8 + $0x3e8] sm:$0xff]
    %v474 = vld [vmem:[#allocation8 + $0x3f0] sm:$0xff]
    %v475 = vld [vmem:[#allocation8 + $0x3f8] sm:$0xff]
    %v604 = vunpack.c.l.b16 %v348
    %v605 = vunpack.c.h.b16 %v348
    %v606 = vunpack.c.l.b16 %v349
    %v607 = vunpack.c.h.b16 %v349
    %v608 = vunpack.c.l.b16 %v350
    %v609 = vunpack.c.h.b16 %v350
    %v610 = vunpack.c.l.b16 %v351
    %v611 = vunpack.c.h.b16 %v351
    %v612 = vunpack.c.l.b16 %v352
    %v613 = vunpack.c.h.b16 %v352
    %v614 = vunpack.c.l.b16 %v353
    %v615 = vunpack.c.h.b16 %v353
    %v616 = vunpack.c.l.b16 %v354
    %v617 = vunpack.c.h.b16 %v354
    %v618 = vunpack.c.l.b16 %v355
    %v619 = vunpack.c.h.b16 %v355
    %v620 = vunpack.c.l.b16 %v356
    %v621 = vunpack.c.h.b16 %v356
    %v622 = vunpack.c.l.b16 %v357
    %v623 = vunpack.c.h.b16 %v357
    %v624 = vunpack.c.l.b16 %v358
    %v625 = vunpack.c.h.b16 %v358
    %v626 = vunpack.c.l.b16 %v359
    %v627 = vunpack.c.h.b16 %v359
    %v628 = vunpack.c.l.b16 %v360
    %v629 = vunpack.c.h.b16 %v360
    %v630 = vunpack.c.l.b16 %v361
    %v631 = vunpack.c.h.b16 %v361
    %v632 = vunpack.c.l.b16 %v362
    %v633 = vunpack.c.h.b16 %v362
    %v634 = vunpack.c.l.b16 %v363
    %v635 = vunpack.c.h.b16 %v363
    %v636 = vunpack.c.l.b16 %v364
    %v637 = vunpack.c.h.b16 %v364
    %v638 = vunpack.c.l.b16 %v365
    %v639 = vunpack.c.h.b16 %v365
    %v640 = vunpack.c.l.b16 %v366
    %v641 = vunpack.c.h.b16 %v366
    %v642 = vunpack.c.l.b16 %v367
    %v643 = vunpack.c.h.b16 %v367
    %v644 = vunpack.c.l.b16 %v368
    %v645 = vunpack.c.h.b16 %v368
    %v646 = vunpack.c.l.b16 %v369
    %v647 = vunpack.c.h.b16 %v369
    %v648 = vunpack.c.l.b16 %v370
    %v649 = vunpack.c.h.b16 %v370
    %v650 = vunpack.c.l.b16 %v371
    %v651 = vunpack.c.h.b16 %v371
    %v652 = vunpack.c.l.b16 %v372
    %v653 = vunpack.c.h.b16 %v372
    %v654 = vunpack.c.l.b16 %v373
    %v655 = vunpack.c.h.b16 %v373
    %v656 = vunpack.c.l.b16 %v374
    %v657 = vunpack.c.h.b16 %v374
    %v658 = vunpack.c.l.b16 %v375
    %v659 = vunpack.c.h.b16 %v375
    %v660 = vunpack.c.l.b16 %v376
    %v661 = vunpack.c.h.b16 %v376
    %v662 = vunpack.c.l.b16 %v377
    %v663 = vunpack.c.h.b16 %v377
    %v664 = vunpack.c.l.b16 %v378
    %v665 = vunpack.c.h.b16 %v378
    %v666 = vunpack.c.l.b16 %v379
    %v667 = vunpack.c.h.b16 %v379
    %v668 = vunpack.c.l.b16 %v380
    %v669 = vunpack.c.h.b16 %v380
    %v670 = vunpack.c.l.b16 %v381
    %v671 = vunpack.c.h.b16 %v381
    %v672 = vunpack.c.l.b16 %v382
    %v673 = vunpack.c.h.b16 %v382
    %v674 = vunpack.c.l.b16 %v383
    %v675 = vunpack.c.h.b16 %v383
    %v676 = vunpack.c.l.b16 %v384
    %v677 = vunpack.c.h.b16 %v384
    %v678 = vunpack.c.l.b16 %v385
    %v679 = vunpack.c.h.b16 %v385
    %v680 = vunpack.c.l.b16 %v386
    %v681 = vunpack.c.h.b16 %v386
    %v682 = vunpack.c.l.b16 %v387
    %v683 = vunpack.c.h.b16 %v387
    %v684 = vunpack.c.l.b16 %v388
    %v685 = vunpack.c.h.b16 %v388
    %v686 = vunpack.c.l.b16 %v389
    %v687 = vunpack.c.h.b16 %v389
    %v688 = vunpack.c.l.b16 %v390
    %v689 = vunpack.c.h.b16 %v390
    %v690 = vunpack.c.l.b16 %v391
    %v691 = vunpack.c.h.b16 %v391
    %v692 = vunpack.c.l.b16 %v392
    %v693 = vunpack.c.h.b16 %v392
    %v694 = vunpack.c.l.b16 %v393
    %v695 = vunpack.c.h.b16 %v393
    %v696 = vunpack.c.l.b16 %v394
    %v697 = vunpack.c.h.b16 %v394
    %v698 = vunpack.c.l.b16 %v395
    %v699 = vunpack.c.h.b16 %v395
    %v700 = vunpack.c.l.b16 %v396
    %v701 = vunpack.c.h.b16 %v396
    %v702 = vunpack.c.l.b16 %v397
    %v703 = vunpack.c.h.b16 %v397
    %v704 = vunpack.c.l.b16 %v398
    %v705 = vunpack.c.h.b16 %v398
    %v706 = vunpack.c.l.b16 %v399
    %v707 = vunpack.c.h.b16 %v399
    %v708 = vunpack.c.l.b16 %v400
    %v709 = vunpack.c.h.b16 %v400
    %v710 = vunpack.c.l.b16 %v401
    %v711 = vunpack.c.h.b16 %v401
    %v712 = vunpack.c.l.b16 %v402
    %v713 = vunpack.c.h.b16 %v402
    %v714 = vunpack.c.l.b16 %v403
    %v715 = vunpack.c.h.b16 %v403
    %v716 = vunpack.c.l.b16 %v404
    %v717 = vunpack.c.h.b16 %v404
    %v718 = vunpack.c.l.b16 %v405
    %v719 = vunpack.c.h.b16 %v405
    %v720 = vunpack.c.l.b16 %v406
    %v721 = vunpack.c.h.b16 %v406
    %v722 = vunpack.c.l.b16 %v407
    %v723 = vunpack.c.h.b16 %v407
    %v724 = vunpack.c.l.b16 %v408
    %v725 = vunpack.c.h.b16 %v408
    %v726 = vunpack.c.l.b16 %v409
    %v727 = vunpack.c.h.b16 %v409
    %v728 = vunpack.c.l.b16 %v410
    %v729 = vunpack.c.h.b16 %v410
    %v730 = vunpack.c.l.b16 %v411
    %v731 = vunpack.c.h.b16 %v411
    %v732 = vunpack.c.l.b16 %v412
    %v733 = vunpack.c.h.b16 %v412
    %v734 = vunpack.c.l.b16 %v413
    %v735 = vunpack.c.h.b16 %v413
    %v736 = vunpack.c.l.b16 %v414
    %v737 = vunpack.c.h.b16 %v414
    %v738 = vunpack.c.l.b16 %v415
    %v739 = vunpack.c.h.b16 %v415
    %v740 = vunpack.c.l.b16 %v416
    %v741 = vunpack.c.h.b16 %v416
    %v742 = vunpack.c.l.b16 %v417
    %v743 = vunpack.c.h.b16 %v417
    %v744 = vunpack.c.l.b16 %v418
    %v745 = vunpack.c.h.b16 %v418
    %v746 = vunpack.c.l.b16 %v419
    %v747 = vunpack.c.h.b16 %v419
    %v748 = vunpack.c.l.b16 %v420
    %v749 = vunpack.c.h.b16 %v420
    %v750 = vunpack.c.l.b16 %v421
    %v751 = vunpack.c.h.b16 %v421
    %v752 = vunpack.c.l.b16 %v422
    %v753 = vunpack.c.h.b16 %v422
    %v754 = vunpack.c.l.b16 %v423
    %v755 = vunpack.c.h.b16 %v423
    %v756 = vunpack.c.l.b16 %v424
    %v757 = vunpack.c.h.b16 %v424
    %v758 = vunpack.c.l.b16 %v425
    %v759 = vunpack.c.h.b16 %v425
    %v760 = vunpack.c.l.b16 %v426
    %v761 = vunpack.c.h.b16 %v426
    %v762 = vunpack.c.l.b16 %v427
    %v763 = vunpack.c.h.b16 %v427
    %v764 = vunpack.c.l.b16 %v428
    %v765 = vunpack.c.h.b16 %v428
    %v766 = vunpack.c.l.b16 %v429
    %v767 = vunpack.c.h.b16 %v429
    %v768 = vunpack.c.l.b16 %v430
    %v769 = vunpack.c.h.b16 %v430
    %v770 = vunpack.c.l.b16 %v431
    %v771 = vunpack.c.h.b16 %v431
    %v772 = vunpack.c.l.b16 %v432
    %v773 = vunpack.c.h.b16 %v432
    %v774 = vunpack.c.l.b16 %v433
    %v775 = vunpack.c.h.b16 %v433
    %v776 = vunpack.c.l.b16 %v434
    %v777 = vunpack.c.h.b16 %v434
    %v778 = vunpack.c.l.b16 %v435
    %v779 = vunpack.c.h.b16 %v435
    %v780 = vunpack.c.l.b16 %v436
    %v781 = vunpack.c.h.b16 %v436
    %v782 = vunpack.c.l.b16 %v437
    %v783 = vunpack.c.h.b16 %v437
    %v784 = vunpack.c.l.b16 %v438
    %v785 = vunpack.c.h.b16 %v438
    %v786 = vunpack.c.l.b16 %v439
    %v787 = vunpack.c.h.b16 %v439
    %v788 = vunpack.c.l.b16 %v440
    %v789 = vunpack.c.h.b16 %v440
    %v790 = vunpack.c.l.b16 %v441
    %v791 = vunpack.c.h.b16 %v441
    %v792 = vunpack.c.l.b16 %v442
    %v793 = vunpack.c.h.b16 %v442
    %v794 = vunpack.c.l.b16 %v443
    %v795 = vunpack.c.h.b16 %v443
    %v796 = vunpack.c.l.b16 %v444
    %v797 = vunpack.c.h.b16 %v444
    %v798 = vunpack.c.l.b16 %v445
    %v799 = vunpack.c.h.b16 %v445
    %v800 = vunpack.c.l.b16 %v446
    %v801 = vunpack.c.h.b16 %v446
    %v802 = vunpack.c.l.b16 %v447
    %v803 = vunpack.c.h.b16 %v447
    %v804 = vunpack.c.l.b16 %v448
    %v805 = vunpack.c.h.b16 %v448
    %v806 = vunpack.c.l.b16 %v449
    %v807 = vunpack.c.h.b16 %v449
    %v808 = vunpack.c.l.b16 %v450
    %v809 = vunpack.c.h.b16 %v450
    %v810 = vunpack.c.l.b16 %v451
    %v811 = vunpack.c.h.b16 %v451
    %v812 = vunpack.c.l.b16 %v452
    %v813 = vunpack.c.h.b16 %v452
    %v814 = vunpack.c.l.b16 %v453
    %v815 = vunpack.c.h.b16 %v453
    %v816 = vunpack.c.l.b16 %v454
    %v817 = vunpack.c.h.b16 %v454
    %v818 = vunpack.c.l.b16 %v455
    %v819 = vunpack.c.h.b16 %v455
    %v820 = vunpack.c.l.b16 %v456
    %v821 = vunpack.c.h.b16 %v456
    %v822 = vunpack.c.l.b16 %v457
    %v823 = vunpack.c.h.b16 %v457
    %v824 = vunpack.c.l.b16 %v458
    %v825 = vunpack.c.h.b16 %v458
    %v826 = vunpack.c.l.b16 %v459
    %v827 = vunpack.c.h.b16 %v459
    %v828 = vunpack.c.l.b16 %v460
    %v829 = vunpack.c.h.b16 %v460
    %v830 = vunpack.c.l.b16 %v461
    %v831 = vunpack.c.h.b16 %v461
    %v832 = vunpack.c.l.b16 %v462
    %v833 = vunpack.c.h.b16 %v462
    %v834 = vunpack.c.l.b16 %v463
    %v835 = vunpack.c.h.b16 %v463
    %v836 = vunpack.c.l.b16 %v464
    %v837 = vunpack.c.h.b16 %v464
    %v838 = vunpack.c.l.b16 %v465
    %v839 = vunpack.c.h.b16 %v465
    %v840 = vunpack.c.l.b16 %v466
    %v841 = vunpack.c.h.b16 %v466
    %v842 = vunpack.c.l.b16 %v467
    %v843 = vunpack.c.h.b16 %v467
    %v844 = vunpack.c.l.b16 %v468
    %v845 = vunpack.c.h.b16 %v468
    %v846 = vunpack.c.l.b16 %v469
    %v847 = vunpack.c.h.b16 %v469
    %v848 = vunpack.c.l.b16 %v470
    %v849 = vunpack.c.h.b16 %v470
    %v850 = vunpack.c.l.b16 %v471
    %v851 = vunpack.c.h.b16 %v471
    %v852 = vunpack.c.l.b16 %v472
    %v853 = vunpack.c.h.b16 %v472
    %v854 = vunpack.c.l.b16 %v473
    %v855 = vunpack.c.h.b16 %v473
    %v856 = vunpack.c.l.b16 %v474
    %v857 = vunpack.c.h.b16 %v474
    %v858 = vunpack.c.l.b16 %v475
    %v859 = vunpack.c.h.b16 %v475
    %v860 = vpack.c.b16 %v608, %v604
    %v861 = vpack.c.b16 %v609, %v605
    %v862 = vpack.c.b16 %v610, %v606
    %v863 = vpack.c.b16 %v611, %v607
    %v864 = vpack.c.b16 %v616, %v612
    %v865 = vpack.c.b16 %v617, %v613
    %v866 = vpack.c.b16 %v618, %v614
    %v867 = vpack.c.b16 %v619, %v615
    %v868 = vpack.c.b16 %v624, %v620
    %v869 = vpack.c.b16 %v625, %v621
    %v870 = vpack.c.b16 %v626, %v622
    %v871 = vpack.c.b16 %v627, %v623
    %v872 = vpack.c.b16 %v632, %v628
    %v873 = vpack.c.b16 %v633, %v629
    %v874 = vpack.c.b16 %v634, %v630
    %v875 = vpack.c.b16 %v635, %v631
    %v876 = vpack.c.b16 %v640, %v636
    %v877 = vpack.c.b16 %v641, %v637
    %v878 = vpack.c.b16 %v642, %v638
    %v879 = vpack.c.b16 %v643, %v639
    %v880 = vpack.c.b16 %v648, %v644
    %v881 = vpack.c.b16 %v649, %v645
    %v882 = vpack.c.b16 %v650, %v646
    %v883 = vpack.c.b16 %v651, %v647
    %v884 = vpack.c.b16 %v656, %v652
    %v885 = vpack.c.b16 %v657, %v653
    %v886 = vpack.c.b16 %v658, %v654
    %v887 = vpack.c.b16 %v659, %v655
    %v888 = vpack.c.b16 %v664, %v660
    %v889 = vpack.c.b16 %v665, %v661
    %v890 = vpack.c.b16 %v666, %v662
    %v891 = vpack.c.b16 %v667, %v663
    %v892 = vpack.c.b16 %v672, %v668
    %v893 = vpack.c.b16 %v673, %v669
    %v894 = vpack.c.b16 %v674, %v670
    %v895 = vpack.c.b16 %v675, %v671
    %v896 = vpack.c.b16 %v680, %v676
    %v897 = vpack.c.b16 %v681, %v677
    %v898 = vpack.c.b16 %v682, %v678
    %v899 = vpack.c.b16 %v683, %v679
    %v900 = vpack.c.b16 %v688, %v684
    %v901 = vpack.c.b16 %v689, %v685
    %v902 = vpack.c.b16 %v690, %v686
    %v903 = vpack.c.b16 %v691, %v687
    %v904 = vpack.c.b16 %v696, %v692
    %v905 = vpack.c.b16 %v697, %v693
    %v906 = vpack.c.b16 %v698, %v694
    %v907 = vpack.c.b16 %v699, %v695
    %v908 = vpack.c.b16 %v704, %v700
    %v909 = vpack.c.b16 %v705, %v701
    %v910 = vpack.c.b16 %v706, %v702
    %v911 = vpack.c.b16 %v707, %v703
    %v912 = vpack.c.b16 %v712, %v708
    %v913 = vpack.c.b16 %v713, %v709
    %v914 = vpack.c.b16 %v714, %v710
    %v915 = vpack.c.b16 %v715, %v711
    %v916 = vpack.c.b16 %v720, %v716
    %v917 = vpack.c.b16 %v721, %v717
    %v918 = vpack.c.b16 %v722, %v718
    %v919 = vpack.c.b16 %v723, %v719
    %v920 = vpack.c.b16 %v728, %v724
    %v921 = vpack.c.b16 %v729, %v725
    %v922 = vpack.c.b16 %v730, %v726
    %v923 = vpack.c.b16 %v731, %v727
    %v924 = vpack.c.b16 %v736, %v732
    %v925 = vpack.c.b16 %v737, %v733
    %v926 = vpack.c.b16 %v738, %v734
    %v927 = vpack.c.b16 %v739, %v735
    %v928 = vpack.c.b16 %v744, %v740
    %v929 = vpack.c.b16 %v745, %v741
    %v930 = vpack.c.b16 %v746, %v742
    %v931 = vpack.c.b16 %v747, %v743
    %v932 = vpack.c.b16 %v752, %v748
    %v933 = vpack.c.b16 %v753, %v749
    %v934 = vpack.c.b16 %v754, %v750
    %v935 = vpack.c.b16 %v755, %v751
    %v936 = vpack.c.b16 %v760, %v756
    %v937 = vpack.c.b16 %v761, %v757
    %v938 = vpack.c.b16 %v762, %v758
    %v939 = vpack.c.b16 %v763, %v759
    %v940 = vpack.c.b16 %v768, %v764
    %v941 = vpack.c.b16 %v769, %v765
    %v942 = vpack.c.b16 %v770, %v766
    %v943 = vpack.c.b16 %v771, %v767
    %v944 = vpack.c.b16 %v776, %v772
    %v945 = vpack.c.b16 %v777, %v773
    %v946 = vpack.c.b16 %v778, %v774
    %v947 = vpack.c.b16 %v779, %v775
    %v948 = vpack.c.b16 %v784, %v780
    %v949 = vpack.c.b16 %v785, %v781
    %v950 = vpack.c.b16 %v786, %v782
    %v951 = vpack.c.b16 %v787, %v783
    %v952 = vpack.c.b16 %v792, %v788
    %v953 = vpack.c.b16 %v793, %v789
    %v954 = vpack.c.b16 %v794, %v790
    %v955 = vpack.c.b16 %v795, %v791
    %v956 = vpack.c.b16 %v800, %v796
    %v957 = vpack.c.b16 %v801, %v797
    %v958 = vpack.c.b16 %v802, %v798
    %v959 = vpack.c.b16 %v803, %v799
    %v960 = vpack.c.b16 %v808, %v804
    %v961 = vpack.c.b16 %v809, %v805
    %v962 = vpack.c.b16 %v810, %v806
    %v963 = vpack.c.b16 %v811, %v807
    %v964 = vpack.c.b16 %v816, %v812
    %v965 = vpack.c.b16 %v817, %v813
    %v966 = vpack.c.b16 %v818, %v814
    %v967 = vpack.c.b16 %v819, %v815
    %v968 = vpack.c.b16 %v824, %v820
    %v969 = vpack.c.b16 %v825, %v821
    %v970 = vpack.c.b16 %v826, %v822
    %v971 = vpack.c.b16 %v827, %v823
    %v972 = vpack.c.b16 %v832, %v828
    %v973 = vpack.c.b16 %v833, %v829
    %v974 = vpack.c.b16 %v834, %v830
    %v975 = vpack.c.b16 %v835, %v831
    %v976 = vpack.c.b16 %v840, %v836
    %v977 = vpack.c.b16 %v841, %v837
    %v978 = vpack.c.b16 %v842, %v838
    %v979 = vpack.c.b16 %v843, %v839
    %v980 = vpack.c.b16 %v848, %v844
    %v981 = vpack.c.b16 %v849, %v845
    %v982 = vpack.c.b16 %v850, %v846
    %v983 = vpack.c.b16 %v851, %v847
    %v984 = vpack.c.b16 %v856, %v852
    %v985 = vpack.c.b16 %v857, %v853
    %v986 = vpack.c.b16 %v858, %v854
    %v987 = vpack.c.b16 %v859, %v855
    %1116 = vmatprep.subr.bf16.mxu0 %v861
    %1117 = vmatpush1.bf16.msra.mxu0 %v860
    %1118 = vmatprep.subr.bf16.mxu0 %v865
    %1119 = vmatpush1.bf16.msra.mxu0 %v864
    %1120 = vmatprep.subr.bf16.mxu0 %v869
    %1121 = vmatpush1.bf16.msra.mxu0 %v868
    %1122 = vmatprep.subr.bf16.mxu0 %v873
    %1123 = vmatpush1.bf16.msra.mxu0 %v872
    %1124 = vmatprep.subr.bf16.mxu0 %v877
    %1125 = vmatpush1.bf16.msra.mxu0 %v876
    %1126 = vmatprep.subr.bf16.mxu0 %v881
    %1127 = vmatpush1.bf16.msra.mxu0 %v880
    %1128 = vmatprep.subr.bf16.mxu0 %v885
    %1129 = vmatpush1.bf16.msra.mxu0 %v884
    %1130 = vmatprep.subr.bf16.mxu0 %v889
    %1131 = vmatpush1.bf16.msra.mxu0 %v888
    %1132 = vmatprep.subr.bf16.mxu0 %v893
    %1133 = vmatpush1.bf16.msra.mxu0 %v892
    %1134 = vmatprep.subr.bf16.mxu0 %v897
    %1135 = vmatpush1.bf16.msra.mxu0 %v896
    %1136 = vmatprep.subr.bf16.mxu0 %v901
    %1137 = vmatpush1.bf16.msra.mxu0 %v900
    %1138 = vmatprep.subr.bf16.mxu0 %v905
    %1139 = vmatpush1.bf16.msra.mxu0 %v904
    %1140 = vmatprep.subr.bf16.mxu0 %v909
    %1141 = vmatpush1.bf16.msra.mxu0 %v908
    %1142 = vmatprep.subr.bf16.mxu0 %v913
    %1143 = vmatpush1.bf16.msra.mxu0 %v912
    %1144 = vmatprep.subr.bf16.mxu0 %v917
    %1145 = vmatpush1.bf16.msra.mxu0 %v916
    %1146 = vmatprep.subr.bf16.mxu0 %v921
    %1147 = vmatpush1.bf16.msra.mxu0 %v920
    %1148 = vmatprep.mubr.bf16.mxu0 %v345
    %1149 = vmatmul.mubr.bf16.gmra.mrb[0].mxu0 %v344
    %v1150 = vpop.f32.mrb[0].mxu0
    %v1151 = vadd.f32 0.0, %v1150
    %v1152 = vpop.f32.mrb[0].mxu0
    %v1153 = vadd.f32 0.0, %v1152
    %v1154 = vpop.f32.mrb[0].mxu0
    %v1155 = vpop.f32.mrb[0].mxu0
    %1156 = vdwg.mxu0
    %1157 = vmatprep.subr.bf16.mxu0 %v925
    %1158 = vmatpush1.bf16.msra.mxu0 %v924
    %1159 = vmatprep.subr.bf16.mxu0 %v929
    %1160 = vmatpush1.bf16.msra.mxu0 %v928
    %1161 = vmatprep.subr.bf16.mxu0 %v933
    %1162 = vmatpush1.bf16.msra.mxu0 %v932
    %1163 = vmatprep.subr.bf16.mxu0 %v937
    %1164 = vmatpush1.bf16.msra.mxu0 %v936
    %1165 = vmatprep.subr.bf16.mxu0 %v941
    %1166 = vmatpush1.bf16.msra.mxu0 %v940
    %1167 = vmatprep.subr.bf16.mxu0 %v945
    %1168 = vmatpush1.bf16.msra.mxu0 %v944
    %1169 = vmatprep.subr.bf16.mxu0 %v949
    %1170 = vmatpush1.bf16.msra.mxu0 %v948
    %1171 = vmatprep.subr.bf16.mxu0 %v953
    %1172 = vmatpush1.bf16.msra.mxu0 %v952
    %1173 = vmatprep.subr.bf16.mxu0 %v957
    %1174 = vmatpush1.bf16.msra.mxu0 %v956
    %1175 = vmatprep.subr.bf16.mxu0 %v961
    %1176 = vmatpush1.bf16.msra.mxu0 %v960
    %1177 = vmatprep.subr.bf16.mxu0 %v965
    %1178 = vmatpush1.bf16.msra.mxu0 %v964
    %1179 = vmatprep.subr.bf16.mxu0 %v969
    %1180 = vmatpush1.bf16.msra.mxu0 %v968
    %1181 = vmatprep.subr.bf16.mxu0 %v973
    %1182 = vmatpush1.bf16.msra.mxu0 %v972
    %1183 = vmatprep.subr.bf16.mxu0 %v977
    %1184 = vmatpush1.bf16.msra.mxu0 %v976
    %1185 = vmatprep.subr.bf16.mxu0 %v981
    %1186 = vmatpush1.bf16.msra.mxu0 %v980
    %1187 = vmatprep.subr.bf16.mxu0 %v985
    %1188 = vmatpush1.bf16.msra.mxu0 %v984
    %1189 = vmatprep.mubr.bf16.mxu0 %v347
    %1190 = vmatmul.mubr.bf16.gmra.mrb[0].mxu0 %v346
    %v1191 = vpop.f32.mrb[0].mxu0
    %v1192 = vadd.f32 %v1151, %v1191
    %v1193 = vpop.f32.mrb[0].mxu0
    %v1194 = vadd.f32 %v1153, %v1193
    %v1195 = vpop.f32.mrb[0].mxu0
    %v1196 = vpop.f32.mrb[0].mxu0
    %1197 = vdwg.mxu0
    %1198 = vmatprep.subr.bf16.mxu0 %v863
    %1199 = vmatpush1.bf16.msra.mxu0 %v862
    %1200 = vmatprep.subr.bf16.mxu0 %v867
    %1201 = vmatpush1.bf16.msra.mxu0 %v866
    %1202 = vmatprep.subr.bf16.mxu0 %v871
    %1203 = vmatpush1.bf16.msra.mxu0 %v870
    %1204 = vmatprep.subr.bf16.mxu0 %v875
    %1205 = vmatpush1.bf16.msra.mxu0 %v874
    %1206 = vmatprep.subr.bf16.mxu0 %v879
    %1207 = vmatpush1.bf16.msra.mxu0 %v878
    %1208 = vmatprep.subr.bf16.mxu0 %v883
    %1209 = vmatpush1.bf16.msra.mxu0 %v882
    %1210 = vmatprep.subr.bf16.mxu0 %v887
    %1211 = vmatpush1.bf16.msra.mxu0 %v886
    %1212 = vmatprep.subr.bf16.mxu0 %v891
    %1213 = vmatpush1.bf16.msra.mxu0 %v890
    %1214 = vmatprep.subr.bf16.mxu0 %v895
    %1215 = vmatpush1.bf16.msra.mxu0 %v894
    %1216 = vmatprep.subr.bf16.mxu0 %v899
    %1217 = vmatpush1.bf16.msra.mxu0 %v898
    %1218 = vmatprep.subr.bf16.mxu0 %v903
    %1219 = vmatpush1.bf16.msra.mxu0 %v902
    %1220 = vmatprep.subr.bf16.mxu0 %v907
    %1221 = vmatpush1.bf16.msra.mxu0 %v906
    %1222 = vmatprep.subr.bf16.mxu0 %v911
    %1223 = vmatpush1.bf16.msra.mxu0 %v910
    %1224 = vmatprep.subr.bf16.mxu0 %v915
    %1225 = vmatpush1.bf16.msra.mxu0 %v914
    %1226 = vmatprep.subr.bf16.mxu0 %v919
    %1227 = vmatpush1.bf16.msra.mxu0 %v918
    %1228 = vmatprep.subr.bf16.mxu0 %v923
    %1229 = vmatpush1.bf16.msra.mxu0 %v922
    %1230 = vmatprep.mubr.bf16.mxu0 %v345
    %1231 = vmatmul.mubr.bf16.gmra.mrb[0].mxu0 %v344
    %v1232 = vpop.f32.mrb[0].mxu0
    %v1233 = vadd.f32 0.0, %v1232
    %v1234 = vpop.f32.mrb[0].mxu0
    %v1235 = vadd.f32 0.0, %v1234
    %v1236 = vpop.f32.mrb[0].mxu0
    %v1237 = vpop.f32.mrb[0].mxu0
    %1238 = vdwg.mxu0
    %1239 = vmatprep.subr.bf16.mxu0 %v927
    %1240 = vmatpush1.bf16.msra.mxu0 %v926
    %1241 = vmatprep.subr.bf16.mxu0 %v931
    %1242 = vmatpush1.bf16.msra.mxu0 %v930
    %1243 = vmatprep.subr.bf16.mxu0 %v935
    %1244 = vmatpush1.bf16.msra.mxu0 %v934
    %1245 = vmatprep.subr.bf16.mxu0 %v939
    %1246 = vmatpush1.bf16.msra.mxu0 %v938
    %1247 = vmatprep.subr.bf16.mxu0 %v943
    %1248 = vmatpush1.bf16.msra.mxu0 %v942
    %1249 = vmatprep.subr.bf16.mxu0 %v947
    %1250 = vmatpush1.bf16.msra.mxu0 %v946
    %1251 = vmatprep.subr.bf16.mxu0 %v951
    %1252 = vmatpush1.bf16.msra.mxu0 %v950
    %1253 = vmatprep.subr.bf16.mxu0 %v955
    %1254 = vmatpush1.bf16.msra.mxu0 %v954
    %1255 = vmatprep.subr.bf16.mxu0 %v959
    %1256 = vmatpush1.bf16.msra.mxu0 %v958
    %1257 = vmatprep.subr.bf16.mxu0 %v963
    %1258 = vmatpush1.bf16.msra.mxu0 %v962
    %1259 = vmatprep.subr.bf16.mxu0 %v967
    %1260 = vmatpush1.bf16.msra.mxu0 %v966
    %1261 = vmatprep.subr.bf16.mxu0 %v971
    %1262 = vmatpush1.bf16.msra.mxu0 %v970
    %1263 = vmatprep.subr.bf16.mxu0 %v975
    %1264 = vmatpush1.bf16.msra.mxu0 %v974
    %1265 = vmatprep.subr.bf16.mxu0 %v979
    %1266 = vmatpush1.bf16.msra.mxu0 %v978
    %1267 = vmatprep.subr.bf16.mxu0 %v983
    %1268 = vmatpush1.bf16.msra.mxu0 %v982
    %1269 = vmatprep.subr.bf16.mxu0 %v987
    %1270 = vmatpush1.bf16.msra.mxu0 %v986
    %1271 = vmatprep.mubr.bf16.mxu0 %v347
    %1272 = vmatmul.mubr.bf16.gmra.mrb[0].mxu0 %v346
    %v1273 = vpop.f32.mrb[0].mxu0
    %v1274 = vadd.f32 %v1233, %v1273
    %v1275 = vpop.f32.mrb[0].mxu0
    %v1276 = vadd.f32 %v1235, %v1275
    %v1277 = vpop.f32.mrb[0].mxu0
    %v1278 = vpop.f32.mrb[0].mxu0
    %1279 = vdwg.mxu0
    %v1280 = vpack.c.bf16 %v1192, %v1192
    %v1281 = vpack.c.bf16 %v1194, %v1194
    %v1282 = vpack.c.bf16 %v1274, %v1274
    %v1283 = vpack.c.bf16 %v1276, %v1276
    %v1284 = vld [vmem:[#allocation10] sm:$0xf]
    %v1287 = vunpack.c.l.s4 1966171168
    %v1288 = vunpack.c.0.s8 %v1287
    %v1289 = vlaneseq
    %v1290 = vshrl.u32 %v1289, 7
    %v1291 = vsub.s32 %v1288, %v1290
    %v1292 = vrot.slane %v1284, %v1291
    %v1293 = vcombine.high %v1292, %v1292
    %v1295 = vunpack.c.l.s4 1966171168
    %v1296 = vunpack.c.0.s8 %v1295
    %v1297 = vlaneseq
    %v1298 = vshrl.u32 %v1297, 7
    %v1299 = vsub.s32 %v1296, %v1298
    %v1300 = vrot.slane %v1292, %v1299
    %v1302 = vunpack.c.l.s4 1966171168
    %v1303 = vunpack.c.0.s8 %v1302
    %v1304 = vlaneseq
    %v1305 = vshrl.u32 %v1304, 7
    %v1306 = vsub.s32 %v1303, %v1305
    %v1307 = vrot.slane %v1293, %v1306
    %v1308 = vcombine.high %v1300, %v1300
    %v1309 = vcombine.high %v1307, %v1307
    %v1311 = vpack.i.b16 %v1300, %v1300
    %v1313 = vlaneseq
    %v1314 = vshrl.u32 %v1313, 7
    %v1315 = vsub.s32 0, %v1314
    %v1316 = vrot.slane %v1311, %v1315
    %v1318 = vpack.i.b16 %v1307, %v1307
    %v1320 = vlaneseq
    %v1321 = vshrl.u32 %v1320, 7
    %v1322 = vsub.s32 0, %v1321
    %v1323 = vrot.slane %v1318, %v1322
    %v1325 = vpack.i.b16 %v1308, %v1308
    %v1327 = vlaneseq
    %v1328 = vshrl.u32 %v1327, 7
    %v1329 = vsub.s32 0, %v1328
    %v1330 = vrot.slane %v1325, %v1329
    %v1332 = vpack.i.b16 %v1309, %v1309
    %v1334 = vlaneseq
    %v1335 = vshrl.u32 %v1334, 7
    %v1336 = vsub.s32 0, %v1335
    %v1337 = vrot.slane %v1332, %v1336
    %v1338 = vadd.bf16 %v1280, %v1316
    %v1339 = vadd.bf16 %v1281, %v1323
    %v1340 = vadd.bf16 %v1282, %v1330
    %v1341 = vadd.bf16 %v1283, %v1337
    %v1342 = vmax.bf16 %v1338, 0
    %v1343 = vmax.bf16 %v1339, 0
    %v1344 = vmax.bf16 %v1340, 0
    %v1345 = vmax.bf16 %v1341, 0
    %v1346 = vld [vmem:[#allocation11] sm:$0xff]
    %v1347 = vld [vmem:[#allocation11 + $0x8] sm:$0xff]
    %v1348 = vld [vmem:[#allocation11 + $0x10] sm:$0xff]
    %v1349 = vld [vmem:[#allocation11 + $0x18] sm:$0xff]
    %v1350 = vld [vmem:[#allocation11 + $0x20] sm:$0xff]
    %v1351 = vld [vmem:[#allocation11 + $0x28] sm:$0xff]
    %v1352 = vld [vmem:[#allocation11 + $0x30] sm:$0xff]
    %v1353 = vld [vmem:[#allocation11 + $0x38] sm:$0xff]
    %v1354 = vld [vmem:[#allocation11 + $0x40] sm:$0xff]
    %v1355 = vld [vmem:[#allocation11 + $0x48] sm:$0xff]
    %v1356 = vld [vmem:[#allocation11 + $0x50] sm:$0xff]
    %v1357 = vld [vmem:[#allocation11 + $0x58] sm:$0xff]
    %v1358 = vld [vmem:[#allocation11 + $0x60] sm:$0xff]
    %v1359 = vld [vmem:[#allocation11 + $0x68] sm:$0xff]
    %v1360 = vld [vmem:[#allocation11 + $0x70] sm:$0xff]
    %v1361 = vld [vmem:[#allocation11 + $0x78] sm:$0xff]
    %v1362 = vld [vmem:[#allocation11 + $0x80] sm:$0xff]
    %v1363 = vld [vmem:[#allocation11 + $0x88] sm:$0xff]
    %v1364 = vld [vmem:[#allocation11 + $0x90] sm:$0xff]
    %v1365 = vld [vmem:[#allocation11 + $0x98] sm:$0xff]
    %v1366 = vld [vmem:[#allocation11 + $0xa0] sm:$0xff]
    %v1367 = vld [vmem:[#allocation11 + $0xa8] sm:$0xff]
    %v1368 = vld [vmem:[#allocation11 + $0xb0] sm:$0xff]
    %v1369 = vld [vmem:[#allocation11 + $0xb8] sm:$0xff]
    %v1370 = vld [vmem:[#allocation11 + $0xc0] sm:$0xff]
    %v1371 = vld [vmem:[#allocation11 + $0xc8] sm:$0xff]
    %v1372 = vld [vmem:[#allocation11 + $0xd0] sm:$0xff]
    %v1373 = vld [vmem:[#allocation11 + $0xd8] sm:$0xff]
    %v1374 = vld [vmem:[#allocation11 + $0xe0] sm:$0xff]
    %v1375 = vld [vmem:[#allocation11 + $0xe8] sm:$0xff]
    %v1376 = vld [vmem:[#allocation11 + $0xf0] sm:$0xff]
    %v1377 = vld [vmem:[#allocation11 + $0xf8] sm:$0xff]
    %v1378 = vld [vmem:[#allocation11 + $0x100] sm:$0xff]
    %v1379 = vld [vmem:[#allocation11 + $0x108] sm:$0xff]
    %v1380 = vld [vmem:[#allocation11 + $0x110] sm:$0xff]
    %v1381 = vld [vmem:[#allocation11 + $0x118] sm:$0xff]
    %v1382 = vld [vmem:[#allocation11 + $0x120] sm:$0xff]
    %v1383 = vld [vmem:[#allocation11 + $0x128] sm:$0xff]
    %v1384 = vld [vmem:[#allocation11 + $0x130] sm:$0xff]
    %v1385 = vld [vmem:[#allocation11 + $0x138] sm:$0xff]
    %v1386 = vld [vmem:[#allocation11 + $0x140] sm:$0xff]
    %v1387 = vld [vmem:[#allocation11 + $0x148] sm:$0xff]
    %v1388 = vld [vmem:[#allocation11 + $0x150] sm:$0xff]
    %v1389 = vld [vmem:[#allocation11 + $0x158] sm:$0xff]
    %v1390 = vld [vmem:[#allocation11 + $0x160] sm:$0xff]
    %v1391 = vld [vmem:[#allocation11 + $0x168] sm:$0xff]
    %v1392 = vld [vmem:[#allocation11 + $0x170] sm:$0xff]
    %v1393 = vld [vmem:[#allocation11 + $0x178] sm:$0xff]
    %v1394 = vld [vmem:[#allocation11 + $0x180] sm:$0xff]
    %v1395 = vld [vmem:[#allocation11 + $0x188] sm:$0xff]
    %v1396 = vld [vmem:[#allocation11 + $0x190] sm:$0xff]
    %v1397 = vld [vmem:[#allocation11 + $0x198] sm:$0xff]
    %v1398 = vld [vmem:[#allocation11 + $0x1a0] sm:$0xff]
    %v1399 = vld [vmem:[#allocation11 + $0x1a8] sm:$0xff]
    %v1400 = vld [vmem:[#allocation11 + $0x1b0] sm:$0xff]
    %v1401 = vld [vmem:[#allocation11 + $0x1b8] sm:$0xff]
    %v1402 = vld [vmem:[#allocation11 + $0x1c0] sm:$0xff]
    %v1403 = vld [vmem:[#allocation11 + $0x1c8] sm:$0xff]
    %v1404 = vld [vmem:[#allocation11 + $0x1d0] sm:$0xff]
    %v1405 = vld [vmem:[#allocation11 + $0x1d8] sm:$0xff]
    %v1406 = vld [vmem:[#allocation11 + $0x1e0] sm:$0xff]
    %v1407 = vld [vmem:[#allocation11 + $0x1e8] sm:$0xff]
    %v1408 = vld [vmem:[#allocation11 + $0x1f0] sm:$0xff]
    %v1409 = vld [vmem:[#allocation11 + $0x1f8] sm:$0xff]
    %v1410 = vld [vmem:[#allocation11 + $0x200] sm:$0xff]
    %v1411 = vld [vmem:[#allocation11 + $0x208] sm:$0xff]
    %v1412 = vld [vmem:[#allocation11 + $0x210] sm:$0xff]
    %v1413 = vld [vmem:[#allocation11 + $0x218] sm:$0xff]
    %v1414 = vld [vmem:[#allocation11 + $0x220] sm:$0xff]
    %v1415 = vld [vmem:[#allocation11 + $0x228] sm:$0xff]
    %v1416 = vld [vmem:[#allocation11 + $0x230] sm:$0xff]
    %v1417 = vld [vmem:[#allocation11 + $0x238] sm:$0xff]
    %v1418 = vld [vmem:[#allocation11 + $0x240] sm:$0xff]
    %v1419 = vld [vmem:[#allocation11 + $0x248] sm:$0xff]
    %v1420 = vld [vmem:[#allocation11 + $0x250] sm:$0xff]
    %v1421 = vld [vmem:[#allocation11 + $0x258] sm:$0xff]
    %v1422 = vld [vmem:[#allocation11 + $0x260] sm:$0xff]
    %v1423 = vld [vmem:[#allocation11 + $0x268] sm:$0xff]
    %v1424 = vld [vmem:[#allocation11 + $0x270] sm:$0xff]
    %v1425 = vld [vmem:[#allocation11 + $0x278] sm:$0xff]
    %v1426 = vld [vmem:[#allocation11 + $0x280] sm:$0xff]
    %v1427 = vld [vmem:[#allocation11 + $0x288] sm:$0xff]
    %v1428 = vld [vmem:[#allocation11 + $0x290] sm:$0xff]
    %v1429 = vld [vmem:[#allocation11 + $0x298] sm:$0xff]
    %v1430 = vld [vmem:[#allocation11 + $0x2a0] sm:$0xff]
    %v1431 = vld [vmem:[#allocation11 + $0x2a8] sm:$0xff]
    %v1432 = vld [vmem:[#allocation11 + $0x2b0] sm:$0xff]
    %v1433 = vld [vmem:[#allocation11 + $0x2b8] sm:$0xff]
    %v1434 = vld [vmem:[#allocation11 + $0x2c0] sm:$0xff]
    %v1435 = vld [vmem:[#allocation11 + $0x2c8] sm:$0xff]
    %v1436 = vld [vmem:[#allocation11 + $0x2d0] sm:$0xff]
    %v1437 = vld [vmem:[#allocation11 + $0x2d8] sm:$0xff]
    %v1438 = vld [vmem:[#allocation11 + $0x2e0] sm:$0xff]
    %v1439 = vld [vmem:[#allocation11 + $0x2e8] sm:$0xff]
    %v1440 = vld [vmem:[#allocation11 + $0x2f0] sm:$0xff]
    %v1441 = vld [vmem:[#allocation11 + $0x2f8] sm:$0xff]
    %v1442 = vld [vmem:[#allocation11 + $0x300] sm:$0xff]
    %v1443 = vld [vmem:[#allocation11 + $0x308] sm:$0xff]
    %v1444 = vld [vmem:[#allocation11 + $0x310] sm:$0xff]
    %v1445 = vld [vmem:[#allocation11 + $0x318] sm:$0xff]
    %v1446 = vld [vmem:[#allocation11 + $0x320] sm:$0xff]
    %v1447 = vld [vmem:[#allocation11 + $0x328] sm:$0xff]
    %v1448 = vld [vmem:[#allocation11 + $0x330] sm:$0xff]
    %v1449 = vld [vmem:[#allocation11 + $0x338] sm:$0xff]
    %v1450 = vld [vmem:[#allocation11 + $0x340] sm:$0xff]
    %v1451 = vld [vmem:[#allocation11 + $0x348] sm:$0xff]
    %v1452 = vld [vmem:[#allocation11 + $0x350] sm:$0xff]
    %v1453 = vld [vmem:[#allocation11 + $0x358] sm:$0xff]
    %v1454 = vld [vmem:[#allocation11 + $0x360] sm:$0xff]
    %v1455 = vld [vmem:[#allocation11 + $0x368] sm:$0xff]
    %v1456 = vld [vmem:[#allocation11 + $0x370] sm:$0xff]
    %v1457 = vld [vmem:[#allocation11 + $0x378] sm:$0xff]
    %v1458 = vld [vmem:[#allocation11 + $0x380] sm:$0xff]
    %v1459 = vld [vmem:[#allocation11 + $0x388] sm:$0xff]
    %v1460 = vld [vmem:[#allocation11 + $0x390] sm:$0xff]
    %v1461 = vld [vmem:[#allocation11 + $0x398] sm:$0xff]
    %v1462 = vld [vmem:[#allocation11 + $0x3a0] sm:$0xff]
    %v1463 = vld [vmem:[#allocation11 + $0x3a8] sm:$0xff]
    %v1464 = vld [vmem:[#allocation11 + $0x3b0] sm:$0xff]
    %v1465 = vld [vmem:[#allocation11 + $0x3b8] sm:$0xff]
    %v1466 = vld [vmem:[#allocation11 + $0x3c0] sm:$0xff]
    %v1467 = vld [vmem:[#allocation11 + $0x3c8] sm:$0xff]
    %v1468 = vld [vmem:[#allocation11 + $0x3d0] sm:$0xff]
    %v1469 = vld [vmem:[#allocation11 + $0x3d8] sm:$0xff]
    %v1470 = vld [vmem:[#allocation11 + $0x3e0] sm:$0xff]
    %v1471 = vld [vmem:[#allocation11 + $0x3e8] sm:$0xff]
    %v1472 = vld [vmem:[#allocation11 + $0x3f0] sm:$0xff]
    %v1473 = vld [vmem:[#allocation11 + $0x3f8] sm:$0xff]
    %v1474 = vld [vmem:[#allocation11 + $0x400] sm:$0xff]
    %v1475 = vld [vmem:[#allocation11 + $0x408] sm:$0xff]
    %v1476 = vld [vmem:[#allocation11 + $0x410] sm:$0xff]
    %v1477 = vld [vmem:[#allocation11 + $0x418] sm:$0xff]
    %v1478 = vld [vmem:[#allocation11 + $0x420] sm:$0xff]
    %v1479 = vld [vmem:[#allocation11 + $0x428] sm:$0xff]
    %v1480 = vld [vmem:[#allocation11 + $0x430] sm:$0xff]
    %v1481 = vld [vmem:[#allocation11 + $0x438] sm:$0xff]
    %v1482 = vld [vmem:[#allocation11 + $0x440] sm:$0xff]
    %v1483 = vld [vmem:[#allocation11 + $0x448] sm:$0xff]
    %v1484 = vld [vmem:[#allocation11 + $0x450] sm:$0xff]
    %v1485 = vld [vmem:[#allocation11 + $0x458] sm:$0xff]
    %v1486 = vld [vmem:[#allocation11 + $0x460] sm:$0xff]
    %v1487 = vld [vmem:[#allocation11 + $0x468] sm:$0xff]
    %v1488 = vld [vmem:[#allocation11 + $0x470] sm:$0xff]
    %v1489 = vld [vmem:[#allocation11 + $0x478] sm:$0xff]
    %v1490 = vld [vmem:[#allocation11 + $0x480] sm:$0xff]
    %v1491 = vld [vmem:[#allocation11 + $0x488] sm:$0xff]
    %v1492 = vld [vmem:[#allocation11 + $0x490] sm:$0xff]
    %v1493 = vld [vmem:[#allocation11 + $0x498] sm:$0xff]
    %v1494 = vld [vmem:[#allocation11 + $0x4a0] sm:$0xff]
    %v1495 = vld [vmem:[#allocation11 + $0x4a8] sm:$0xff]
    %v1496 = vld [vmem:[#allocation11 + $0x4b0] sm:$0xff]
    %v1497 = vld [vmem:[#allocation11 + $0x4b8] sm:$0xff]
    %v1498 = vld [vmem:[#allocation11 + $0x4c0] sm:$0xff]
    %v1499 = vld [vmem:[#allocation11 + $0x4c8] sm:$0xff]
    %v1500 = vld [vmem:[#allocation11 + $0x4d0] sm:$0xff]
    %v1501 = vld [vmem:[#allocation11 + $0x4d8] sm:$0xff]
    %v1502 = vld [vmem:[#allocation11 + $0x4e0] sm:$0xff]
    %v1503 = vld [vmem:[#allocation11 + $0x4e8] sm:$0xff]
    %v1504 = vld [vmem:[#allocation11 + $0x4f0] sm:$0xff]
    %v1505 = vld [vmem:[#allocation11 + $0x4f8] sm:$0xff]
    %v1506 = vld [vmem:[#allocation11 + $0x500] sm:$0xff]
    %v1507 = vld [vmem:[#allocation11 + $0x508] sm:$0xff]
    %v1508 = vld [vmem:[#allocation11 + $0x510] sm:$0xff]
    %v1509 = vld [vmem:[#allocation11 + $0x518] sm:$0xff]
    %v1510 = vld [vmem:[#allocation11 + $0x520] sm:$0xff]
    %v1511 = vld [vmem:[#allocation11 + $0x528] sm:$0xff]
    %v1512 = vld [vmem:[#allocation11 + $0x530] sm:$0xff]
    %v1513 = vld [vmem:[#allocation11 + $0x538] sm:$0xff]
    %v1514 = vld [vmem:[#allocation11 + $0x540] sm:$0xff]
    %v1515 = vld [vmem:[#allocation11 + $0x548] sm:$0xff]
    %v1516 = vld [vmem:[#allocation11 + $0x550] sm:$0xff]
    %v1517 = vld [vmem:[#allocation11 + $0x558] sm:$0xff]
    %v1518 = vld [vmem:[#allocation11 + $0x560] sm:$0xff]
    %v1519 = vld [vmem:[#allocation11 + $0x568] sm:$0xff]
    %v1520 = vld [vmem:[#allocation11 + $0x570] sm:$0xff]
    %v1521 = vld [vmem:[#allocation11 + $0x578] sm:$0xff]
    %v1522 = vld [vmem:[#allocation11 + $0x580] sm:$0xff]
    %v1523 = vld [vmem:[#allocation11 + $0x588] sm:$0xff]
    %v1524 = vld [vmem:[#allocation11 + $0x590] sm:$0xff]
    %v1525 = vld [vmem:[#allocation11 + $0x598] sm:$0xff]
    %v1526 = vld [vmem:[#allocation11 + $0x5a0] sm:$0xff]
    %v1527 = vld [vmem:[#allocation11 + $0x5a8] sm:$0xff]
    %v1528 = vld [vmem:[#allocation11 + $0x5b0] sm:$0xff]
    %v1529 = vld [vmem:[#allocation11 + $0x5b8] sm:$0xff]
    %v1530 = vld [vmem:[#allocation11 + $0x5c0] sm:$0xff]
    %v1531 = vld [vmem:[#allocation11 + $0x5c8] sm:$0xff]
    %v1532 = vld [vmem:[#allocation11 + $0x5d0] sm:$0xff]
    %v1533 = vld [vmem:[#allocation11 + $0x5d8] sm:$0xff]
    %v1534 = vld [vmem:[#allocation11 + $0x5e0] sm:$0xff]
    %v1535 = vld [vmem:[#allocation11 + $0x5e8] sm:$0xff]
    %v1536 = vld [vmem:[#allocation11 + $0x5f0] sm:$0xff]
    %v1537 = vld [vmem:[#allocation11 + $0x5f8] sm:$0xff]
    %v1538 = vld [vmem:[#allocation11 + $0x600] sm:$0xff]
    %v1539 = vld [vmem:[#allocation11 + $0x608] sm:$0xff]
    %v1540 = vld [vmem:[#allocation11 + $0x610] sm:$0xff]
    %v1541 = vld [vmem:[#allocation11 + $0x618] sm:$0xff]
    %v1542 = vld [vmem:[#allocation11 + $0x620] sm:$0xff]
    %v1543 = vld [vmem:[#allocation11 + $0x628] sm:$0xff]
    %v1544 = vld [vmem:[#allocation11 + $0x630] sm:$0xff]
    %v1545 = vld [vmem:[#allocation11 + $0x638] sm:$0xff]
    %v1546 = vld [vmem:[#allocation11 + $0x640] sm:$0xff]
    %v1547 = vld [vmem:[#allocation11 + $0x648] sm:$0xff]
    %v1548 = vld [vmem:[#allocation11 + $0x650] sm:$0xff]
    %v1549 = vld [vmem:[#allocation11 + $0x658] sm:$0xff]
    %v1550 = vld [vmem:[#allocation11 + $0x660] sm:$0xff]
    %v1551 = vld [vmem:[#allocation11 + $0x668] sm:$0xff]
    %v1552 = vld [vmem:[#allocation11 + $0x670] sm:$0xff]
    %v1553 = vld [vmem:[#allocation11 + $0x678] sm:$0xff]
    %v1554 = vld [vmem:[#allocation11 + $0x680] sm:$0xff]
    %v1555 = vld [vmem:[#allocation11 + $0x688] sm:$0xff]
    %v1556 = vld [vmem:[#allocation11 + $0x690] sm:$0xff]
    %v1557 = vld [vmem:[#allocation11 + $0x698] sm:$0xff]
    %v1558 = vld [vmem:[#allocation11 + $0x6a0] sm:$0xff]
    %v1559 = vld [vmem:[#allocation11 + $0x6a8] sm:$0xff]
    %v1560 = vld [vmem:[#allocation11 + $0x6b0] sm:$0xff]
    %v1561 = vld [vmem:[#allocation11 + $0x6b8] sm:$0xff]
    %v1562 = vld [vmem:[#allocation11 + $0x6c0] sm:$0xff]
    %v1563 = vld [vmem:[#allocation11 + $0x6c8] sm:$0xff]
    %v1564 = vld [vmem:[#allocation11 + $0x6d0] sm:$0xff]
    %v1565 = vld [vmem:[#allocation11 + $0x6d8] sm:$0xff]
    %v1566 = vld [vmem:[#allocation11 + $0x6e0] sm:$0xff]
    %v1567 = vld [vmem:[#allocation11 + $0x6e8] sm:$0xff]
    %v1568 = vld [vmem:[#allocation11 + $0x6f0] sm:$0xff]
    %v1569 = vld [vmem:[#allocation11 + $0x6f8] sm:$0xff]
    %v1570 = vld [vmem:[#allocation11 + $0x700] sm:$0xff]
    %v1571 = vld [vmem:[#allocation11 + $0x708] sm:$0xff]
    %v1572 = vld [vmem:[#allocation11 + $0x710] sm:$0xff]
    %v1573 = vld [vmem:[#allocation11 + $0x718] sm:$0xff]
    %v1574 = vld [vmem:[#allocation11 + $0x720] sm:$0xff]
    %v1575 = vld [vmem:[#allocation11 + $0x728] sm:$0xff]
    %v1576 = vld [vmem:[#allocation11 + $0x730] sm:$0xff]
    %v1577 = vld [vmem:[#allocation11 + $0x738] sm:$0xff]
    %v1578 = vld [vmem:[#allocation11 + $0x740] sm:$0xff]
    %v1579 = vld [vmem:[#allocation11 + $0x748] sm:$0xff]
    %v1580 = vld [vmem:[#allocation11 + $0x750] sm:$0xff]
    %v1581 = vld [vmem:[#allocation11 + $0x758] sm:$0xff]
    %v1582 = vld [vmem:[#allocation11 + $0x760] sm:$0xff]
    %v1583 = vld [vmem:[#allocation11 + $0x768] sm:$0xff]
    %v1584 = vld [vmem:[#allocation11 + $0x770] sm:$0xff]
    %v1585 = vld [vmem:[#allocation11 + $0x778] sm:$0xff]
    %v1586 = vld [vmem:[#allocation11 + $0x780] sm:$0xff]
    %v1587 = vld [vmem:[#allocation11 + $0x788] sm:$0xff]
    %v1588 = vld [vmem:[#allocation11 + $0x790] sm:$0xff]
    %v1589 = vld [vmem:[#allocation11 + $0x798] sm:$0xff]
    %v1590 = vld [vmem:[#allocation11 + $0x7a0] sm:$0xff]
    %v1591 = vld [vmem:[#allocation11 + $0x7a8] sm:$0xff]
    %v1592 = vld [vmem:[#allocation11 + $0x7b0] sm:$0xff]
    %v1593 = vld [vmem:[#allocation11 + $0x7b8] sm:$0xff]
    %v1594 = vld [vmem:[#allocation11 + $0x7c0] sm:$0xff]
    %v1595 = vld [vmem:[#allocation11 + $0x7c8] sm:$0xff]
    %v1596 = vld [vmem:[#allocation11 + $0x7d0] sm:$0xff]
    %v1597 = vld [vmem:[#allocation11 + $0x7d8] sm:$0xff]
    %v1598 = vld [vmem:[#allocation11 + $0x7e0] sm:$0xff]
    %v1599 = vld [vmem:[#allocation11 + $0x7e8] sm:$0xff]
    %v1600 = vld [vmem:[#allocation11 + $0x7f0] sm:$0xff]
    %v1601 = vld [vmem:[#allocation11 + $0x7f8] sm:$0xff]
    %v1602 = vld [vmem:[#allocation11 + $0x800] sm:$0xff]
    %v1603 = vld [vmem:[#allocation11 + $0x808] sm:$0xff]
    %v1604 = vld [vmem:[#allocation11 + $0x810] sm:$0xff]
    %v1605 = vld [vmem:[#allocation11 + $0x818] sm:$0xff]
    %v1606 = vld [vmem:[#allocation11 + $0x820] sm:$0xff]
    %v1607 = vld [vmem:[#allocation11 + $0x828] sm:$0xff]
    %v1608 = vld [vmem:[#allocation11 + $0x830] sm:$0xff]
    %v1609 = vld [vmem:[#allocation11 + $0x838] sm:$0xff]
    %v1610 = vld [vmem:[#allocation11 + $0x840] sm:$0xff]
    %v1611 = vld [vmem:[#allocation11 + $0x848] sm:$0xff]
    %v1612 = vld [vmem:[#allocation11 + $0x850] sm:$0xff]
    %v1613 = vld [vmem:[#allocation11 + $0x858] sm:$0xff]
    %v1614 = vld [vmem:[#allocation11 + $0x860] sm:$0xff]
    %v1615 = vld [vmem:[#allocation11 + $0x868] sm:$0xff]
    %v1616 = vld [vmem:[#allocation11 + $0x870] sm:$0xff]
    %v1617 = vld [vmem:[#allocation11 + $0x878] sm:$0xff]
    %v1618 = vld [vmem:[#allocation11 + $0x880] sm:$0xff]
    %v1619 = vld [vmem:[#allocation11 + $0x888] sm:$0xff]
    %v1620 = vld [vmem:[#allocation11 + $0x890] sm:$0xff]
    %v1621 = vld [vmem:[#allocation11 + $0x898] sm:$0xff]
    %v1622 = vld [vmem:[#allocation11 + $0x8a0] sm:$0xff]
    %v1623 = vld [vmem:[#allocation11 + $0x8a8] sm:$0xff]
    %v1624 = vld [vmem:[#allocation11 + $0x8b0] sm:$0xff]
    %v1625 = vld [vmem:[#allocation11 + $0x8b8] sm:$0xff]
    %v1626 = vld [vmem:[#allocation11 + $0x8c0] sm:$0xff]
    %v1627 = vld [vmem:[#allocation11 + $0x8c8] sm:$0xff]
    %v1628 = vld [vmem:[#allocation11 + $0x8d0] sm:$0xff]
    %v1629 = vld [vmem:[#allocation11 + $0x8d8] sm:$0xff]
    %v1630 = vld [vmem:[#allocation11 + $0x8e0] sm:$0xff]
    %v1631 = vld [vmem:[#allocation11 + $0x8e8] sm:$0xff]
    %v1632 = vld [vmem:[#allocation11 + $0x8f0] sm:$0xff]
    %v1633 = vld [vmem:[#allocation11 + $0x8f8] sm:$0xff]
    %v1634 = vld [vmem:[#allocation11 + $0x900] sm:$0xff]
    %v1635 = vld [vmem:[#allocation11 + $0x908] sm:$0xff]
    %v1636 = vld [vmem:[#allocation11 + $0x910] sm:$0xff]
    %v1637 = vld [vmem:[#allocation11 + $0x918] sm:$0xff]
    %v1638 = vld [vmem:[#allocation11 + $0x920] sm:$0xff]
    %v1639 = vld [vmem:[#allocation11 + $0x928] sm:$0xff]
    %v1640 = vld [vmem:[#allocation11 + $0x930] sm:$0xff]
    %v1641 = vld [vmem:[#allocation11 + $0x938] sm:$0xff]
    %v1642 = vld [vmem:[#allocation11 + $0x940] sm:$0xff]
    %v1643 = vld [vmem:[#allocation11 + $0x948] sm:$0xff]
    %v1644 = vld [vmem:[#allocation11 + $0x950] sm:$0xff]
    %v1645 = vld [vmem:[#allocation11 + $0x958] sm:$0xff]
    %v1646 = vld [vmem:[#allocation11 + $0x960] sm:$0xff]
    %v1647 = vld [vmem:[#allocation11 + $0x968] sm:$0xff]
    %v1648 = vld [vmem:[#allocation11 + $0x970] sm:$0xff]
    %v1649 = vld [vmem:[#allocation11 + $0x978] sm:$0xff]
    %v1650 = vld [vmem:[#allocation11 + $0x980] sm:$0xff]
    %v1651 = vld [vmem:[#allocation11 + $0x988] sm:$0xff]
    %v1652 = vld [vmem:[#allocation11 + $0x990] sm:$0xff]
    %v1653 = vld [vmem:[#allocation11 + $0x998] sm:$0xff]
    %v1654 = vld [vmem:[#allocation11 + $0x9a0] sm:$0xff]
    %v1655 = vld [vmem:[#allocation11 + $0x9a8] sm:$0xff]
    %v1656 = vld [vmem:[#allocation11 + $0x9b0] sm:$0xff]
    %v1657 = vld [vmem:[#allocation11 + $0x9b8] sm:$0xff]
    %v1658 = vld [vmem:[#allocation11 + $0x9c0] sm:$0xff]
    %v1659 = vld [vmem:[#allocation11 + $0x9c8] sm:$0xff]
    %v1660 = vld [vmem:[#allocation11 + $0x9d0] sm:$0xff]
    %v1661 = vld [vmem:[#allocation11 + $0x9d8] sm:$0xff]
    %v1662 = vld [vmem:[#allocation11 + $0x9e0] sm:$0xff]
    %v1663 = vld [vmem:[#allocation11 + $0x9e8] sm:$0xff]
    %v1664 = vld [vmem:[#allocation11 + $0x9f0] sm:$0xff]
    %v1665 = vld [vmem:[#allocation11 + $0x9f8] sm:$0xff]
    %v1666 = vld [vmem:[#allocation11 + $0xa00] sm:$0xff]
    %v1667 = vld [vmem:[#allocation11 + $0xa08] sm:$0xff]
    %v1668 = vld [vmem:[#allocation11 + $0xa10] sm:$0xff]
    %v1669 = vld [vmem:[#allocation11 + $0xa18] sm:$0xff]
    %v1670 = vld [vmem:[#allocation11 + $0xa20] sm:$0xff]
    %v1671 = vld [vmem:[#allocation11 + $0xa28] sm:$0xff]
    %v1672 = vld [vmem:[#allocation11 + $0xa30] sm:$0xff]
    %v1673 = vld [vmem:[#allocation11 + $0xa38] sm:$0xff]
    %v1674 = vld [vmem:[#allocation11 + $0xa40] sm:$0xff]
    %v1675 = vld [vmem:[#allocation11 + $0xa48] sm:$0xff]
    %v1676 = vld [vmem:[#allocation11 + $0xa50] sm:$0xff]
    %v1677 = vld [vmem:[#allocation11 + $0xa58] sm:$0xff]
    %v1678 = vld [vmem:[#allocation11 + $0xa60] sm:$0xff]
    %v1679 = vld [vmem:[#allocation11 + $0xa68] sm:$0xff]
    %v1680 = vld [vmem:[#allocation11 + $0xa70] sm:$0xff]
    %v1681 = vld [vmem:[#allocation11 + $0xa78] sm:$0xff]
    %v1682 = vld [vmem:[#allocation11 + $0xa80] sm:$0xff]
    %v1683 = vld [vmem:[#allocation11 + $0xa88] sm:$0xff]
    %v1684 = vld [vmem:[#allocation11 + $0xa90] sm:$0xff]
    %v1685 = vld [vmem:[#allocation11 + $0xa98] sm:$0xff]
    %v1686 = vld [vmem:[#allocation11 + $0xaa0] sm:$0xff]
    %v1687 = vld [vmem:[#allocation11 + $0xaa8] sm:$0xff]
    %v1688 = vld [vmem:[#allocation11 + $0xab0] sm:$0xff]
    %v1689 = vld [vmem:[#allocation11 + $0xab8] sm:$0xff]
    %v1690 = vld [vmem:[#allocation11 + $0xac0] sm:$0xff]
    %v1691 = vld [vmem:[#allocation11 + $0xac8] sm:$0xff]
    %v1692 = vld [vmem:[#allocation11 + $0xad0] sm:$0xff]
    %v1693 = vld [vmem:[#allocation11 + $0xad8] sm:$0xff]
    %v1694 = vld [vmem:[#allocation11 + $0xae0] sm:$0xff]
    %v1695 = vld [vmem:[#allocation11 + $0xae8] sm:$0xff]
    %v1696 = vld [vmem:[#allocation11 + $0xaf0] sm:$0xff]
    %v1697 = vld [vmem:[#allocation11 + $0xaf8] sm:$0xff]
    %v1698 = vld [vmem:[#allocation11 + $0xb00] sm:$0xff]
    %v1699 = vld [vmem:[#allocation11 + $0xb08] sm:$0xff]
    %v1700 = vld [vmem:[#allocation11 + $0xb10] sm:$0xff]
    %v1701 = vld [vmem:[#allocation11 + $0xb18] sm:$0xff]
    %v1702 = vld [vmem:[#allocation11 + $0xb20] sm:$0xff]
    %v1703 = vld [vmem:[#allocation11 + $0xb28] sm:$0xff]
    %v1704 = vld [vmem:[#allocation11 + $0xb30] sm:$0xff]
    %v1705 = vld [vmem:[#allocation11 + $0xb38] sm:$0xff]
    %v1706 = vld [vmem:[#allocation11 + $0xb40] sm:$0xff]
    %v1707 = vld [vmem:[#allocation11 + $0xb48] sm:$0xff]
    %v1708 = vld [vmem:[#allocation11 + $0xb50] sm:$0xff]
    %v1709 = vld [vmem:[#allocation11 + $0xb58] sm:$0xff]
    %v1710 = vld [vmem:[#allocation11 + $0xb60] sm:$0xff]
    %v1711 = vld [vmem:[#allocation11 + $0xb68] sm:$0xff]
    %v1712 = vld [vmem:[#allocation11 + $0xb70] sm:$0xff]
    %v1713 = vld [vmem:[#allocation11 + $0xb78] sm:$0xff]
    %v1714 = vld [vmem:[#allocation11 + $0xb80] sm:$0xff]
    %v1715 = vld [vmem:[#allocation11 + $0xb88] sm:$0xff]
    %v1716 = vld [vmem:[#allocation11 + $0xb90] sm:$0xff]
    %v1717 = vld [vmem:[#allocation11 + $0xb98] sm:$0xff]
    %v1718 = vld [vmem:[#allocation11 + $0xba0] sm:$0xff]
    %v1719 = vld [vmem:[#allocation11 + $0xba8] sm:$0xff]
    %v1720 = vld [vmem:[#allocation11 + $0xbb0] sm:$0xff]
    %v1721 = vld [vmem:[#allocation11 + $0xbb8] sm:$0xff]
    %v1722 = vld [vmem:[#allocation11 + $0xbc0] sm:$0xff]
    %v1723 = vld [vmem:[#allocation11 + $0xbc8] sm:$0xff]
    %v1724 = vld [vmem:[#allocation11 + $0xbd0] sm:$0xff]
    %v1725 = vld [vmem:[#allocation11 + $0xbd8] sm:$0xff]
    %v1726 = vld [vmem:[#allocation11 + $0xbe0] sm:$0xff]
    %v1727 = vld [vmem:[#allocation11 + $0xbe8] sm:$0xff]
    %v1728 = vld [vmem:[#allocation11 + $0xbf0] sm:$0xff]
    %v1729 = vld [vmem:[#allocation11 + $0xbf8] sm:$0xff]
    %v1730 = vld [vmem:[#allocation11 + $0xc00] sm:$0xff]
    %v1731 = vld [vmem:[#allocation11 + $0xc08] sm:$0xff]
    %v1732 = vld [vmem:[#allocation11 + $0xc10] sm:$0xff]
    %v1733 = vld [vmem:[#allocation11 + $0xc18] sm:$0xff]
    %v1734 = vld [vmem:[#allocation11 + $0xc20] sm:$0xff]
    %v1735 = vld [vmem:[#allocation11 + $0xc28] sm:$0xff]
    %v1736 = vld [vmem:[#allocation11 + $0xc30] sm:$0xff]
    %v1737 = vld [vmem:[#allocation11 + $0xc38] sm:$0xff]
    %v1738 = vld [vmem:[#allocation11 + $0xc40] sm:$0xff]
    %v1739 = vld [vmem:[#allocation11 + $0xc48] sm:$0xff]
    %v1740 = vld [vmem:[#allocation11 + $0xc50] sm:$0xff]
    %v1741 = vld [vmem:[#allocation11 + $0xc58] sm:$0xff]
    %v1742 = vld [vmem:[#allocation11 + $0xc60] sm:$0xff]
    %v1743 = vld [vmem:[#allocation11 + $0xc68] sm:$0xff]
    %v1744 = vld [vmem:[#allocation11 + $0xc70] sm:$0xff]
    %v1745 = vld [vmem:[#allocation11 + $0xc78] sm:$0xff]
    %v1746 = vld [vmem:[#allocation11 + $0xc80] sm:$0xff]
    %v1747 = vld [vmem:[#allocation11 + $0xc88] sm:$0xff]
    %v1748 = vld [vmem:[#allocation11 + $0xc90] sm:$0xff]
    %v1749 = vld [vmem:[#allocation11 + $0xc98] sm:$0xff]
    %v1750 = vld [vmem:[#allocation11 + $0xca0] sm:$0xff]
    %v1751 = vld [vmem:[#allocation11 + $0xca8] sm:$0xff]
    %v1752 = vld [vmem:[#allocation11 + $0xcb0] sm:$0xff]
    %v1753 = vld [vmem:[#allocation11 + $0xcb8] sm:$0xff]
    %v1754 = vld [vmem:[#allocation11 + $0xcc0] sm:$0xff]
    %v1755 = vld [vmem:[#allocation11 + $0xcc8] sm:$0xff]
    %v1756 = vld [vmem:[#allocation11 + $0xcd0] sm:$0xff]
    %v1757 = vld [vmem:[#allocation11 + $0xcd8] sm:$0xff]
    %v1758 = vld [vmem:[#allocation11 + $0xce0] sm:$0xff]
    %v1759 = vld [vmem:[#allocation11 + $0xce8] sm:$0xff]
    %v1760 = vld [vmem:[#allocation11 + $0xcf0] sm:$0xff]
    %v1761 = vld [vmem:[#allocation11 + $0xcf8] sm:$0xff]
    %v1762 = vld [vmem:[#allocation11 + $0xd00] sm:$0xff]
    %v1763 = vld [vmem:[#allocation11 + $0xd08] sm:$0xff]
    %v1764 = vld [vmem:[#allocation11 + $0xd10] sm:$0xff]
    %v1765 = vld [vmem:[#allocation11 + $0xd18] sm:$0xff]
    %v1766 = vld [vmem:[#allocation11 + $0xd20] sm:$0xff]
    %v1767 = vld [vmem:[#allocation11 + $0xd28] sm:$0xff]
    %v1768 = vld [vmem:[#allocation11 + $0xd30] sm:$0xff]
    %v1769 = vld [vmem:[#allocation11 + $0xd38] sm:$0xff]
    %v1770 = vld [vmem:[#allocation11 + $0xd40] sm:$0xff]
    %v1771 = vld [vmem:[#allocation11 + $0xd48] sm:$0xff]
    %v1772 = vld [vmem:[#allocation11 + $0xd50] sm:$0xff]
    %v1773 = vld [vmem:[#allocation11 + $0xd58] sm:$0xff]
    %v1774 = vld [vmem:[#allocation11 + $0xd60] sm:$0xff]
    %v1775 = vld [vmem:[#allocation11 + $0xd68] sm:$0xff]
    %v1776 = vld [vmem:[#allocation11 + $0xd70] sm:$0xff]
    %v1777 = vld [vmem:[#allocation11 + $0xd78] sm:$0xff]
    %v1778 = vld [vmem:[#allocation11 + $0xd80] sm:$0xff]
    %v1779 = vld [vmem:[#allocation11 + $0xd88] sm:$0xff]
    %v1780 = vld [vmem:[#allocation11 + $0xd90] sm:$0xff]
    %v1781 = vld [vmem:[#allocation11 + $0xd98] sm:$0xff]
    %v1782 = vld [vmem:[#allocation11 + $0xda0] sm:$0xff]
    %v1783 = vld [vmem:[#allocation11 + $0xda8] sm:$0xff]
    %v1784 = vld [vmem:[#allocation11 + $0xdb0] sm:$0xff]
    %v1785 = vld [vmem:[#allocation11 + $0xdb8] sm:$0xff]
    %v1786 = vld [vmem:[#allocation11 + $0xdc0] sm:$0xff]
    %v1787 = vld [vmem:[#allocation11 + $0xdc8] sm:$0xff]
    %v1788 = vld [vmem:[#allocation11 + $0xdd0] sm:$0xff]
    %v1789 = vld [vmem:[#allocation11 + $0xdd8] sm:$0xff]
    %v1790 = vld [vmem:[#allocation11 + $0xde0] sm:$0xff]
    %v1791 = vld [vmem:[#allocation11 + $0xde8] sm:$0xff]
    %v1792 = vld [vmem:[#allocation11 + $0xdf0] sm:$0xff]
    %v1793 = vld [vmem:[#allocation11 + $0xdf8] sm:$0xff]
    %v1794 = vld [vmem:[#allocation11 + $0xe00] sm:$0xff]
    %v1795 = vld [vmem:[#allocation11 + $0xe08] sm:$0xff]
    %v1796 = vld [vmem:[#allocation11 + $0xe10] sm:$0xff]
    %v1797 = vld [vmem:[#allocation11 + $0xe18] sm:$0xff]
    %v1798 = vld [vmem:[#allocation11 + $0xe20] sm:$0xff]
    %v1799 = vld [vmem:[#allocation11 + $0xe28] sm:$0xff]
    %v1800 = vld [vmem:[#allocation11 + $0xe30] sm:$0xff]
    %v1801 = vld [vmem:[#allocation11 + $0xe38] sm:$0xff]
    %v1802 = vld [vmem:[#allocation11 + $0xe40] sm:$0xff]
    %v1803 = vld [vmem:[#allocation11 + $0xe48] sm:$0xff]
    %v1804 = vld [vmem:[#allocation11 + $0xe50] sm:$0xff]
    %v1805 = vld [vmem:[#allocation11 + $0xe58] sm:$0xff]
    %v1806 = vld [vmem:[#allocation11 + $0xe60] sm:$0xff]
    %v1807 = vld [vmem:[#allocation11 + $0xe68] sm:$0xff]
    %v1808 = vld [vmem:[#allocation11 + $0xe70] sm:$0xff]
    %v1809 = vld [vmem:[#allocation11 + $0xe78] sm:$0xff]
    %v1810 = vld [vmem:[#allocation11 + $0xe80] sm:$0xff]
    %v1811 = vld [vmem:[#allocation11 + $0xe88] sm:$0xff]
    %v1812 = vld [vmem:[#allocation11 + $0xe90] sm:$0xff]
    %v1813 = vld [vmem:[#allocation11 + $0xe98] sm:$0xff]
    %v1814 = vld [vmem:[#allocation11 + $0xea0] sm:$0xff]
    %v1815 = vld [vmem:[#allocation11 + $0xea8] sm:$0xff]
    %v1816 = vld [vmem:[#allocation11 + $0xeb0] sm:$0xff]
    %v1817 = vld [vmem:[#allocation11 + $0xeb8] sm:$0xff]
    %v1818 = vld [vmem:[#allocation11 + $0xec0] sm:$0xff]
    %v1819 = vld [vmem:[#allocation11 + $0xec8] sm:$0xff]
    %v1820 = vld [vmem:[#allocation11 + $0xed0] sm:$0xff]
    %v1821 = vld [vmem:[#allocation11 + $0xed8] sm:$0xff]
    %v1822 = vld [vmem:[#allocation11 + $0xee0] sm:$0xff]
    %v1823 = vld [vmem:[#allocation11 + $0xee8] sm:$0xff]
    %v1824 = vld [vmem:[#allocation11 + $0xef0] sm:$0xff]
    %v1825 = vld [vmem:[#allocation11 + $0xef8] sm:$0xff]
    %v1826 = vld [vmem:[#allocation11 + $0xf00] sm:$0xff]
    %v1827 = vld [vmem:[#allocation11 + $0xf08] sm:$0xff]
    %v1828 = vld [vmem:[#allocation11 + $0xf10] sm:$0xff]
    %v1829 = vld [vmem:[#allocation11 + $0xf18] sm:$0xff]
    %v1830 = vld [vmem:[#allocation11 + $0xf20] sm:$0xff]
    %v1831 = vld [vmem:[#allocation11 + $0xf28] sm:$0xff]
    %v1832 = vld [vmem:[#allocation11 + $0xf30] sm:$0xff]
    %v1833 = vld [vmem:[#allocation11 + $0xf38] sm:$0xff]
    %v1834 = vld [vmem:[#allocation11 + $0xf40] sm:$0xff]
    %v1835 = vld [vmem:[#allocation11 + $0xf48] sm:$0xff]
    %v1836 = vld [vmem:[#allocation11 + $0xf50] sm:$0xff]
    %v1837 = vld [vmem:[#allocation11 + $0xf58] sm:$0xff]
    %v1838 = vld [vmem:[#allocation11 + $0xf60] sm:$0xff]
    %v1839 = vld [vmem:[#allocation11 + $0xf68] sm:$0xff]
    %v1840 = vld [vmem:[#allocation11 + $0xf70] sm:$0xff]
    %v1841 = vld [vmem:[#allocation11 + $0xf78] sm:$0xff]
    %v1842 = vld [vmem:[#allocation11 + $0xf80] sm:$0xff]
    %v1843 = vld [vmem:[#allocation11 + $0xf88] sm:$0xff]
    %v1844 = vld [vmem:[#allocation11 + $0xf90] sm:$0xff]
    %v1845 = vld [vmem:[#allocation11 + $0xf98] sm:$0xff]
    %v1846 = vld [vmem:[#allocation11 + $0xfa0] sm:$0xff]
    %v1847 = vld [vmem:[#allocation11 + $0xfa8] sm:$0xff]
    %v1848 = vld [vmem:[#allocation11 + $0xfb0] sm:$0xff]
    %v1849 = vld [vmem:[#allocation11 + $0xfb8] sm:$0xff]
    %v1850 = vld [vmem:[#allocation11 + $0xfc0] sm:$0xff]
    %v1851 = vld [vmem:[#allocation11 + $0xfc8] sm:$0xff]
    %v1852 = vld [vmem:[#allocation11 + $0xfd0] sm:$0xff]
    %v1853 = vld [vmem:[#allocation11 + $0xfd8] sm:$0xff]
    %v1854 = vld [vmem:[#allocation11 + $0xfe0] sm:$0xff]
    %v1855 = vld [vmem:[#allocation11 + $0xfe8] sm:$0xff]
    %v1856 = vld [vmem:[#allocation11 + $0xff0] sm:$0xff]
    %v1857 = vld [vmem:[#allocation11 + $0xff8] sm:$0xff]
    %v2370 = vunpack.c.l.b16 %v1346
    %v2371 = vunpack.c.h.b16 %v1346
    %v2372 = vunpack.c.l.b16 %v1347
    %v2373 = vunpack.c.h.b16 %v1347
    %v2374 = vunpack.c.l.b16 %v1348
    %v2375 = vunpack.c.h.b16 %v1348
    %v2376 = vunpack.c.l.b16 %v1349
    %v2377 = vunpack.c.h.b16 %v1349
    %v2378 = vunpack.c.l.b16 %v1350
    %v2379 = vunpack.c.h.b16 %v1350
    %v2380 = vunpack.c.l.b16 %v1351
    %v2381 = vunpack.c.h.b16 %v1351
    %v2382 = vunpack.c.l.b16 %v1352
    %v2383 = vunpack.c.h.b16 %v1352
    %v2384 = vunpack.c.l.b16 %v1353
    %v2385 = vunpack.c.h.b16 %v1353
    %v2386 = vunpack.c.l.b16 %v1354
    %v2387 = vunpack.c.h.b16 %v1354
    %v2388 = vunpack.c.l.b16 %v1355
    %v2389 = vunpack.c.h.b16 %v1355
    %v2390 = vunpack.c.l.b16 %v1356
    %v2391 = vunpack.c.h.b16 %v1356
    %v2392 = vunpack.c.l.b16 %v1357
    %v2393 = vunpack.c.h.b16 %v1357
    %v2394 = vunpack.c.l.b16 %v1358
    %v2395 = vunpack.c.h.b16 %v1358
    %v2396 = vunpack.c.l.b16 %v1359
    %v2397 = vunpack.c.h.b16 %v1359
    %v2398 = vunpack.c.l.b16 %v1360
    %v2399 = vunpack.c.h.b16 %v1360
    %v2400 = vunpack.c.l.b16 %v1361
    %v2401 = vunpack.c.h.b16 %v1361
    %v2402 = vunpack.c.l.b16 %v1362
    %v2403 = vunpack.c.h.b16 %v1362
    %v2404 = vunpack.c.l.b16 %v1363
    %v2405 = vunpack.c.h.b16 %v1363
    %v2406 = vunpack.c.l.b16 %v1364
    %v2407 = vunpack.c.h.b16 %v1364
    %v2408 = vunpack.c.l.b16 %v1365
    %v2409 = vunpack.c.h.b16 %v1365
    %v2410 = vunpack.c.l.b16 %v1366
    %v2411 = vunpack.c.h.b16 %v1366
    %v2412 = vunpack.c.l.b16 %v1367
    %v2413 = vunpack.c.h.b16 %v1367
    %v2414 = vunpack.c.l.b16 %v1368
    %v2415 = vunpack.c.h.b16 %v1368
    %v2416 = vunpack.c.l.b16 %v1369
    %v2417 = vunpack.c.h.b16 %v1369
    %v2418 = vunpack.c.l.b16 %v1370
    %v2419 = vunpack.c.h.b16 %v1370
    %v2420 = vunpack.c.l.b16 %v1371
    %v2421 = vunpack.c.h.b16 %v1371
    %v2422 = vunpack.c.l.b16 %v1372
    %v2423 = vunpack.c.h.b16 %v1372
    %v2424 = vunpack.c.l.b16 %v1373
    %v2425 = vunpack.c.h.b16 %v1373
    %v2426 = vunpack.c.l.b16 %v1374
    %v2427 = vunpack.c.h.b16 %v1374
    %v2428 = vunpack.c.l.b16 %v1375
    %v2429 = vunpack.c.h.b16 %v1375
    %v2430 = vunpack.c.l.b16 %v1376
    %v2431 = vunpack.c.h.b16 %v1376
    %v2432 = vunpack.c.l.b16 %v1377
    %v2433 = vunpack.c.h.b16 %v1377
    %v2434 = vunpack.c.l.b16 %v1378
    %v2435 = vunpack.c.h.b16 %v1378
    %v2436 = vunpack.c.l.b16 %v1379
    %v2437 = vunpack.c.h.b16 %v1379
    %v2438 = vunpack.c.l.b16 %v1380
    %v2439 = vunpack.c.h.b16 %v1380
    %v2440 = vunpack.c.l.b16 %v1381
    %v2441 = vunpack.c.h.b16 %v1381
    %v2442 = vunpack.c.l.b16 %v1382
    %v2443 = vunpack.c.h.b16 %v1382
    %v2444 = vunpack.c.l.b16 %v1383
    %v2445 = vunpack.c.h.b16 %v1383
    %v2446 = vunpack.c.l.b16 %v1384
    %v2447 = vunpack.c.h.b16 %v1384
    %v2448 = vunpack.c.l.b16 %v1385
    %v2449 = vunpack.c.h.b16 %v1385
    %v2450 = vunpack.c.l.b16 %v1386
    %v2451 = vunpack.c.h.b16 %v1386
    %v2452 = vunpack.c.l.b16 %v1387
    %v2453 = vunpack.c.h.b16 %v1387
    %v2454 = vunpack.c.l.b16 %v1388
    %v2455 = vunpack.c.h.b16 %v1388
    %v2456 = vunpack.c.l.b16 %v1389
    %v2457 = vunpack.c.h.b16 %v1389
    %v2458 = vunpack.c.l.b16 %v1390
    %v2459 = vunpack.c.h.b16 %v1390
    %v2460 = vunpack.c.l.b16 %v1391
    %v2461 = vunpack.c.h.b16 %v1391
    %v2462 = vunpack.c.l.b16 %v1392
    %v2463 = vunpack.c.h.b16 %v1392
    %v2464 = vunpack.c.l.b16 %v1393
    %v2465 = vunpack.c.h.b16 %v1393
    %v2466 = vunpack.c.l.b16 %v1394
    %v2467 = vunpack.c.h.b16 %v1394
    %v2468 = vunpack.c.l.b16 %v1395
    %v2469 = vunpack.c.h.b16 %v1395
    %v2470 = vunpack.c.l.b16 %v1396
    %v2471 = vunpack.c.h.b16 %v1396
    %v2472 = vunpack.c.l.b16 %v1397
    %v2473 = vunpack.c.h.b16 %v1397
    %v2474 = vunpack.c.l.b16 %v1398
    %v2475 = vunpack.c.h.b16 %v1398
    %v2476 = vunpack.c.l.b16 %v1399
    %v2477 = vunpack.c.h.b16 %v1399
    %v2478 = vunpack.c.l.b16 %v1400
    %v2479 = vunpack.c.h.b16 %v1400
    %v2480 = vunpack.c.l.b16 %v1401
    %v2481 = vunpack.c.h.b16 %v1401
    %v2482 = vunpack.c.l.b16 %v1402
    %v2483 = vunpack.c.h.b16 %v1402
    %v2484 = vunpack.c.l.b16 %v1403
    %v2485 = vunpack.c.h.b16 %v1403
    %v2486 = vunpack.c.l.b16 %v1404
    %v2487 = vunpack.c.h.b16 %v1404
    %v2488 = vunpack.c.l.b16 %v1405
    %v2489 = vunpack.c.h.b16 %v1405
    %v2490 = vunpack.c.l.b16 %v1406
    %v2491 = vunpack.c.h.b16 %v1406
    %v2492 = vunpack.c.l.b16 %v1407
    %v2493 = vunpack.c.h.b16 %v1407
    %v2494 = vunpack.c.l.b16 %v1408
    %v2495 = vunpack.c.h.b16 %v1408
    %v2496 = vunpack.c.l.b16 %v1409
    %v2497 = vunpack.c.h.b16 %v1409
    %v2498 = vunpack.c.l.b16 %v1410
    %v2499 = vunpack.c.h.b16 %v1410
    %v2500 = vunpack.c.l.b16 %v1411
    %v2501 = vunpack.c.h.b16 %v1411
    %v2502 = vunpack.c.l.b16 %v1412
    %v2503 = vunpack.c.h.b16 %v1412
    %v2504 = vunpack.c.l.b16 %v1413
    %v2505 = vunpack.c.h.b16 %v1413
    %v2506 = vunpack.c.l.b16 %v1414
    %v2507 = vunpack.c.h.b16 %v1414
    %v2508 = vunpack.c.l.b16 %v1415
    %v2509 = vunpack.c.h.b16 %v1415
    %v2510 = vunpack.c.l.b16 %v1416
    %v2511 = vunpack.c.h.b16 %v1416
    %v2512 = vunpack.c.l.b16 %v1417
    %v2513 = vunpack.c.h.b16 %v1417
    %v2514 = vunpack.c.l.b16 %v1418
    %v2515 = vunpack.c.h.b16 %v1418
    %v2516 = vunpack.c.l.b16 %v1419
    %v2517 = vunpack.c.h.b16 %v1419
    %v2518 = vunpack.c.l.b16 %v1420
    %v2519 = vunpack.c.h.b16 %v1420
    %v2520 = vunpack.c.l.b16 %v1421
    %v2521 = vunpack.c.h.b16 %v1421
    %v2522 = vunpack.c.l.b16 %v1422
    %v2523 = vunpack.c.h.b16 %v1422
    %v2524 = vunpack.c.l.b16 %v1423
    %v2525 = vunpack.c.h.b16 %v1423
    %v2526 = vunpack.c.l.b16 %v1424
    %v2527 = vunpack.c.h.b16 %v1424
    %v2528 = vunpack.c.l.b16 %v1425
    %v2529 = vunpack.c.h.b16 %v1425
    %v2530 = vunpack.c.l.b16 %v1426
    %v2531 = vunpack.c.h.b16 %v1426
    %v2532 = vunpack.c.l.b16 %v1427
    %v2533 = vunpack.c.h.b16 %v1427
    %v2534 = vunpack.c.l.b16 %v1428
    %v2535 = vunpack.c.h.b16 %v1428
    %v2536 = vunpack.c.l.b16 %v1429
    %v2537 = vunpack.c.h.b16 %v1429
    %v2538 = vunpack.c.l.b16 %v1430
    %v2539 = vunpack.c.h.b16 %v1430
    %v2540 = vunpack.c.l.b16 %v1431
    %v2541 = vunpack.c.h.b16 %v1431
    %v2542 = vunpack.c.l.b16 %v1432
    %v2543 = vunpack.c.h.b16 %v1432
    %v2544 = vunpack.c.l.b16 %v1433
    %v2545 = vunpack.c.h.b16 %v1433
    %v2546 = vunpack.c.l.b16 %v1434
    %v2547 = vunpack.c.h.b16 %v1434
    %v2548 = vunpack.c.l.b16 %v1435
    %v2549 = vunpack.c.h.b16 %v1435
    %v2550 = vunpack.c.l.b16 %v1436
    %v2551 = vunpack.c.h.b16 %v1436
    %v2552 = vunpack.c.l.b16 %v1437
    %v2553 = vunpack.c.h.b16 %v1437
    %v2554 = vunpack.c.l.b16 %v1438
    %v2555 = vunpack.c.h.b16 %v1438
    %v2556 = vunpack.c.l.b16 %v1439
    %v2557 = vunpack.c.h.b16 %v1439
    %v2558 = vunpack.c.l.b16 %v1440
    %v2559 = vunpack.c.h.b16 %v1440
    %v2560 = vunpack.c.l.b16 %v1441
    %v2561 = vunpack.c.h.b16 %v1441
    %v2562 = vunpack.c.l.b16 %v1442
    %v2563 = vunpack.c.h.b16 %v1442
    %v2564 = vunpack.c.l.b16 %v1443
    %v2565 = vunpack.c.h.b16 %v1443
    %v2566 = vunpack.c.l.b16 %v1444
    %v2567 = vunpack.c.h.b16 %v1444
    %v2568 = vunpack.c.l.b16 %v1445
    %v2569 = vunpack.c.h.b16 %v1445
    %v2570 = vunpack.c.l.b16 %v1446
    %v2571 = vunpack.c.h.b16 %v1446
    %v2572 = vunpack.c.l.b16 %v1447
    %v2573 = vunpack.c.h.b16 %v1447
    %v2574 = vunpack.c.l.b16 %v1448
    %v2575 = vunpack.c.h.b16 %v1448
    %v2576 = vunpack.c.l.b16 %v1449
    %v2577 = vunpack.c.h.b16 %v1449
    %v2578 = vunpack.c.l.b16 %v1450
    %v2579 = vunpack.c.h.b16 %v1450
    %v2580 = vunpack.c.l.b16 %v1451
    %v2581 = vunpack.c.h.b16 %v1451
    %v2582 = vunpack.c.l.b16 %v1452
    %v2583 = vunpack.c.h.b16 %v1452
    %v2584 = vunpack.c.l.b16 %v1453
    %v2585 = vunpack.c.h.b16 %v1453
    %v2586 = vunpack.c.l.b16 %v1454
    %v2587 = vunpack.c.h.b16 %v1454
    %v2588 = vunpack.c.l.b16 %v1455
    %v2589 = vunpack.c.h.b16 %v1455
    %v2590 = vunpack.c.l.b16 %v1456
    %v2591 = vunpack.c.h.b16 %v1456
    %v2592 = vunpack.c.l.b16 %v1457
    %v2593 = vunpack.c.h.b16 %v1457
    %v2594 = vunpack.c.l.b16 %v1458
    %v2595 = vunpack.c.h.b16 %v1458
    %v2596 = vunpack.c.l.b16 %v1459
    %v2597 = vunpack.c.h.b16 %v1459
    %v2598 = vunpack.c.l.b16 %v1460
    %v2599 = vunpack.c.h.b16 %v1460
    %v2600 = vunpack.c.l.b16 %v1461
    %v2601 = vunpack.c.h.b16 %v1461
    %v2602 = vunpack.c.l.b16 %v1462
    %v2603 = vunpack.c.h.b16 %v1462
    %v2604 = vunpack.c.l.b16 %v1463
    %v2605 = vunpack.c.h.b16 %v1463
    %v2606 = vunpack.c.l.b16 %v1464
    %v2607 = vunpack.c.h.b16 %v1464
    %v2608 = vunpack.c.l.b16 %v1465
    %v2609 = vunpack.c.h.b16 %v1465
    %v2610 = vunpack.c.l.b16 %v1466
    %v2611 = vunpack.c.h.b16 %v1466
    %v2612 = vunpack.c.l.b16 %v1467
    %v2613 = vunpack.c.h.b16 %v1467
    %v2614 = vunpack.c.l.b16 %v1468
    %v2615 = vunpack.c.h.b16 %v1468
    %v2616 = vunpack.c.l.b16 %v1469
    %v2617 = vunpack.c.h.b16 %v1469
    %v2618 = vunpack.c.l.b16 %v1470
    %v2619 = vunpack.c.h.b16 %v1470
    %v2620 = vunpack.c.l.b16 %v1471
    %v2621 = vunpack.c.h.b16 %v1471
    %v2622 = vunpack.c.l.b16 %v1472
    %v2623 = vunpack.c.h.b16 %v1472
    %v2624 = vunpack.c.l.b16 %v1473
    %v2625 = vunpack.c.h.b16 %v1473
    %v2626 = vunpack.c.l.b16 %v1474
    %v2627 = vunpack.c.h.b16 %v1474
    %v2628 = vunpack.c.l.b16 %v1475
    %v2629 = vunpack.c.h.b16 %v1475
    %v2630 = vunpack.c.l.b16 %v1476
    %v2631 = vunpack.c.h.b16 %v1476
    %v2632 = vunpack.c.l.b16 %v1477
    %v2633 = vunpack.c.h.b16 %v1477
    %v2634 = vunpack.c.l.b16 %v1478
    %v2635 = vunpack.c.h.b16 %v1478
    %v2636 = vunpack.c.l.b16 %v1479
    %v2637 = vunpack.c.h.b16 %v1479
    %v2638 = vunpack.c.l.b16 %v1480
    %v2639 = vunpack.c.h.b16 %v1480
    %v2640 = vunpack.c.l.b16 %v1481
    %v2641 = vunpack.c.h.b16 %v1481
    %v2642 = vunpack.c.l.b16 %v1482
    %v2643 = vunpack.c.h.b16 %v1482
    %v2644 = vunpack.c.l.b16 %v1483
    %v2645 = vunpack.c.h.b16 %v1483
    %v2646 = vunpack.c.l.b16 %v1484
    %v2647 = vunpack.c.h.b16 %v1484
    %v2648 = vunpack.c.l.b16 %v1485
    %v2649 = vunpack.c.h.b16 %v1485
    %v2650 = vunpack.c.l.b16 %v1486
    %v2651 = vunpack.c.h.b16 %v1486
    %v2652 = vunpack.c.l.b16 %v1487
    %v2653 = vunpack.c.h.b16 %v1487
    %v2654 = vunpack.c.l.b16 %v1488
    %v2655 = vunpack.c.h.b16 %v1488
    %v2656 = vunpack.c.l.b16 %v1489
    %v2657 = vunpack.c.h.b16 %v1489
    %v2658 = vunpack.c.l.b16 %v1490
    %v2659 = vunpack.c.h.b16 %v1490
    %v2660 = vunpack.c.l.b16 %v1491
    %v2661 = vunpack.c.h.b16 %v1491
    %v2662 = vunpack.c.l.b16 %v1492
    %v2663 = vunpack.c.h.b16 %v1492
    %v2664 = vunpack.c.l.b16 %v1493
    %v2665 = vunpack.c.h.b16 %v1493
    %v2666 = vunpack.c.l.b16 %v1494
    %v2667 = vunpack.c.h.b16 %v1494
    %v2668 = vunpack.c.l.b16 %v1495
    %v2669 = vunpack.c.h.b16 %v1495
    %v2670 = vunpack.c.l.b16 %v1496
    %v2671 = vunpack.c.h.b16 %v1496
    %v2672 = vunpack.c.l.b16 %v1497
    %v2673 = vunpack.c.h.b16 %v1497
    %v2674 = vunpack.c.l.b16 %v1498
    %v2675 = vunpack.c.h.b16 %v1498
    %v2676 = vunpack.c.l.b16 %v1499
    %v2677 = vunpack.c.h.b16 %v1499
    %v2678 = vunpack.c.l.b16 %v1500
    %v2679 = vunpack.c.h.b16 %v1500
    %v2680 = vunpack.c.l.b16 %v1501
    %v2681 = vunpack.c.h.b16 %v1501
    %v2682 = vunpack.c.l.b16 %v1502
    %v2683 = vunpack.c.h.b16 %v1502
    %v2684 = vunpack.c.l.b16 %v1503
    %v2685 = vunpack.c.h.b16 %v1503
    %v2686 = vunpack.c.l.b16 %v1504
    %v2687 = vunpack.c.h.b16 %v1504
    %v2688 = vunpack.c.l.b16 %v1505
    %v2689 = vunpack.c.h.b16 %v1505
    %v2690 = vunpack.c.l.b16 %v1506
    %v2691 = vunpack.c.h.b16 %v1506
    %v2692 = vunpack.c.l.b16 %v1507
    %v2693 = vunpack.c.h.b16 %v1507
    %v2694 = vunpack.c.l.b16 %v1508
    %v2695 = vunpack.c.h.b16 %v1508
    %v2696 = vunpack.c.l.b16 %v1509
    %v2697 = vunpack.c.h.b16 %v1509
    %v2698 = vunpack.c.l.b16 %v1510
    %v2699 = vunpack.c.h.b16 %v1510
    %v2700 = vunpack.c.l.b16 %v1511
    %v2701 = vunpack.c.h.b16 %v1511
    %v2702 = vunpack.c.l.b16 %v1512
    %v2703 = vunpack.c.h.b16 %v1512
    %v2704 = vunpack.c.l.b16 %v1513
    %v2705 = vunpack.c.h.b16 %v1513
    %v2706 = vunpack.c.l.b16 %v1514
    %v2707 = vunpack.c.h.b16 %v1514
    %v2708 = vunpack.c.l.b16 %v1515
    %v2709 = vunpack.c.h.b16 %v1515
    %v2710 = vunpack.c.l.b16 %v1516
    %v2711 = vunpack.c.h.b16 %v1516
    %v2712 = vunpack.c.l.b16 %v1517
    %v2713 = vunpack.c.h.b16 %v1517
    %v2714 = vunpack.c.l.b16 %v1518
    %v2715 = vunpack.c.h.b16 %v1518
    %v2716 = vunpack.c.l.b16 %v1519
    %v2717 = vunpack.c.h.b16 %v1519
    %v2718 = vunpack.c.l.b16 %v1520
    %v2719 = vunpack.c.h.b16 %v1520
    %v2720 = vunpack.c.l.b16 %v1521
    %v2721 = vunpack.c.h.b16 %v1521
    %v2722 = vunpack.c.l.b16 %v1522
    %v2723 = vunpack.c.h.b16 %v1522
    %v2724 = vunpack.c.l.b16 %v1523
    %v2725 = vunpack.c.h.b16 %v1523
    %v2726 = vunpack.c.l.b16 %v1524
    %v2727 = vunpack.c.h.b16 %v1524
    %v2728 = vunpack.c.l.b16 %v1525
    %v2729 = vunpack.c.h.b16 %v1525
    %v2730 = vunpack.c.l.b16 %v1526
    %v2731 = vunpack.c.h.b16 %v1526
    %v2732 = vunpack.c.l.b16 %v1527
    %v2733 = vunpack.c.h.b16 %v1527
    %v2734 = vunpack.c.l.b16 %v1528
    %v2735 = vunpack.c.h.b16 %v1528
    %v2736 = vunpack.c.l.b16 %v1529
    %v2737 = vunpack.c.h.b16 %v1529
    %v2738 = vunpack.c.l.b16 %v1530
    %v2739 = vunpack.c.h.b16 %v1530
    %v2740 = vunpack.c.l.b16 %v1531
    %v2741 = vunpack.c.h.b16 %v1531
    %v2742 = vunpack.c.l.b16 %v1532
    %v2743 = vunpack.c.h.b16 %v1532
    %v2744 = vunpack.c.l.b16 %v1533
    %v2745 = vunpack.c.h.b16 %v1533
    %v2746 = vunpack.c.l.b16 %v1534
    %v2747 = vunpack.c.h.b16 %v1534
    %v2748 = vunpack.c.l.b16 %v1535
    %v2749 = vunpack.c.h.b16 %v1535
    %v2750 = vunpack.c.l.b16 %v1536
    %v2751 = vunpack.c.h.b16 %v1536
    %v2752 = vunpack.c.l.b16 %v1537
    %v2753 = vunpack.c.h.b16 %v1537
    %v2754 = vunpack.c.l.b16 %v1538
    %v2755 = vunpack.c.h.b16 %v1538
    %v2756 = vunpack.c.l.b16 %v1539
    %v2757 = vunpack.c.h.b16 %v1539
    %v2758 = vunpack.c.l.b16 %v1540
    %v2759 = vunpack.c.h.b16 %v1540
    %v2760 = vunpack.c.l.b16 %v1541
    %v2761 = vunpack.c.h.b16 %v1541
    %v2762 = vunpack.c.l.b16 %v1542
    %v2763 = vunpack.c.h.b16 %v1542
    %v2764 = vunpack.c.l.b16 %v1543
    %v2765 = vunpack.c.h.b16 %v1543
    %v2766 = vunpack.c.l.b16 %v1544
    %v2767 = vunpack.c.h.b16 %v1544
    %v2768 = vunpack.c.l.b16 %v1545
    %v2769 = vunpack.c.h.b16 %v1545
    %v2770 = vunpack.c.l.b16 %v1546
    %v2771 = vunpack.c.h.b16 %v1546
    %v2772 = vunpack.c.l.b16 %v1547
    %v2773 = vunpack.c.h.b16 %v1547
    %v2774 = vunpack.c.l.b16 %v1548
    %v2775 = vunpack.c.h.b16 %v1548
    %v2776 = vunpack.c.l.b16 %v1549
    %v2777 = vunpack.c.h.b16 %v1549
    %v2778 = vunpack.c.l.b16 %v1550
    %v2779 = vunpack.c.h.b16 %v1550
    %v2780 = vunpack.c.l.b16 %v1551
    %v2781 = vunpack.c.h.b16 %v1551
    %v2782 = vunpack.c.l.b16 %v1552
    %v2783 = vunpack.c.h.b16 %v1552
    %v2784 = vunpack.c.l.b16 %v1553
    %v2785 = vunpack.c.h.b16 %v1553
    %v2786 = vunpack.c.l.b16 %v1554
    %v2787 = vunpack.c.h.b16 %v1554
    %v2788 = vunpack.c.l.b16 %v1555
    %v2789 = vunpack.c.h.b16 %v1555
    %v2790 = vunpack.c.l.b16 %v1556
    %v2791 = vunpack.c.h.b16 %v1556
    %v2792 = vunpack.c.l.b16 %v1557
    %v2793 = vunpack.c.h.b16 %v1557
    %v2794 = vunpack.c.l.b16 %v1558
    %v2795 = vunpack.c.h.b16 %v1558
    %v2796 = vunpack.c.l.b16 %v1559
    %v2797 = vunpack.c.h.b16 %v1559
    %v2798 = vunpack.c.l.b16 %v1560
    %v2799 = vunpack.c.h.b16 %v1560
    %v2800 = vunpack.c.l.b16 %v1561
    %v2801 = vunpack.c.h.b16 %v1561
    %v2802 = vunpack.c.l.b16 %v1562
    %v2803 = vunpack.c.h.b16 %v1562
    %v2804 = vunpack.c.l.b16 %v1563
    %v2805 = vunpack.c.h.b16 %v1563
    %v2806 = vunpack.c.l.b16 %v1564
    %v2807 = vunpack.c.h.b16 %v1564
    %v2808 = vunpack.c.l.b16 %v1565
    %v2809 = vunpack.c.h.b16 %v1565
    %v2810 = vunpack.c.l.b16 %v1566
    %v2811 = vunpack.c.h.b16 %v1566
    %v2812 = vunpack.c.l.b16 %v1567
    %v2813 = vunpack.c.h.b16 %v1567
    %v2814 = vunpack.c.l.b16 %v1568
    %v2815 = vunpack.c.h.b16 %v1568
    %v2816 = vunpack.c.l.b16 %v1569
    %v2817 = vunpack.c.h.b16 %v1569
    %v2818 = vunpack.c.l.b16 %v1570
    %v2819 = vunpack.c.h.b16 %v1570
    %v2820 = vunpack.c.l.b16 %v1571
    %v2821 = vunpack.c.h.b16 %v1571
    %v2822 = vunpack.c.l.b16 %v1572
    %v2823 = vunpack.c.h.b16 %v1572
    %v2824 = vunpack.c.l.b16 %v1573
    %v2825 = vunpack.c.h.b16 %v1573
    %v2826 = vunpack.c.l.b16 %v1574
    %v2827 = vunpack.c.h.b16 %v1574
    %v2828 = vunpack.c.l.b16 %v1575
    %v2829 = vunpack.c.h.b16 %v1575
    %v2830 = vunpack.c.l.b16 %v1576
    %v2831 = vunpack.c.h.b16 %v1576
    %v2832 = vunpack.c.l.b16 %v1577
    %v2833 = vunpack.c.h.b16 %v1577
    %v2834 = vunpack.c.l.b16 %v1578
    %v2835 = vunpack.c.h.b16 %v1578
    %v2836 = vunpack.c.l.b16 %v1579
    %v2837 = vunpack.c.h.b16 %v1579
    %v2838 = vunpack.c.l.b16 %v1580
    %v2839 = vunpack.c.h.b16 %v1580
    %v2840 = vunpack.c.l.b16 %v1581
    %v2841 = vunpack.c.h.b16 %v1581
    %v2842 = vunpack.c.l.b16 %v1582
    %v2843 = vunpack.c.h.b16 %v1582
    %v2844 = vunpack.c.l.b16 %v1583
    %v2845 = vunpack.c.h.b16 %v1583
    %v2846 = vunpack.c.l.b16 %v1584
    %v2847 = vunpack.c.h.b16 %v1584
    %v2848 = vunpack.c.l.b16 %v1585
    %v2849 = vunpack.c.h.b16 %v1585
    %v2850 = vunpack.c.l.b16 %v1586
    %v2851 = vunpack.c.h.b16 %v1586
    %v2852 = vunpack.c.l.b16 %v1587
    %v2853 = vunpack.c.h.b16 %v1587
    %v2854 = vunpack.c.l.b16 %v1588
    %v2855 = vunpack.c.h.b16 %v1588
    %v2856 = vunpack.c.l.b16 %v1589
    %v2857 = vunpack.c.h.b16 %v1589
    %v2858 = vunpack.c.l.b16 %v1590
    %v2859 = vunpack.c.h.b16 %v1590
    %v2860 = vunpack.c.l.b16 %v1591
    %v2861 = vunpack.c.h.b16 %v1591
    %v2862 = vunpack.c.l.b16 %v1592
    %v2863 = vunpack.c.h.b16 %v1592
    %v2864 = vunpack.c.l.b16 %v1593
    %v2865 = vunpack.c.h.b16 %v1593
    %v2866 = vunpack.c.l.b16 %v1594
    %v2867 = vunpack.c.h.b16 %v1594
    %v2868 = vunpack.c.l.b16 %v1595
    %v2869 = vunpack.c.h.b16 %v1595
    %v2870 = vunpack.c.l.b16 %v1596
    %v2871 = vunpack.c.h.b16 %v1596
    %v2872 = vunpack.c.l.b16 %v1597
    %v2873 = vunpack.c.h.b16 %v1597
    %v2874 = vunpack.c.l.b16 %v1598
    %v2875 = vunpack.c.h.b16 %v1598
    %v2876 = vunpack.c.l.b16 %v1599
    %v2877 = vunpack.c.h.b16 %v1599
    %v2878 = vunpack.c.l.b16 %v1600
    %v2879 = vunpack.c.h.b16 %v1600
    %v2880 = vunpack.c.l.b16 %v1601
    %v2881 = vunpack.c.h.b16 %v1601
    %v2882 = vunpack.c.l.b16 %v1602
    %v2883 = vunpack.c.h.b16 %v1602
    %v2884 = vunpack.c.l.b16 %v1603
    %v2885 = vunpack.c.h.b16 %v1603
    %v2886 = vunpack.c.l.b16 %v1604
    %v2887 = vunpack.c.h.b16 %v1604
    %v2888 = vunpack.c.l.b16 %v1605
    %v2889 = vunpack.c.h.b16 %v1605
    %v2890 = vunpack.c.l.b16 %v1606
    %v2891 = vunpack.c.h.b16 %v1606
    %v2892 = vunpack.c.l.b16 %v1607
    %v2893 = vunpack.c.h.b16 %v1607
    %v2894 = vunpack.c.l.b16 %v1608
    %v2895 = vunpack.c.h.b16 %v1608
    %v2896 = vunpack.c.l.b16 %v1609
    %v2897 = vunpack.c.h.b16 %v1609
    %v2898 = vunpack.c.l.b16 %v1610
    %v2899 = vunpack.c.h.b16 %v1610
    %v2900 = vunpack.c.l.b16 %v1611
    %v2901 = vunpack.c.h.b16 %v1611
    %v2902 = vunpack.c.l.b16 %v1612
    %v2903 = vunpack.c.h.b16 %v1612
    %v2904 = vunpack.c.l.b16 %v1613
    %v2905 = vunpack.c.h.b16 %v1613
    %v2906 = vunpack.c.l.b16 %v1614
    %v2907 = vunpack.c.h.b16 %v1614
    %v2908 = vunpack.c.l.b16 %v1615
    %v2909 = vunpack.c.h.b16 %v1615
    %v2910 = vunpack.c.l.b16 %v1616
    %v2911 = vunpack.c.h.b16 %v1616
    %v2912 = vunpack.c.l.b16 %v1617
    %v2913 = vunpack.c.h.b16 %v1617
    %v2914 = vunpack.c.l.b16 %v1618
    %v2915 = vunpack.c.h.b16 %v1618
    %v2916 = vunpack.c.l.b16 %v1619
    %v2917 = vunpack.c.h.b16 %v1619
    %v2918 = vunpack.c.l.b16 %v1620
    %v2919 = vunpack.c.h.b16 %v1620
    %v2920 = vunpack.c.l.b16 %v1621
    %v2921 = vunpack.c.h.b16 %v1621
    %v2922 = vunpack.c.l.b16 %v1622
    %v2923 = vunpack.c.h.b16 %v1622
    %v2924 = vunpack.c.l.b16 %v1623
    %v2925 = vunpack.c.h.b16 %v1623
    %v2926 = vunpack.c.l.b16 %v1624
    %v2927 = vunpack.c.h.b16 %v1624
    %v2928 = vunpack.c.l.b16 %v1625
    %v2929 = vunpack.c.h.b16 %v1625
    %v2930 = vunpack.c.l.b16 %v1626
    %v2931 = vunpack.c.h.b16 %v1626
    %v2932 = vunpack.c.l.b16 %v1627
    %v2933 = vunpack.c.h.b16 %v1627
    %v2934 = vunpack.c.l.b16 %v1628
    %v2935 = vunpack.c.h.b16 %v1628
    %v2936 = vunpack.c.l.b16 %v1629
    %v2937 = vunpack.c.h.b16 %v1629
    %v2938 = vunpack.c.l.b16 %v1630
    %v2939 = vunpack.c.h.b16 %v1630
    %v2940 = vunpack.c.l.b16 %v1631
    %v2941 = vunpack.c.h.b16 %v1631
    %v2942 = vunpack.c.l.b16 %v1632
    %v2943 = vunpack.c.h.b16 %v1632
    %v2944 = vunpack.c.l.b16 %v1633
    %v2945 = vunpack.c.h.b16 %v1633
    %v2946 = vunpack.c.l.b16 %v1634
    %v2947 = vunpack.c.h.b16 %v1634
    %v2948 = vunpack.c.l.b16 %v1635
    %v2949 = vunpack.c.h.b16 %v1635
    %v2950 = vunpack.c.l.b16 %v1636
    %v2951 = vunpack.c.h.b16 %v1636
    %v2952 = vunpack.c.l.b16 %v1637
    %v2953 = vunpack.c.h.b16 %v1637
    %v2954 = vunpack.c.l.b16 %v1638
    %v2955 = vunpack.c.h.b16 %v1638
    %v2956 = vunpack.c.l.b16 %v1639
    %v2957 = vunpack.c.h.b16 %v1639
    %v2958 = vunpack.c.l.b16 %v1640
    %v2959 = vunpack.c.h.b16 %v1640
    %v2960 = vunpack.c.l.b16 %v1641
    %v2961 = vunpack.c.h.b16 %v1641
    %v2962 = vunpack.c.l.b16 %v1642
    %v2963 = vunpack.c.h.b16 %v1642
    %v2964 = vunpack.c.l.b16 %v1643
    %v2965 = vunpack.c.h.b16 %v1643
    %v2966 = vunpack.c.l.b16 %v1644
    %v2967 = vunpack.c.h.b16 %v1644
    %v2968 = vunpack.c.l.b16 %v1645
    %v2969 = vunpack.c.h.b16 %v1645
    %v2970 = vunpack.c.l.b16 %v1646
    %v2971 = vunpack.c.h.b16 %v1646
    %v2972 = vunpack.c.l.b16 %v1647
    %v2973 = vunpack.c.h.b16 %v1647
    %v2974 = vunpack.c.l.b16 %v1648
    %v2975 = vunpack.c.h.b16 %v1648
    %v2976 = vunpack.c.l.b16 %v1649
    %v2977 = vunpack.c.h.b16 %v1649
    %v2978 = vunpack.c.l.b16 %v1650
    %v2979 = vunpack.c.h.b16 %v1650
    %v2980 = vunpack.c.l.b16 %v1651
    %v2981 = vunpack.c.h.b16 %v1651
    %v2982 = vunpack.c.l.b16 %v1652
    %v2983 = vunpack.c.h.b16 %v1652
    %v2984 = vunpack.c.l.b16 %v1653
    %v2985 = vunpack.c.h.b16 %v1653
    %v2986 = vunpack.c.l.b16 %v1654
    %v2987 = vunpack.c.h.b16 %v1654
    %v2988 = vunpack.c.l.b16 %v1655
    %v2989 = vunpack.c.h.b16 %v1655
    %v2990 = vunpack.c.l.b16 %v1656
    %v2991 = vunpack.c.h.b16 %v1656
    %v2992 = vunpack.c.l.b16 %v1657
    %v2993 = vunpack.c.h.b16 %v1657
    %v2994 = vunpack.c.l.b16 %v1658
    %v2995 = vunpack.c.h.b16 %v1658
    %v2996 = vunpack.c.l.b16 %v1659
    %v2997 = vunpack.c.h.b16 %v1659
    %v2998 = vunpack.c.l.b16 %v1660
    %v2999 = vunpack.c.h.b16 %v1660
    %v3000 = vunpack.c.l.b16 %v1661
    %v3001 = vunpack.c.h.b16 %v1661
    %v3002 = vunpack.c.l.b16 %v1662
    %v3003 = vunpack.c.h.b16 %v1662
    %v3004 = vunpack.c.l.b16 %v1663
    %v3005 = vunpack.c.h.b16 %v1663
    %v3006 = vunpack.c.l.b16 %v1664
    %v3007 = vunpack.c.h.b16 %v1664
    %v3008 = vunpack.c.l.b16 %v1665
    %v3009 = vunpack.c.h.b16 %v1665
    %v3010 = vunpack.c.l.b16 %v1666
    %v3011 = vunpack.c.h.b16 %v1666
    %v3012 = vunpack.c.l.b16 %v1667
    %v3013 = vunpack.c.h.b16 %v1667
    %v3014 = vunpack.c.l.b16 %v1668
    %v3015 = vunpack.c.h.b16 %v1668
    %v3016 = vunpack.c.l.b16 %v1669
    %v3017 = vunpack.c.h.b16 %v1669
    %v3018 = vunpack.c.l.b16 %v1670
    %v3019 = vunpack.c.h.b16 %v1670
    %v3020 = vunpack.c.l.b16 %v1671
    %v3021 = vunpack.c.h.b16 %v1671
    %v3022 = vunpack.c.l.b16 %v1672
    %v3023 = vunpack.c.h.b16 %v1672
    %v3024 = vunpack.c.l.b16 %v1673
    %v3025 = vunpack.c.h.b16 %v1673
    %v3026 = vunpack.c.l.b16 %v1674
    %v3027 = vunpack.c.h.b16 %v1674
    %v3028 = vunpack.c.l.b16 %v1675
    %v3029 = vunpack.c.h.b16 %v1675
    %v3030 = vunpack.c.l.b16 %v1676
    %v3031 = vunpack.c.h.b16 %v1676
    %v3032 = vunpack.c.l.b16 %v1677
    %v3033 = vunpack.c.h.b16 %v1677
    %v3034 = vunpack.c.l.b16 %v1678
    %v3035 = vunpack.c.h.b16 %v1678
    %v3036 = vunpack.c.l.b16 %v1679
    %v3037 = vunpack.c.h.b16 %v1679
    %v3038 = vunpack.c.l.b16 %v1680
    %v3039 = vunpack.c.h.b16 %v1680
    %v3040 = vunpack.c.l.b16 %v1681
    %v3041 = vunpack.c.h.b16 %v1681
    %v3042 = vunpack.c.l.b16 %v1682
    %v3043 = vunpack.c.h.b16 %v1682
    %v3044 = vunpack.c.l.b16 %v1683
    %v3045 = vunpack.c.h.b16 %v1683
    %v3046 = vunpack.c.l.b16 %v1684
    %v3047 = vunpack.c.h.b16 %v1684
    %v3048 = vunpack.c.l.b16 %v1685
    %v3049 = vunpack.c.h.b16 %v1685
    %v3050 = vunpack.c.l.b16 %v1686
    %v3051 = vunpack.c.h.b16 %v1686
    %v3052 = vunpack.c.l.b16 %v1687
    %v3053 = vunpack.c.h.b16 %v1687
    %v3054 = vunpack.c.l.b16 %v1688
    %v3055 = vunpack.c.h.b16 %v1688
    %v3056 = vunpack.c.l.b16 %v1689
    %v3057 = vunpack.c.h.b16 %v1689
    %v3058 = vunpack.c.l.b16 %v1690
    %v3059 = vunpack.c.h.b16 %v1690
    %v3060 = vunpack.c.l.b16 %v1691
    %v3061 = vunpack.c.h.b16 %v1691
    %v3062 = vunpack.c.l.b16 %v1692
    %v3063 = vunpack.c.h.b16 %v1692
    %v3064 = vunpack.c.l.b16 %v1693
    %v3065 = vunpack.c.h.b16 %v1693
    %v3066 = vunpack.c.l.b16 %v1694
    %v3067 = vunpack.c.h.b16 %v1694
    %v3068 = vunpack.c.l.b16 %v1695
    %v3069 = vunpack.c.h.b16 %v1695
    %v3070 = vunpack.c.l.b16 %v1696
    %v3071 = vunpack.c.h.b16 %v1696
    %v3072 = vunpack.c.l.b16 %v1697
    %v3073 = vunpack.c.h.b16 %v1697
    %v3074 = vunpack.c.l.b16 %v1698
    %v3075 = vunpack.c.h.b16 %v1698
    %v3076 = vunpack.c.l.b16 %v1699
    %v3077 = vunpack.c.h.b16 %v1699
    %v3078 = vunpack.c.l.b16 %v1700
    %v3079 = vunpack.c.h.b16 %v1700
    %v3080 = vunpack.c.l.b16 %v1701
    %v3081 = vunpack.c.h.b16 %v1701
    %v3082 = vunpack.c.l.b16 %v1702
    %v3083 = vunpack.c.h.b16 %v1702
    %v3084 = vunpack.c.l.b16 %v1703
    %v3085 = vunpack.c.h.b16 %v1703
    %v3086 = vunpack.c.l.b16 %v1704
    %v3087 = vunpack.c.h.b16 %v1704
    %v3088 = vunpack.c.l.b16 %v1705
    %v3089 = vunpack.c.h.b16 %v1705
    %v3090 = vunpack.c.l.b16 %v1706
    %v3091 = vunpack.c.h.b16 %v1706
    %v3092 = vunpack.c.l.b16 %v1707
    %v3093 = vunpack.c.h.b16 %v1707
    %v3094 = vunpack.c.l.b16 %v1708
    %v3095 = vunpack.c.h.b16 %v1708
    %v3096 = vunpack.c.l.b16 %v1709
    %v3097 = vunpack.c.h.b16 %v1709
    %v3098 = vunpack.c.l.b16 %v1710
    %v3099 = vunpack.c.h.b16 %v1710
    %v3100 = vunpack.c.l.b16 %v1711
    %v3101 = vunpack.c.h.b16 %v1711
    %v3102 = vunpack.c.l.b16 %v1712
    %v3103 = vunpack.c.h.b16 %v1712
    %v3104 = vunpack.c.l.b16 %v1713
    %v3105 = vunpack.c.h.b16 %v1713
    %v3106 = vunpack.c.l.b16 %v1714
    %v3107 = vunpack.c.h.b16 %v1714
    %v3108 = vunpack.c.l.b16 %v1715
    %v3109 = vunpack.c.h.b16 %v1715
    %v3110 = vunpack.c.l.b16 %v1716
    %v3111 = vunpack.c.h.b16 %v1716
    %v3112 = vunpack.c.l.b16 %v1717
    %v3113 = vunpack.c.h.b16 %v1717
    %v3114 = vunpack.c.l.b16 %v1718
    %v3115 = vunpack.c.h.b16 %v1718
    %v3116 = vunpack.c.l.b16 %v1719
    %v3117 = vunpack.c.h.b16 %v1719
    %v3118 = vunpack.c.l.b16 %v1720
    %v3119 = vunpack.c.h.b16 %v1720
    %v3120 = vunpack.c.l.b16 %v1721
    %v3121 = vunpack.c.h.b16 %v1721
    %v3122 = vunpack.c.l.b16 %v1722
    %v3123 = vunpack.c.h.b16 %v1722
    %v3124 = vunpack.c.l.b16 %v1723
    %v3125 = vunpack.c.h.b16 %v1723
    %v3126 = vunpack.c.l.b16 %v1724
    %v3127 = vunpack.c.h.b16 %v1724
    %v3128 = vunpack.c.l.b16 %v1725
    %v3129 = vunpack.c.h.b16 %v1725
    %v3130 = vunpack.c.l.b16 %v1726
    %v3131 = vunpack.c.h.b16 %v1726
    %v3132 = vunpack.c.l.b16 %v1727
    %v3133 = vunpack.c.h.b16 %v1727
    %v3134 = vunpack.c.l.b16 %v1728
    %v3135 = vunpack.c.h.b16 %v1728
    %v3136 = vunpack.c.l.b16 %v1729
    %v3137 = vunpack.c.h.b16 %v1729
    %v3138 = vunpack.c.l.b16 %v1730
    %v3139 = vunpack.c.h.b16 %v1730
    %v3140 = vunpack.c.l.b16 %v1731
    %v3141 = vunpack.c.h.b16 %v1731
    %v3142 = vunpack.c.l.b16 %v1732
    %v3143 = vunpack.c.h.b16 %v1732
    %v3144 = vunpack.c.l.b16 %v1733
    %v3145 = vunpack.c.h.b16 %v1733
    %v3146 = vunpack.c.l.b16 %v1734
    %v3147 = vunpack.c.h.b16 %v1734
    %v3148 = vunpack.c.l.b16 %v1735
    %v3149 = vunpack.c.h.b16 %v1735
    %v3150 = vunpack.c.l.b16 %v1736
    %v3151 = vunpack.c.h.b16 %v1736
    %v3152 = vunpack.c.l.b16 %v1737
    %v3153 = vunpack.c.h.b16 %v1737
    %v3154 = vunpack.c.l.b16 %v1738
    %v3155 = vunpack.c.h.b16 %v1738
    %v3156 = vunpack.c.l.b16 %v1739
    %v3157 = vunpack.c.h.b16 %v1739
    %v3158 = vunpack.c.l.b16 %v1740
    %v3159 = vunpack.c.h.b16 %v1740
    %v3160 = vunpack.c.l.b16 %v1741
    %v3161 = vunpack.c.h.b16 %v1741
    %v3162 = vunpack.c.l.b16 %v1742
    %v3163 = vunpack.c.h.b16 %v1742
    %v3164 = vunpack.c.l.b16 %v1743
    %v3165 = vunpack.c.h.b16 %v1743
    %v3166 = vunpack.c.l.b16 %v1744
    %v3167 = vunpack.c.h.b16 %v1744
    %v3168 = vunpack.c.l.b16 %v1745
    %v3169 = vunpack.c.h.b16 %v1745
    %v3170 = vunpack.c.l.b16 %v1746
    %v3171 = vunpack.c.h.b16 %v1746
    %v3172 = vunpack.c.l.b16 %v1747
    %v3173 = vunpack.c.h.b16 %v1747
    %v3174 = vunpack.c.l.b16 %v1748
    %v3175 = vunpack.c.h.b16 %v1748
    %v3176 = vunpack.c.l.b16 %v1749
    %v3177 = vunpack.c.h.b16 %v1749
    %v3178 = vunpack.c.l.b16 %v1750
    %v3179 = vunpack.c.h.b16 %v1750
    %v3180 = vunpack.c.l.b16 %v1751
    %v3181 = vunpack.c.h.b16 %v1751
    %v3182 = vunpack.c.l.b16 %v1752
    %v3183 = vunpack.c.h.b16 %v1752
    %v3184 = vunpack.c.l.b16 %v1753
    %v3185 = vunpack.c.h.b16 %v1753
    %v3186 = vunpack.c.l.b16 %v1754
    %v3187 = vunpack.c.h.b16 %v1754
    %v3188 = vunpack.c.l.b16 %v1755
    %v3189 = vunpack.c.h.b16 %v1755
    %v3190 = vunpack.c.l.b16 %v1756
    %v3191 = vunpack.c.h.b16 %v1756
    %v3192 = vunpack.c.l.b16 %v1757
    %v3193 = vunpack.c.h.b16 %v1757
    %v3194 = vunpack.c.l.b16 %v1758
    %v3195 = vunpack.c.h.b16 %v1758
    %v3196 = vunpack.c.l.b16 %v1759
    %v3197 = vunpack.c.h.b16 %v1759
    %v3198 = vunpack.c.l.b16 %v1760
    %v3199 = vunpack.c.h.b16 %v1760
    %v3200 = vunpack.c.l.b16 %v1761
    %v3201 = vunpack.c.h.b16 %v1761
    %v3202 = vunpack.c.l.b16 %v1762
    %v3203 = vunpack.c.h.b16 %v1762
    %v3204 = vunpack.c.l.b16 %v1763
    %v3205 = vunpack.c.h.b16 %v1763
    %v3206 = vunpack.c.l.b16 %v1764
    %v3207 = vunpack.c.h.b16 %v1764
    %v3208 = vunpack.c.l.b16 %v1765
    %v3209 = vunpack.c.h.b16 %v1765
    %v3210 = vunpack.c.l.b16 %v1766
    %v3211 = vunpack.c.h.b16 %v1766
    %v3212 = vunpack.c.l.b16 %v1767
    %v3213 = vunpack.c.h.b16 %v1767
    %v3214 = vunpack.c.l.b16 %v1768
    %v3215 = vunpack.c.h.b16 %v1768
    %v3216 = vunpack.c.l.b16 %v1769
    %v3217 = vunpack.c.h.b16 %v1769
    %v3218 = vunpack.c.l.b16 %v1770
    %v3219 = vunpack.c.h.b16 %v1770
    %v3220 = vunpack.c.l.b16 %v1771
    %v3221 = vunpack.c.h.b16 %v1771
    %v3222 = vunpack.c.l.b16 %v1772
    %v3223 = vunpack.c.h.b16 %v1772
    %v3224 = vunpack.c.l.b16 %v1773
    %v3225 = vunpack.c.h.b16 %v1773
    %v3226 = vunpack.c.l.b16 %v1774
    %v3227 = vunpack.c.h.b16 %v1774
    %v3228 = vunpack.c.l.b16 %v1775
    %v3229 = vunpack.c.h.b16 %v1775
    %v3230 = vunpack.c.l.b16 %v1776
    %v3231 = vunpack.c.h.b16 %v1776
    %v3232 = vunpack.c.l.b16 %v1777
    %v3233 = vunpack.c.h.b16 %v1777
    %v3234 = vunpack.c.l.b16 %v1778
    %v3235 = vunpack.c.h.b16 %v1778
    %v3236 = vunpack.c.l.b16 %v1779
    %v3237 = vunpack.c.h.b16 %v1779
    %v3238 = vunpack.c.l.b16 %v1780
    %v3239 = vunpack.c.h.b16 %v1780
    %v3240 = vunpack.c.l.b16 %v1781
    %v3241 = vunpack.c.h.b16 %v1781
    %v3242 = vunpack.c.l.b16 %v1782
    %v3243 = vunpack.c.h.b16 %v1782
    %v3244 = vunpack.c.l.b16 %v1783
    %v3245 = vunpack.c.h.b16 %v1783
    %v3246 = vunpack.c.l.b16 %v1784
    %v3247 = vunpack.c.h.b16 %v1784
    %v3248 = vunpack.c.l.b16 %v1785
    %v3249 = vunpack.c.h.b16 %v1785
    %v3250 = vunpack.c.l.b16 %v1786
    %v3251 = vunpack.c.h.b16 %v1786
    %v3252 = vunpack.c.l.b16 %v1787
    %v3253 = vunpack.c.h.b16 %v1787
    %v3254 = vunpack.c.l.b16 %v1788
    %v3255 = vunpack.c.h.b16 %v1788
    %v3256 = vunpack.c.l.b16 %v1789
    %v3257 = vunpack.c.h.b16 %v1789
    %v3258 = vunpack.c.l.b16 %v1790
    %v3259 = vunpack.c.h.b16 %v1790
    %v3260 = vunpack.c.l.b16 %v1791
    %v3261 = vunpack.c.h.b16 %v1791
    %v3262 = vunpack.c.l.b16 %v1792
    %v3263 = vunpack.c.h.b16 %v1792
    %v3264 = vunpack.c.l.b16 %v1793
    %v3265 = vunpack.c.h.b16 %v1793
    %v3266 = vunpack.c.l.b16 %v1794
    %v3267 = vunpack.c.h.b16 %v1794
    %v3268 = vunpack.c.l.b16 %v1795
    %v3269 = vunpack.c.h.b16 %v1795
    %v3270 = vunpack.c.l.b16 %v1796
    %v3271 = vunpack.c.h.b16 %v1796
    %v3272 = vunpack.c.l.b16 %v1797
    %v3273 = vunpack.c.h.b16 %v1797
    %v3274 = vunpack.c.l.b16 %v1798
    %v3275 = vunpack.c.h.b16 %v1798
    %v3276 = vunpack.c.l.b16 %v1799
    %v3277 = vunpack.c.h.b16 %v1799
    %v3278 = vunpack.c.l.b16 %v1800
    %v3279 = vunpack.c.h.b16 %v1800
    %v3280 = vunpack.c.l.b16 %v1801
    %v3281 = vunpack.c.h.b16 %v1801
    %v3282 = vunpack.c.l.b16 %v1802
    %v3283 = vunpack.c.h.b16 %v1802
    %v3284 = vunpack.c.l.b16 %v1803
    %v3285 = vunpack.c.h.b16 %v1803
    %v3286 = vunpack.c.l.b16 %v1804
    %v3287 = vunpack.c.h.b16 %v1804
    %v3288 = vunpack.c.l.b16 %v1805
    %v3289 = vunpack.c.h.b16 %v1805
    %v3290 = vunpack.c.l.b16 %v1806
    %v3291 = vunpack.c.h.b16 %v1806
    %v3292 = vunpack.c.l.b16 %v1807
    %v3293 = vunpack.c.h.b16 %v1807
    %v3294 = vunpack.c.l.b16 %v1808
    %v3295 = vunpack.c.h.b16 %v1808
    %v3296 = vunpack.c.l.b16 %v1809
    %v3297 = vunpack.c.h.b16 %v1809
    %v3298 = vunpack.c.l.b16 %v1810
    %v3299 = vunpack.c.h.b16 %v1810
    %v3300 = vunpack.c.l.b16 %v1811
    %v3301 = vunpack.c.h.b16 %v1811
    %v3302 = vunpack.c.l.b16 %v1812
    %v3303 = vunpack.c.h.b16 %v1812
    %v3304 = vunpack.c.l.b16 %v1813
    %v3305 = vunpack.c.h.b16 %v1813
    %v3306 = vunpack.c.l.b16 %v1814
    %v3307 = vunpack.c.h.b16 %v1814
    %v3308 = vunpack.c.l.b16 %v1815
    %v3309 = vunpack.c.h.b16 %v1815
    %v3310 = vunpack.c.l.b16 %v1816
    %v3311 = vunpack.c.h.b16 %v1816
    %v3312 = vunpack.c.l.b16 %v1817
    %v3313 = vunpack.c.h.b16 %v1817
    %v3314 = vunpack.c.l.b16 %v1818
    %v3315 = vunpack.c.h.b16 %v1818
    %v3316 = vunpack.c.l.b16 %v1819
    %v3317 = vunpack.c.h.b16 %v1819
    %v3318 = vunpack.c.l.b16 %v1820
    %v3319 = vunpack.c.h.b16 %v1820
    %v3320 = vunpack.c.l.b16 %v1821
    %v3321 = vunpack.c.h.b16 %v1821
    %v3322 = vunpack.c.l.b16 %v1822
    %v3323 = vunpack.c.h.b16 %v1822
    %v3324 = vunpack.c.l.b16 %v1823
    %v3325 = vunpack.c.h.b16 %v1823
    %v3326 = vunpack.c.l.b16 %v1824
    %v3327 = vunpack.c.h.b16 %v1824
    %v3328 = vunpack.c.l.b16 %v1825
    %v3329 = vunpack.c.h.b16 %v1825
    %v3330 = vunpack.c.l.b16 %v1826
    %v3331 = vunpack.c.h.b16 %v1826
    %v3332 = vunpack.c.l.b16 %v1827
    %v3333 = vunpack.c.h.b16 %v1827
    %v3334 = vunpack.c.l.b16 %v1828
    %v3335 = vunpack.c.h.b16 %v1828
    %v3336 = vunpack.c.l.b16 %v1829
    %v3337 = vunpack.c.h.b16 %v1829
    %v3338 = vunpack.c.l.b16 %v1830
    %v3339 = vunpack.c.h.b16 %v1830
    %v3340 = vunpack.c.l.b16 %v1831
    %v3341 = vunpack.c.h.b16 %v1831
    %v3342 = vunpack.c.l.b16 %v1832
    %v3343 = vunpack.c.h.b16 %v1832
    %v3344 = vunpack.c.l.b16 %v1833
    %v3345 = vunpack.c.h.b16 %v1833
    %v3346 = vunpack.c.l.b16 %v1834
    %v3347 = vunpack.c.h.b16 %v1834
    %v3348 = vunpack.c.l.b16 %v1835
    %v3349 = vunpack.c.h.b16 %v1835
    %v3350 = vunpack.c.l.b16 %v1836
    %v3351 = vunpack.c.h.b16 %v1836
    %v3352 = vunpack.c.l.b16 %v1837
    %v3353 = vunpack.c.h.b16 %v1837
    %v3354 = vunpack.c.l.b16 %v1838
    %v3355 = vunpack.c.h.b16 %v1838
    %v3356 = vunpack.c.l.b16 %v1839
    %v3357 = vunpack.c.h.b16 %v1839
    %v3358 = vunpack.c.l.b16 %v1840
    %v3359 = vunpack.c.h.b16 %v1840
    %v3360 = vunpack.c.l.b16 %v1841
    %v3361 = vunpack.c.h.b16 %v1841
    %v3362 = vunpack.c.l.b16 %v1842
    %v3363 = vunpack.c.h.b16 %v1842
    %v3364 = vunpack.c.l.b16 %v1843
    %v3365 = vunpack.c.h.b16 %v1843
    %v3366 = vunpack.c.l.b16 %v1844
    %v3367 = vunpack.c.h.b16 %v1844
    %v3368 = vunpack.c.l.b16 %v1845
    %v3369 = vunpack.c.h.b16 %v1845
    %v3370 = vunpack.c.l.b16 %v1846
    %v3371 = vunpack.c.h.b16 %v1846
    %v3372 = vunpack.c.l.b16 %v1847
    %v3373 = vunpack.c.h.b16 %v1847
    %v3374 = vunpack.c.l.b16 %v1848
    %v3375 = vunpack.c.h.b16 %v1848
    %v3376 = vunpack.c.l.b16 %v1849
    %v3377 = vunpack.c.h.b16 %v1849
    %v3378 = vunpack.c.l.b16 %v1850
    %v3379 = vunpack.c.h.b16 %v1850
    %v3380 = vunpack.c.l.b16 %v1851
    %v3381 = vunpack.c.h.b16 %v1851
    %v3382 = vunpack.c.l.b16 %v1852
    %v3383 = vunpack.c.h.b16 %v1852
    %v3384 = vunpack.c.l.b16 %v1853
    %v3385 = vunpack.c.h.b16 %v1853
    %v3386 = vunpack.c.l.b16 %v1854
    %v3387 = vunpack.c.h.b16 %v1854
    %v3388 = vunpack.c.l.b16 %v1855
    %v3389 = vunpack.c.h.b16 %v1855
    %v3390 = vunpack.c.l.b16 %v1856
    %v3391 = vunpack.c.h.b16 %v1856
    %v3392 = vunpack.c.l.b16 %v1857
    %v3393 = vunpack.c.h.b16 %v1857
    %v3394 = vpack.c.b16 %v2386, %v2370
    %v3395 = vpack.c.b16 %v2387, %v2371
    %v3396 = vpack.c.b16 %v2388, %v2372
    %v3397 = vpack.c.b16 %v2389, %v2373
    %v3398 = vpack.c.b16 %v2390, %v2374
    %v3399 = vpack.c.b16 %v2391, %v2375
    %v3400 = vpack.c.b16 %v2392, %v2376
    %v3401 = vpack.c.b16 %v2393, %v2377
    %v3402 = vpack.c.b16 %v2394, %v2378
    %v3403 = vpack.c.b16 %v2395, %v2379
    %v3404 = vpack.c.b16 %v2396, %v2380
    %v3405 = vpack.c.b16 %v2397, %v2381
    %v3406 = vpack.c.b16 %v2398, %v2382
    %v3407 = vpack.c.b16 %v2399, %v2383
    %v3408 = vpack.c.b16 %v2400, %v2384
    %v3409 = vpack.c.b16 %v2401, %v2385
    %v3410 = vpack.c.b16 %v2418, %v2402
    %v3411 = vpack.c.b16 %v2419, %v2403
    %v3412 = vpack.c.b16 %v2420, %v2404
    %v3413 = vpack.c.b16 %v2421, %v2405
    %v3414 = vpack.c.b16 %v2422, %v2406
    %v3415 = vpack.c.b16 %v2423, %v2407
    %v3416 = vpack.c.b16 %v2424, %v2408
    %v3417 = vpack.c.b16 %v2425, %v2409
    %v3418 = vpack.c.b16 %v2426, %v2410
    %v3419 = vpack.c.b16 %v2427, %v2411
    %v3420 = vpack.c.b16 %v2428, %v2412
    %v3421 = vpack.c.b16 %v2429, %v2413
    %v3422 = vpack.c.b16 %v2430, %v2414
    %v3423 = vpack.c.b16 %v2431, %v2415
    %v3424 = vpack.c.b16 %v2432, %v2416
    %v3425 = vpack.c.b16 %v2433, %v2417
    %v3426 = vpack.c.b16 %v2450, %v2434
    %v3427 = vpack.c.b16 %v2451, %v2435
    %v3428 = vpack.c.b16 %v2452, %v2436
    %v3429 = vpack.c.b16 %v2453, %v2437
    %v3430 = vpack.c.b16 %v2454, %v2438
    %v3431 = vpack.c.b16 %v2455, %v2439
    %v3432 = vpack.c.b16 %v2456, %v2440
    %v3433 = vpack.c.b16 %v2457, %v2441
    %v3434 = vpack.c.b16 %v2458, %v2442
    %v3435 = vpack.c.b16 %v2459, %v2443
    %v3436 = vpack.c.b16 %v2460, %v2444
    %v3437 = vpack.c.b16 %v2461, %v2445
    %v3438 = vpack.c.b16 %v2462, %v2446
    %v3439 = vpack.c.b16 %v2463, %v2447
    %v3440 = vpack.c.b16 %v2464, %v2448
    %v3441 = vpack.c.b16 %v2465, %v2449
    %v3442 = vpack.c.b16 %v2482, %v2466
    %v3443 = vpack.c.b16 %v2483, %v2467
    %v3444 = vpack.c.b16 %v2484, %v2468
    %v3445 = vpack.c.b16 %v2485, %v2469
    %v3446 = vpack.c.b16 %v2486, %v2470
    %v3447 = vpack.c.b16 %v2487, %v2471
    %v3448 = vpack.c.b16 %v2488, %v2472
    %v3449 = vpack.c.b16 %v2489, %v2473
    %v3450 = vpack.c.b16 %v2490, %v2474
    %v3451 = vpack.c.b16 %v2491, %v2475
    %v3452 = vpack.c.b16 %v2492, %v2476
    %v3453 = vpack.c.b16 %v2493, %v2477
    %v3454 = vpack.c.b16 %v2494, %v2478
    %v3455 = vpack.c.b16 %v2495, %v2479
    %v3456 = vpack.c.b16 %v2496, %v2480
    %v3457 = vpack.c.b16 %v2497, %v2481
    %v3458 = vpack.c.b16 %v2514, %v2498
    %v3459 = vpack.c.b16 %v2515, %v2499
    %v3460 = vpack.c.b16 %v2516, %v2500
    %v3461 = vpack.c.b16 %v2517, %v2501
    %v3462 = vpack.c.b16 %v2518, %v2502
    %v3463 = vpack.c.b16 %v2519, %v2503
    %v3464 = vpack.c.b16 %v2520, %v2504
    %v3465 = vpack.c.b16 %v2521, %v2505
    %v3466 = vpack.c.b16 %v2522, %v2506
    %v3467 = vpack.c.b16 %v2523, %v2507
    %v3468 = vpack.c.b16 %v2524, %v2508
    %v3469 = vpack.c.b16 %v2525, %v2509
    %v3470 = vpack.c.b16 %v2526, %v2510
    %v3471 = vpack.c.b16 %v2527, %v2511
    %v3472 = vpack.c.b16 %v2528, %v2512
    %v3473 = vpack.c.b16 %v2529, %v2513
    %v3474 = vpack.c.b16 %v2546, %v2530
    %v3475 = vpack.c.b16 %v2547, %v2531
    %v3476 = vpack.c.b16 %v2548, %v2532
    %v3477 = vpack.c.b16 %v2549, %v2533
    %v3478 = vpack.c.b16 %v2550, %v2534
    %v3479 = vpack.c.b16 %v2551, %v2535
    %v3480 = vpack.c.b16 %v2552, %v2536
    %v3481 = vpack.c.b16 %v2553, %v2537
    %v3482 = vpack.c.b16 %v2554, %v2538
    %v3483 = vpack.c.b16 %v2555, %v2539
    %v3484 = vpack.c.b16 %v2556, %v2540
    %v3485 = vpack.c.b16 %v2557, %v2541
    %v3486 = vpack.c.b16 %v2558, %v2542
    %v3487 = vpack.c.b16 %v2559, %v2543
    %v3488 = vpack.c.b16 %v2560, %v2544
    %v3489 = vpack.c.b16 %v2561, %v2545
    %v3490 = vpack.c.b16 %v2578, %v2562
    %v3491 = vpack.c.b16 %v2579, %v2563
    %v3492 = vpack.c.b16 %v2580, %v2564
    %v3493 = vpack.c.b16 %v2581, %v2565
    %v3494 = vpack.c.b16 %v2582, %v2566
    %v3495 = vpack.c.b16 %v2583, %v2567
    %v3496 = vpack.c.b16 %v2584, %v2568
    %v3497 = vpack.c.b16 %v2585, %v2569
    %v3498 = vpack.c.b16 %v2586, %v2570
    %v3499 = vpack.c.b16 %v2587, %v2571
    %v3500 = vpack.c.b16 %v2588, %v2572
    %v3501 = vpack.c.b16 %v2589, %v2573
    %v3502 = vpack.c.b16 %v2590, %v2574
    %v3503 = vpack.c.b16 %v2591, %v2575
    %v3504 = vpack.c.b16 %v2592, %v2576
    %v3505 = vpack.c.b16 %v2593, %v2577
    %v3506 = vpack.c.b16 %v2610, %v2594
    %v3507 = vpack.c.b16 %v2611, %v2595
    %v3508 = vpack.c.b16 %v2612, %v2596
    %v3509 = vpack.c.b16 %v2613, %v2597
    %v3510 = vpack.c.b16 %v2614, %v2598
    %v3511 = vpack.c.b16 %v2615, %v2599
    %v3512 = vpack.c.b16 %v2616, %v2600
    %v3513 = vpack.c.b16 %v2617, %v2601
    %v3514 = vpack.c.b16 %v2618, %v2602
    %v3515 = vpack.c.b16 %v2619, %v2603
    %v3516 = vpack.c.b16 %v2620, %v2604
    %v3517 = vpack.c.b16 %v2621, %v2605
    %v3518 = vpack.c.b16 %v2622, %v2606
    %v3519 = vpack.c.b16 %v2623, %v2607
    %v3520 = vpack.c.b16 %v2624, %v2608
    %v3521 = vpack.c.b16 %v2625, %v2609
    %v3522 = vpack.c.b16 %v2642, %v2626
    %v3523 = vpack.c.b16 %v2643, %v2627
    %v3524 = vpack.c.b16 %v2644, %v2628
    %v3525 = vpack.c.b16 %v2645, %v2629
    %v3526 = vpack.c.b16 %v2646, %v2630
    %v3527 = vpack.c.b16 %v2647, %v2631
    %v3528 = vpack.c.b16 %v2648, %v2632
    %v3529 = vpack.c.b16 %v2649, %v2633
    %v3530 = vpack.c.b16 %v2650, %v2634
    %v3531 = vpack.c.b16 %v2651, %v2635
    %v3532 = vpack.c.b16 %v2652, %v2636
    %v3533 = vpack.c.b16 %v2653, %v2637
    %v3534 = vpack.c.b16 %v2654, %v2638
    %v3535 = vpack.c.b16 %v2655, %v2639
    %v3536 = vpack.c.b16 %v2656, %v2640
    %v3537 = vpack.c.b16 %v2657, %v2641
    %v3538 = vpack.c.b16 %v2674, %v2658
    %v3539 = vpack.c.b16 %v2675, %v2659
    %v3540 = vpack.c.b16 %v2676, %v2660
    %v3541 = vpack.c.b16 %v2677, %v2661
    %v3542 = vpack.c.b16 %v2678, %v2662
    %v3543 = vpack.c.b16 %v2679, %v2663
    %v3544 = vpack.c.b16 %v2680, %v2664
    %v3545 = vpack.c.b16 %v2681, %v2665
    %v3546 = vpack.c.b16 %v2682, %v2666
    %v3547 = vpack.c.b16 %v2683, %v2667
    %v3548 = vpack.c.b16 %v2684, %v2668
    %v3549 = vpack.c.b16 %v2685, %v2669
    %v3550 = vpack.c.b16 %v2686, %v2670
    %v3551 = vpack.c.b16 %v2687, %v2671
    %v3552 = vpack.c.b16 %v2688, %v2672
    %v3553 = vpack.c.b16 %v2689, %v2673
    %v3554 = vpack.c.b16 %v2706, %v2690
    %v3555 = vpack.c.b16 %v2707, %v2691
    %v3556 = vpack.c.b16 %v2708, %v2692
    %v3557 = vpack.c.b16 %v2709, %v2693
    %v3558 = vpack.c.b16 %v2710, %v2694
    %v3559 = vpack.c.b16 %v2711, %v2695
    %v3560 = vpack.c.b16 %v2712, %v2696
    %v3561 = vpack.c.b16 %v2713, %v2697
    %v3562 = vpack.c.b16 %v2714, %v2698
    %v3563 = vpack.c.b16 %v2715, %v2699
    %v3564 = vpack.c.b16 %v2716, %v2700
    %v3565 = vpack.c.b16 %v2717, %v2701
    %v3566 = vpack.c.b16 %v2718, %v2702
    %v3567 = vpack.c.b16 %v2719, %v2703
    %v3568 = vpack.c.b16 %v2720, %v2704
    %v3569 = vpack.c.b16 %v2721, %v2705
    %v3570 = vpack.c.b16 %v2738, %v2722
    %v3571 = vpack.c.b16 %v2739, %v2723
    %v3572 = vpack.c.b16 %v2740, %v2724
    %v3573 = vpack.c.b16 %v2741, %v2725
    %v3574 = vpack.c.b16 %v2742, %v2726
    %v3575 = vpack.c.b16 %v2743, %v2727
    %v3576 = vpack.c.b16 %v2744, %v2728
    %v3577 = vpack.c.b16 %v2745, %v2729
    %v3578 = vpack.c.b16 %v2746, %v2730
    %v3579 = vpack.c.b16 %v2747, %v2731
    %v3580 = vpack.c.b16 %v2748, %v2732
    %v3581 = vpack.c.b16 %v2749, %v2733
    %v3582 = vpack.c.b16 %v2750, %v2734
    %v3583 = vpack.c.b16 %v2751, %v2735
    %v3584 = vpack.c.b16 %v2752, %v2736
    %v3585 = vpack.c.b16 %v2753, %v2737
    %v3586 = vpack.c.b16 %v2770, %v2754
    %v3587 = vpack.c.b16 %v2771, %v2755
    %v3588 = vpack.c.b16 %v2772, %v2756
    %v3589 = vpack.c.b16 %v2773, %v2757
    %v3590 = vpack.c.b16 %v2774, %v2758
    %v3591 = vpack.c.b16 %v2775, %v2759
    %v3592 = vpack.c.b16 %v2776, %v2760
    %v3593 = vpack.c.b16 %v2777, %v2761
    %v3594 = vpack.c.b16 %v2778, %v2762
    %v3595 = vpack.c.b16 %v2779, %v2763
    %v3596 = vpack.c.b16 %v2780, %v2764
    %v3597 = vpack.c.b16 %v2781, %v2765
    %v3598 = vpack.c.b16 %v2782, %v2766
    %v3599 = vpack.c.b16 %v2783, %v2767
    %v3600 = vpack.c.b16 %v2784, %v2768
    %v3601 = vpack.c.b16 %v2785, %v2769
    %v3602 = vpack.c.b16 %v2802, %v2786
    %v3603 = vpack.c.b16 %v2803, %v2787
    %v3604 = vpack.c.b16 %v2804, %v2788
    %v3605 = vpack.c.b16 %v2805, %v2789
    %v3606 = vpack.c.b16 %v2806, %v2790
    %v3607 = vpack.c.b16 %v2807, %v2791
    %v3608 = vpack.c.b16 %v2808, %v2792
    %v3609 = vpack.c.b16 %v2809, %v2793
    %v3610 = vpack.c.b16 %v2810, %v2794
    %v3611 = vpack.c.b16 %v2811, %v2795
    %v3612 = vpack.c.b16 %v2812, %v2796
    %v3613 = vpack.c.b16 %v2813, %v2797
    %v3614 = vpack.c.b16 %v2814, %v2798
    %v3615 = vpack.c.b16 %v2815, %v2799
    %v3616 = vpack.c.b16 %v2816, %v2800
    %v3617 = vpack.c.b16 %v2817, %v2801
    %v3618 = vpack.c.b16 %v2834, %v2818
    %v3619 = vpack.c.b16 %v2835, %v2819
    %v3620 = vpack.c.b16 %v2836, %v2820
    %v3621 = vpack.c.b16 %v2837, %v2821
    %v3622 = vpack.c.b16 %v2838, %v2822
    %v3623 = vpack.c.b16 %v2839, %v2823
    %v3624 = vpack.c.b16 %v2840, %v2824
    %v3625 = vpack.c.b16 %v2841, %v2825
    %v3626 = vpack.c.b16 %v2842, %v2826
    %v3627 = vpack.c.b16 %v2843, %v2827
    %v3628 = vpack.c.b16 %v2844, %v2828
    %v3629 = vpack.c.b16 %v2845, %v2829
    %v3630 = vpack.c.b16 %v2846, %v2830
    %v3631 = vpack.c.b16 %v2847, %v2831
    %v3632 = vpack.c.b16 %v2848, %v2832
    %v3633 = vpack.c.b16 %v2849, %v2833
    %v3634 = vpack.c.b16 %v2866, %v2850
    %v3635 = vpack.c.b16 %v2867, %v2851
    %v3636 = vpack.c.b16 %v2868, %v2852
    %v3637 = vpack.c.b16 %v2869, %v2853
    %v3638 = vpack.c.b16 %v2870, %v2854
    %v3639 = vpack.c.b16 %v2871, %v2855
    %v3640 = vpack.c.b16 %v2872, %v2856
    %v3641 = vpack.c.b16 %v2873, %v2857
    %v3642 = vpack.c.b16 %v2874, %v2858
    %v3643 = vpack.c.b16 %v2875, %v2859
    %v3644 = vpack.c.b16 %v2876, %v2860
    %v3645 = vpack.c.b16 %v2877, %v2861
    %v3646 = vpack.c.b16 %v2878, %v2862
    %v3647 = vpack.c.b16 %v2879, %v2863
    %v3648 = vpack.c.b16 %v2880, %v2864
    %v3649 = vpack.c.b16 %v2881, %v2865
    %v3650 = vpack.c.b16 %v2898, %v2882
    %v3651 = vpack.c.b16 %v2899, %v2883
    %v3652 = vpack.c.b16 %v2900, %v2884
    %v3653 = vpack.c.b16 %v2901, %v2885
    %v3654 = vpack.c.b16 %v2902, %v2886
    %v3655 = vpack.c.b16 %v2903, %v2887
    %v3656 = vpack.c.b16 %v2904, %v2888
    %v3657 = vpack.c.b16 %v2905, %v2889
    %v3658 = vpack.c.b16 %v2906, %v2890
    %v3659 = vpack.c.b16 %v2907, %v2891
    %v3660 = vpack.c.b16 %v2908, %v2892
    %v3661 = vpack.c.b16 %v2909, %v2893
    %v3662 = vpack.c.b16 %v2910, %v2894
    %v3663 = vpack.c.b16 %v2911, %v2895
    %v3664 = vpack.c.b16 %v2912, %v2896
    %v3665 = vpack.c.b16 %v2913, %v2897
    %v3666 = vpack.c.b16 %v2930, %v2914
    %v3667 = vpack.c.b16 %v2931, %v2915
    %v3668 = vpack.c.b16 %v2932, %v2916
    %v3669 = vpack.c.b16 %v2933, %v2917
    %v3670 = vpack.c.b16 %v2934, %v2918
    %v3671 = vpack.c.b16 %v2935, %v2919
    %v3672 = vpack.c.b16 %v2936, %v2920
    %v3673 = vpack.c.b16 %v2937, %v2921
    %v3674 = vpack.c.b16 %v2938, %v2922
    %v3675 = vpack.c.b16 %v2939, %v2923
    %v3676 = vpack.c.b16 %v2940, %v2924
    %v3677 = vpack.c.b16 %v2941, %v2925
    %v3678 = vpack.c.b16 %v2942, %v2926
    %v3679 = vpack.c.b16 %v2943, %v2927
    %v3680 = vpack.c.b16 %v2944, %v2928
    %v3681 = vpack.c.b16 %v2945, %v2929
    %v3682 = vpack.c.b16 %v2962, %v2946
    %v3683 = vpack.c.b16 %v2963, %v2947
    %v3684 = vpack.c.b16 %v2964, %v2948
    %v3685 = vpack.c.b16 %v2965, %v2949
    %v3686 = vpack.c.b16 %v2966, %v2950
    %v3687 = vpack.c.b16 %v2967, %v2951
    %v3688 = vpack.c.b16 %v2968, %v2952
    %v3689 = vpack.c.b16 %v2969, %v2953
    %v3690 = vpack.c.b16 %v2970, %v2954
    %v3691 = vpack.c.b16 %v2971, %v2955
    %v3692 = vpack.c.b16 %v2972, %v2956
    %v3693 = vpack.c.b16 %v2973, %v2957
    %v3694 = vpack.c.b16 %v2974, %v2958
    %v3695 = vpack.c.b16 %v2975, %v2959
    %v3696 = vpack.c.b16 %v2976, %v2960
    %v3697 = vpack.c.b16 %v2977, %v2961
    %v3698 = vpack.c.b16 %v2994, %v2978
    %v3699 = vpack.c.b16 %v2995, %v2979
    %v3700 = vpack.c.b16 %v2996, %v2980
    %v3701 = vpack.c.b16 %v2997, %v2981
    %v3702 = vpack.c.b16 %v2998, %v2982
    %v3703 = vpack.c.b16 %v2999, %v2983
    %v3704 = vpack.c.b16 %v3000, %v2984
    %v3705 = vpack.c.b16 %v3001, %v2985
    %v3706 = vpack.c.b16 %v3002, %v2986
    %v3707 = vpack.c.b16 %v3003, %v2987
    %v3708 = vpack.c.b16 %v3004, %v2988
    %v3709 = vpack.c.b16 %v3005, %v2989
    %v3710 = vpack.c.b16 %v3006, %v2990
    %v3711 = vpack.c.b16 %v3007, %v2991
    %v3712 = vpack.c.b16 %v3008, %v2992
    %v3713 = vpack.c.b16 %v3009, %v2993
    %v3714 = vpack.c.b16 %v3026, %v3010
    %v3715 = vpack.c.b16 %v3027, %v3011
    %v3716 = vpack.c.b16 %v3028, %v3012
    %v3717 = vpack.c.b16 %v3029, %v3013
    %v3718 = vpack.c.b16 %v3030, %v3014
    %v3719 = vpack.c.b16 %v3031, %v3015
    %v3720 = vpack.c.b16 %v3032, %v3016
    %v3721 = vpack.c.b16 %v3033, %v3017
    %v3722 = vpack.c.b16 %v3034, %v3018
    %v3723 = vpack.c.b16 %v3035, %v3019
    %v3724 = vpack.c.b16 %v3036, %v3020
    %v3725 = vpack.c.b16 %v3037, %v3021
    %v3726 = vpack.c.b16 %v3038, %v3022
    %v3727 = vpack.c.b16 %v3039, %v3023
    %v3728 = vpack.c.b16 %v3040, %v3024
    %v3729 = vpack.c.b16 %v3041, %v3025
    %v3730 = vpack.c.b16 %v3058, %v3042
    %v3731 = vpack.c.b16 %v3059, %v3043
    %v3732 = vpack.c.b16 %v3060, %v3044
    %v3733 = vpack.c.b16 %v3061, %v3045
    %v3734 = vpack.c.b16 %v3062, %v3046
    %v3735 = vpack.c.b16 %v3063, %v3047
    %v3736 = vpack.c.b16 %v3064, %v3048
    %v3737 = vpack.c.b16 %v3065, %v3049
    %v3738 = vpack.c.b16 %v3066, %v3050
    %v3739 = vpack.c.b16 %v3067, %v3051
    %v3740 = vpack.c.b16 %v3068, %v3052
    %v3741 = vpack.c.b16 %v3069, %v3053
    %v3742 = vpack.c.b16 %v3070, %v3054
    %v3743 = vpack.c.b16 %v3071, %v3055
    %v3744 = vpack.c.b16 %v3072, %v3056
    %v3745 = vpack.c.b16 %v3073, %v3057
    %v3746 = vpack.c.b16 %v3090, %v3074
    %v3747 = vpack.c.b16 %v3091, %v3075
    %v3748 = vpack.c.b16 %v3092, %v3076
    %v3749 = vpack.c.b16 %v3093, %v3077
    %v3750 = vpack.c.b16 %v3094, %v3078
    %v3751 = vpack.c.b16 %v3095, %v3079
    %v3752 = vpack.c.b16 %v3096, %v3080
    %v3753 = vpack.c.b16 %v3097, %v3081
    %v3754 = vpack.c.b16 %v3098, %v3082
    %v3755 = vpack.c.b16 %v3099, %v3083
    %v3756 = vpack.c.b16 %v3100, %v3084
    %v3757 = vpack.c.b16 %v3101, %v3085
    %v3758 = vpack.c.b16 %v3102, %v3086
    %v3759 = vpack.c.b16 %v3103, %v3087
    %v3760 = vpack.c.b16 %v3104, %v3088
    %v3761 = vpack.c.b16 %v3105, %v3089
    %v3762 = vpack.c.b16 %v3122, %v3106
    %v3763 = vpack.c.b16 %v3123, %v3107
    %v3764 = vpack.c.b16 %v3124, %v3108
    %v3765 = vpack.c.b16 %v3125, %v3109
    %v3766 = vpack.c.b16 %v3126, %v3110
    %v3767 = vpack.c.b16 %v3127, %v3111
    %v3768 = vpack.c.b16 %v3128, %v3112
    %v3769 = vpack.c.b16 %v3129, %v3113
    %v3770 = vpack.c.b16 %v3130, %v3114
    %v3771 = vpack.c.b16 %v3131, %v3115
    %v3772 = vpack.c.b16 %v3132, %v3116
    %v3773 = vpack.c.b16 %v3133, %v3117
    %v3774 = vpack.c.b16 %v3134, %v3118
    %v3775 = vpack.c.b16 %v3135, %v3119
    %v3776 = vpack.c.b16 %v3136, %v3120
    %v3777 = vpack.c.b16 %v3137, %v3121
    %v3778 = vpack.c.b16 %v3154, %v3138
    %v3779 = vpack.c.b16 %v3155, %v3139
    %v3780 = vpack.c.b16 %v3156, %v3140
    %v3781 = vpack.c.b16 %v3157, %v3141
    %v3782 = vpack.c.b16 %v3158, %v3142
    %v3783 = vpack.c.b16 %v3159, %v3143
    %v3784 = vpack.c.b16 %v3160, %v3144
    %v3785 = vpack.c.b16 %v3161, %v3145
    %v3786 = vpack.c.b16 %v3162, %v3146
    %v3787 = vpack.c.b16 %v3163, %v3147
    %v3788 = vpack.c.b16 %v3164, %v3148
    %v3789 = vpack.c.b16 %v3165, %v3149
    %v3790 = vpack.c.b16 %v3166, %v3150
    %v3791 = vpack.c.b16 %v3167, %v3151
    %v3792 = vpack.c.b16 %v3168, %v3152
    %v3793 = vpack.c.b16 %v3169, %v3153
    %v3794 = vpack.c.b16 %v3186, %v3170
    %v3795 = vpack.c.b16 %v3187, %v3171
    %v3796 = vpack.c.b16 %v3188, %v3172
    %v3797 = vpack.c.b16 %v3189, %v3173
    %v3798 = vpack.c.b16 %v3190, %v3174
    %v3799 = vpack.c.b16 %v3191, %v3175
    %v3800 = vpack.c.b16 %v3192, %v3176
    %v3801 = vpack.c.b16 %v3193, %v3177
    %v3802 = vpack.c.b16 %v3194, %v3178
    %v3803 = vpack.c.b16 %v3195, %v3179
    %v3804 = vpack.c.b16 %v3196, %v3180
    %v3805 = vpack.c.b16 %v3197, %v3181
    %v3806 = vpack.c.b16 %v3198, %v3182
    %v3807 = vpack.c.b16 %v3199, %v3183
    %v3808 = vpack.c.b16 %v3200, %v3184
    %v3809 = vpack.c.b16 %v3201, %v3185
    %v3810 = vpack.c.b16 %v3218, %v3202
    %v3811 = vpack.c.b16 %v3219, %v3203
    %v3812 = vpack.c.b16 %v3220, %v3204
    %v3813 = vpack.c.b16 %v3221, %v3205
    %v3814 = vpack.c.b16 %v3222, %v3206
    %v3815 = vpack.c.b16 %v3223, %v3207
    %v3816 = vpack.c.b16 %v3224, %v3208
    %v3817 = vpack.c.b16 %v3225, %v3209
    %v3818 = vpack.c.b16 %v3226, %v3210
    %v3819 = vpack.c.b16 %v3227, %v3211
    %v3820 = vpack.c.b16 %v3228, %v3212
    %v3821 = vpack.c.b16 %v3229, %v3213
    %v3822 = vpack.c.b16 %v3230, %v3214
    %v3823 = vpack.c.b16 %v3231, %v3215
    %v3824 = vpack.c.b16 %v3232, %v3216
    %v3825 = vpack.c.b16 %v3233, %v3217
    %v3826 = vpack.c.b16 %v3250, %v3234
    %v3827 = vpack.c.b16 %v3251, %v3235
    %v3828 = vpack.c.b16 %v3252, %v3236
    %v3829 = vpack.c.b16 %v3253, %v3237
    %v3830 = vpack.c.b16 %v3254, %v3238
    %v3831 = vpack.c.b16 %v3255, %v3239
    %v3832 = vpack.c.b16 %v3256, %v3240
    %v3833 = vpack.c.b16 %v3257, %v3241
    %v3834 = vpack.c.b16 %v3258, %v3242
    %v3835 = vpack.c.b16 %v3259, %v3243
    %v3836 = vpack.c.b16 %v3260, %v3244
    %v3837 = vpack.c.b16 %v3261, %v3245
    %v3838 = vpack.c.b16 %v3262, %v3246
    %v3839 = vpack.c.b16 %v3263, %v3247
    %v3840 = vpack.c.b16 %v3264, %v3248
    %v3841 = vpack.c.b16 %v3265, %v3249
    %v3842 = vpack.c.b16 %v3282, %v3266
    %v3843 = vpack.c.b16 %v3283, %v3267
    %v3844 = vpack.c.b16 %v3284, %v3268
    %v3845 = vpack.c.b16 %v3285, %v3269
    %v3846 = vpack.c.b16 %v3286, %v3270
    %v3847 = vpack.c.b16 %v3287, %v3271
    %v3848 = vpack.c.b16 %v3288, %v3272
    %v3849 = vpack.c.b16 %v3289, %v3273
    %v3850 = vpack.c.b16 %v3290, %v3274
    %v3851 = vpack.c.b16 %v3291, %v3275
    %v3852 = vpack.c.b16 %v3292, %v3276
    %v3853 = vpack.c.b16 %v3293, %v3277
    %v3854 = vpack.c.b16 %v3294, %v3278
    %v3855 = vpack.c.b16 %v3295, %v3279
    %v3856 = vpack.c.b16 %v3296, %v3280
    %v3857 = vpack.c.b16 %v3297, %v3281
    %v3858 = vpack.c.b16 %v3314, %v3298
    %v3859 = vpack.c.b16 %v3315, %v3299
    %v3860 = vpack.c.b16 %v3316, %v3300
    %v3861 = vpack.c.b16 %v3317, %v3301
    %v3862 = vpack.c.b16 %v3318, %v3302
    %v3863 = vpack.c.b16 %v3319, %v3303
    %v3864 = vpack.c.b16 %v3320, %v3304
    %v3865 = vpack.c.b16 %v3321, %v3305
    %v3866 = vpack.c.b16 %v3322, %v3306
    %v3867 = vpack.c.b16 %v3323, %v3307
    %v3868 = vpack.c.b16 %v3324, %v3308
    %v3869 = vpack.c.b16 %v3325, %v3309
    %v3870 = vpack.c.b16 %v3326, %v3310
    %v3871 = vpack.c.b16 %v3327, %v3311
    %v3872 = vpack.c.b16 %v3328, %v3312
    %v3873 = vpack.c.b16 %v3329, %v3313
    %v3874 = vpack.c.b16 %v3346, %v3330
    %v3875 = vpack.c.b16 %v3347, %v3331
    %v3876 = vpack.c.b16 %v3348, %v3332
    %v3877 = vpack.c.b16 %v3349, %v3333
    %v3878 = vpack.c.b16 %v3350, %v3334
    %v3879 = vpack.c.b16 %v3351, %v3335
    %v3880 = vpack.c.b16 %v3352, %v3336
    %v3881 = vpack.c.b16 %v3353, %v3337
    %v3882 = vpack.c.b16 %v3354, %v3338
    %v3883 = vpack.c.b16 %v3355, %v3339
    %v3884 = vpack.c.b16 %v3356, %v3340
    %v3885 = vpack.c.b16 %v3357, %v3341
    %v3886 = vpack.c.b16 %v3358, %v3342
    %v3887 = vpack.c.b16 %v3359, %v3343
    %v3888 = vpack.c.b16 %v3360, %v3344
    %v3889 = vpack.c.b16 %v3361, %v3345
    %v3890 = vpack.c.b16 %v3378, %v3362
    %v3891 = vpack.c.b16 %v3379, %v3363
    %v3892 = vpack.c.b16 %v3380, %v3364
    %v3893 = vpack.c.b16 %v3381, %v3365
    %v3894 = vpack.c.b16 %v3382, %v3366
    %v3895 = vpack.c.b16 %v3383, %v3367
    %v3896 = vpack.c.b16 %v3384, %v3368
    %v3897 = vpack.c.b16 %v3385, %v3369
    %v3898 = vpack.c.b16 %v3386, %v3370
    %v3899 = vpack.c.b16 %v3387, %v3371
    %v3900 = vpack.c.b16 %v3388, %v3372
    %v3901 = vpack.c.b16 %v3389, %v3373
    %v3902 = vpack.c.b16 %v3390, %v3374
    %v3903 = vpack.c.b16 %v3391, %v3375
    %v3904 = vpack.c.b16 %v3392, %v3376
    %v3905 = vpack.c.b16 %v3393, %v3377
    %4418 = vmatprep.subr.bf16.mxu0 %v3395
    %4419 = vmatpush1.bf16.msra.mxu0 %v3394
    %4420 = vmatprep.subr.bf16.mxu0 %v3411
    %4421 = vmatpush1.bf16.msra.mxu0 %v3410
    %4422 = vmatprep.subr.bf16.mxu0 %v3427
    %4423 = vmatpush1.bf16.msra.mxu0 %v3426
    %4424 = vmatprep.subr.bf16.mxu0 %v3443
    %4425 = vmatpush1.bf16.msra.mxu0 %v3442
    %4426 = vmatprep.subr.bf16.mxu0 %v3459
    %4427 = vmatpush1.bf16.msra.mxu0 %v3458
    %4428 = vmatprep.subr.bf16.mxu0 %v3475
    %4429 = vmatpush1.bf16.msra.mxu0 %v3474
    %4430 = vmatprep.subr.bf16.mxu0 %v3491
    %4431 = vmatpush1.bf16.msra.mxu0 %v3490
    %4432 = vmatprep.subr.bf16.mxu0 %v3507
    %4433 = vmatpush1.bf16.msra.mxu0 %v3506
    %4434 = vmatprep.subr.bf16.mxu0 %v3523
    %4435 = vmatpush1.bf16.msra.mxu0 %v3522
    %4436 = vmatprep.subr.bf16.mxu0 %v3539
    %4437 = vmatpush1.bf16.msra.mxu0 %v3538
    %4438 = vmatprep.subr.bf16.mxu0 %v3555
    %4439 = vmatpush1.bf16.msra.mxu0 %v3554
    %4440 = vmatprep.subr.bf16.mxu0 %v3571
    %4441 = vmatpush1.bf16.msra.mxu0 %v3570
    %4442 = vmatprep.subr.bf16.mxu0 %v3587
    %4443 = vmatpush1.bf16.msra.mxu0 %v3586
    %4444 = vmatprep.subr.bf16.mxu0 %v3603
    %4445 = vmatpush1.bf16.msra.mxu0 %v3602
    %4446 = vmatprep.subr.bf16.mxu0 %v3619
    %4447 = vmatpush1.bf16.msra.mxu0 %v3618
    %4448 = vmatprep.subr.bf16.mxu0 %v3635
    %4449 = vmatpush1.bf16.msra.mxu0 %v3634
    %4450 = vmatprep.mubr.bf16.mxu0 %v1343
    %4451 = vmatmul.mubr.bf16.gmra.mrb[0].mxu0 %v1342
    %v4452 = vpop.f32.mrb[0].mxu0
    %v4453 = vadd.f32 0.0, %v4452
    %v4454 = vpop.f32.mrb[0].mxu0
    %v4455 = vadd.f32 0.0, %v4454
    %v4456 = vpop.f32.mrb[0].mxu0
    %v4457 = vpop.f32.mrb[0].mxu0
    %4458 = vdwg.mxu0
    %4459 = vmatprep.subr.bf16.mxu0 %v3651
    %4460 = vmatpush1.bf16.msra.mxu0 %v3650
    %4461 = vmatprep.subr.bf16.mxu0 %v3667
    %4462 = vmatpush1.bf16.msra.mxu0 %v3666
    %4463 = vmatprep.subr.bf16.mxu0 %v3683
    %4464 = vmatpush1.bf16.msra.mxu0 %v3682
    %4465 = vmatprep.subr.bf16.mxu0 %v3699
    %4466 = vmatpush1.bf16.msra.mxu0 %v3698
    %4467 = vmatprep.subr.bf16.mxu0 %v3715
    %4468 = vmatpush1.bf16.msra.mxu0 %v3714
    %4469 = vmatprep.subr.bf16.mxu0 %v3731
    %4470 = vmatpush1.bf16.msra.mxu0 %v3730
    %4471 = vmatprep.subr.bf16.mxu0 %v3747
    %4472 = vmatpush1.bf16.msra.mxu0 %v3746
    %4473 = vmatprep.subr.bf16.mxu0 %v3763
    %4474 = vmatpush1.bf16.msra.mxu0 %v3762
    %4475 = vmatprep.subr.bf16.mxu0 %v3779
    %4476 = vmatpush1.bf16.msra.mxu0 %v3778
    %4477 = vmatprep.subr.bf16.mxu0 %v3795
    %4478 = vmatpush1.bf16.msra.mxu0 %v3794
    %4479 = vmatprep.subr.bf16.mxu0 %v3811
    %4480 = vmatpush1.bf16.msra.mxu0 %v3810
    %4481 = vmatprep.subr.bf16.mxu0 %v3827
    %4482 = vmatpush1.bf16.msra.mxu0 %v3826
    %4483 = vmatprep.subr.bf16.mxu0 %v3843
    %4484 = vmatpush1.bf16.msra.mxu0 %v3842
    %4485 = vmatprep.subr.bf16.mxu0 %v3859
    %4486 = vmatpush1.bf16.msra.mxu0 %v3858
    %4487 = vmatprep.subr.bf16.mxu0 %v3875
    %4488 = vmatpush1.bf16.msra.mxu0 %v3874
    %4489 = vmatprep.subr.bf16.mxu0 %v3891
    %4490 = vmatpush1.bf16.msra.mxu0 %v3890
    %4491 = vmatprep.mubr.bf16.mxu0 %v1345
    %4492 = vmatmul.mubr.bf16.gmra.mrb[0].mxu0 %v1344
    %v4493 = vpop.f32.mrb[0].mxu0
    %v4494 = vadd.f32 %v4453, %v4493
    %v4495 = vpop.f32.mrb[0].mxu0
    %v4496 = vadd.f32 %v4455, %v4495
    %v4497 = vpop.f32.mrb[0].mxu0
    %v4498 = vpop.f32.mrb[0].mxu0
    %4499 = vdwg.mxu0
    %4500 = vmatprep.subr.bf16.mxu0 %v3397
    %4501 = vmatpush1.bf16.msra.mxu0 %v3396
    %4502 = vmatprep.subr.bf16.mxu0 %v3413
    %4503 = vmatpush1.bf16.msra.mxu0 %v3412
    %4504 = vmatprep.subr.bf16.mxu0 %v3429
    %4505 = vmatpush1.bf16.msra.mxu0 %v3428
    %4506 = vmatprep.subr.bf16.mxu0 %v3445
    %4507 = vmatpush1.bf16.msra.mxu0 %v3444
    %4508 = vmatprep.subr.bf16.mxu0 %v3461
    %4509 = vmatpush1.bf16.msra.mxu0 %v3460
    %4510 = vmatprep.subr.bf16.mxu0 %v3477
    %4511 = vmatpush1.bf16.msra.mxu0 %v3476
    %4512 = vmatprep.subr.bf16.mxu0 %v3493
    %4513 = vmatpush1.bf16.msra.mxu0 %v3492
    %4514 = vmatprep.subr.bf16.mxu0 %v3509
    %4515 = vmatpush1.bf16.msra.mxu0 %v3508
    %4516 = vmatprep.subr.bf16.mxu0 %v3525
    %4517 = vmatpush1.bf16.msra.mxu0 %v3524
    %4518 = vmatprep.subr.bf16.mxu0 %v3541
    %4519 = vmatpush1.bf16.msra.mxu0 %v3540
    %4520 = vmatprep.subr.bf16.mxu0 %v3557
    %4521 = vmatpush1.bf16.msra.mxu0 %v3556
    %4522 = vmatprep.subr.bf16.mxu0 %v3573
    %4523 = vmatpush1.bf16.msra.mxu0 %v3572
    %4524 = vmatprep.subr.bf16.mxu0 %v3589
    %4525 = vmatpush1.bf16.msra.mxu0 %v3588
    %4526 = vmatprep.subr.bf16.mxu0 %v3605
    %4527 = vmatpush1.bf16.msra.mxu0 %v3604
    %4528 = vmatprep.subr.bf16.mxu0 %v3621
    %4529 = vmatpush1.bf16.msra.mxu0 %v3620
    %4530 = vmatprep.subr.bf16.mxu0 %v3637
    %4531 = vmatpush1.bf16.msra.mxu0 %v3636
    %4532 = vmatprep.mubr.bf16.mxu0 %v1343
    %4533 = vmatmul.mubr.bf16.gmra.mrb[0].mxu0 %v1342
    %v4534 = vpop.f32.mrb[0].mxu0
    %v4535 = vadd.f32 0.0, %v4534
    %v4536 = vpop.f32.mrb[0].mxu0
    %v4537 = vadd.f32 0.0, %v4536
    %v4538 = vpop.f32.mrb[0].mxu0
    %v4539 = vpop.f32.mrb[0].mxu0
    %4540 = vdwg.mxu0
    %4541 = vmatprep.subr.bf16.mxu0 %v3653
    %4542 = vmatpush1.bf16.msra.mxu0 %v3652
    %4543 = vmatprep.subr.bf16.mxu0 %v3669
    %4544 = vmatpush1.bf16.msra.mxu0 %v3668
    %4545 = vmatprep.subr.bf16.mxu0 %v3685
    %4546 = vmatpush1.bf16.msra.mxu0 %v3684
    %4547 = vmatprep.subr.bf16.mxu0 %v3701
    %4548 = vmatpush1.bf16.msra.mxu0 %v3700
    %4549 = vmatprep.subr.bf16.mxu0 %v3717
    %4550 = vmatpush1.bf16.msra.mxu0 %v3716
    %4551 = vmatprep.subr.bf16.mxu0 %v3733
    %4552 = vmatpush1.bf16.msra.mxu0 %v3732
    %4553 = vmatprep.subr.bf16.mxu0 %v3749
    %4554 = vmatpush1.bf16.msra.mxu0 %v3748
    %4555 = vmatprep.subr.bf16.mxu0 %v3765
    %4556 = vmatpush1.bf16.msra.mxu0 %v3764
    %4557 = vmatprep.subr.bf16.mxu0 %v3781
    %4558 = vmatpush1.bf16.msra.mxu0 %v3780
    %4559 = vmatprep.subr.bf16.mxu0 %v3797
    %4560 = vmatpush1.bf16.msra.mxu0 %v3796
    %4561 = vmatprep.subr.bf16.mxu0 %v3813
    %4562 = vmatpush1.bf16.msra.mxu0 %v3812
    %4563 = vmatprep.subr.bf16.mxu0 %v3829
    %4564 = vmatpush1.bf16.msra.mxu0 %v3828
    %4565 = vmatprep.subr.bf16.mxu0 %v3845
    %4566 = vmatpush1.bf16.msra.mxu0 %v3844
    %4567 = vmatprep.subr.bf16.mxu0 %v3861
    %4568 = vmatpush1.bf16.msra.mxu0 %v3860
    %4569 = vmatprep.subr.bf16.mxu0 %v3877
    %4570 = vmatpush1.bf16.msra.mxu0 %v3876
    %4571 = vmatprep.subr.bf16.mxu0 %v3893
    %4572 = vmatpush1.bf16.msra.mxu0 %v3892
    %4573 = vmatprep.mubr.bf16.mxu0 %v1345
    %4574 = vmatmul.mubr.bf16.gmra.mrb[0].mxu0 %v1344
    %v4575 = vpop.f32.mrb[0].mxu0
    %v4576 = vadd.f32 %v4535, %v4575
    %v4577 = vpop.f32.mrb[0].mxu0
    %v4578 = vadd.f32 %v4537, %v4577
    %v4579 = vpop.f32.mrb[0].mxu0
    %v4580 = vpop.f32.mrb[0].mxu0
    %4581 = vdwg.mxu0
    %4582 = vmatprep.subr.bf16.mxu0 %v3399
    %4583 = vmatpush1.bf16.msra.mxu0 %v3398
    %4584 = vmatprep.subr.bf16.mxu0 %v3415
    %4585 = vmatpush1.bf16.msra.mxu0 %v3414
    %4586 = vmatprep.subr.bf16.mxu0 %v3431
    %4587 = vmatpush1.bf16.msra.mxu0 %v3430
    %4588 = vmatprep.subr.bf16.mxu0 %v3447
    %4589 = vmatpush1.bf16.msra.mxu0 %v3446
    %4590 = vmatprep.subr.bf16.mxu0 %v3463
    %4591 = vmatpush1.bf16.msra.mxu0 %v3462
    %4592 = vmatprep.subr.bf16.mxu0 %v3479
    %4593 = vmatpush1.bf16.msra.mxu0 %v3478
    %4594 = vmatprep.subr.bf16.mxu0 %v3495
    %4595 = vmatpush1.bf16.msra.mxu0 %v3494
    %4596 = vmatprep.subr.bf16.mxu0 %v3511
    %4597 = vmatpush1.bf16.msra.mxu0 %v3510
    %4598 = vmatprep.subr.bf16.mxu0 %v3527
    %4599 = vmatpush1.bf16.msra.mxu0 %v3526
    %4600 = vmatprep.subr.bf16.mxu0 %v3543
    %4601 = vmatpush1.bf16.msra.mxu0 %v3542
    %4602 = vmatprep.subr.bf16.mxu0 %v3559
    %4603 = vmatpush1.bf16.msra.mxu0 %v3558
    %4604 = vmatprep.subr.bf16.mxu0 %v3575
    %4605 = vmatpush1.bf16.msra.mxu0 %v3574
    %4606 = vmatprep.subr.bf16.mxu0 %v3591
    %4607 = vmatpush1.bf16.msra.mxu0 %v3590
    %4608 = vmatprep.subr.bf16.mxu0 %v3607
    %4609 = vmatpush1.bf16.msra.mxu0 %v3606
    %4610 = vmatprep.subr.bf16.mxu0 %v3623
    %4611 = vmatpush1.bf16.msra.mxu0 %v3622
    %4612 = vmatprep.subr.bf16.mxu0 %v3639
    %4613 = vmatpush1.bf16.msra.mxu0 %v3638
    %4614 = vmatprep.mubr.bf16.mxu0 %v1343
    %4615 = vmatmul.mubr.bf16.gmra.mrb[0].mxu0 %v1342
    %v4616 = vpop.f32.mrb[0].mxu0
    %v4617 = vadd.f32 0.0, %v4616
    %v4618 = vpop.f32.mrb[0].mxu0
    %v4619 = vadd.f32 0.0, %v4618
    %v4620 = vpop.f32.mrb[0].mxu0
    %v4621 = vpop.f32.mrb[0].mxu0
    %4622 = vdwg.mxu0
    %4623 = vmatprep.subr.bf16.mxu0 %v3655
    %4624 = vmatpush1.bf16.msra.mxu0 %v3654
    %4625 = vmatprep.subr.bf16.mxu0 %v3671
    %4626 = vmatpush1.bf16.msra.mxu0 %v3670
    %4627 = vmatprep.subr.bf16.mxu0 %v3687
    %4628 = vmatpush1.bf16.msra.mxu0 %v3686
    %4629 = vmatprep.subr.bf16.mxu0 %v3703
    %4630 = vmatpush1.bf16.msra.mxu0 %v3702
    %4631 = vmatprep.subr.bf16.mxu0 %v3719
    %4632 = vmatpush1.bf16.msra.mxu0 %v3718
    %4633 = vmatprep.subr.bf16.mxu0 %v3735
    %4634 = vmatpush1.bf16.msra.mxu0 %v3734
    %4635 = vmatprep.subr.bf16.mxu0 %v3751
    %4636 = vmatpush1.bf16.msra.mxu0 %v3750
    %4637 = vmatprep.subr.bf16.mxu0 %v3767
    %4638 = vmatpush1.bf16.msra.mxu0 %v3766
    %4639 = vmatprep.subr.bf16.mxu0 %v3783
    %4640 = vmatpush1.bf16.msra.mxu0 %v3782
    %4641 = vmatprep.subr.bf16.mxu0 %v3799
    %4642 = vmatpush1.bf16.msra.mxu0 %v3798
    %4643 = vmatprep.subr.bf16.mxu0 %v3815
    %4644 = vmatpush1.bf16.msra.mxu0 %v3814
    %4645 = vmatprep.subr.bf16.mxu0 %v3831
    %4646 = vmatpush1.bf16.msra.mxu0 %v3830
    %4647 = vmatprep.subr.bf16.mxu0 %v3847
    %4648 = vmatpush1.bf16.msra.mxu0 %v3846
    %4649 = vmatprep.subr.bf16.mxu0 %v3863
    %4650 = vmatpush1.bf16.msra.mxu0 %v3862
    %4651 = vmatprep.subr.bf16.mxu0 %v3879
    %4652 = vmatpush1.bf16.msra.mxu0 %v3878
    %4653 = vmatprep.subr.bf16.mxu0 %v3895
    %4654 = vmatpush1.bf16.msra.mxu0 %v3894
    %4655 = vmatprep.mubr.bf16.mxu0 %v1345
    %4656 = vmatmul.mubr.bf16.gmra.mrb[0].mxu0 %v1344
    %v4657 = vpop.f32.mrb[0].mxu0
    %v4658 = vadd.f32 %v4617, %v4657
    %v4659 = vpop.f32.mrb[0].mxu0
    %v4660 = vadd.f32 %v4619, %v4659
    %v4661 = vpop.f32.mrb[0].mxu0
    %v4662 = vpop.f32.mrb[0].mxu0
    %4663 = vdwg.mxu0
    %4664 = vmatprep.subr.bf16.mxu0 %v3401
    %4665 = vmatpush1.bf16.msra.mxu0 %v3400
    %4666 = vmatprep.subr.bf16.mxu0 %v3417
    %4667 = vmatpush1.bf16.msra.mxu0 %v3416
    %4668 = vmatprep.subr.bf16.mxu0 %v3433
    %4669 = vmatpush1.bf16.msra.mxu0 %v3432
    %4670 = vmatprep.subr.bf16.mxu0 %v3449
    %4671 = vmatpush1.bf16.msra.mxu0 %v3448
    %4672 = vmatprep.subr.bf16.mxu0 %v3465
    %4673 = vmatpush1.bf16.msra.mxu0 %v3464
    %4674 = vmatprep.subr.bf16.mxu0 %v3481
    %4675 = vmatpush1.bf16.msra.mxu0 %v3480
    %4676 = vmatprep.subr.bf16.mxu0 %v3497
    %4677 = vmatpush1.bf16.msra.mxu0 %v3496
    %4678 = vmatprep.subr.bf16.mxu0 %v3513
    %4679 = vmatpush1.bf16.msra.mxu0 %v3512
    %4680 = vmatprep.subr.bf16.mxu0 %v3529
    %4681 = vmatpush1.bf16.msra.mxu0 %v3528
    %4682 = vmatprep.subr.bf16.mxu0 %v3545
    %4683 = vmatpush1.bf16.msra.mxu0 %v3544
    %4684 = vmatprep.subr.bf16.mxu0 %v3561
    %4685 = vmatpush1.bf16.msra.mxu0 %v3560
    %4686 = vmatprep.subr.bf16.mxu0 %v3577
    %4687 = vmatpush1.bf16.msra.mxu0 %v3576
    %4688 = vmatprep.subr.bf16.mxu0 %v3593
    %4689 = vmatpush1.bf16.msra.mxu0 %v3592
    %4690 = vmatprep.subr.bf16.mxu0 %v3609
    %4691 = vmatpush1.bf16.msra.mxu0 %v3608
    %4692 = vmatprep.subr.bf16.mxu0 %v3625
    %4693 = vmatpush1.bf16.msra.mxu0 %v3624
    %4694 = vmatprep.subr.bf16.mxu0 %v3641
    %4695 = vmatpush1.bf16.msra.mxu0 %v3640
    %4696 = vmatprep.mubr.bf16.mxu0 %v1343
    %4697 = vmatmul.mubr.bf16.gmra.mrb[0].mxu0 %v1342
    %v4698 = vpop.f32.mrb[0].mxu0
    %v4699 = vadd.f32 0.0, %v4698
    %v4700 = vpop.f32.mrb[0].mxu0
    %v4701 = vadd.f32 0.0, %v4700
    %v4702 = vpop.f32.mrb[0].mxu0
    %v4703 = vpop.f32.mrb[0].mxu0
    %4704 = vdwg.mxu0
    %4705 = vmatprep.subr.bf16.mxu0 %v3657
    %4706 = vmatpush1.bf16.msra.mxu0 %v3656
    %4707 = vmatprep.subr.bf16.mxu0 %v3673
    %4708 = vmatpush1.bf16.msra.mxu0 %v3672
    %4709 = vmatprep.subr.bf16.mxu0 %v3689
    %4710 = vmatpush1.bf16.msra.mxu0 %v3688
    %4711 = vmatprep.subr.bf16.mxu0 %v3705
    %4712 = vmatpush1.bf16.msra.mxu0 %v3704
    %4713 = vmatprep.subr.bf16.mxu0 %v3721
    %4714 = vmatpush1.bf16.msra.mxu0 %v3720
    %4715 = vmatprep.subr.bf16.mxu0 %v3737
    %4716 = vmatpush1.bf16.msra.mxu0 %v3736
    %4717 = vmatprep.subr.bf16.mxu0 %v3753
    %4718 = vmatpush1.bf16.msra.mxu0 %v3752
    %4719 = vmatprep.subr.bf16.mxu0 %v3769
    %4720 = vmatpush1.bf16.msra.mxu0 %v3768
    %4721 = vmatprep.subr.bf16.mxu0 %v3785
    %4722 = vmatpush1.bf16.msra.mxu0 %v3784
    %4723 = vmatprep.subr.bf16.mxu0 %v3801
    %4724 = vmatpush1.bf16.msra.mxu0 %v3800
    %4725 = vmatprep.subr.bf16.mxu0 %v3817
    %4726 = vmatpush1.bf16.msra.mxu0 %v3816
    %4727 = vmatprep.subr.bf16.mxu0 %v3833
    %4728 = vmatpush1.bf16.msra.mxu0 %v3832
    %4729 = vmatprep.subr.bf16.mxu0 %v3849
    %4730 = vmatpush1.bf16.msra.mxu0 %v3848
    %4731 = vmatprep.subr.bf16.mxu0 %v3865
    %4732 = vmatpush1.bf16.msra.mxu0 %v3864
    %4733 = vmatprep.subr.bf16.mxu0 %v3881
    %4734 = vmatpush1.bf16.msra.mxu0 %v3880
    %4735 = vmatprep.subr.bf16.mxu0 %v3897
    %4736 = vmatpush1.bf16.msra.mxu0 %v3896
    %4737 = vmatprep.mubr.bf16.mxu0 %v1345
    %4738 = vmatmul.mubr.bf16.gmra.mrb[0].mxu0 %v1344
    %v4739 = vpop.f32.mrb[0].mxu0
    %v4740 = vadd.f32 %v4699, %v4739
    %v4741 = vpop.f32.mrb[0].mxu0
    %v4742 = vadd.f32 %v4701, %v4741
    %v4743 = vpop.f32.mrb[0].mxu0
    %v4744 = vpop.f32.mrb[0].mxu0
    %4745 = vdwg.mxu0
    %4746 = vmatprep.subr.bf16.mxu0 %v3403
    %4747 = vmatpush1.bf16.msra.mxu0 %v3402
    %4748 = vmatprep.subr.bf16.mxu0 %v3419
    %4749 = vmatpush1.bf16.msra.mxu0 %v3418
    %4750 = vmatprep.subr.bf16.mxu0 %v3435
    %4751 = vmatpush1.bf16.msra.mxu0 %v3434
    %4752 = vmatprep.subr.bf16.mxu0 %v3451
    %4753 = vmatpush1.bf16.msra.mxu0 %v3450
    %4754 = vmatprep.subr.bf16.mxu0 %v3467
    %4755 = vmatpush1.bf16.msra.mxu0 %v3466
    %4756 = vmatprep.subr.bf16.mxu0 %v3483
    %4757 = vmatpush1.bf16.msra.mxu0 %v3482
    %4758 = vmatprep.subr.bf16.mxu0 %v3499
    %4759 = vmatpush1.bf16.msra.mxu0 %v3498
    %4760 = vmatprep.subr.bf16.mxu0 %v3515
    %4761 = vmatpush1.bf16.msra.mxu0 %v3514
    %4762 = vmatprep.subr.bf16.mxu0 %v3531
    %4763 = vmatpush1.bf16.msra.mxu0 %v3530
    %4764 = vmatprep.subr.bf16.mxu0 %v3547
    %4765 = vmatpush1.bf16.msra.mxu0 %v3546
    %4766 = vmatprep.subr.bf16.mxu0 %v3563
    %4767 = vmatpush1.bf16.msra.mxu0 %v3562
    %4768 = vmatprep.subr.bf16.mxu0 %v3579
    %4769 = vmatpush1.bf16.msra.mxu0 %v3578
    %4770 = vmatprep.subr.bf16.mxu0 %v3595
    %4771 = vmatpush1.bf16.msra.mxu0 %v3594
    %4772 = vmatprep.subr.bf16.mxu0 %v3611
    %4773 = vmatpush1.bf16.msra.mxu0 %v3610
    %4774 = vmatprep.subr.bf16.mxu0 %v3627
    %4775 = vmatpush1.bf16.msra.mxu0 %v3626
    %4776 = vmatprep.subr.bf16.mxu0 %v3643
    %4777 = vmatpush1.bf16.msra.mxu0 %v3642
    %4778 = vmatprep.mubr.bf16.mxu0 %v1343
    %4779 = vmatmul.mubr.bf16.gmra.mrb[0].mxu0 %v1342
    %v4780 = vpop.f32.mrb[0].mxu0
    %v4781 = vadd.f32 0.0, %v4780
    %v4782 = vpop.f32.mrb[0].mxu0
    %v4783 = vadd.f32 0.0, %v4782
    %v4784 = vpop.f32.mrb[0].mxu0
    %v4785 = vpop.f32.mrb[0].mxu0
    %4786 = vdwg.mxu0
    %4787 = vmatprep.subr.bf16.mxu0 %v3659
    %4788 = vmatpush1.bf16.msra.mxu0 %v3658
    %4789 = vmatprep.subr.bf16.mxu0 %v3675
    %4790 = vmatpush1.bf16.msra.mxu0 %v3674
    %4791 = vmatprep.subr.bf16.mxu0 %v3691
    %4792 = vmatpush1.bf16.msra.mxu0 %v3690
    %4793 = vmatprep.subr.bf16.mxu0 %v3707
    %4794 = vmatpush1.bf16.msra.mxu0 %v3706
    %4795 = vmatprep.subr.bf16.mxu0 %v3723
    %4796 = vmatpush1.bf16.msra.mxu0 %v3722
    %4797 = vmatprep.subr.bf16.mxu0 %v3739
    %4798 = vmatpush1.bf16.msra.mxu0 %v3738
    %4799 = vmatprep.subr.bf16.mxu0 %v3755
    %4800 = vmatpush1.bf16.msra.mxu0 %v3754
    %4801 = vmatprep.subr.bf16.mxu0 %v3771
    %4802 = vmatpush1.bf16.msra.mxu0 %v3770
    %4803 = vmatprep.subr.bf16.mxu0 %v3787
    %4804 = vmatpush1.bf16.msra.mxu0 %v3786
    %4805 = vmatprep.subr.bf16.mxu0 %v3803
    %4806 = vmatpush1.bf16.msra.mxu0 %v3802
    %4807 = vmatprep.subr.bf16.mxu0 %v3819
    %4808 = vmatpush1.bf16.msra.mxu0 %v3818
    %4809 = vmatprep.subr.bf16.mxu0 %v3835
    %4810 = vmatpush1.bf16.msra.mxu0 %v3834
    %4811 = vmatprep.subr.bf16.mxu0 %v3851
    %4812 = vmatpush1.bf16.msra.mxu0 %v3850
    %4813 = vmatprep.subr.bf16.mxu0 %v3867
    %4814 = vmatpush1.bf16.msra.mxu0 %v3866
    %4815 = vmatprep.subr.bf16.mxu0 %v3883
    %4816 = vmatpush1.bf16.msra.mxu0 %v3882
    %4817 = vmatprep.subr.bf16.mxu0 %v3899
    %4818 = vmatpush1.bf16.msra.mxu0 %v3898
    %4819 = vmatprep.mubr.bf16.mxu0 %v1345
    %4820 = vmatmul.mubr.bf16.gmra.mrb[0].mxu0 %v1344
    %v4821 = vpop.f32.mrb[0].mxu0
    %v4822 = vadd.f32 %v4781, %v4821
    %v4823 = vpop.f32.mrb[0].mxu0
    %v4824 = vadd.f32 %v4783, %v4823
    %v4825 = vpop.f32.mrb[0].mxu0
    %v4826 = vpop.f32.mrb[0].mxu0
    %4827 = vdwg.mxu0
    %4828 = vmatprep.subr.bf16.mxu0 %v3405
    %4829 = vmatpush1.bf16.msra.mxu0 %v3404
    %4830 = vmatprep.subr.bf16.mxu0 %v3421
    %4831 = vmatpush1.bf16.msra.mxu0 %v3420
    %4832 = vmatprep.subr.bf16.mxu0 %v3437
    %4833 = vmatpush1.bf16.msra.mxu0 %v3436
    %4834 = vmatprep.subr.bf16.mxu0 %v3453
    %4835 = vmatpush1.bf16.msra.mxu0 %v3452
    %4836 = vmatprep.subr.bf16.mxu0 %v3469
    %4837 = vmatpush1.bf16.msra.mxu0 %v3468
    %4838 = vmatprep.subr.bf16.mxu0 %v3485
    %4839 = vmatpush1.bf16.msra.mxu0 %v3484
    %4840 = vmatprep.subr.bf16.mxu0 %v3501
    %4841 = vmatpush1.bf16.msra.mxu0 %v3500
    %4842 = vmatprep.subr.bf16.mxu0 %v3517
    %4843 = vmatpush1.bf16.msra.mxu0 %v3516
    %4844 = vmatprep.subr.bf16.mxu0 %v3533
    %4845 = vmatpush1.bf16.msra.mxu0 %v3532
    %4846 = vmatprep.subr.bf16.mxu0 %v3549
    %4847 = vmatpush1.bf16.msra.mxu0 %v3548
    %4848 = vmatprep.subr.bf16.mxu0 %v3565
    %4849 = vmatpush1.bf16.msra.mxu0 %v3564
    %4850 = vmatprep.subr.bf16.mxu0 %v3581
    %4851 = vmatpush1.bf16.msra.mxu0 %v3580
    %4852 = vmatprep.subr.bf16.mxu0 %v3597
    %4853 = vmatpush1.bf16.msra.mxu0 %v3596
    %4854 = vmatprep.subr.bf16.mxu0 %v3613
    %4855 = vmatpush1.bf16.msra.mxu0 %v3612
    %4856 = vmatprep.subr.bf16.mxu0 %v3629
    %4857 = vmatpush1.bf16.msra.mxu0 %v3628
    %4858 = vmatprep.subr.bf16.mxu0 %v3645
    %4859 = vmatpush1.bf16.msra.mxu0 %v3644
    %4860 = vmatprep.mubr.bf16.mxu0 %v1343
    %4861 = vmatmul.mubr.bf16.gmra.mrb[0].mxu0 %v1342
    %v4862 = vpop.f32.mrb[0].mxu0
    %v4863 = vadd.f32 0.0, %v4862
    %v4864 = vpop.f32.mrb[0].mxu0
    %v4865 = vadd.f32 0.0, %v4864
    %v4866 = vpop.f32.mrb[0].mxu0
    %v4867 = vpop.f32.mrb[0].mxu0
    %4868 = vdwg.mxu0
    %4869 = vmatprep.subr.bf16.mxu0 %v3661
    %4870 = vmatpush1.bf16.msra.mxu0 %v3660
    %4871 = vmatprep.subr.bf16.mxu0 %v3677
    %4872 = vmatpush1.bf16.msra.mxu0 %v3676
    %4873 = vmatprep.subr.bf16.mxu0 %v3693
    %4874 = vmatpush1.bf16.msra.mxu0 %v3692
    %4875 = vmatprep.subr.bf16.mxu0 %v3709
    %4876 = vmatpush1.bf16.msra.mxu0 %v3708
    %4877 = vmatprep.subr.bf16.mxu0 %v3725
    %4878 = vmatpush1.bf16.msra.mxu0 %v3724
    %4879 = vmatprep.subr.bf16.mxu0 %v3741
    %4880 = vmatpush1.bf16.msra.mxu0 %v3740
    %4881 = vmatprep.subr.bf16.mxu0 %v3757
    %4882 = vmatpush1.bf16.msra.mxu0 %v3756
    %4883 = vmatprep.subr.bf16.mxu0 %v3773
    %4884 = vmatpush1.bf16.msra.mxu0 %v3772
    %4885 = vmatprep.subr.bf16.mxu0 %v3789
    %4886 = vmatpush1.bf16.msra.mxu0 %v3788
    %4887 = vmatprep.subr.bf16.mxu0 %v3805
    %4888 = vmatpush1.bf16.msra.mxu0 %v3804
    %4889 = vmatprep.subr.bf16.mxu0 %v3821
    %4890 = vmatpush1.bf16.msra.mxu0 %v3820
    %4891 = vmatprep.subr.bf16.mxu0 %v3837
    %4892 = vmatpush1.bf16.msra.mxu0 %v3836
    %4893 = vmatprep.subr.bf16.mxu0 %v3853
    %4894 = vmatpush1.bf16.msra.mxu0 %v3852
    %4895 = vmatprep.subr.bf16.mxu0 %v3869
    %4896 = vmatpush1.bf16.msra.mxu0 %v3868
    %4897 = vmatprep.subr.bf16.mxu0 %v3885
    %4898 = vmatpush1.bf16.msra.mxu0 %v3884
    %4899 = vmatprep.subr.bf16.mxu0 %v3901
    %4900 = vmatpush1.bf16.msra.mxu0 %v3900
    %4901 = vmatprep.mubr.bf16.mxu0 %v1345
    %4902 = vmatmul.mubr.bf16.gmra.mrb[0].mxu0 %v1344
    %v4903 = vpop.f32.mrb[0].mxu0
    %v4904 = vadd.f32 %v4863, %v4903
    %v4905 = vpop.f32.mrb[0].mxu0
    %v4906 = vadd.f32 %v4865, %v4905
    %v4907 = vpop.f32.mrb[0].mxu0
    %v4908 = vpop.f32.mrb[0].mxu0
    %4909 = vdwg.mxu0
    %4910 = vmatprep.subr.bf16.mxu0 %v3407
    %4911 = vmatpush1.bf16.msra.mxu0 %v3406
    %4912 = vmatprep.subr.bf16.mxu0 %v3423
    %4913 = vmatpush1.bf16.msra.mxu0 %v3422
    %4914 = vmatprep.subr.bf16.mxu0 %v3439
    %4915 = vmatpush1.bf16.msra.mxu0 %v3438
    %4916 = vmatprep.subr.bf16.mxu0 %v3455
    %4917 = vmatpush1.bf16.msra.mxu0 %v3454
    %4918 = vmatprep.subr.bf16.mxu0 %v3471
    %4919 = vmatpush1.bf16.msra.mxu0 %v3470
    %4920 = vmatprep.subr.bf16.mxu0 %v3487
    %4921 = vmatpush1.bf16.msra.mxu0 %v3486
    %4922 = vmatprep.subr.bf16.mxu0 %v3503
    %4923 = vmatpush1.bf16.msra.mxu0 %v3502
    %4924 = vmatprep.subr.bf16.mxu0 %v3519
    %4925 = vmatpush1.bf16.msra.mxu0 %v3518
    %4926 = vmatprep.subr.bf16.mxu0 %v3535
    %4927 = vmatpush1.bf16.msra.mxu0 %v3534
    %4928 = vmatprep.subr.bf16.mxu0 %v3551
    %4929 = vmatpush1.bf16.msra.mxu0 %v3550
    %4930 = vmatprep.subr.bf16.mxu0 %v3567
    %4931 = vmatpush1.bf16.msra.mxu0 %v3566
    %4932 = vmatprep.subr.bf16.mxu0 %v3583
    %4933 = vmatpush1.bf16.msra.mxu0 %v3582
    %4934 = vmatprep.subr.bf16.mxu0 %v3599
    %4935 = vmatpush1.bf16.msra.mxu0 %v3598
    %4936 = vmatprep.subr.bf16.mxu0 %v3615
    %4937 = vmatpush1.bf16.msra.mxu0 %v3614
    %4938 = vmatprep.subr.bf16.mxu0 %v3631
    %4939 = vmatpush1.bf16.msra.mxu0 %v3630
    %4940 = vmatprep.subr.bf16.mxu0 %v3647
    %4941 = vmatpush1.bf16.msra.mxu0 %v3646
    %4942 = vmatprep.mubr.bf16.mxu0 %v1343
    %4943 = vmatmul.mubr.bf16.gmra.mrb[0].mxu0 %v1342
    %v4944 = vpop.f32.mrb[0].mxu0
    %v4945 = vadd.f32 0.0, %v4944
    %v4946 = vpop.f32.mrb[0].mxu0
    %v4947 = vadd.f32 0.0, %v4946
    %v4948 = vpop.f32.mrb[0].mxu0
    %v4949 = vpop.f32.mrb[0].mxu0
    %4950 = vdwg.mxu0
    %4951 = vmatprep.subr.bf16.mxu0 %v3663
    %4952 = vmatpush1.bf16.msra.mxu0 %v3662
    %4953 = vmatprep.subr.bf16.mxu0 %v3679
    %4954 = vmatpush1.bf16.msra.mxu0 %v3678
    %4955 = vmatprep.subr.bf16.mxu0 %v3695
    %4956 = vmatpush1.bf16.msra.mxu0 %v3694
    %4957 = vmatprep.subr.bf16.mxu0 %v3711
    %4958 = vmatpush1.bf16.msra.mxu0 %v3710
    %4959 = vmatprep.subr.bf16.mxu0 %v3727
    %4960 = vmatpush1.bf16.msra.mxu0 %v3726
    %4961 = vmatprep.subr.bf16.mxu0 %v3743
    %4962 = vmatpush1.bf16.msra.mxu0 %v3742
    %4963 = vmatprep.subr.bf16.mxu0 %v3759
    %4964 = vmatpush1.bf16.msra.mxu0 %v3758
    %4965 = vmatprep.subr.bf16.mxu0 %v3775
    %4966 = vmatpush1.bf16.msra.mxu0 %v3774
    %4967 = vmatprep.subr.bf16.mxu0 %v3791
    %4968 = vmatpush1.bf16.msra.mxu0 %v3790
    %4969 = vmatprep.subr.bf16.mxu0 %v3807
    %4970 = vmatpush1.bf16.msra.mxu0 %v3806
    %4971 = vmatprep.subr.bf16.mxu0 %v3823
    %4972 = vmatpush1.bf16.msra.mxu0 %v3822
    %4973 = vmatprep.subr.bf16.mxu0 %v3839
    %4974 = vmatpush1.bf16.msra.mxu0 %v3838
    %4975 = vmatprep.subr.bf16.mxu0 %v3855
    %4976 = vmatpush1.bf16.msra.mxu0 %v3854
    %4977 = vmatprep.subr.bf16.mxu0 %v3871
    %4978 = vmatpush1.bf16.msra.mxu0 %v3870
    %4979 = vmatprep.subr.bf16.mxu0 %v3887
    %4980 = vmatpush1.bf16.msra.mxu0 %v3886
    %4981 = vmatprep.subr.bf16.mxu0 %v3903
    %4982 = vmatpush1.bf16.msra.mxu0 %v3902
    %4983 = vmatprep.mubr.bf16.mxu0 %v1345
    %4984 = vmatmul.mubr.bf16.gmra.mrb[0].mxu0 %v1344
    %v4985 = vpop.f32.mrb[0].mxu0
    %v4986 = vadd.f32 %v4945, %v4985
    %v4987 = vpop.f32.mrb[0].mxu0
    %v4988 = vadd.f32 %v4947, %v4987
    %v4989 = vpop.f32.mrb[0].mxu0
    %v4990 = vpop.f32.mrb[0].mxu0
    %4991 = vdwg.mxu0
    %4992 = vmatprep.subr.bf16.mxu0 %v3409
    %4993 = vmatpush1.bf16.msra.mxu0 %v3408
    %4994 = vmatprep.subr.bf16.mxu0 %v3425
    %4995 = vmatpush1.bf16.msra.mxu0 %v3424
    %4996 = vmatprep.subr.bf16.mxu0 %v3441
    %4997 = vmatpush1.bf16.msra.mxu0 %v3440
    %4998 = vmatprep.subr.bf16.mxu0 %v3457
    %4999 = vmatpush1.bf16.msra.mxu0 %v3456
    %5000 = vmatprep.subr.bf16.mxu0 %v3473
    %5001 = vmatpush1.bf16.msra.mxu0 %v3472
    %5002 = vmatprep.subr.bf16.mxu0 %v3489
    %5003 = vmatpush1.bf16.msra.mxu0 %v3488
    %5004 = vmatprep.subr.bf16.mxu0 %v3505
    %5005 = vmatpush1.bf16.msra.mxu0 %v3504
    %5006 = vmatprep.subr.bf16.mxu0 %v3521
    %5007 = vmatpush1.bf16.msra.mxu0 %v3520
    %5008 = vmatprep.subr.bf16.mxu0 %v3537
    %5009 = vmatpush1.bf16.msra.mxu0 %v3536
    %5010 = vmatprep.subr.bf16.mxu0 %v3553
    %5011 = vmatpush1.bf16.msra.mxu0 %v3552
    %5012 = vmatprep.subr.bf16.mxu0 %v3569
    %5013 = vmatpush1.bf16.msra.mxu0 %v3568
    %5014 = vmatprep.subr.bf16.mxu0 %v3585
    %5015 = vmatpush1.bf16.msra.mxu0 %v3584
    %5016 = vmatprep.subr.bf16.mxu0 %v3601
    %5017 = vmatpush1.bf16.msra.mxu0 %v3600
    %5018 = vmatprep.subr.bf16.mxu0 %v3617
    %5019 = vmatpush1.bf16.msra.mxu0 %v3616
    %5020 = vmatprep.subr.bf16.mxu0 %v3633
    %5021 = vmatpush1.bf16.msra.mxu0 %v3632
    %5022 = vmatprep.subr.bf16.mxu0 %v3649
    %5023 = vmatpush1.bf16.msra.mxu0 %v3648
    %5024 = vmatprep.mubr.bf16.mxu0 %v1343
    %5025 = vmatmul.mubr.bf16.gmra.mrb[0].mxu0 %v1342
    %v5026 = vpop.f32.mrb[0].mxu0
    %v5027 = vadd.f32 0.0, %v5026
    %v5028 = vpop.f32.mrb[0].mxu0
    %v5029 = vadd.f32 0.0, %v5028
    %v5030 = vpop.f32.mrb[0].mxu0
    %v5031 = vpop.f32.mrb[0].mxu0
    %5032 = vdwg.mxu0
    %5033 = vmatprep.subr.bf16.mxu0 %v3665
    %5034 = vmatpush1.bf16.msra.mxu0 %v3664
    %5035 = vmatprep.subr.bf16.mxu0 %v3681
    %5036 = vmatpush1.bf16.msra.mxu0 %v3680
    %5037 = vmatprep.subr.bf16.mxu0 %v3697
    %5038 = vmatpush1.bf16.msra.mxu0 %v3696
    %5039 = vmatprep.subr.bf16.mxu0 %v3713
    %5040 = vmatpush1.bf16.msra.mxu0 %v3712
    %5041 = vmatprep.subr.bf16.mxu0 %v3729
    %5042 = vmatpush1.bf16.msra.mxu0 %v3728
    %5043 = vmatprep.subr.bf16.mxu0 %v3745
    %5044 = vmatpush1.bf16.msra.mxu0 %v3744
    %5045 = vmatprep.subr.bf16.mxu0 %v3761
    %5046 = vmatpush1.bf16.msra.mxu0 %v3760
    %5047 = vmatprep.subr.bf16.mxu0 %v3777
    %5048 = vmatpush1.bf16.msra.mxu0 %v3776
    %5049 = vmatprep.subr.bf16.mxu0 %v3793
    %5050 = vmatpush1.bf16.msra.mxu0 %v3792
    %5051 = vmatprep.subr.bf16.mxu0 %v3809
    %5052 = vmatpush1.bf16.msra.mxu0 %v3808
    %5053 = vmatprep.subr.bf16.mxu0 %v3825
    %5054 = vmatpush1.bf16.msra.mxu0 %v3824
    %5055 = vmatprep.subr.bf16.mxu0 %v3841
    %5056 = vmatpush1.bf16.msra.mxu0 %v3840
    %5057 = vmatprep.subr.bf16.mxu0 %v3857
    %5058 = vmatpush1.bf16.msra.mxu0 %v3856
    %5059 = vmatprep.subr.bf16.mxu0 %v3873
    %5060 = vmatpush1.bf16.msra.mxu0 %v3872
    %5061 = vmatprep.subr.bf16.mxu0 %v3889
    %5062 = vmatpush1.bf16.msra.mxu0 %v3888
    %5063 = vmatprep.subr.bf16.mxu0 %v3905
    %5064 = vmatpush1.bf16.msra.mxu0 %v3904
    %5065 = vmatprep.mubr.bf16.mxu0 %v1345
    %5066 = vmatmul.mubr.bf16.gmra.mrb[0].mxu0 %v1344
    %v5067 = vpop.f32.mrb[0].mxu0
    %v5068 = vadd.f32 %v5027, %v5067
    %v5069 = vpop.f32.mrb[0].mxu0
    %v5070 = vadd.f32 %v5029, %v5069
    %v5071 = vpop.f32.mrb[0].mxu0
    %v5072 = vpop.f32.mrb[0].mxu0
    %5073 = vdwg.mxu0
    %v5074 = vpack.c.bf16 %v4494, %v4494
    %v5075 = vpack.c.bf16 %v4496, %v4496
    %v5076 = vpack.c.bf16 %v4576, %v4576
    %v5077 = vpack.c.bf16 %v4578, %v4578
    %v5078 = vpack.c.bf16 %v4658, %v4658
    %v5079 = vpack.c.bf16 %v4660, %v4660
    %v5080 = vpack.c.bf16 %v4740, %v4740
    %v5081 = vpack.c.bf16 %v4742, %v4742
    %v5082 = vpack.c.bf16 %v4822, %v4822
    %v5083 = vpack.c.bf16 %v4824, %v4824
    %v5084 = vpack.c.bf16 %v4904, %v4904
    %v5085 = vpack.c.bf16 %v4906, %v4906
    %v5086 = vpack.c.bf16 %v4986, %v4986
    %v5087 = vpack.c.bf16 %v4988, %v4988
    %v5088 = vpack.c.bf16 %v5068, %v5068
    %v5089 = vpack.c.bf16 %v5070, %v5070
    %v5090 = vld [vmem:[#allocation13] sm:$0xff]
    %v5091 = vld [vmem:[#allocation13 + $0x8] sm:$0xff]
    %v5094 = vcombine.high %v5090, %v5090
    %v5096 = vunpack.c.l.s4 1966171168
    %v5097 = vunpack.c.0.s8 %v5096
    %v5098 = vlaneseq
    %v5099 = vshrl.u32 %v5098, 7
    %v5100 = vsub.s32 %v5097, %v5099
    %v5101 = vrot.slane %v5090, %v5100
    %v5103 = vunpack.c.l.s4 1966171168
    %v5104 = vunpack.c.0.s8 %v5103
    %v5105 = vlaneseq
    %v5106 = vshrl.u32 %v5105, 7
    %v5107 = vsub.s32 %v5104, %v5106
    %v5108 = vrot.slane %v5094, %v5107
    %v5109 = vcombine.high %v5101, %v5101
    %v5110 = vcombine.high %v5108, %v5108
    %v5112 = vunpack.c.l.s4 1966171168
    %v5113 = vunpack.c.0.s8 %v5112
    %v5114 = vlaneseq
    %v5115 = vshrl.u32 %v5114, 7
    %v5116 = vsub.s32 %v5113, %v5115
    %v5117 = vrot.slane %v5101, %v5116
    %v5119 = vunpack.c.l.s4 1966171168
    %v5120 = vunpack.c.0.s8 %v5119
    %v5121 = vlaneseq
    %v5122 = vshrl.u32 %v5121, 7
    %v5123 = vsub.s32 %v5120, %v5122
    %v5124 = vrot.slane %v5108, %v5123
    %v5126 = vunpack.c.l.s4 1966171168
    %v5127 = vunpack.c.0.s8 %v5126
    %v5128 = vlaneseq
    %v5129 = vshrl.u32 %v5128, 7
    %v5130 = vsub.s32 %v5127, %v5129
    %v5131 = vrot.slane %v5109, %v5130
    %v5133 = vunpack.c.l.s4 1966171168
    %v5134 = vunpack.c.0.s8 %v5133
    %v5135 = vlaneseq
    %v5136 = vshrl.u32 %v5135, 7
    %v5137 = vsub.s32 %v5134, %v5136
    %v5138 = vrot.slane %v5110, %v5137
    %v5139 = vcombine.high %v5117, %v5117
    %v5140 = vcombine.high %v5124, %v5124
    %v5141 = vcombine.high %v5131, %v5131
    %v5142 = vcombine.high %v5138, %v5138
    %v5143 = vcombine.high %v5091, %v5091
    %v5145 = vunpack.c.l.s4 1966171168
    %v5146 = vunpack.c.0.s8 %v5145
    %v5147 = vlaneseq
    %v5148 = vshrl.u32 %v5147, 7
    %v5149 = vsub.s32 %v5146, %v5148
    %v5150 = vrot.slane %v5091, %v5149
    %v5152 = vunpack.c.l.s4 1966171168
    %v5153 = vunpack.c.0.s8 %v5152
    %v5154 = vlaneseq
    %v5155 = vshrl.u32 %v5154, 7
    %v5156 = vsub.s32 %v5153, %v5155
    %v5157 = vrot.slane %v5143, %v5156
    %v5158 = vcombine.high %v5150, %v5150
    %v5159 = vcombine.high %v5157, %v5157
    %v5161 = vunpack.c.l.s4 1966171168
    %v5162 = vunpack.c.0.s8 %v5161
    %v5163 = vlaneseq
    %v5164 = vshrl.u32 %v5163, 7
    %v5165 = vsub.s32 %v5162, %v5164
    %v5166 = vrot.slane %v5150, %v5165
    %v5168 = vunpack.c.l.s4 1966171168
    %v5169 = vunpack.c.0.s8 %v5168
    %v5170 = vlaneseq
    %v5171 = vshrl.u32 %v5170, 7
    %v5172 = vsub.s32 %v5169, %v5171
    %v5173 = vrot.slane %v5157, %v5172
    %v5175 = vunpack.c.l.s4 1966171168
    %v5176 = vunpack.c.0.s8 %v5175
    %v5177 = vlaneseq
    %v5178 = vshrl.u32 %v5177, 7
    %v5179 = vsub.s32 %v5176, %v5178
    %v5180 = vrot.slane %v5158, %v5179
    %v5182 = vunpack.c.l.s4 1966171168
    %v5183 = vunpack.c.0.s8 %v5182
    %v5184 = vlaneseq
    %v5185 = vshrl.u32 %v5184, 7
    %v5186 = vsub.s32 %v5183, %v5185
    %v5187 = vrot.slane %v5159, %v5186
    %v5188 = vcombine.high %v5166, %v5166
    %v5189 = vcombine.high %v5173, %v5173
    %v5190 = vcombine.high %v5180, %v5180
    %v5191 = vcombine.high %v5187, %v5187
    %v5193 = vpack.i.b16 %v5117, %v5117
    %v5195 = vlaneseq
    %v5196 = vshrl.u32 %v5195, 7
    %v5197 = vsub.s32 0, %v5196
    %v5198 = vrot.slane %v5193, %v5197
    %v5200 = vpack.i.b16 %v5131, %v5131
    %v5202 = vlaneseq
    %v5203 = vshrl.u32 %v5202, 7
    %v5204 = vsub.s32 0, %v5203
    %v5205 = vrot.slane %v5200, %v5204
    %v5207 = vpack.i.b16 %v5139, %v5139
    %v5209 = vlaneseq
    %v5210 = vshrl.u32 %v5209, 7
    %v5211 = vsub.s32 0, %v5210
    %v5212 = vrot.slane %v5207, %v5211
    %v5214 = vpack.i.b16 %v5141, %v5141
    %v5216 = vlaneseq
    %v5217 = vshrl.u32 %v5216, 7
    %v5218 = vsub.s32 0, %v5217
    %v5219 = vrot.slane %v5214, %v5218
    %v5221 = vpack.i.b16 %v5124, %v5124
    %v5223 = vlaneseq
    %v5224 = vshrl.u32 %v5223, 7
    %v5225 = vsub.s32 0, %v5224
    %v5226 = vrot.slane %v5221, %v5225
    %v5228 = vpack.i.b16 %v5138, %v5138
    %v5230 = vlaneseq
    %v5231 = vshrl.u32 %v5230, 7
    %v5232 = vsub.s32 0, %v5231
    %v5233 = vrot.slane %v5228, %v5232
    %v5235 = vpack.i.b16 %v5140, %v5140
    %v5237 = vlaneseq
    %v5238 = vshrl.u32 %v5237, 7
    %v5239 = vsub.s32 0, %v5238
    %v5240 = vrot.slane %v5235, %v5239
    %v5242 = vpack.i.b16 %v5142, %v5142
    %v5244 = vlaneseq
    %v5245 = vshrl.u32 %v5244, 7
    %v5246 = vsub.s32 0, %v5245
    %v5247 = vrot.slane %v5242, %v5246
    %v5249 = vpack.i.b16 %v5166, %v5166
    %v5251 = vlaneseq
    %v5252 = vshrl.u32 %v5251, 7
    %v5253 = vsub.s32 0, %v5252
    %v5254 = vrot.slane %v5249, %v5253
    %v5256 = vpack.i.b16 %v5180, %v5180
    %v5258 = vlaneseq
    %v5259 = vshrl.u32 %v5258, 7
    %v5260 = vsub.s32 0, %v5259
    %v5261 = vrot.slane %v5256, %v5260
    %v5263 = vpack.i.b16 %v5188, %v5188
    %v5265 = vlaneseq
    %v5266 = vshrl.u32 %v5265, 7
    %v5267 = vsub.s32 0, %v5266
    %v5268 = vrot.slane %v5263, %v5267
    %v5270 = vpack.i.b16 %v5190, %v5190
    %v5272 = vlaneseq
    %v5273 = vshrl.u32 %v5272, 7
    %v5274 = vsub.s32 0, %v5273
    %v5275 = vrot.slane %v5270, %v5274
    %v5277 = vpack.i.b16 %v5173, %v5173
    %v5279 = vlaneseq
    %v5280 = vshrl.u32 %v5279, 7
    %v5281 = vsub.s32 0, %v5280
    %v5282 = vrot.slane %v5277, %v5281
    %v5284 = vpack.i.b16 %v5187, %v5187
    %v5286 = vlaneseq
    %v5287 = vshrl.u32 %v5286, 7
    %v5288 = vsub.s32 0, %v5287
    %v5289 = vrot.slane %v5284, %v5288
    %v5291 = vpack.i.b16 %v5189, %v5189
    %v5293 = vlaneseq
    %v5294 = vshrl.u32 %v5293, 7
    %v5295 = vsub.s32 0, %v5294
    %v5296 = vrot.slane %v5291, %v5295
    %v5298 = vpack.i.b16 %v5191, %v5191
    %v5300 = vlaneseq
    %v5301 = vshrl.u32 %v5300, 7
    %v5302 = vsub.s32 0, %v5301
    %v5303 = vrot.slane %v5298, %v5302
    %v5304 = vadd.bf16 %v5074, %v5198
    %v5305 = vadd.bf16 %v5075, %v5205
    %v5306 = vadd.bf16 %v5076, %v5212
    %v5307 = vadd.bf16 %v5077, %v5219
    %v5308 = vadd.bf16 %v5078, %v5226
    %v5309 = vadd.bf16 %v5079, %v5233
    %v5310 = vadd.bf16 %v5080, %v5240
    %v5311 = vadd.bf16 %v5081, %v5247
    %v5312 = vadd.bf16 %v5082, %v5254
    %v5313 = vadd.bf16 %v5083, %v5261
    %v5314 = vadd.bf16 %v5084, %v5268
    %v5315 = vadd.bf16 %v5085, %v5275
    %v5316 = vadd.bf16 %v5086, %v5282
    %v5317 = vadd.bf16 %v5087, %v5289
    %v5318 = vadd.bf16 %v5088, %v5296
    %v5319 = vadd.bf16 %v5089, %v5303
    %v5320 = vmax.bf16 %v5304, 0
    %v5321 = vmax.bf16 %v5305, 0
    %v5322 = vmax.bf16 %v5306, 0
    %v5323 = vmax.bf16 %v5307, 0
    %v5324 = vmax.bf16 %v5308, 0
    %v5325 = vmax.bf16 %v5309, 0
    %v5326 = vmax.bf16 %v5310, 0
    %v5327 = vmax.bf16 %v5311, 0
    %v5328 = vmax.bf16 %v5312, 0
    %v5329 = vmax.bf16 %v5313, 0
    %v5330 = vmax.bf16 %v5314, 0
    %v5331 = vmax.bf16 %v5315, 0
    %v5332 = vmax.bf16 %v5316, 0
    %v5333 = vmax.bf16 %v5317, 0
    %v5334 = vmax.bf16 %v5318, 0
    %v5335 = vmax.bf16 %v5319, 0
    %v5336 = vld [vmem:[#allocation14] sm:$0xf]
    %v5337 = vld [vmem:[#allocation14 + $0x4] sm:$0xf]
    %v5338 = vld [vmem:[#allocation14 + $0x8] sm:$0xf]
    %v5339 = vld [vmem:[#allocation14 + $0xc] sm:$0xf]
    %v5340 = vld [vmem:[#allocation14 + $0x10] sm:$0xf]
    %v5341 = vld [vmem:[#allocation14 + $0x14] sm:$0xf]
    %v5342 = vld [vmem:[#allocation14 + $0x18] sm:$0xf]
    %v5343 = vld [vmem:[#allocation14 + $0x1c] sm:$0xf]
    %v5344 = vld [vmem:[#allocation14 + $0x20] sm:$0xf]
    %v5345 = vld [vmem:[#allocation14 + $0x24] sm:$0xf]
    %v5346 = vld [vmem:[#allocation14 + $0x28] sm:$0xf]
    %v5347 = vld [vmem:[#allocation14 + $0x2c] sm:$0xf]
    %v5348 = vld [vmem:[#allocation14 + $0x30] sm:$0xf]
    %v5349 = vld [vmem:[#allocation14 + $0x34] sm:$0xf]
    %v5350 = vld [vmem:[#allocation14 + $0x38] sm:$0xf]
    %v5351 = vld [vmem:[#allocation14 + $0x3c] sm:$0xf]
    %v5352 = vld [vmem:[#allocation14 + $0x40] sm:$0xf]
    %v5353 = vld [vmem:[#allocation14 + $0x44] sm:$0xf]
    %v5354 = vld [vmem:[#allocation14 + $0x48] sm:$0xf]
    %v5355 = vld [vmem:[#allocation14 + $0x4c] sm:$0xf]
    %v5356 = vld [vmem:[#allocation14 + $0x50] sm:$0xf]
    %v5357 = vld [vmem:[#allocation14 + $0x54] sm:$0xf]
    %v5358 = vld [vmem:[#allocation14 + $0x58] sm:$0xf]
    %v5359 = vld [vmem:[#allocation14 + $0x5c] sm:$0xf]
    %v5360 = vld [vmem:[#allocation14 + $0x60] sm:$0xf]
    %v5361 = vld [vmem:[#allocation14 + $0x64] sm:$0xf]
    %v5362 = vld [vmem:[#allocation14 + $0x68] sm:$0xf]
    %v5363 = vld [vmem:[#allocation14 + $0x6c] sm:$0xf]
    %v5364 = vld [vmem:[#allocation14 + $0x70] sm:$0xf]
    %v5365 = vld [vmem:[#allocation14 + $0x74] sm:$0xf]
    %v5366 = vld [vmem:[#allocation14 + $0x78] sm:$0xf]
    %v5367 = vld [vmem:[#allocation14 + $0x7c] sm:$0xf]
    %v5368 = vld [vmem:[#allocation14 + $0x80] sm:$0xf]
    %v5369 = vld [vmem:[#allocation14 + $0x84] sm:$0xf]
    %v5370 = vld [vmem:[#allocation14 + $0x88] sm:$0xf]
    %v5371 = vld [vmem:[#allocation14 + $0x8c] sm:$0xf]
    %v5372 = vld [vmem:[#allocation14 + $0x90] sm:$0xf]
    %v5373 = vld [vmem:[#allocation14 + $0x94] sm:$0xf]
    %v5374 = vld [vmem:[#allocation14 + $0x98] sm:$0xf]
    %v5375 = vld [vmem:[#allocation14 + $0x9c] sm:$0xf]
    %v5376 = vld [vmem:[#allocation14 + $0xa0] sm:$0xf]
    %v5377 = vld [vmem:[#allocation14 + $0xa4] sm:$0xf]
    %v5378 = vld [vmem:[#allocation14 + $0xa8] sm:$0xf]
    %v5379 = vld [vmem:[#allocation14 + $0xac] sm:$0xf]
    %v5380 = vld [vmem:[#allocation14 + $0xb0] sm:$0xf]
    %v5381 = vld [vmem:[#allocation14 + $0xb4] sm:$0xf]
    %v5382 = vld [vmem:[#allocation14 + $0xb8] sm:$0xf]
    %v5383 = vld [vmem:[#allocation14 + $0xbc] sm:$0xf]
    %v5384 = vld [vmem:[#allocation14 + $0xc0] sm:$0xf]
    %v5385 = vld [vmem:[#allocation14 + $0xc4] sm:$0xf]
    %v5386 = vld [vmem:[#allocation14 + $0xc8] sm:$0xf]
    %v5387 = vld [vmem:[#allocation14 + $0xcc] sm:$0xf]
    %v5388 = vld [vmem:[#allocation14 + $0xd0] sm:$0xf]
    %v5389 = vld [vmem:[#allocation14 + $0xd4] sm:$0xf]
    %v5390 = vld [vmem:[#allocation14 + $0xd8] sm:$0xf]
    %v5391 = vld [vmem:[#allocation14 + $0xdc] sm:$0xf]
    %v5392 = vld [vmem:[#allocation14 + $0xe0] sm:$0xf]
    %v5393 = vld [vmem:[#allocation14 + $0xe4] sm:$0xf]
    %v5394 = vld [vmem:[#allocation14 + $0xe8] sm:$0xf]
    %v5395 = vld [vmem:[#allocation14 + $0xec] sm:$0xf]
    %v5396 = vld [vmem:[#allocation14 + $0xf0] sm:$0xf]
    %v5397 = vld [vmem:[#allocation14 + $0xf4] sm:$0xf]
    %v5398 = vld [vmem:[#allocation14 + $0xf8] sm:$0xf]
    %v5399 = vld [vmem:[#allocation14 + $0xfc] sm:$0xf]
    %v5400 = vld [vmem:[#allocation14 + $0x100] sm:$0xf]
    %v5401 = vld [vmem:[#allocation14 + $0x104] sm:$0xf]
    %v5402 = vld [vmem:[#allocation14 + $0x108] sm:$0xf]
    %v5403 = vld [vmem:[#allocation14 + $0x10c] sm:$0xf]
    %v5404 = vld [vmem:[#allocation14 + $0x110] sm:$0xf]
    %v5405 = vld [vmem:[#allocation14 + $0x114] sm:$0xf]
    %v5406 = vld [vmem:[#allocation14 + $0x118] sm:$0xf]
    %v5407 = vld [vmem:[#allocation14 + $0x11c] sm:$0xf]
    %v5408 = vld [vmem:[#allocation14 + $0x120] sm:$0xf]
    %v5409 = vld [vmem:[#allocation14 + $0x124] sm:$0xf]
    %v5410 = vld [vmem:[#allocation14 + $0x128] sm:$0xf]
    %v5411 = vld [vmem:[#allocation14 + $0x12c] sm:$0xf]
    %v5412 = vld [vmem:[#allocation14 + $0x130] sm:$0xf]
    %v5413 = vld [vmem:[#allocation14 + $0x134] sm:$0xf]
    %v5414 = vld [vmem:[#allocation14 + $0x138] sm:$0xf]
    %v5415 = vld [vmem:[#allocation14 + $0x13c] sm:$0xf]
    %v5416 = vld [vmem:[#allocation14 + $0x140] sm:$0xf]
    %v5417 = vld [vmem:[#allocation14 + $0x144] sm:$0xf]
    %v5418 = vld [vmem:[#allocation14 + $0x148] sm:$0xf]
    %v5419 = vld [vmem:[#allocation14 + $0x14c] sm:$0xf]
    %v5420 = vld [vmem:[#allocation14 + $0x150] sm:$0xf]
    %v5421 = vld [vmem:[#allocation14 + $0x154] sm:$0xf]
    %v5422 = vld [vmem:[#allocation14 + $0x158] sm:$0xf]
    %v5423 = vld [vmem:[#allocation14 + $0x15c] sm:$0xf]
    %v5424 = vld [vmem:[#allocation14 + $0x160] sm:$0xf]
    %v5425 = vld [vmem:[#allocation14 + $0x164] sm:$0xf]
    %v5426 = vld [vmem:[#allocation14 + $0x168] sm:$0xf]
    %v5427 = vld [vmem:[#allocation14 + $0x16c] sm:$0xf]
    %v5428 = vld [vmem:[#allocation14 + $0x170] sm:$0xf]
    %v5429 = vld [vmem:[#allocation14 + $0x174] sm:$0xf]
    %v5430 = vld [vmem:[#allocation14 + $0x178] sm:$0xf]
    %v5431 = vld [vmem:[#allocation14 + $0x17c] sm:$0xf]
    %v5432 = vld [vmem:[#allocation14 + $0x180] sm:$0xf]
    %v5433 = vld [vmem:[#allocation14 + $0x184] sm:$0xf]
    %v5434 = vld [vmem:[#allocation14 + $0x188] sm:$0xf]
    %v5435 = vld [vmem:[#allocation14 + $0x18c] sm:$0xf]
    %v5436 = vld [vmem:[#allocation14 + $0x190] sm:$0xf]
    %v5437 = vld [vmem:[#allocation14 + $0x194] sm:$0xf]
    %v5438 = vld [vmem:[#allocation14 + $0x198] sm:$0xf]
    %v5439 = vld [vmem:[#allocation14 + $0x19c] sm:$0xf]
    %v5440 = vld [vmem:[#allocation14 + $0x1a0] sm:$0xf]
    %v5441 = vld [vmem:[#allocation14 + $0x1a4] sm:$0xf]
    %v5442 = vld [vmem:[#allocation14 + $0x1a8] sm:$0xf]
    %v5443 = vld [vmem:[#allocation14 + $0x1ac] sm:$0xf]
    %v5444 = vld [vmem:[#allocation14 + $0x1b0] sm:$0xf]
    %v5445 = vld [vmem:[#allocation14 + $0x1b4] sm:$0xf]
    %v5446 = vld [vmem:[#allocation14 + $0x1b8] sm:$0xf]
    %v5447 = vld [vmem:[#allocation14 + $0x1bc] sm:$0xf]
    %v5448 = vld [vmem:[#allocation14 + $0x1c0] sm:$0xf]
    %v5449 = vld [vmem:[#allocation14 + $0x1c4] sm:$0xf]
    %v5450 = vld [vmem:[#allocation14 + $0x1c8] sm:$0xf]
    %v5451 = vld [vmem:[#allocation14 + $0x1cc] sm:$0xf]
    %v5452 = vld [vmem:[#allocation14 + $0x1d0] sm:$0xf]
    %v5453 = vld [vmem:[#allocation14 + $0x1d4] sm:$0xf]
    %v5454 = vld [vmem:[#allocation14 + $0x1d8] sm:$0xf]
    %v5455 = vld [vmem:[#allocation14 + $0x1dc] sm:$0xf]
    %v5456 = vld [vmem:[#allocation14 + $0x1e0] sm:$0xf]
    %v5457 = vld [vmem:[#allocation14 + $0x1e4] sm:$0xf]
    %v5458 = vld [vmem:[#allocation14 + $0x1e8] sm:$0xf]
    %v5459 = vld [vmem:[#allocation14 + $0x1ec] sm:$0xf]
    %v5460 = vld [vmem:[#allocation14 + $0x1f0] sm:$0xf]
    %v5461 = vld [vmem:[#allocation14 + $0x1f4] sm:$0xf]
    %v5462 = vld [vmem:[#allocation14 + $0x1f8] sm:$0xf]
    %v5463 = vld [vmem:[#allocation14 + $0x1fc] sm:$0xf]
    %v5464 = vld [vmem:[#allocation14 + $0x200] sm:$0xf]
    %v5465 = vld [vmem:[#allocation14 + $0x204] sm:$0xf]
    %v5466 = vld [vmem:[#allocation14 + $0x208] sm:$0xf]
    %v5467 = vld [vmem:[#allocation14 + $0x20c] sm:$0xf]
    %v5468 = vld [vmem:[#allocation14 + $0x210] sm:$0xf]
    %v5469 = vld [vmem:[#allocation14 + $0x214] sm:$0xf]
    %v5470 = vld [vmem:[#allocation14 + $0x218] sm:$0xf]
    %v5471 = vld [vmem:[#allocation14 + $0x21c] sm:$0xf]
    %v5472 = vld [vmem:[#allocation14 + $0x220] sm:$0xf]
    %v5473 = vld [vmem:[#allocation14 + $0x224] sm:$0xf]
    %v5474 = vld [vmem:[#allocation14 + $0x228] sm:$0xf]
    %v5475 = vld [vmem:[#allocation14 + $0x22c] sm:$0xf]
    %v5476 = vld [vmem:[#allocation14 + $0x230] sm:$0xf]
    %v5477 = vld [vmem:[#allocation14 + $0x234] sm:$0xf]
    %v5478 = vld [vmem:[#allocation14 + $0x238] sm:$0xf]
    %v5479 = vld [vmem:[#allocation14 + $0x23c] sm:$0xf]
    %v5480 = vld [vmem:[#allocation14 + $0x240] sm:$0xf]
    %v5481 = vld [vmem:[#allocation14 + $0x244] sm:$0xf]
    %v5482 = vld [vmem:[#allocation14 + $0x248] sm:$0xf]
    %v5483 = vld [vmem:[#allocation14 + $0x24c] sm:$0xf]
    %v5484 = vld [vmem:[#allocation14 + $0x250] sm:$0xf]
    %v5485 = vld [vmem:[#allocation14 + $0x254] sm:$0xf]
    %v5486 = vld [vmem:[#allocation14 + $0x258] sm:$0xf]
    %v5487 = vld [vmem:[#allocation14 + $0x25c] sm:$0xf]
    %v5488 = vld [vmem:[#allocation14 + $0x260] sm:$0xf]
    %v5489 = vld [vmem:[#allocation14 + $0x264] sm:$0xf]
    %v5490 = vld [vmem:[#allocation14 + $0x268] sm:$0xf]
    %v5491 = vld [vmem:[#allocation14 + $0x26c] sm:$0xf]
    %v5492 = vld [vmem:[#allocation14 + $0x270] sm:$0xf]
    %v5493 = vld [vmem:[#allocation14 + $0x274] sm:$0xf]
    %v5494 = vld [vmem:[#allocation14 + $0x278] sm:$0xf]
    %v5495 = vld [vmem:[#allocation14 + $0x27c] sm:$0xf]
    %v5496 = vld [vmem:[#allocation14 + $0x280] sm:$0xf]
    %v5497 = vld [vmem:[#allocation14 + $0x284] sm:$0xf]
    %v5498 = vld [vmem:[#allocation14 + $0x288] sm:$0xf]
    %v5499 = vld [vmem:[#allocation14 + $0x28c] sm:$0xf]
    %v5500 = vld [vmem:[#allocation14 + $0x290] sm:$0xf]
    %v5501 = vld [vmem:[#allocation14 + $0x294] sm:$0xf]
    %v5502 = vld [vmem:[#allocation14 + $0x298] sm:$0xf]
    %v5503 = vld [vmem:[#allocation14 + $0x29c] sm:$0xf]
    %v5504 = vld [vmem:[#allocation14 + $0x2a0] sm:$0xf]
    %v5505 = vld [vmem:[#allocation14 + $0x2a4] sm:$0xf]
    %v5506 = vld [vmem:[#allocation14 + $0x2a8] sm:$0xf]
    %v5507 = vld [vmem:[#allocation14 + $0x2ac] sm:$0xf]
    %v5508 = vld [vmem:[#allocation14 + $0x2b0] sm:$0xf]
    %v5509 = vld [vmem:[#allocation14 + $0x2b4] sm:$0xf]
    %v5510 = vld [vmem:[#allocation14 + $0x2b8] sm:$0xf]
    %v5511 = vld [vmem:[#allocation14 + $0x2bc] sm:$0xf]
    %v5512 = vld [vmem:[#allocation14 + $0x2c0] sm:$0xf]
    %v5513 = vld [vmem:[#allocation14 + $0x2c4] sm:$0xf]
    %v5514 = vld [vmem:[#allocation14 + $0x2c8] sm:$0xf]
    %v5515 = vld [vmem:[#allocation14 + $0x2cc] sm:$0xf]
    %v5516 = vld [vmem:[#allocation14 + $0x2d0] sm:$0xf]
    %v5517 = vld [vmem:[#allocation14 + $0x2d4] sm:$0xf]
    %v5518 = vld [vmem:[#allocation14 + $0x2d8] sm:$0xf]
    %v5519 = vld [vmem:[#allocation14 + $0x2dc] sm:$0xf]
    %v5520 = vld [vmem:[#allocation14 + $0x2e0] sm:$0xf]
    %v5521 = vld [vmem:[#allocation14 + $0x2e4] sm:$0xf]
    %v5522 = vld [vmem:[#allocation14 + $0x2e8] sm:$0xf]
    %v5523 = vld [vmem:[#allocation14 + $0x2ec] sm:$0xf]
    %v5524 = vld [vmem:[#allocation14 + $0x2f0] sm:$0xf]
    %v5525 = vld [vmem:[#allocation14 + $0x2f4] sm:$0xf]
    %v5526 = vld [vmem:[#allocation14 + $0x2f8] sm:$0xf]
    %v5527 = vld [vmem:[#allocation14 + $0x2fc] sm:$0xf]
    %v5528 = vld [vmem:[#allocation14 + $0x300] sm:$0xf]
    %v5529 = vld [vmem:[#allocation14 + $0x304] sm:$0xf]
    %v5530 = vld [vmem:[#allocation14 + $0x308] sm:$0xf]
    %v5531 = vld [vmem:[#allocation14 + $0x30c] sm:$0xf]
    %v5532 = vld [vmem:[#allocation14 + $0x310] sm:$0xf]
    %v5533 = vld [vmem:[#allocation14 + $0x314] sm:$0xf]
    %v5534 = vld [vmem:[#allocation14 + $0x318] sm:$0xf]
    %v5535 = vld [vmem:[#allocation14 + $0x31c] sm:$0xf]
    %v5536 = vld [vmem:[#allocation14 + $0x320] sm:$0xf]
    %v5537 = vld [vmem:[#allocation14 + $0x324] sm:$0xf]
    %v5538 = vld [vmem:[#allocation14 + $0x328] sm:$0xf]
    %v5539 = vld [vmem:[#allocation14 + $0x32c] sm:$0xf]
    %v5540 = vld [vmem:[#allocation14 + $0x330] sm:$0xf]
    %v5541 = vld [vmem:[#allocation14 + $0x334] sm:$0xf]
    %v5542 = vld [vmem:[#allocation14 + $0x338] sm:$0xf]
    %v5543 = vld [vmem:[#allocation14 + $0x33c] sm:$0xf]
    %v5544 = vld [vmem:[#allocation14 + $0x340] sm:$0xf]
    %v5545 = vld [vmem:[#allocation14 + $0x344] sm:$0xf]
    %v5546 = vld [vmem:[#allocation14 + $0x348] sm:$0xf]
    %v5547 = vld [vmem:[#allocation14 + $0x34c] sm:$0xf]
    %v5548 = vld [vmem:[#allocation14 + $0x350] sm:$0xf]
    %v5549 = vld [vmem:[#allocation14 + $0x354] sm:$0xf]
    %v5550 = vld [vmem:[#allocation14 + $0x358] sm:$0xf]
    %v5551 = vld [vmem:[#allocation14 + $0x35c] sm:$0xf]
    %v5552 = vld [vmem:[#allocation14 + $0x360] sm:$0xf]
    %v5553 = vld [vmem:[#allocation14 + $0x364] sm:$0xf]
    %v5554 = vld [vmem:[#allocation14 + $0x368] sm:$0xf]
    %v5555 = vld [vmem:[#allocation14 + $0x36c] sm:$0xf]
    %v5556 = vld [vmem:[#allocation14 + $0x370] sm:$0xf]
    %v5557 = vld [vmem:[#allocation14 + $0x374] sm:$0xf]
    %v5558 = vld [vmem:[#allocation14 + $0x378] sm:$0xf]
    %v5559 = vld [vmem:[#allocation14 + $0x37c] sm:$0xf]
    %v5560 = vld [vmem:[#allocation14 + $0x380] sm:$0xf]
    %v5561 = vld [vmem:[#allocation14 + $0x384] sm:$0xf]
    %v5562 = vld [vmem:[#allocation14 + $0x388] sm:$0xf]
    %v5563 = vld [vmem:[#allocation14 + $0x38c] sm:$0xf]
    %v5564 = vld [vmem:[#allocation14 + $0x390] sm:$0xf]
    %v5565 = vld [vmem:[#allocation14 + $0x394] sm:$0xf]
    %v5566 = vld [vmem:[#allocation14 + $0x398] sm:$0xf]
    %v5567 = vld [vmem:[#allocation14 + $0x39c] sm:$0xf]
    %v5568 = vld [vmem:[#allocation14 + $0x3a0] sm:$0xf]
    %v5569 = vld [vmem:[#allocation14 + $0x3a4] sm:$0xf]
    %v5570 = vld [vmem:[#allocation14 + $0x3a8] sm:$0xf]
    %v5571 = vld [vmem:[#allocation14 + $0x3ac] sm:$0xf]
    %v5572 = vld [vmem:[#allocation14 + $0x3b0] sm:$0xf]
    %v5573 = vld [vmem:[#allocation14 + $0x3b4] sm:$0xf]
    %v5574 = vld [vmem:[#allocation14 + $0x3b8] sm:$0xf]
    %v5575 = vld [vmem:[#allocation14 + $0x3bc] sm:$0xf]
    %v5576 = vld [vmem:[#allocation14 + $0x3c0] sm:$0xf]
    %v5577 = vld [vmem:[#allocation14 + $0x3c4] sm:$0xf]
    %v5578 = vld [vmem:[#allocation14 + $0x3c8] sm:$0xf]
    %v5579 = vld [vmem:[#allocation14 + $0x3cc] sm:$0xf]
    %v5580 = vld [vmem:[#allocation14 + $0x3d0] sm:$0xf]
    %v5581 = vld [vmem:[#allocation14 + $0x3d4] sm:$0xf]
    %v5582 = vld [vmem:[#allocation14 + $0x3d8] sm:$0xf]
    %v5583 = vld [vmem:[#allocation14 + $0x3dc] sm:$0xf]
    %v5584 = vld [vmem:[#allocation14 + $0x3e0] sm:$0xf]
    %v5585 = vld [vmem:[#allocation14 + $0x3e4] sm:$0xf]
    %v5586 = vld [vmem:[#allocation14 + $0x3e8] sm:$0xf]
    %v5587 = vld [vmem:[#allocation14 + $0x3ec] sm:$0xf]
    %v5588 = vld [vmem:[#allocation14 + $0x3f0] sm:$0xf]
    %v5589 = vld [vmem:[#allocation14 + $0x3f4] sm:$0xf]
    %v5590 = vld [vmem:[#allocation14 + $0x3f8] sm:$0xf]
    %v5591 = vld [vmem:[#allocation14 + $0x3fc] sm:$0xf]
    %v5592 = vld [vmem:[#allocation16] sm:$0x1]
    %v5594 = vlaneseq
    %v5595 = vshrl.u32 %v5594, 7
    %v5596 = vsub.s32 0, %v5595
    %v5597 = vrot.slane %v5592, %v5596
    %v5855 = vunpack.c.l.b16 %v5336
    %v5856 = vunpack.c.l.b16 %v5337
    %v5857 = vunpack.c.l.b16 %v5338
    %v5858 = vunpack.c.l.b16 %v5339
    %v5859 = vunpack.c.l.b16 %v5340
    %v5860 = vunpack.c.l.b16 %v5341
    %v5861 = vunpack.c.l.b16 %v5342
    %v5862 = vunpack.c.l.b16 %v5343
    %v5863 = vunpack.c.l.b16 %v5344
    %v5864 = vunpack.c.l.b16 %v5345
    %v5865 = vunpack.c.l.b16 %v5346
    %v5866 = vunpack.c.l.b16 %v5347
    %v5867 = vunpack.c.l.b16 %v5348
    %v5868 = vunpack.c.l.b16 %v5349
    %v5869 = vunpack.c.l.b16 %v5350
    %v5870 = vunpack.c.l.b16 %v5351
    %v5871 = vunpack.c.l.b16 %v5352
    %v5872 = vunpack.c.l.b16 %v5353
    %v5873 = vunpack.c.l.b16 %v5354
    %v5874 = vunpack.c.l.b16 %v5355
    %v5875 = vunpack.c.l.b16 %v5356
    %v5876 = vunpack.c.l.b16 %v5357
    %v5877 = vunpack.c.l.b16 %v5358
    %v5878 = vunpack.c.l.b16 %v5359
    %v5879 = vunpack.c.l.b16 %v5360
    %v5880 = vunpack.c.l.b16 %v5361
    %v5881 = vunpack.c.l.b16 %v5362
    %v5882 = vunpack.c.l.b16 %v5363
    %v5883 = vunpack.c.l.b16 %v5364
    %v5884 = vunpack.c.l.b16 %v5365
    %v5885 = vunpack.c.l.b16 %v5366
    %v5886 = vunpack.c.l.b16 %v5367
    %v5887 = vunpack.c.l.b16 %v5368
    %v5888 = vunpack.c.l.b16 %v5369
    %v5889 = vunpack.c.l.b16 %v5370
    %v5890 = vunpack.c.l.b16 %v5371
    %v5891 = vunpack.c.l.b16 %v5372
    %v5892 = vunpack.c.l.b16 %v5373
    %v5893 = vunpack.c.l.b16 %v5374
    %v5894 = vunpack.c.l.b16 %v5375
    %v5895 = vunpack.c.l.b16 %v5376
    %v5896 = vunpack.c.l.b16 %v5377
    %v5897 = vunpack.c.l.b16 %v5378
    %v5898 = vunpack.c.l.b16 %v5379
    %v5899 = vunpack.c.l.b16 %v5380
    %v5900 = vunpack.c.l.b16 %v5381
    %v5901 = vunpack.c.l.b16 %v5382
    %v5902 = vunpack.c.l.b16 %v5383
    %v5903 = vunpack.c.l.b16 %v5384
    %v5904 = vunpack.c.l.b16 %v5385
    %v5905 = vunpack.c.l.b16 %v5386
    %v5906 = vunpack.c.l.b16 %v5387
    %v5907 = vunpack.c.l.b16 %v5388
    %v5908 = vunpack.c.l.b16 %v5389
    %v5909 = vunpack.c.l.b16 %v5390
    %v5910 = vunpack.c.l.b16 %v5391
    %v5911 = vunpack.c.l.b16 %v5392
    %v5912 = vunpack.c.l.b16 %v5393
    %v5913 = vunpack.c.l.b16 %v5394
    %v5914 = vunpack.c.l.b16 %v5395
    %v5915 = vunpack.c.l.b16 %v5396
    %v5916 = vunpack.c.l.b16 %v5397
    %v5917 = vunpack.c.l.b16 %v5398
    %v5918 = vunpack.c.l.b16 %v5399
    %v5919 = vunpack.c.l.b16 %v5400
    %v5920 = vunpack.c.l.b16 %v5401
    %v5921 = vunpack.c.l.b16 %v5402
    %v5922 = vunpack.c.l.b16 %v5403
    %v5923 = vunpack.c.l.b16 %v5404
    %v5924 = vunpack.c.l.b16 %v5405
    %v5925 = vunpack.c.l.b16 %v5406
    %v5926 = vunpack.c.l.b16 %v5407
    %v5927 = vunpack.c.l.b16 %v5408
    %v5928 = vunpack.c.l.b16 %v5409
    %v5929 = vunpack.c.l.b16 %v5410
    %v5930 = vunpack.c.l.b16 %v5411
    %v5931 = vunpack.c.l.b16 %v5412
    %v5932 = vunpack.c.l.b16 %v5413
    %v5933 = vunpack.c.l.b16 %v5414
    %v5934 = vunpack.c.l.b16 %v5415
    %v5935 = vunpack.c.l.b16 %v5416
    %v5936 = vunpack.c.l.b16 %v5417
    %v5937 = vunpack.c.l.b16 %v5418
    %v5938 = vunpack.c.l.b16 %v5419
    %v5939 = vunpack.c.l.b16 %v5420
    %v5940 = vunpack.c.l.b16 %v5421
    %v5941 = vunpack.c.l.b16 %v5422
    %v5942 = vunpack.c.l.b16 %v5423
    %v5943 = vunpack.c.l.b16 %v5424
    %v5944 = vunpack.c.l.b16 %v5425
    %v5945 = vunpack.c.l.b16 %v5426
    %v5946 = vunpack.c.l.b16 %v5427
    %v5947 = vunpack.c.l.b16 %v5428
    %v5948 = vunpack.c.l.b16 %v5429
    %v5949 = vunpack.c.l.b16 %v5430
    %v5950 = vunpack.c.l.b16 %v5431
    %v5951 = vunpack.c.l.b16 %v5432
    %v5952 = vunpack.c.l.b16 %v5433
    %v5953 = vunpack.c.l.b16 %v5434
    %v5954 = vunpack.c.l.b16 %v5435
    %v5955 = vunpack.c.l.b16 %v5436
    %v5956 = vunpack.c.l.b16 %v5437
    %v5957 = vunpack.c.l.b16 %v5438
    %v5958 = vunpack.c.l.b16 %v5439
    %v5959 = vunpack.c.l.b16 %v5440
    %v5960 = vunpack.c.l.b16 %v5441
    %v5961 = vunpack.c.l.b16 %v5442
    %v5962 = vunpack.c.l.b16 %v5443
    %v5963 = vunpack.c.l.b16 %v5444
    %v5964 = vunpack.c.l.b16 %v5445
    %v5965 = vunpack.c.l.b16 %v5446
    %v5966 = vunpack.c.l.b16 %v5447
    %v5967 = vunpack.c.l.b16 %v5448
    %v5968 = vunpack.c.l.b16 %v5449
    %v5969 = vunpack.c.l.b16 %v5450
    %v5970 = vunpack.c.l.b16 %v5451
    %v5971 = vunpack.c.l.b16 %v5452
    %v5972 = vunpack.c.l.b16 %v5453
    %v5973 = vunpack.c.l.b16 %v5454
    %v5974 = vunpack.c.l.b16 %v5455
    %v5975 = vunpack.c.l.b16 %v5456
    %v5976 = vunpack.c.l.b16 %v5457
    %v5977 = vunpack.c.l.b16 %v5458
    %v5978 = vunpack.c.l.b16 %v5459
    %v5979 = vunpack.c.l.b16 %v5460
    %v5980 = vunpack.c.l.b16 %v5461
    %v5981 = vunpack.c.l.b16 %v5462
    %v5982 = vunpack.c.l.b16 %v5463
    %v5983 = vunpack.c.l.b16 %v5464
    %v5984 = vunpack.c.l.b16 %v5465
    %v5985 = vunpack.c.l.b16 %v5466
    %v5986 = vunpack.c.l.b16 %v5467
    %v5987 = vunpack.c.l.b16 %v5468
    %v5988 = vunpack.c.l.b16 %v5469
    %v5989 = vunpack.c.l.b16 %v5470
    %v5990 = vunpack.c.l.b16 %v5471
    %v5991 = vunpack.c.l.b16 %v5472
    %v5992 = vunpack.c.l.b16 %v5473
    %v5993 = vunpack.c.l.b16 %v5474
    %v5994 = vunpack.c.l.b16 %v5475
    %v5995 = vunpack.c.l.b16 %v5476
    %v5996 = vunpack.c.l.b16 %v5477
    %v5997 = vunpack.c.l.b16 %v5478
    %v5998 = vunpack.c.l.b16 %v5479
    %v5999 = vunpack.c.l.b16 %v5480
    %v6000 = vunpack.c.l.b16 %v5481
    %v6001 = vunpack.c.l.b16 %v5482
    %v6002 = vunpack.c.l.b16 %v5483
    %v6003 = vunpack.c.l.b16 %v5484
    %v6004 = vunpack.c.l.b16 %v5485
    %v6005 = vunpack.c.l.b16 %v5486
    %v6006 = vunpack.c.l.b16 %v5487
    %v6007 = vunpack.c.l.b16 %v5488
    %v6008 = vunpack.c.l.b16 %v5489
    %v6009 = vunpack.c.l.b16 %v5490
    %v6010 = vunpack.c.l.b16 %v5491
    %v6011 = vunpack.c.l.b16 %v5492
    %v6012 = vunpack.c.l.b16 %v5493
    %v6013 = vunpack.c.l.b16 %v5494
    %v6014 = vunpack.c.l.b16 %v5495
    %v6015 = vunpack.c.l.b16 %v5496
    %v6016 = vunpack.c.l.b16 %v5497
    %v6017 = vunpack.c.l.b16 %v5498
    %v6018 = vunpack.c.l.b16 %v5499
    %v6019 = vunpack.c.l.b16 %v5500
    %v6020 = vunpack.c.l.b16 %v5501
    %v6021 = vunpack.c.l.b16 %v5502
    %v6022 = vunpack.c.l.b16 %v5503
    %v6023 = vunpack.c.l.b16 %v5504
    %v6024 = vunpack.c.l.b16 %v5505
    %v6025 = vunpack.c.l.b16 %v5506
    %v6026 = vunpack.c.l.b16 %v5507
    %v6027 = vunpack.c.l.b16 %v5508
    %v6028 = vunpack.c.l.b16 %v5509
    %v6029 = vunpack.c.l.b16 %v5510
    %v6030 = vunpack.c.l.b16 %v5511
    %v6031 = vunpack.c.l.b16 %v5512
    %v6032 = vunpack.c.l.b16 %v5513
    %v6033 = vunpack.c.l.b16 %v5514
    %v6034 = vunpack.c.l.b16 %v5515
    %v6035 = vunpack.c.l.b16 %v5516
    %v6036 = vunpack.c.l.b16 %v5517
    %v6037 = vunpack.c.l.b16 %v5518
    %v6038 = vunpack.c.l.b16 %v5519
    %v6039 = vunpack.c.l.b16 %v5520
    %v6040 = vunpack.c.l.b16 %v5521
    %v6041 = vunpack.c.l.b16 %v5522
    %v6042 = vunpack.c.l.b16 %v5523
    %v6043 = vunpack.c.l.b16 %v5524
    %v6044 = vunpack.c.l.b16 %v5525
    %v6045 = vunpack.c.l.b16 %v5526
    %v6046 = vunpack.c.l.b16 %v5527
    %v6047 = vunpack.c.l.b16 %v5528
    %v6048 = vunpack.c.l.b16 %v5529
    %v6049 = vunpack.c.l.b16 %v5530
    %v6050 = vunpack.c.l.b16 %v5531
    %v6051 = vunpack.c.l.b16 %v5532
    %v6052 = vunpack.c.l.b16 %v5533
    %v6053 = vunpack.c.l.b16 %v5534
    %v6054 = vunpack.c.l.b16 %v5535
    %v6055 = vunpack.c.l.b16 %v5536
    %v6056 = vunpack.c.l.b16 %v5537
    %v6057 = vunpack.c.l.b16 %v5538
    %v6058 = vunpack.c.l.b16 %v5539
    %v6059 = vunpack.c.l.b16 %v5540
    %v6060 = vunpack.c.l.b16 %v5541
    %v6061 = vunpack.c.l.b16 %v5542
    %v6062 = vunpack.c.l.b16 %v5543
    %v6063 = vunpack.c.l.b16 %v5544
    %v6064 = vunpack.c.l.b16 %v5545
    %v6065 = vunpack.c.l.b16 %v5546
    %v6066 = vunpack.c.l.b16 %v5547
    %v6067 = vunpack.c.l.b16 %v5548
    %v6068 = vunpack.c.l.b16 %v5549
    %v6069 = vunpack.c.l.b16 %v5550
    %v6070 = vunpack.c.l.b16 %v5551
    %v6071 = vunpack.c.l.b16 %v5552
    %v6072 = vunpack.c.l.b16 %v5553
    %v6073 = vunpack.c.l.b16 %v5554
    %v6074 = vunpack.c.l.b16 %v5555
    %v6075 = vunpack.c.l.b16 %v5556
    %v6076 = vunpack.c.l.b16 %v5557
    %v6077 = vunpack.c.l.b16 %v5558
    %v6078 = vunpack.c.l.b16 %v5559
    %v6079 = vunpack.c.l.b16 %v5560
    %v6080 = vunpack.c.l.b16 %v5561
    %v6081 = vunpack.c.l.b16 %v5562
    %v6082 = vunpack.c.l.b16 %v5563
    %v6083 = vunpack.c.l.b16 %v5564
    %v6084 = vunpack.c.l.b16 %v5565
    %v6085 = vunpack.c.l.b16 %v5566
    %v6086 = vunpack.c.l.b16 %v5567
    %v6087 = vunpack.c.l.b16 %v5568
    %v6088 = vunpack.c.l.b16 %v5569
    %v6089 = vunpack.c.l.b16 %v5570
    %v6090 = vunpack.c.l.b16 %v5571
    %v6091 = vunpack.c.l.b16 %v5572
    %v6092 = vunpack.c.l.b16 %v5573
    %v6093 = vunpack.c.l.b16 %v5574
    %v6094 = vunpack.c.l.b16 %v5575
    %v6095 = vunpack.c.l.b16 %v5576
    %v6096 = vunpack.c.l.b16 %v5577
    %v6097 = vunpack.c.l.b16 %v5578
    %v6098 = vunpack.c.l.b16 %v5579
    %v6099 = vunpack.c.l.b16 %v5580
    %v6100 = vunpack.c.l.b16 %v5581
    %v6101 = vunpack.c.l.b16 %v5582
    %v6102 = vunpack.c.l.b16 %v5583
    %v6103 = vunpack.c.l.b16 %v5584
    %v6104 = vunpack.c.l.b16 %v5585
    %v6105 = vunpack.c.l.b16 %v5586
    %v6106 = vunpack.c.l.b16 %v5587
    %v6107 = vunpack.c.l.b16 %v5588
    %v6108 = vunpack.c.l.b16 %v5589
    %v6109 = vunpack.c.l.b16 %v5590
    %v6110 = vunpack.c.l.b16 %v5591
    %v6111 = vpack.c.b16 %v5856, %v5855
    %v6112 = vpack.c.b16 %v5858, %v5857
    %v6113 = vpack.c.b16 %v5860, %v5859
    %v6114 = vpack.c.b16 %v5862, %v5861
    %v6115 = vpack.c.b16 %v5864, %v5863
    %v6116 = vpack.c.b16 %v5866, %v5865
    %v6117 = vpack.c.b16 %v5868, %v5867
    %v6118 = vpack.c.b16 %v5870, %v5869
    %v6119 = vpack.c.b16 %v5872, %v5871
    %v6120 = vpack.c.b16 %v5874, %v5873
    %v6121 = vpack.c.b16 %v5876, %v5875
    %v6122 = vpack.c.b16 %v5878, %v5877
    %v6123 = vpack.c.b16 %v5880, %v5879
    %v6124 = vpack.c.b16 %v5882, %v5881
    %v6125 = vpack.c.b16 %v5884, %v5883
    %v6126 = vpack.c.b16 %v5886, %v5885
    %v6127 = vpack.c.b16 %v5888, %v5887
    %v6128 = vpack.c.b16 %v5890, %v5889
    %v6129 = vpack.c.b16 %v5892, %v5891
    %v6130 = vpack.c.b16 %v5894, %v5893
    %v6131 = vpack.c.b16 %v5896, %v5895
    %v6132 = vpack.c.b16 %v5898, %v5897
    %v6133 = vpack.c.b16 %v5900, %v5899
    %v6134 = vpack.c.b16 %v5902, %v5901
    %v6135 = vpack.c.b16 %v5904, %v5903
    %v6136 = vpack.c.b16 %v5906, %v5905
    %v6137 = vpack.c.b16 %v5908, %v5907
    %v6138 = vpack.c.b16 %v5910, %v5909
    %v6139 = vpack.c.b16 %v5912, %v5911
    %v6140 = vpack.c.b16 %v5914, %v5913
    %v6141 = vpack.c.b16 %v5916, %v5915
    %v6142 = vpack.c.b16 %v5918, %v5917
    %v6143 = vpack.c.b16 %v5920, %v5919
    %v6144 = vpack.c.b16 %v5922, %v5921
    %v6145 = vpack.c.b16 %v5924, %v5923
    %v6146 = vpack.c.b16 %v5926, %v5925
    %v6147 = vpack.c.b16 %v5928, %v5927
    %v6148 = vpack.c.b16 %v5930, %v5929
    %v6149 = vpack.c.b16 %v5932, %v5931
    %v6150 = vpack.c.b16 %v5934, %v5933
    %v6151 = vpack.c.b16 %v5936, %v5935
    %v6152 = vpack.c.b16 %v5938, %v5937
    %v6153 = vpack.c.b16 %v5940, %v5939
    %v6154 = vpack.c.b16 %v5942, %v5941
    %v6155 = vpack.c.b16 %v5944, %v5943
    %v6156 = vpack.c.b16 %v5946, %v5945
    %v6157 = vpack.c.b16 %v5948, %v5947
    %v6158 = vpack.c.b16 %v5950, %v5949
    %v6159 = vpack.c.b16 %v5952, %v5951
    %v6160 = vpack.c.b16 %v5954, %v5953
    %v6161 = vpack.c.b16 %v5956, %v5955
    %v6162 = vpack.c.b16 %v5958, %v5957
    %v6163 = vpack.c.b16 %v5960, %v5959
    %v6164 = vpack.c.b16 %v5962, %v5961
    %v6165 = vpack.c.b16 %v5964, %v5963
    %v6166 = vpack.c.b16 %v5966, %v5965
    %v6167 = vpack.c.b16 %v5968, %v5967
    %v6168 = vpack.c.b16 %v5970, %v5969
    %v6169 = vpack.c.b16 %v5972, %v5971
    %v6170 = vpack.c.b16 %v5974, %v5973
    %v6171 = vpack.c.b16 %v5976, %v5975
    %v6172 = vpack.c.b16 %v5978, %v5977
    %v6173 = vpack.c.b16 %v5980, %v5979
    %v6174 = vpack.c.b16 %v5982, %v5981
    %v6175 = vpack.c.b16 %v5984, %v5983
    %v6176 = vpack.c.b16 %v5986, %v5985
    %v6177 = vpack.c.b16 %v5988, %v5987
    %v6178 = vpack.c.b16 %v5990, %v5989
    %v6179 = vpack.c.b16 %v5992, %v5991
    %v6180 = vpack.c.b16 %v5994, %v5993
    %v6181 = vpack.c.b16 %v5996, %v5995
    %v6182 = vpack.c.b16 %v5998, %v5997
    %v6183 = vpack.c.b16 %v6000, %v5999
    %v6184 = vpack.c.b16 %v6002, %v6001
    %v6185 = vpack.c.b16 %v6004, %v6003
    %v6186 = vpack.c.b16 %v6006, %v6005
    %v6187 = vpack.c.b16 %v6008, %v6007
    %v6188 = vpack.c.b16 %v6010, %v6009
    %v6189 = vpack.c.b16 %v6012, %v6011
    %v6190 = vpack.c.b16 %v6014, %v6013
    %v6191 = vpack.c.b16 %v6016, %v6015
    %v6192 = vpack.c.b16 %v6018, %v6017
    %v6193 = vpack.c.b16 %v6020, %v6019
    %v6194 = vpack.c.b16 %v6022, %v6021
    %v6195 = vpack.c.b16 %v6024, %v6023
    %v6196 = vpack.c.b16 %v6026, %v6025
    %v6197 = vpack.c.b16 %v6028, %v6027
    %v6198 = vpack.c.b16 %v6030, %v6029
    %v6199 = vpack.c.b16 %v6032, %v6031
    %v6200 = vpack.c.b16 %v6034, %v6033
    %v6201 = vpack.c.b16 %v6036, %v6035
    %v6202 = vpack.c.b16 %v6038, %v6037
    %v6203 = vpack.c.b16 %v6040, %v6039
    %v6204 = vpack.c.b16 %v6042, %v6041
    %v6205 = vpack.c.b16 %v6044, %v6043
    %v6206 = vpack.c.b16 %v6046, %v6045
    %v6207 = vpack.c.b16 %v6048, %v6047
    %v6208 = vpack.c.b16 %v6050, %v6049
    %v6209 = vpack.c.b16 %v6052, %v6051
    %v6210 = vpack.c.b16 %v6054, %v6053
    %v6211 = vpack.c.b16 %v6056, %v6055
    %v6212 = vpack.c.b16 %v6058, %v6057
    %v6213 = vpack.c.b16 %v6060, %v6059
    %v6214 = vpack.c.b16 %v6062, %v6061
    %v6215 = vpack.c.b16 %v6064, %v6063
    %v6216 = vpack.c.b16 %v6066, %v6065
    %v6217 = vpack.c.b16 %v6068, %v6067
    %v6218 = vpack.c.b16 %v6070, %v6069
    %v6219 = vpack.c.b16 %v6072, %v6071
    %v6220 = vpack.c.b16 %v6074, %v6073
    %v6221 = vpack.c.b16 %v6076, %v6075
    %v6222 = vpack.c.b16 %v6078, %v6077
    %v6223 = vpack.c.b16 %v6080, %v6079
    %v6224 = vpack.c.b16 %v6082, %v6081
    %v6225 = vpack.c.b16 %v6084, %v6083
    %v6226 = vpack.c.b16 %v6086, %v6085
    %v6227 = vpack.c.b16 %v6088, %v6087
    %v6228 = vpack.c.b16 %v6090, %v6089
    %v6229 = vpack.c.b16 %v6092, %v6091
    %v6230 = vpack.c.b16 %v6094, %v6093
    %v6231 = vpack.c.b16 %v6096, %v6095
    %v6232 = vpack.c.b16 %v6098, %v6097
    %v6233 = vpack.c.b16 %v6100, %v6099
    %v6234 = vpack.c.b16 %v6102, %v6101
    %v6235 = vpack.c.b16 %v6104, %v6103
    %v6236 = vpack.c.b16 %v6106, %v6105
    %v6237 = vpack.c.b16 %v6108, %v6107
    %v6238 = vpack.c.b16 %v6110, %v6109
    %6367 = vmatprep.subr.bf16.mxu0 0
    %6368 = vmatpush1.bf16.msra.mxu0 %v6111
    %6369 = vmatprep.subr.bf16.mxu0 0
    %6370 = vmatpush1.bf16.msra.mxu0 %v6112
    %6371 = vmatprep.subr.bf16.mxu0 0
    %6372 = vmatpush1.bf16.msra.mxu0 %v6113
    %6373 = vmatprep.subr.bf16.mxu0 0
    %6374 = vmatpush1.bf16.msra.mxu0 %v6114
    %6375 = vmatprep.subr.bf16.mxu0 0
    %6376 = vmatpush1.bf16.msra.mxu0 %v6115
    %6377 = vmatprep.subr.bf16.mxu0 0
    %6378 = vmatpush1.bf16.msra.mxu0 %v6116
    %6379 = vmatprep.subr.bf16.mxu0 0
    %6380 = vmatpush1.bf16.msra.mxu0 %v6117
    %6381 = vmatprep.subr.bf16.mxu0 0
    %6382 = vmatpush1.bf16.msra.mxu0 %v6118
    %6383 = vmatprep.subr.bf16.mxu0 0
    %6384 = vmatpush1.bf16.msra.mxu0 %v6119
    %6385 = vmatprep.subr.bf16.mxu0 0
    %6386 = vmatpush1.bf16.msra.mxu0 %v6120
    %6387 = vmatprep.subr.bf16.mxu0 0
    %6388 = vmatpush1.bf16.msra.mxu0 %v6121
    %6389 = vmatprep.subr.bf16.mxu0 0
    %6390 = vmatpush1.bf16.msra.mxu0 %v6122
    %6391 = vmatprep.subr.bf16.mxu0 0
    %6392 = vmatpush1.bf16.msra.mxu0 %v6123
    %6393 = vmatprep.subr.bf16.mxu0 0
    %6394 = vmatpush1.bf16.msra.mxu0 %v6124
    %6395 = vmatprep.subr.bf16.mxu0 0
    %6396 = vmatpush1.bf16.msra.mxu0 %v6125
    %6397 = vmatprep.subr.bf16.mxu0 0
    %6398 = vmatpush1.bf16.msra.mxu0 %v6126
    %6399 = vmatprep.mubr.bf16.mxu0 %v5321
    %6400 = vmatmul.mubr.bf16.gmra.mrb[0].mxu0 %v5320
    %v6401 = vpop.f32.mrb[0].mxu0
    %v6402 = vadd.f32 %v5597, %v6401
    %v6403 = vpop.f32.mrb[0].mxu0
    %v6404 = vpop.f32.mrb[0].mxu0
    %v6405 = vpop.f32.mrb[0].mxu0
    %6406 = vdwg.mxu0
    %6407 = vmatprep.subr.bf16.mxu0 0
    %6408 = vmatpush1.bf16.msra.mxu0 %v6127
    %6409 = vmatprep.subr.bf16.mxu0 0
    %6410 = vmatpush1.bf16.msra.mxu0 %v6128
    %6411 = vmatprep.subr.bf16.mxu0 0
    %6412 = vmatpush1.bf16.msra.mxu0 %v6129
    %6413 = vmatprep.subr.bf16.mxu0 0
    %6414 = vmatpush1.bf16.msra.mxu0 %v6130
    %6415 = vmatprep.subr.bf16.mxu0 0
    %6416 = vmatpush1.bf16.msra.mxu0 %v6131
    %6417 = vmatprep.subr.bf16.mxu0 0
    %6418 = vmatpush1.bf16.msra.mxu0 %v6132
    %6419 = vmatprep.subr.bf16.mxu0 0
    %6420 = vmatpush1.bf16.msra.mxu0 %v6133
    %6421 = vmatprep.subr.bf16.mxu0 0
    %6422 = vmatpush1.bf16.msra.mxu0 %v6134
    %6423 = vmatprep.subr.bf16.mxu0 0
    %6424 = vmatpush1.bf16.msra.mxu0 %v6135
    %6425 = vmatprep.subr.bf16.mxu0 0
    %6426 = vmatpush1.bf16.msra.mxu0 %v6136
    %6427 = vmatprep.subr.bf16.mxu0 0
    %6428 = vmatpush1.bf16.msra.mxu0 %v6137
    %6429 = vmatprep.subr.bf16.mxu0 0
    %6430 = vmatpush1.bf16.msra.mxu0 %v6138
    %6431 = vmatprep.subr.bf16.mxu0 0
    %6432 = vmatpush1.bf16.msra.mxu0 %v6139
    %6433 = vmatprep.subr.bf16.mxu0 0
    %6434 = vmatpush1.bf16.msra.mxu0 %v6140
    %6435 = vmatprep.subr.bf16.mxu0 0
    %6436 = vmatpush1.bf16.msra.mxu0 %v6141
    %6437 = vmatprep.subr.bf16.mxu0 0
    %6438 = vmatpush1.bf16.msra.mxu0 %v6142
    %6439 = vmatprep.mubr.bf16.mxu0 %v5323
    %6440 = vmatmul.mubr.bf16.gmra.mrb[0].mxu0 %v5322
    %v6441 = vpop.f32.mrb[0].mxu0
    %v6442 = vadd.f32 %v6402, %v6441
    %v6443 = vpop.f32.mrb[0].mxu0
    %v6444 = vpop.f32.mrb[0].mxu0
    %v6445 = vpop.f32.mrb[0].mxu0
    %6446 = vdwg.mxu0
    %6447 = vmatprep.subr.bf16.mxu0 0
    %6448 = vmatpush1.bf16.msra.mxu0 %v6143
    %6449 = vmatprep.subr.bf16.mxu0 0
    %6450 = vmatpush1.bf16.msra.mxu0 %v6144
    %6451 = vmatprep.subr.bf16.mxu0 0
    %6452 = vmatpush1.bf16.msra.mxu0 %v6145
    %6453 = vmatprep.subr.bf16.mxu0 0
    %6454 = vmatpush1.bf16.msra.mxu0 %v6146
    %6455 = vmatprep.subr.bf16.mxu0 0
    %6456 = vmatpush1.bf16.msra.mxu0 %v6147
    %6457 = vmatprep.subr.bf16.mxu0 0
    %6458 = vmatpush1.bf16.msra.mxu0 %v6148
    %6459 = vmatprep.subr.bf16.mxu0 0
    %6460 = vmatpush1.bf16.msra.mxu0 %v6149
    %6461 = vmatprep.subr.bf16.mxu0 0
    %6462 = vmatpush1.bf16.msra.mxu0 %v6150
    %6463 = vmatprep.subr.bf16.mxu0 0
    %6464 = vmatpush1.bf16.msra.mxu0 %v6151
    %6465 = vmatprep.subr.bf16.mxu0 0
    %6466 = vmatpush1.bf16.msra.mxu0 %v6152
    %6467 = vmatprep.subr.bf16.mxu0 0
    %6468 = vmatpush1.bf16.msra.mxu0 %v6153
    %6469 = vmatprep.subr.bf16.mxu0 0
    %6470 = vmatpush1.bf16.msra.mxu0 %v6154
    %6471 = vmatprep.subr.bf16.mxu0 0
    %6472 = vmatpush1.bf16.msra.mxu0 %v6155
    %6473 = vmatprep.subr.bf16.mxu0 0
    %6474 = vmatpush1.bf16.msra.mxu0 %v6156
    %6475 = vmatprep.subr.bf16.mxu0 0
    %6476 = vmatpush1.bf16.msra.mxu0 %v6157
    %6477 = vmatprep.subr.bf16.mxu0 0
    %6478 = vmatpush1.bf16.msra.mxu0 %v6158
    %6479 = vmatprep.mubr.bf16.mxu0 %v5325
    %6480 = vmatmul.mubr.bf16.gmra.mrb[0].mxu0 %v5324
    %v6481 = vpop.f32.mrb[0].mxu0
    %v6482 = vadd.f32 %v6442, %v6481
    %v6483 = vpop.f32.mrb[0].mxu0
    %v6484 = vpop.f32.mrb[0].mxu0
    %v6485 = vpop.f32.mrb[0].mxu0
    %6486 = vdwg.mxu0
    %6487 = vmatprep.subr.bf16.mxu0 0
    %6488 = vmatpush1.bf16.msra.mxu0 %v6159
    %6489 = vmatprep.subr.bf16.mxu0 0
    %6490 = vmatpush1.bf16.msra.mxu0 %v6160
    %6491 = vmatprep.subr.bf16.mxu0 0
    %6492 = vmatpush1.bf16.msra.mxu0 %v6161
    %6493 = vmatprep.subr.bf16.mxu0 0
    %6494 = vmatpush1.bf16.msra.mxu0 %v6162
    %6495 = vmatprep.subr.bf16.mxu0 0
    %6496 = vmatpush1.bf16.msra.mxu0 %v6163
    %6497 = vmatprep.subr.bf16.mxu0 0
    %6498 = vmatpush1.bf16.msra.mxu0 %v6164
    %6499 = vmatprep.subr.bf16.mxu0 0
    %6500 = vmatpush1.bf16.msra.mxu0 %v6165
    %6501 = vmatprep.subr.bf16.mxu0 0
    %6502 = vmatpush1.bf16.msra.mxu0 %v6166
    %6503 = vmatprep.subr.bf16.mxu0 0
    %6504 = vmatpush1.bf16.msra.mxu0 %v6167
    %6505 = vmatprep.subr.bf16.mxu0 0
    %6506 = vmatpush1.bf16.msra.mxu0 %v6168
    %6507 = vmatprep.subr.bf16.mxu0 0
    %6508 = vmatpush1.bf16.msra.mxu0 %v6169
    %6509 = vmatprep.subr.bf16.mxu0 0
    %6510 = vmatpush1.bf16.msra.mxu0 %v6170
    %6511 = vmatprep.subr.bf16.mxu0 0
    %6512 = vmatpush1.bf16.msra.mxu0 %v6171
    %6513 = vmatprep.subr.bf16.mxu0 0
    %6514 = vmatpush1.bf16.msra.mxu0 %v6172
    %6515 = vmatprep.subr.bf16.mxu0 0
    %6516 = vmatpush1.bf16.msra.mxu0 %v6173
    %6517 = vmatprep.subr.bf16.mxu0 0
    %6518 = vmatpush1.bf16.msra.mxu0 %v6174
    %6519 = vmatprep.mubr.bf16.mxu0 %v5327
    %6520 = vmatmul.mubr.bf16.gmra.mrb[0].mxu0 %v5326
    %v6521 = vpop.f32.mrb[0].mxu0
    %v6522 = vadd.f32 %v6482, %v6521
    %v6523 = vpop.f32.mrb[0].mxu0
    %v6524 = vpop.f32.mrb[0].mxu0
    %v6525 = vpop.f32.mrb[0].mxu0
    %6526 = vdwg.mxu0
    %6527 = vmatprep.subr.bf16.mxu0 0
    %6528 = vmatpush1.bf16.msra.mxu0 %v6175
    %6529 = vmatprep.subr.bf16.mxu0 0
    %6530 = vmatpush1.bf16.msra.mxu0 %v6176
    %6531 = vmatprep.subr.bf16.mxu0 0
    %6532 = vmatpush1.bf16.msra.mxu0 %v6177
    %6533 = vmatprep.subr.bf16.mxu0 0
    %6534 = vmatpush1.bf16.msra.mxu0 %v6178
    %6535 = vmatprep.subr.bf16.mxu0 0
    %6536 = vmatpush1.bf16.msra.mxu0 %v6179
    %6537 = vmatprep.subr.bf16.mxu0 0
    %6538 = vmatpush1.bf16.msra.mxu0 %v6180
    %6539 = vmatprep.subr.bf16.mxu0 0
    %6540 = vmatpush1.bf16.msra.mxu0 %v6181
    %6541 = vmatprep.subr.bf16.mxu0 0
    %6542 = vmatpush1.bf16.msra.mxu0 %v6182
    %6543 = vmatprep.subr.bf16.mxu0 0
    %6544 = vmatpush1.bf16.msra.mxu0 %v6183
    %6545 = vmatprep.subr.bf16.mxu0 0
    %6546 = vmatpush1.bf16.msra.mxu0 %v6184
    %6547 = vmatprep.subr.bf16.mxu0 0
    %6548 = vmatpush1.bf16.msra.mxu0 %v6185
    %6549 = vmatprep.subr.bf16.mxu0 0
    %6550 = vmatpush1.bf16.msra.mxu0 %v6186
    %6551 = vmatprep.subr.bf16.mxu0 0
    %6552 = vmatpush1.bf16.msra.mxu0 %v6187
    %6553 = vmatprep.subr.bf16.mxu0 0
    %6554 = vmatpush1.bf16.msra.mxu0 %v6188
    %6555 = vmatprep.subr.bf16.mxu0 0
    %6556 = vmatpush1.bf16.msra.mxu0 %v6189
    %6557 = vmatprep.subr.bf16.mxu0 0
    %6558 = vmatpush1.bf16.msra.mxu0 %v6190
    %6559 = vmatprep.mubr.bf16.mxu0 %v5329
    %6560 = vmatmul.mubr.bf16.gmra.mrb[0].mxu0 %v5328
    %v6561 = vpop.f32.mrb[0].mxu0
    %v6562 = vadd.f32 %v6522, %v6561
    %v6563 = vpop.f32.mrb[0].mxu0
    %v6564 = vpop.f32.mrb[0].mxu0
    %v6565 = vpop.f32.mrb[0].mxu0
    %6566 = vdwg.mxu0
    %6567 = vmatprep.subr.bf16.mxu0 0
    %6568 = vmatpush1.bf16.msra.mxu0 %v6191
    %6569 = vmatprep.subr.bf16.mxu0 0
    %6570 = vmatpush1.bf16.msra.mxu0 %v6192
    %6571 = vmatprep.subr.bf16.mxu0 0
    %6572 = vmatpush1.bf16.msra.mxu0 %v6193
    %6573 = vmatprep.subr.bf16.mxu0 0
    %6574 = vmatpush1.bf16.msra.mxu0 %v6194
    %6575 = vmatprep.subr.bf16.mxu0 0
    %6576 = vmatpush1.bf16.msra.mxu0 %v6195
    %6577 = vmatprep.subr.bf16.mxu0 0
    %6578 = vmatpush1.bf16.msra.mxu0 %v6196
    %6579 = vmatprep.subr.bf16.mxu0 0
    %6580 = vmatpush1.bf16.msra.mxu0 %v6197
    %6581 = vmatprep.subr.bf16.mxu0 0
    %6582 = vmatpush1.bf16.msra.mxu0 %v6198
    %6583 = vmatprep.subr.bf16.mxu0 0
    %6584 = vmatpush1.bf16.msra.mxu0 %v6199
    %6585 = vmatprep.subr.bf16.mxu0 0
    %6586 = vmatpush1.bf16.msra.mxu0 %v6200
    %6587 = vmatprep.subr.bf16.mxu0 0
    %6588 = vmatpush1.bf16.msra.mxu0 %v6201
    %6589 = vmatprep.subr.bf16.mxu0 0
    %6590 = vmatpush1.bf16.msra.mxu0 %v6202
    %6591 = vmatprep.subr.bf16.mxu0 0
    %6592 = vmatpush1.bf16.msra.mxu0 %v6203
    %6593 = vmatprep.subr.bf16.mxu0 0
    %6594 = vmatpush1.bf16.msra.mxu0 %v6204
    %6595 = vmatprep.subr.bf16.mxu0 0
    %6596 = vmatpush1.bf16.msra.mxu0 %v6205
    %6597 = vmatprep.subr.bf16.mxu0 0
    %6598 = vmatpush1.bf16.msra.mxu0 %v6206
    %6599 = vmatprep.mubr.bf16.mxu0 %v5331
    %6600 = vmatmul.mubr.bf16.gmra.mrb[0].mxu0 %v5330
    %v6601 = vpop.f32.mrb[0].mxu0
    %v6602 = vadd.f32 %v6562, %v6601
    %v6603 = vpop.f32.mrb[0].mxu0
    %v6604 = vpop.f32.mrb[0].mxu0
    %v6605 = vpop.f32.mrb[0].mxu0
    %6606 = vdwg.mxu0
    %6607 = vmatprep.subr.bf16.mxu0 0
    %6608 = vmatpush1.bf16.msra.mxu0 %v6207
    %6609 = vmatprep.subr.bf16.mxu0 0
    %6610 = vmatpush1.bf16.msra.mxu0 %v6208
    %6611 = vmatprep.subr.bf16.mxu0 0
    %6612 = vmatpush1.bf16.msra.mxu0 %v6209
    %6613 = vmatprep.subr.bf16.mxu0 0
    %6614 = vmatpush1.bf16.msra.mxu0 %v6210
    %6615 = vmatprep.subr.bf16.mxu0 0
    %6616 = vmatpush1.bf16.msra.mxu0 %v6211
    %6617 = vmatprep.subr.bf16.mxu0 0
    %6618 = vmatpush1.bf16.msra.mxu0 %v6212
    %6619 = vmatprep.subr.bf16.mxu0 0
    %6620 = vmatpush1.bf16.msra.mxu0 %v6213
    %6621 = vmatprep.subr.bf16.mxu0 0
    %6622 = vmatpush1.bf16.msra.mxu0 %v6214
    %6623 = vmatprep.subr.bf16.mxu0 0
    %6624 = vmatpush1.bf16.msra.mxu0 %v6215
    %6625 = vmatprep.subr.bf16.mxu0 0
    %6626 = vmatpush1.bf16.msra.mxu0 %v6216
    %6627 = vmatprep.subr.bf16.mxu0 0
    %6628 = vmatpush1.bf16.msra.mxu0 %v6217
    %6629 = vmatprep.subr.bf16.mxu0 0
    %6630 = vmatpush1.bf16.msra.mxu0 %v6218
    %6631 = vmatprep.subr.bf16.mxu0 0
    %6632 = vmatpush1.bf16.msra.mxu0 %v6219
    %6633 = vmatprep.subr.bf16.mxu0 0
    %6634 = vmatpush1.bf16.msra.mxu0 %v6220
    %6635 = vmatprep.subr.bf16.mxu0 0
    %6636 = vmatpush1.bf16.msra.mxu0 %v6221
    %6637 = vmatprep.subr.bf16.mxu0 0
    %6638 = vmatpush1.bf16.msra.mxu0 %v6222
    %6639 = vmatprep.mubr.bf16.mxu0 %v5333
    %6640 = vmatmul.mubr.bf16.gmra.mrb[0].mxu0 %v5332
    %v6641 = vpop.f32.mrb[0].mxu0
    %v6642 = vadd.f32 %v6602, %v6641
    %v6643 = vpop.f32.mrb[0].mxu0
    %v6644 = vpop.f32.mrb[0].mxu0
    %v6645 = vpop.f32.mrb[0].mxu0
    %6646 = vdwg.mxu0
    %6647 = vmatprep.subr.bf16.mxu0 0
    %6648 = vmatpush1.bf16.msra.mxu0 %v6223
    %6649 = vmatprep.subr.bf16.mxu0 0
    %6650 = vmatpush1.bf16.msra.mxu0 %v6224
    %6651 = vmatprep.subr.bf16.mxu0 0
    %6652 = vmatpush1.bf16.msra.mxu0 %v6225
    %6653 = vmatprep.subr.bf16.mxu0 0
    %6654 = vmatpush1.bf16.msra.mxu0 %v6226
    %6655 = vmatprep.subr.bf16.mxu0 0
    %6656 = vmatpush1.bf16.msra.mxu0 %v6227
    %6657 = vmatprep.subr.bf16.mxu0 0
    %6658 = vmatpush1.bf16.msra.mxu0 %v6228
    %6659 = vmatprep.subr.bf16.mxu0 0
    %6660 = vmatpush1.bf16.msra.mxu0 %v6229
    %6661 = vmatprep.subr.bf16.mxu0 0
    %6662 = vmatpush1.bf16.msra.mxu0 %v6230
    %6663 = vmatprep.subr.bf16.mxu0 0
    %6664 = vmatpush1.bf16.msra.mxu0 %v6231
    %6665 = vmatprep.subr.bf16.mxu0 0
    %6666 = vmatpush1.bf16.msra.mxu0 %v6232
    %6667 = vmatprep.subr.bf16.mxu0 0
    %6668 = vmatpush1.bf16.msra.mxu0 %v6233
    %6669 = vmatprep.subr.bf16.mxu0 0
    %6670 = vmatpush1.bf16.msra.mxu0 %v6234
    %6671 = vmatprep.subr.bf16.mxu0 0
    %6672 = vmatpush1.bf16.msra.mxu0 %v6235
    %6673 = vmatprep.subr.bf16.mxu0 0
    %6674 = vmatpush1.bf16.msra.mxu0 %v6236
    %6675 = vmatprep.subr.bf16.mxu0 0
    %6676 = vmatpush1.bf16.msra.mxu0 %v6237
    %6677 = vmatprep.subr.bf16.mxu0 0
    %6678 = vmatpush1.bf16.msra.mxu0 %v6238
    %6679 = vmatprep.mubr.bf16.mxu0 %v5335
    %6680 = vmatmul.mubr.bf16.gmra.mrb[0].mxu0 %v5334
    %v6681 = vpop.f32.mrb[0].mxu0
    %v6682 = vadd.f32 %v6642, %v6681
    %v6683 = vpop.f32.mrb[0].mxu0
    %v6684 = vpop.f32.mrb[0].mxu0
    %v6685 = vpop.f32.mrb[0].mxu0
    %6686 = vdwg.mxu0
    %6687 = vst [vmem:[#allocation17] sm:$0xff] %v6682
    // Predicated region
    $region74: #{encoder_forward.1} parent=1 // pred_check
      _
    $region75: #{encoder_forward.1} parent=1 // pred_check_branch
      %6689 = sbr.rel (0) target = $region77
    $region76: #{encoder_forward.1} parent=1 // pred_region
      %s6691 = ssub.s32 128, 128
      %6692 = vsyncadd [#allocation4], %s6691
      %s6694 = sshll.u32 [#allocation17], 4
      %s6695 = int_to_ptr.vmem [resolvable:$true] %s6694
      %6697 = dma.vmem_to_hbm [thread:$0]  %s6695, 128, %s9, [#allocation4]
    $region77: #{encoder_forward.1} parent=1 // pred_fallthru
      _
    // Predicated region
    $region78: #{encoder_forward.1} parent=1 // pred_check
      _
    $region79: #{encoder_forward.1} parent=1 // pred_check_branch
      %6699 = sbr.rel (0) target = $region81
    $region80: #{encoder_forward.1} parent=1 // pred_region
      %6700 = dma.done [#allocation4], 128
    $region81: #{encoder_forward.1} parent=1 // pred_fallthru
      _
    %6701 = vsyncpa [#allocation3], 1
    %6702 = vsyncpa [#allocation6], 1
    %6703 = vsyncpa [#allocation9], 1
    %6704 = vsyncpa [#allocation12], 1
    %6705 = vsyncpa [#allocation15], 1
    %6706 = vsyncpa [#allocation4], 1

</llo_original>
